<compile_context>
chip_gen: v6e
topology: v6e:2x2x1
jax: 0.10.0
libtpu: 0.0.40
codegen_flags: <defaults>
</compile_context>

<pallas_src>
import functools
import math

import jax
import jax.numpy as jnp
from jax.experimental import pallas as pl
from jax.experimental.pallas import tpu as pltpu


_PARAMS_PER_LAYER = 16


def _vmem_spec():
    return pl.BlockSpec(memory_space=pltpu.MemorySpace.VMEM)


def _layernorm(x, w, b, eps=1e-5):
    mu = jnp.mean(x, axis=-1, keepdims=True)
    var = jnp.mean((x - mu) ** 2, axis=-1, keepdims=True)
    return (x - mu) * jax.lax.rsqrt(var + eps) * w + b


def _transformer_net_kernel(*refs, S, N, H, L):
    """Fused forward: L x (self-attn + FFN, post-norm) + decoder, on (N*S, E)."""
    x_ref, o_ref = refs[0], refs[-1]
    prefs = refs[1:-1]
    E = x_ref.shape[-1]
    hd = E // H
    scale = 1.0 / math.sqrt(hd)

    # Causal additive mask — built ONCE, reused by every layer. Finite large
    # negative (instead of -inf): masked logits still underflow to exactly 0
    # after exp, but no inf-inf NaN hazard.
    row = jax.lax.broadcasted_iota(jnp.int32, (S, S), 0)
    col = jax.lax.broadcasted_iota(jnp.int32, (S, S), 1)
    mask = jnp.where(col <= row, 0.0, -1e30).astype(jnp.float32)[None, :, :]

    x = x_ref[...].astype(jnp.float32)                       # (N*S, E) activations

    for l in range(L):
        (wq, bq, wk, bk, wv, bv, wo, bo,
         w1, b1, w2, b2, ln1w, ln1b, ln2w, ln2b) = prefs[
            l * _PARAMS_PER_LAYER:(l + 1) * _PARAMS_PER_LAYER]

        # ---------------- self-attention (bf16 MXU operands, f32 math) -------
        x_bf = x.astype(jnp.bfloat16)
        q = jnp.dot(x_bf, wq[...], preferred_element_type=jnp.float32) + bq[...]
        k = jnp.dot(x_bf, wk[...], preferred_element_type=jnp.float32) + bk[...]
        v = jnp.dot(x_bf, wv[...], preferred_element_type=jnp.float32) + bv[...]

        attn = jnp.zeros((N * S, E), jnp.float32)
        for h in range(H):                                    # H small, unrolled
            qh = q[:, h * hd:(h + 1) * hd].reshape(N, S, hd).astype(jnp.bfloat16)
            kh = k[:, h * hd:(h + 1) * hd].reshape(N, S, hd).astype(jnp.bfloat16)
            vh = v[:, h * hd:(h + 1) * hd].reshape(N, S, hd).astype(jnp.bfloat16)
            # one batched contraction over the batch dim (no per-n unroll)
            s = jnp.einsum('bqd,bkd->bqk', qh, kh,
                           preferred_element_type=jnp.float32) * scale + mask
            s = s - jnp.max(s, axis=-1, keepdims=True)
            p = jnp.exp(s)
            p = p * pl.reciprocal(jnp.sum(p, axis=-1, keepdims=True), approx=True)
            ctx = jnp.einsum('bqk,bkd->bqd', p.astype(jnp.bfloat16), vh,
                             preferred_element_type=jnp.float32)   # (N, S, hd)
            # out-proj contribution of this head; wo is (H, hd, E) so wo[h] is an
            # aligned leading-dim load (no packed-sublane slicing, no concat).
            attn = attn + jnp.dot(ctx.reshape(N * S, hd).astype(jnp.bfloat16),
                                  wo[h], preferred_element_type=jnp.float32)
        attn = attn + bo[...]

        # residual + post-LayerNorm (f32); dropout = identity (eval mode)
        x1 = _layernorm(x + attn, ln1w[...], ln1b[...])

        # ---------------- feed-forward: linear1 -> ReLU -> linear2 -----------
        h1 = jnp.dot(x1.astype(jnp.bfloat16), w1[...],
                     preferred_element_type=jnp.float32) + b1[...]
        h1 = jnp.maximum(h1, 0.0)
        ff = jnp.dot(h1.astype(jnp.bfloat16), w2[...],
                     preferred_element_type=jnp.float32) + b2[...]
        x = _layernorm(x1 + ff, ln2w[...], ln2b[...])

    # ---------------- decoder (fused; lane-padded output) --------------------
    wd, bd = prefs[L * _PARAMS_PER_LAYER], prefs[L * _PARAMS_PER_LAYER + 1]
    o_ref[...] = jnp.dot(x.astype(jnp.bfloat16), wd[...],
                         preferred_element_type=jnp.float32) + bd[...]


def transformer_net_forward(x_sne, layer_params, dec_params, *, H, out_dim=10):
    """x_sne: (S, N, E) PyTorch layout (batch_first=False). Returns (S, N, out_dim)."""
    S, N, E = x_sne.shape
    L = len(layer_params)
    x_flat = jnp.transpose(x_sne, (1, 0, 2)).reshape(N * S, E)
    flat_params = [p for layer in layer_params for p in layer] + list(dec_params)
    out_pad = dec_params[0].shape[-1]
    kernel = functools.partial(_transformer_net_kernel, S=S, N=N, H=H, L=L)
    y_flat = pl.pallas_call(
        kernel,
        out_shape=jax.ShapeDtypeStruct((N * S, out_pad), jnp.float32),
        in_specs=[_vmem_spec()] * (1 + len(flat_params)),
        out_specs=_vmem_spec(),
    )(x_flat, *flat_params)
    y = y_flat[:, :out_dim].reshape(N, S, out_dim)
    return jnp.transpose(y, (1, 0, 2))


def init_params(key, E, num_layers, num_heads, ff=2048, out_dim=10, out_pad=128):
    """Deterministic synthetic init. PyTorch-convention shapes, transposed to
    matmul-ready (in, out) layout. Matmul weights pre-cast to bf16 (half DMA);
    biases / LayerNorm params stay f32. Out-proj weight stored as (H, hd, E);
    decoder weight/bias zero-padded to `out_pad` lanes."""
    hd = E // num_heads
    layer_params = []
    for _ in range(num_layers):
        key, *ks = jax.random.split(key, 9)
        w_in = jax.random.normal(ks[0], (3 * E, E), jnp.float32) * 0.05   # in_proj_weight
        b_in = jax.random.normal(ks[1], (3 * E,), jnp.float32) * 0.01
        wq, wk, wv = w_in[:E], w_in[E:2 * E], w_in[2 * E:]
        bq, bk, bv = b_in[:E], b_in[E:2 * E], b_in[2 * E:]
        wo = jax.random.normal(ks[2], (E, E), jnp.float32) * 0.05
        bo = jax.random.normal(ks[3], (E,), jnp.float32) * 0.01
        w1 = jax.random.normal(ks[4], (ff, E), jnp.float32) * 0.05
        b1 = jax.random.normal(ks[5], (ff,), jnp.float32) * 0.01
        w2 = jax.random.normal(ks[6], (E, ff), jnp.float32) * 0.05
        b2 = jax.random.normal(ks[7], (E,), jnp.float32) * 0.01
        ln1w = jnp.ones((E,), jnp.float32)
        ln1b = jnp.zeros((E,), jnp.float32)
        ln2w = jnp.ones((E,), jnp.float32)
        ln2b = jnp.zeros((E,), jnp.float32)
        layer_params.append((
            wq.T.astype(jnp.bfloat16), bq.reshape(1, -1),
            wk.T.astype(jnp.bfloat16), bk.reshape(1, -1),
            wv.T.astype(jnp.bfloat16), bv.reshape(1, -1),
            wo.T.reshape(num_heads, hd, E).astype(jnp.bfloat16), bo.reshape(1, -1),
            w1.T.astype(jnp.bfloat16), b1.reshape(1, -1),
            w2.T.astype(jnp.bfloat16), b2.reshape(1, -1),
            ln1w.reshape(1, -1), ln1b.reshape(1, -1),
            ln2w.reshape(1, -1), ln2b.reshape(1, -1),
        ))
    key, k1, k2 = jax.random.split(key, 3)
    wd = jax.random.normal(k1, (out_dim, E), jnp.float32) * 0.05   # decoder Linear(E, 10)
    bd = jax.random.normal(k2, (out_dim,), jnp.float32) * 0.01
    wd_pad = jnp.zeros((E, out_pad), jnp.float32).at[:, :out_dim].set(wd.T)
    bd_pad = jnp.zeros((1, out_pad), jnp.float32).at[:, :out_dim].set(bd.reshape(1, -1))
    return layer_params, (wd_pad.astype(jnp.bfloat16), bd_pad)


if __name__ == "__main__":
    # TransformerNet(feature_size=32, num_layers=2, num_heads=4); seq=8, batch=2
    S, N, E, L, H = 8, 2, 32, 2, 4
    key = jax.random.PRNGKey(0)
    key, kx, kp = jax.random.split(key, 3)
    x = jax.random.normal(kx, (S, N, E), jnp.float32)   # PyTorch layout (S, N, E)
    layer_params, dec_params = init_params(kp, E, L, H)
    fwd = jax.jit(functools.partial(transformer_net_forward, H=H, out_dim=10))
    y = fwd(x, layer_params, dec_params)
    jax.block_until_ready(y)
    assert y.shape == (S, N, 10) and y.dtype == jnp.float32
    assert bool(jnp.all(jnp.isfinite(y)))
    print("KERNEL_OK")
</pallas_src>

<mosaic_0001>
module attributes {stable_mosaic.version = 11 : i64} {
  func.func @_transformer_net_kernel(%arg0: memref<16x32xf32, #tpu.memory_space<vmem>>, %arg1: memref<32x32xbf16, #tpu.memory_space<vmem>>, %arg2: memref<1x32xf32, #tpu.memory_space<vmem>>, %arg3: memref<32x32xbf16, #tpu.memory_space<vmem>>, %arg4: memref<1x32xf32, #tpu.memory_space<vmem>>, %arg5: memref<32x32xbf16, #tpu.memory_space<vmem>>, %arg6: memref<1x32xf32, #tpu.memory_space<vmem>>, %arg7: memref<4x8x32xbf16, #tpu.memory_space<vmem>>, %arg8: memref<1x32xf32, #tpu.memory_space<vmem>>, %arg9: memref<32x2048xbf16, #tpu.memory_space<vmem>>, %arg10: memref<1x2048xf32, #tpu.memory_space<vmem>>, %arg11: memref<2048x32xbf16, #tpu.memory_space<vmem>>, %arg12: memref<1x32xf32, #tpu.memory_space<vmem>>, %arg13: memref<1x32xf32, #tpu.memory_space<vmem>>, %arg14: memref<1x32xf32, #tpu.memory_space<vmem>>, %arg15: memref<1x32xf32, #tpu.memory_space<vmem>>, %arg16: memref<1x32xf32, #tpu.memory_space<vmem>>, %arg17: memref<32x32xbf16, #tpu.memory_space<vmem>>, %arg18: memref<1x32xf32, #tpu.memory_space<vmem>>, %arg19: memref<32x32xbf16, #tpu.memory_space<vmem>>, %arg20: memref<1x32xf32, #tpu.memory_space<vmem>>, %arg21: memref<32x32xbf16, #tpu.memory_space<vmem>>, %arg22: memref<1x32xf32, #tpu.memory_space<vmem>>, %arg23: memref<4x8x32xbf16, #tpu.memory_space<vmem>>, %arg24: memref<1x32xf32, #tpu.memory_space<vmem>>, %arg25: memref<32x2048xbf16, #tpu.memory_space<vmem>>, %arg26: memref<1x2048xf32, #tpu.memory_space<vmem>>, %arg27: memref<2048x32xbf16, #tpu.memory_space<vmem>>, %arg28: memref<1x32xf32, #tpu.memory_space<vmem>>, %arg29: memref<1x32xf32, #tpu.memory_space<vmem>>, %arg30: memref<1x32xf32, #tpu.memory_space<vmem>>, %arg31: memref<1x32xf32, #tpu.memory_space<vmem>>, %arg32: memref<1x32xf32, #tpu.memory_space<vmem>>, %arg33: memref<32x128xbf16, #tpu.memory_space<vmem>>, %arg34: memref<1x128xf32, #tpu.memory_space<vmem>>, %arg35: memref<16x128xf32, #tpu.memory_space<vmem>>) attributes {dimension_semantics = [], scalar_prefetch = 0 : i64, scratch_operands = 0 : i64, tpu.core_type = #tpu.core_type<tc>} {
    %0 = tpu.iota {dimensions = array<i32: 0>} : vector<8x8xi32>
    %1 = tpu.iota {dimensions = array<i32: 1>} : vector<8x8xi32>
    %2 = arith.cmpi sle, %1, %0 : vector<8x8xi32>
    %cst = arith.constant 0.000000e+00 : f32
    %cst_0 = arith.constant -1.000000e+30 : f32
    %3 = vector.broadcast %cst : f32 to vector<8x8xf32>
    %4 = vector.broadcast %cst_0 : f32 to vector<8x8xf32>
    %5 = arith.select %2, %3, %4 : vector<8x8xi1>, vector<8x8xf32>
    %6 = vector.shape_cast %5 : vector<8x8xf32> to vector<1x8x8xf32>
    %c0 = arith.constant 0 : index
    %c0_1 = arith.constant 0 : index
    %7 = vector.load %arg0[%c0, %c0_1] : memref<16x32xf32, #tpu.memory_space<vmem>>, vector<16x32xf32>
    %8 = arith.truncf %7 : vector<16x32xf32> to vector<16x32xbf16>
    %c0_2 = arith.constant 0 : index
    %c0_3 = arith.constant 0 : index
    %9 = vector.load %arg1[%c0_2, %c0_3] : memref<32x32xbf16, #tpu.memory_space<vmem>>, vector<32x32xbf16>
    %cst_4 = arith.constant dense<0.000000e+00> : vector<16x32xf32>
    %10 = tpu.matmul %8, %9, %cst_4 {dimension_numbers = #tpu.dot_dimension_numbers<[1], [0], [0], [1], [0, 0, 1, 1], [], []>} : vector<16x32xbf16>, vector<32x32xbf16>, vector<16x32xf32> -> vector<16x32xf32>
    %c0_5 = arith.constant 0 : index
    %c0_6 = arith.constant 0 : index
    %11 = vector.load %arg2[%c0_5, %c0_6] : memref<1x32xf32, #tpu.memory_space<vmem>>, vector<1x32xf32>
    %12 = vector.broadcast %11 : vector<1x32xf32> to vector<16x32xf32>
    %13 = arith.addf %10, %12 : vector<16x32xf32>
    %c0_7 = arith.constant 0 : index
    %c0_8 = arith.constant 0 : index
    %14 = vector.load %arg3[%c0_7, %c0_8] : memref<32x32xbf16, #tpu.memory_space<vmem>>, vector<32x32xbf16>
    %cst_9 = arith.constant dense<0.000000e+00> : vector<16x32xf32>
    %15 = tpu.matmul %8, %14, %cst_9 {dimension_numbers = #tpu.dot_dimension_numbers<[1], [0], [0], [1], [0, 0, 1, 1], [], []>} : vector<16x32xbf16>, vector<32x32xbf16>, vector<16x32xf32> -> vector<16x32xf32>
    %c0_10 = arith.constant 0 : index
    %c0_11 = arith.constant 0 : index
    %16 = vector.load %arg4[%c0_10, %c0_11] : memref<1x32xf32, #tpu.memory_space<vmem>>, vector<1x32xf32>
    %17 = vector.broadcast %16 : vector<1x32xf32> to vector<16x32xf32>
    %18 = arith.addf %15, %17 : vector<16x32xf32>
    %c0_12 = arith.constant 0 : index
    %c0_13 = arith.constant 0 : index
    %19 = vector.load %arg5[%c0_12, %c0_13] : memref<32x32xbf16, #tpu.memory_space<vmem>>, vector<32x32xbf16>
    %cst_14 = arith.constant dense<0.000000e+00> : vector<16x32xf32>
    %20 = tpu.matmul %8, %19, %cst_14 {dimension_numbers = #tpu.dot_dimension_numbers<[1], [0], [0], [1], [0, 0, 1, 1], [], []>} : vector<16x32xbf16>, vector<32x32xbf16>, vector<16x32xf32> -> vector<16x32xf32>
    %c0_15 = arith.constant 0 : index
    %c0_16 = arith.constant 0 : index
    %21 = vector.load %arg6[%c0_15, %c0_16] : memref<1x32xf32, #tpu.memory_space<vmem>>, vector<1x32xf32>
    %22 = vector.broadcast %21 : vector<1x32xf32> to vector<16x32xf32>
    %23 = arith.addf %20, %22 : vector<16x32xf32>
    %cst_17 = arith.constant 0.000000e+00 : f32
    %24 = vector.broadcast %cst_17 : f32 to vector<16x32xf32>
    %25 = vector.extract_strided_slice %13 {offsets = [0, 0], sizes = [16, 8], strides = [1, 1]} : vector<16x32xf32> to vector<16x8xf32>
    %26 = vector.shape_cast %25 : vector<16x8xf32> to vector<2x8x8xf32>
    %27 = arith.truncf %26 : vector<2x8x8xf32> to vector<2x8x8xbf16>
    %28 = vector.extract_strided_slice %18 {offsets = [0, 0], sizes = [16, 8], strides = [1, 1]} : vector<16x32xf32> to vector<16x8xf32>
    %29 = vector.shape_cast %28 : vector<16x8xf32> to vector<2x8x8xf32>
    %30 = arith.truncf %29 : vector<2x8x8xf32> to vector<2x8x8xbf16>
    %31 = vector.extract_strided_slice %23 {offsets = [0, 0], sizes = [16, 8], strides = [1, 1]} : vector<16x32xf32> to vector<16x8xf32>
    %32 = vector.shape_cast %31 : vector<16x8xf32> to vector<2x8x8xf32>
    %33 = arith.truncf %32 : vector<2x8x8xf32> to vector<2x8x8xbf16>
    "tpu.trace_start"() <{level = 10 : i32, message = "bqd,bkd->bqk"}> : () -> ()
    %cst_18 = arith.constant dense<0.000000e+00> : vector<2x8x8xf32>
    %34 = tpu.matmul %27, %30, %cst_18 {dimension_numbers = #tpu.dot_dimension_numbers<[2], [2], [1], [1], [0, 0, 0, 1, 1, 1], [0], [0]>} : vector<2x8x8xbf16>, vector<2x8x8xbf16>, vector<2x8x8xf32> -> vector<2x8x8xf32>
    "tpu.trace_stop"() : () -> ()
    %cst_19 = arith.constant 0.353553385 : f32
    %35 = vector.broadcast %cst_19 : f32 to vector<2x8x8xf32>
    %36 = arith.mulf %34, %35 : vector<2x8x8xf32>
    %37 = vector.broadcast %6 : vector<1x8x8xf32> to vector<2x8x8xf32>
    %38 = arith.addf %36, %37 : vector<2x8x8xf32>
    %cst_20 = arith.constant dense<0xFF800000> : vector<2x8xf32>
    %39 = vector.multi_reduction <maximumf>, %38, %cst_20 [2] : vector<2x8x8xf32> to vector<2x8xf32>
    %40 = vector.shape_cast %39 : vector<2x8xf32> to vector<2x8x1xf32>
    %41 = vector.broadcast %40 : vector<2x8x1xf32> to vector<2x8x8xf32>
    %42 = arith.subf %38, %41 : vector<2x8x8xf32>
    %43 = math.exp %42 : vector<2x8x8xf32>
    %cst_21 = arith.constant dense<0.000000e+00> : vector<2x8xf32>
    %44 = vector.multi_reduction <add>, %43, %cst_21 [2] : vector<2x8x8xf32> to vector<2x8xf32>
    %45 = vector.shape_cast %44 : vector<2x8xf32> to vector<2x8x1xf32>
    %46 = tpu.reciprocal %45 {approx = true} : vector<2x8x1xf32> -> vector<2x8x1xf32>
    %47 = vector.broadcast %46 : vector<2x8x1xf32> to vector<2x8x8xf32>
    %48 = arith.mulf %43, %47 : vector<2x8x8xf32>
    %49 = arith.truncf %48 : vector<2x8x8xf32> to vector<2x8x8xbf16>
    "tpu.trace_start"() <{level = 10 : i32, message = "bqk,bkd->bqd"}> : () -> ()
    %cst_22 = arith.constant dense<0.000000e+00> : vector<2x8x8xf32>
    %50 = tpu.matmul %49, %33, %cst_22 {dimension_numbers = #tpu.dot_dimension_numbers<[2], [1], [1], [2], [0, 0, 0, 1, 1, 2], [0], [0]>} : vector<2x8x8xbf16>, vector<2x8x8xbf16>, vector<2x8x8xf32> -> vector<2x8x8xf32>
    "tpu.trace_stop"() : () -> ()
    %51 = vector.shape_cast %50 : vector<2x8x8xf32> to vector<16x8xf32>
    %52 = arith.truncf %51 : vector<16x8xf32> to vector<16x8xbf16>
    %c0_23 = arith.constant 0 : index
    %c0_24 = arith.constant 0 : index
    %c0_25 = arith.constant 0 : index
    %53 = vector.load %arg7[%c0_23, %c0_24, %c0_25] : memref<4x8x32xbf16, #tpu.memory_space<vmem>>, vector<1x8x32xbf16>
    %54 = vector.shape_cast %53 : vector<1x8x32xbf16> to vector<8x32xbf16>
    %cst_26 = arith.constant dense<0.000000e+00> : vector<16x32xf32>
    %55 = tpu.matmul %52, %54, %cst_26 {dimension_numbers = #tpu.dot_dimension_numbers<[1], [0], [0], [1], [0, 0, 1, 1], [], []>} : vector<16x8xbf16>, vector<8x32xbf16>, vector<16x32xf32> -> vector<16x32xf32>
    %56 = arith.addf %24, %55 : vector<16x32xf32>
    %57 = vector.extract_strided_slice %13 {offsets = [0, 8], sizes = [16, 8], strides = [1, 1]} : vector<16x32xf32> to vector<16x8xf32>
    %58 = vector.shape_cast %57 : vector<16x8xf32> to vector<2x8x8xf32>
    %59 = arith.truncf %58 : vector<2x8x8xf32> to vector<2x8x8xbf16>
    %60 = vector.extract_strided_slice %18 {offsets = [0, 8], sizes = [16, 8], strides = [1, 1]} : vector<16x32xf32> to vector<16x8xf32>
    %61 = vector.shape_cast %60 : vector<16x8xf32> to vector<2x8x8xf32>
    %62 = arith.truncf %61 : vector<2x8x8xf32> to vector<2x8x8xbf16>
    %63 = vector.extract_strided_slice %23 {offsets = [0, 8], sizes = [16, 8], strides = [1, 1]} : vector<16x32xf32> to vector<16x8xf32>
    %64 = vector.shape_cast %63 : vector<16x8xf32> to vector<2x8x8xf32>
    %65 = arith.truncf %64 : vector<2x8x8xf32> to vector<2x8x8xbf16>
    "tpu.trace_start"() <{level = 10 : i32, message = "bqd,bkd->bqk"}> : () -> ()
    %cst_27 = arith.constant dense<0.000000e+00> : vector<2x8x8xf32>
    %66 = tpu.matmul %59, %62, %cst_27 {dimension_numbers = #tpu.dot_dimension_numbers<[2], [2], [1], [1], [0, 0, 0, 1, 1, 1], [0], [0]>} : vector<2x8x8xbf16>, vector<2x8x8xbf16>, vector<2x8x8xf32> -> vector<2x8x8xf32>
    "tpu.trace_stop"() : () -> ()
    %cst_28 = arith.constant 0.353553385 : f32
    %67 = vector.broadcast %cst_28 : f32 to vector<2x8x8xf32>
    %68 = arith.mulf %66, %67 : vector<2x8x8xf32>
    %69 = vector.broadcast %6 : vector<1x8x8xf32> to vector<2x8x8xf32>
    %70 = arith.addf %68, %69 : vector<2x8x8xf32>
    %cst_29 = arith.constant dense<0xFF800000> : vector<2x8xf32>
    %71 = vector.multi_reduction <maximumf>, %70, %cst_29 [2] : vector<2x8x8xf32> to vector<2x8xf32>
    %72 = vector.shape_cast %71 : vector<2x8xf32> to vector<2x8x1xf32>
    %73 = vector.broadcast %72 : vector<2x8x1xf32> to vector<2x8x8xf32>
    %74 = arith.subf %70, %73 : vector<2x8x8xf32>
    %75 = math.exp %74 : vector<2x8x8xf32>
    %cst_30 = arith.constant dense<0.000000e+00> : vector<2x8xf32>
    %76 = vector.multi_reduction <add>, %75, %cst_30 [2] : vector<2x8x8xf32> to vector<2x8xf32>
    %77 = vector.shape_cast %76 : vector<2x8xf32> to vector<2x8x1xf32>
    %78 = tpu.reciprocal %77 {approx = true} : vector<2x8x1xf32> -> vector<2x8x1xf32>
    %79 = vector.broadcast %78 : vector<2x8x1xf32> to vector<2x8x8xf32>
    %80 = arith.mulf %75, %79 : vector<2x8x8xf32>
    %81 = arith.truncf %80 : vector<2x8x8xf32> to vector<2x8x8xbf16>
    "tpu.trace_start"() <{level = 10 : i32, message = "bqk,bkd->bqd"}> : () -> ()
    %cst_31 = arith.constant dense<0.000000e+00> : vector<2x8x8xf32>
    %82 = tpu.matmul %81, %65, %cst_31 {dimension_numbers = #tpu.dot_dimension_numbers<[2], [1], [1], [2], [0, 0, 0, 1, 1, 2], [0], [0]>} : vector<2x8x8xbf16>, vector<2x8x8xbf16>, vector<2x8x8xf32> -> vector<2x8x8xf32>
    "tpu.trace_stop"() : () -> ()
    %83 = vector.shape_cast %82 : vector<2x8x8xf32> to vector<16x8xf32>
    %84 = arith.truncf %83 : vector<16x8xf32> to vector<16x8xbf16>
    %c1 = arith.constant 1 : index
    %c0_32 = arith.constant 0 : index
    %c0_33 = arith.constant 0 : index
    %85 = vector.load %arg7[%c1, %c0_32, %c0_33] : memref<4x8x32xbf16, #tpu.memory_space<vmem>>, vector<1x8x32xbf16>
    %86 = vector.shape_cast %85 : vector<1x8x32xbf16> to vector<8x32xbf16>
    %cst_34 = arith.constant dense<0.000000e+00> : vector<16x32xf32>
    %87 = tpu.matmul %84, %86, %cst_34 {dimension_numbers = #tpu.dot_dimension_numbers<[1], [0], [0], [1], [0, 0, 1, 1], [], []>} : vector<16x8xbf16>, vector<8x32xbf16>, vector<16x32xf32> -> vector<16x32xf32>
    %88 = arith.addf %56, %87 : vector<16x32xf32>
    %89 = vector.extract_strided_slice %13 {offsets = [0, 16], sizes = [16, 8], strides = [1, 1]} : vector<16x32xf32> to vector<16x8xf32>
    %90 = vector.shape_cast %89 : vector<16x8xf32> to vector<2x8x8xf32>
    %91 = arith.truncf %90 : vector<2x8x8xf32> to vector<2x8x8xbf16>
    %92 = vector.extract_strided_slice %18 {offsets = [0, 16], sizes = [16, 8], strides = [1, 1]} : vector<16x32xf32> to vector<16x8xf32>
    %93 = vector.shape_cast %92 : vector<16x8xf32> to vector<2x8x8xf32>
    %94 = arith.truncf %93 : vector<2x8x8xf32> to vector<2x8x8xbf16>
    %95 = vector.extract_strided_slice %23 {offsets = [0, 16], sizes = [16, 8], strides = [1, 1]} : vector<16x32xf32> to vector<16x8xf32>
    %96 = vector.shape_cast %95 : vector<16x8xf32> to vector<2x8x8xf32>
    %97 = arith.truncf %96 : vector<2x8x8xf32> to vector<2x8x8xbf16>
    "tpu.trace_start"() <{level = 10 : i32, message = "bqd,bkd->bqk"}> : () -> ()
    %cst_35 = arith.constant dense<0.000000e+00> : vector<2x8x8xf32>
    %98 = tpu.matmul %91, %94, %cst_35 {dimension_numbers = #tpu.dot_dimension_numbers<[2], [2], [1], [1], [0, 0, 0, 1, 1, 1], [0], [0]>} : vector<2x8x8xbf16>, vector<2x8x8xbf16>, vector<2x8x8xf32> -> vector<2x8x8xf32>
    "tpu.trace_stop"() : () -> ()
    %cst_36 = arith.constant 0.353553385 : f32
    %99 = vector.broadcast %cst_36 : f32 to vector<2x8x8xf32>
    %100 = arith.mulf %98, %99 : vector<2x8x8xf32>
    %101 = vector.broadcast %6 : vector<1x8x8xf32> to vector<2x8x8xf32>
    %102 = arith.addf %100, %101 : vector<2x8x8xf32>
    %cst_37 = arith.constant dense<0xFF800000> : vector<2x8xf32>
    %103 = vector.multi_reduction <maximumf>, %102, %cst_37 [2] : vector<2x8x8xf32> to vector<2x8xf32>
    %104 = vector.shape_cast %103 : vector<2x8xf32> to vector<2x8x1xf32>
    %105 = vector.broadcast %104 : vector<2x8x1xf32> to vector<2x8x8xf32>
    %106 = arith.subf %102, %105 : vector<2x8x8xf32>
    %107 = math.exp %106 : vector<2x8x8xf32>
    %cst_38 = arith.constant dense<0.000000e+00> : vector<2x8xf32>
    %108 = vector.multi_reduction <add>, %107, %cst_38 [2] : vector<2x8x8xf32> to vector<2x8xf32>
    %109 = vector.shape_cast %108 : vector<2x8xf32> to vector<2x8x1xf32>
    %110 = tpu.reciprocal %109 {approx = true} : vector<2x8x1xf32> -> vector<2x8x1xf32>
    %111 = vector.broadcast %110 : vector<2x8x1xf32> to vector<2x8x8xf32>
    %112 = arith.mulf %107, %111 : vector<2x8x8xf32>
    %113 = arith.truncf %112 : vector<2x8x8xf32> to vector<2x8x8xbf16>
    "tpu.trace_start"() <{level = 10 : i32, message = "bqk,bkd->bqd"}> : () -> ()
    %cst_39 = arith.constant dense<0.000000e+00> : vector<2x8x8xf32>
    %114 = tpu.matmul %113, %97, %cst_39 {dimension_numbers = #tpu.dot_dimension_numbers<[2], [1], [1], [2], [0, 0, 0, 1, 1, 2], [0], [0]>} : vector<2x8x8xbf16>, vector<2x8x8xbf16>, vector<2x8x8xf32> -> vector<2x8x8xf32>
    "tpu.trace_stop"() : () -> ()
    %115 = vector.shape_cast %114 : vector<2x8x8xf32> to vector<16x8xf32>
    %116 = arith.truncf %115 : vector<16x8xf32> to vector<16x8xbf16>
    %c2 = arith.constant 2 : index
    %c0_40 = arith.constant 0 : index
    %c0_41 = arith.constant 0 : index
    %117 = vector.load %arg7[%c2, %c0_40, %c0_41] : memref<4x8x32xbf16, #tpu.memory_space<vmem>>, vector<1x8x32xbf16>
    %118 = vector.shape_cast %117 : vector<1x8x32xbf16> to vector<8x32xbf16>
    %cst_42 = arith.constant dense<0.000000e+00> : vector<16x32xf32>
    %119 = tpu.matmul %116, %118, %cst_42 {dimension_numbers = #tpu.dot_dimension_numbers<[1], [0], [0], [1], [0, 0, 1, 1], [], []>} : vector<16x8xbf16>, vector<8x32xbf16>, vector<16x32xf32> -> vector<16x32xf32>
    %120 = arith.addf %88, %119 : vector<16x32xf32>
    %121 = vector.extract_strided_slice %13 {offsets = [0, 24], sizes = [16, 8], strides = [1, 1]} : vector<16x32xf32> to vector<16x8xf32>
    %122 = vector.shape_cast %121 : vector<16x8xf32> to vector<2x8x8xf32>
    %123 = arith.truncf %122 : vector<2x8x8xf32> to vector<2x8x8xbf16>
    %124 = vector.extract_strided_slice %18 {offsets = [0, 24], sizes = [16, 8], strides = [1, 1]} : vector<16x32xf32> to vector<16x8xf32>
    %125 = vector.shape_cast %124 : vector<16x8xf32> to vector<2x8x8xf32>
    %126 = arith.truncf %125 : vector<2x8x8xf32> to vector<2x8x8xbf16>
    %127 = vector.extract_strided_slice %23 {offsets = [0, 24], sizes = [16, 8], strides = [1, 1]} : vector<16x32xf32> to vector<16x8xf32>
    %128 = vector.shape_cast %127 : vector<16x8xf32> to vector<2x8x8xf32>
    %129 = arith.truncf %128 : vector<2x8x8xf32> to vector<2x8x8xbf16>
    "tpu.trace_start"() <{level = 10 : i32, message = "bqd,bkd->bqk"}> : () -> ()
    %cst_43 = arith.constant dense<0.000000e+00> : vector<2x8x8xf32>
    %130 = tpu.matmul %123, %126, %cst_43 {dimension_numbers = #tpu.dot_dimension_numbers<[2], [2], [1], [1], [0, 0, 0, 1, 1, 1], [0], [0]>} : vector<2x8x8xbf16>, vector<2x8x8xbf16>, vector<2x8x8xf32> -> vector<2x8x8xf32>
    "tpu.trace_stop"() : () -> ()
    %cst_44 = arith.constant 0.353553385 : f32
    %131 = vector.broadcast %cst_44 : f32 to vector<2x8x8xf32>
    %132 = arith.mulf %130, %131 : vector<2x8x8xf32>
    %133 = vector.broadcast %6 : vector<1x8x8xf32> to vector<2x8x8xf32>
    %134 = arith.addf %132, %133 : vector<2x8x8xf32>
    %cst_45 = arith.constant dense<0xFF800000> : vector<2x8xf32>
    %135 = vector.multi_reduction <maximumf>, %134, %cst_45 [2] : vector<2x8x8xf32> to vector<2x8xf32>
    %136 = vector.shape_cast %135 : vector<2x8xf32> to vector<2x8x1xf32>
    %137 = vector.broadcast %136 : vector<2x8x1xf32> to vector<2x8x8xf32>
    %138 = arith.subf %134, %137 : vector<2x8x8xf32>
    %139 = math.exp %138 : vector<2x8x8xf32>
    %cst_46 = arith.constant dense<0.000000e+00> : vector<2x8xf32>
    %140 = vector.multi_reduction <add>, %139, %cst_46 [2] : vector<2x8x8xf32> to vector<2x8xf32>
    %141 = vector.shape_cast %140 : vector<2x8xf32> to vector<2x8x1xf32>
    %142 = tpu.reciprocal %141 {approx = true} : vector<2x8x1xf32> -> vector<2x8x1xf32>
    %143 = vector.broadcast %142 : vector<2x8x1xf32> to vector<2x8x8xf32>
    %144 = arith.mulf %139, %143 : vector<2x8x8xf32>
    %145 = arith.truncf %144 : vector<2x8x8xf32> to vector<2x8x8xbf16>
    "tpu.trace_start"() <{level = 10 : i32, message = "bqk,bkd->bqd"}> : () -> ()
    %cst_47 = arith.constant dense<0.000000e+00> : vector<2x8x8xf32>
    %146 = tpu.matmul %145, %129, %cst_47 {dimension_numbers = #tpu.dot_dimension_numbers<[2], [1], [1], [2], [0, 0, 0, 1, 1, 2], [0], [0]>} : vector<2x8x8xbf16>, vector<2x8x8xbf16>, vector<2x8x8xf32> -> vector<2x8x8xf32>
    "tpu.trace_stop"() : () -> ()
    %147 = vector.shape_cast %146 : vector<2x8x8xf32> to vector<16x8xf32>
    %148 = arith.truncf %147 : vector<16x8xf32> to vector<16x8xbf16>
    %c3 = arith.constant 3 : index
    %c0_48 = arith.constant 0 : index
    %c0_49 = arith.constant 0 : index
    %149 = vector.load %arg7[%c3, %c0_48, %c0_49] : memref<4x8x32xbf16, #tpu.memory_space<vmem>>, vector<1x8x32xbf16>
    %150 = vector.shape_cast %149 : vector<1x8x32xbf16> to vector<8x32xbf16>
    %cst_50 = arith.constant dense<0.000000e+00> : vector<16x32xf32>
    %151 = tpu.matmul %148, %150, %cst_50 {dimension_numbers = #tpu.dot_dimension_numbers<[1], [0], [0], [1], [0, 0, 1, 1], [], []>} : vector<16x8xbf16>, vector<8x32xbf16>, vector<16x32xf32> -> vector<16x32xf32>
    %152 = arith.addf %120, %151 : vector<16x32xf32>
    %c0_51 = arith.constant 0 : index
    %c0_52 = arith.constant 0 : index
    %153 = vector.load %arg8[%c0_51, %c0_52] : memref<1x32xf32, #tpu.memory_space<vmem>>, vector<1x32xf32>
    %154 = vector.broadcast %153 : vector<1x32xf32> to vector<16x32xf32>
    %155 = arith.addf %152, %154 : vector<16x32xf32>
    %156 = arith.addf %7, %155 : vector<16x32xf32>
    %c0_53 = arith.constant 0 : index
    %c0_54 = arith.constant 0 : index
    %157 = vector.load %arg13[%c0_53, %c0_54] : memref<1x32xf32, #tpu.memory_space<vmem>>, vector<1x32xf32>
    %c0_55 = arith.constant 0 : index
    %c0_56 = arith.constant 0 : index
    %158 = vector.load %arg14[%c0_55, %c0_56] : memref<1x32xf32, #tpu.memory_space<vmem>>, vector<1x32xf32>
    %cst_57 = arith.constant dense<0.000000e+00> : vector<16xf32>
    %159 = vector.multi_reduction <add>, %156, %cst_57 [1] : vector<16x32xf32> to vector<16xf32>
    %160 = vector.shape_cast %159 : vector<16xf32> to vector<16x1xf32>
    %cst_58 = arith.constant 3.200000e+01 : f32
    %161 = vector.broadcast %cst_58 : f32 to vector<16x1xf32>
    %162 = arith.divf %160, %161 : vector<16x1xf32>
    %163 = vector.broadcast %162 : vector<16x1xf32> to vector<16x32xf32>
    %164 = arith.subf %156, %163 : vector<16x32xf32>
    %165 = arith.mulf %164, %164 : vector<16x32xf32>
    %cst_59 = arith.constant dense<0.000000e+00> : vector<16xf32>
    %166 = vector.multi_reduction <add>, %165, %cst_59 [1] : vector<16x32xf32> to vector<16xf32>
    %167 = vector.shape_cast %166 : vector<16xf32> to vector<16x1xf32>
    %cst_60 = arith.constant 3.200000e+01 : f32
    %168 = vector.broadcast %cst_60 : f32 to vector<16x1xf32>
    %169 = arith.divf %167, %168 : vector<16x1xf32>
    %170 = vector.broadcast %162 : vector<16x1xf32> to vector<16x32xf32>
    %171 = arith.subf %156, %170 : vector<16x32xf32>
    %cst_61 = arith.constant 9.99999974E-6 : f32
    %172 = vector.broadcast %cst_61 : f32 to vector<16x1xf32>
    %173 = arith.addf %169, %172 : vector<16x1xf32>
    %174 = math.rsqrt %173 : vector<16x1xf32>
    %175 = vector.broadcast %174 : vector<16x1xf32> to vector<16x32xf32>
    %176 = arith.mulf %171, %175 : vector<16x32xf32>
    %177 = vector.broadcast %157 : vector<1x32xf32> to vector<16x32xf32>
    %178 = arith.mulf %176, %177 : vector<16x32xf32>
    %179 = vector.broadcast %158 : vector<1x32xf32> to vector<16x32xf32>
    %180 = arith.addf %178, %179 : vector<16x32xf32>
    %181 = arith.truncf %180 : vector<16x32xf32> to vector<16x32xbf16>
    %c0_62 = arith.constant 0 : index
    %c0_63 = arith.constant 0 : index
    %182 = vector.load %arg9[%c0_62, %c0_63] : memref<32x2048xbf16, #tpu.memory_space<vmem>>, vector<32x2048xbf16>
    %cst_64 = arith.constant dense<0.000000e+00> : vector<16x2048xf32>
    %183 = tpu.matmul %181, %182, %cst_64 {dimension_numbers = #tpu.dot_dimension_numbers<[1], [0], [0], [1], [0, 0, 1, 1], [], []>} : vector<16x32xbf16>, vector<32x2048xbf16>, vector<16x2048xf32> -> vector<16x2048xf32>
    %c0_65 = arith.constant 0 : index
    %c0_66 = arith.constant 0 : index
    %184 = vector.load %arg10[%c0_65, %c0_66] : memref<1x2048xf32, #tpu.memory_space<vmem>>, vector<1x2048xf32>
    %185 = vector.broadcast %184 : vector<1x2048xf32> to vector<16x2048xf32>
    %186 = arith.addf %183, %185 : vector<16x2048xf32>
    %cst_67 = arith.constant 0.000000e+00 : f32
    %187 = vector.broadcast %cst_67 : f32 to vector<16x2048xf32>
    %188 = arith.maximumf %186, %187 : vector<16x2048xf32>
    %189 = arith.truncf %188 : vector<16x2048xf32> to vector<16x2048xbf16>
    %c0_68 = arith.constant 0 : index
    %c0_69 = arith.constant 0 : index
    %190 = vector.load %arg11[%c0_68, %c0_69] : memref<2048x32xbf16, #tpu.memory_space<vmem>>, vector<2048x32xbf16>
    %cst_70 = arith.constant dense<0.000000e+00> : vector<16x32xf32>
    %191 = tpu.matmul %189, %190, %cst_70 {dimension_numbers = #tpu.dot_dimension_numbers<[1], [0], [0], [1], [0, 0, 1, 1], [], []>} : vector<16x2048xbf16>, vector<2048x32xbf16>, vector<16x32xf32> -> vector<16x32xf32>
    %c0_71 = arith.constant 0 : index
    %c0_72 = arith.constant 0 : index
    %192 = vector.load %arg12[%c0_71, %c0_72] : memref<1x32xf32, #tpu.memory_space<vmem>>, vector<1x32xf32>
    %193 = vector.broadcast %192 : vector<1x32xf32> to vector<16x32xf32>
    %194 = arith.addf %191, %193 : vector<16x32xf32>
    %195 = arith.addf %180, %194 : vector<16x32xf32>
    %c0_73 = arith.constant 0 : index
    %c0_74 = arith.constant 0 : index
    %196 = vector.load %arg15[%c0_73, %c0_74] : memref<1x32xf32, #tpu.memory_space<vmem>>, vector<1x32xf32>
    %c0_75 = arith.constant 0 : index
    %c0_76 = arith.constant 0 : index
    %197 = vector.load %arg16[%c0_75, %c0_76] : memref<1x32xf32, #tpu.memory_space<vmem>>, vector<1x32xf32>
    %cst_77 = arith.constant dense<0.000000e+00> : vector<16xf32>
    %198 = vector.multi_reduction <add>, %195, %cst_77 [1] : vector<16x32xf32> to vector<16xf32>
    %199 = vector.shape_cast %198 : vector<16xf32> to vector<16x1xf32>
    %cst_78 = arith.constant 3.200000e+01 : f32
    %200 = vector.broadcast %cst_78 : f32 to vector<16x1xf32>
    %201 = arith.divf %199, %200 : vector<16x1xf32>
    %202 = vector.broadcast %201 : vector<16x1xf32> to vector<16x32xf32>
    %203 = arith.subf %195, %202 : vector<16x32xf32>
    %204 = arith.mulf %203, %203 : vector<16x32xf32>
    %cst_79 = arith.constant dense<0.000000e+00> : vector<16xf32>
    %205 = vector.multi_reduction <add>, %204, %cst_79 [1] : vector<16x32xf32> to vector<16xf32>
    %206 = vector.shape_cast %205 : vector<16xf32> to vector<16x1xf32>
    %cst_80 = arith.constant 3.200000e+01 : f32
    %207 = vector.broadcast %cst_80 : f32 to vector<16x1xf32>
    %208 = arith.divf %206, %207 : vector<16x1xf32>
    %209 = vector.broadcast %201 : vector<16x1xf32> to vector<16x32xf32>
    %210 = arith.subf %195, %209 : vector<16x32xf32>
    %cst_81 = arith.constant 9.99999974E-6 : f32
    %211 = vector.broadcast %cst_81 : f32 to vector<16x1xf32>
    %212 = arith.addf %208, %211 : vector<16x1xf32>
    %213 = math.rsqrt %212 : vector<16x1xf32>
    %214 = vector.broadcast %213 : vector<16x1xf32> to vector<16x32xf32>
    %215 = arith.mulf %210, %214 : vector<16x32xf32>
    %216 = vector.broadcast %196 : vector<1x32xf32> to vector<16x32xf32>
    %217 = arith.mulf %215, %216 : vector<16x32xf32>
    %218 = vector.broadcast %197 : vector<1x32xf32> to vector<16x32xf32>
    %219 = arith.addf %217, %218 : vector<16x32xf32>
    %220 = arith.truncf %219 : vector<16x32xf32> to vector<16x32xbf16>
    %c0_82 = arith.constant 0 : index
    %c0_83 = arith.constant 0 : index
    %221 = vector.load %arg17[%c0_82, %c0_83] : memref<32x32xbf16, #tpu.memory_space<vmem>>, vector<32x32xbf16>
    %cst_84 = arith.constant dense<0.000000e+00> : vector<16x32xf32>
    %222 = tpu.matmul %220, %221, %cst_84 {dimension_numbers = #tpu.dot_dimension_numbers<[1], [0], [0], [1], [0, 0, 1, 1], [], []>} : vector<16x32xbf16>, vector<32x32xbf16>, vector<16x32xf32> -> vector<16x32xf32>
    %c0_85 = arith.constant 0 : index
    %c0_86 = arith.constant 0 : index
    %223 = vector.load %arg18[%c0_85, %c0_86] : memref<1x32xf32, #tpu.memory_space<vmem>>, vector<1x32xf32>
    %224 = vector.broadcast %223 : vector<1x32xf32> to vector<16x32xf32>
    %225 = arith.addf %222, %224 : vector<16x32xf32>
    %c0_87 = arith.constant 0 : index
    %c0_88 = arith.constant 0 : index
    %226 = vector.load %arg19[%c0_87, %c0_88] : memref<32x32xbf16, #tpu.memory_space<vmem>>, vector<32x32xbf16>
    %cst_89 = arith.constant dense<0.000000e+00> : vector<16x32xf32>
    %227 = tpu.matmul %220, %226, %cst_89 {dimension_numbers = #tpu.dot_dimension_numbers<[1], [0], [0], [1], [0, 0, 1, 1], [], []>} : vector<16x32xbf16>, vector<32x32xbf16>, vector<16x32xf32> -> vector<16x32xf32>
    %c0_90 = arith.constant 0 : index
    %c0_91 = arith.constant 0 : index
    %228 = vector.load %arg20[%c0_90, %c0_91] : memref<1x32xf32, #tpu.memory_space<vmem>>, vector<1x32xf32>
    %229 = vector.broadcast %228 : vector<1x32xf32> to vector<16x32xf32>
    %230 = arith.addf %227, %229 : vector<16x32xf32>
    %c0_92 = arith.constant 0 : index
    %c0_93 = arith.constant 0 : index
    %231 = vector.load %arg21[%c0_92, %c0_93] : memref<32x32xbf16, #tpu.memory_space<vmem>>, vector<32x32xbf16>
    %cst_94 = arith.constant dense<0.000000e+00> : vector<16x32xf32>
    %232 = tpu.matmul %220, %231, %cst_94 {dimension_numbers = #tpu.dot_dimension_numbers<[1], [0], [0], [1], [0, 0, 1, 1], [], []>} : vector<16x32xbf16>, vector<32x32xbf16>, vector<16x32xf32> -> vector<16x32xf32>
    %c0_95 = arith.constant 0 : index
    %c0_96 = arith.constant 0 : index
    %233 = vector.load %arg22[%c0_95, %c0_96] : memref<1x32xf32, #tpu.memory_space<vmem>>, vector<1x32xf32>
    %234 = vector.broadcast %233 : vector<1x32xf32> to vector<16x32xf32>
    %235 = arith.addf %232, %234 : vector<16x32xf32>
    %cst_97 = arith.constant 0.000000e+00 : f32
    %236 = vector.broadcast %cst_97 : f32 to vector<16x32xf32>
    %237 = vector.extract_strided_slice %225 {offsets = [0, 0], sizes = [16, 8], strides = [1, 1]} : vector<16x32xf32> to vector<16x8xf32>
    %238 = vector.shape_cast %237 : vector<16x8xf32> to vector<2x8x8xf32>
    %239 = arith.truncf %238 : vector<2x8x8xf32> to vector<2x8x8xbf16>
    %240 = vector.extract_strided_slice %230 {offsets = [0, 0], sizes = [16, 8], strides = [1, 1]} : vector<16x32xf32> to vector<16x8xf32>
    %241 = vector.shape_cast %240 : vector<16x8xf32> to vector<2x8x8xf32>
    %242 = arith.truncf %241 : vector<2x8x8xf32> to vector<2x8x8xbf16>
    %243 = vector.extract_strided_slice %235 {offsets = [0, 0], sizes = [16, 8], strides = [1, 1]} : vector<16x32xf32> to vector<16x8xf32>
    %244 = vector.shape_cast %243 : vector<16x8xf32> to vector<2x8x8xf32>
    %245 = arith.truncf %244 : vector<2x8x8xf32> to vector<2x8x8xbf16>
    "tpu.trace_start"() <{level = 10 : i32, message = "bqd,bkd->bqk"}> : () -> ()
    %cst_98 = arith.constant dense<0.000000e+00> : vector<2x8x8xf32>
    %246 = tpu.matmul %239, %242, %cst_98 {dimension_numbers = #tpu.dot_dimension_numbers<[2], [2], [1], [1], [0, 0, 0, 1, 1, 1], [0], [0]>} : vector<2x8x8xbf16>, vector<2x8x8xbf16>, vector<2x8x8xf32> -> vector<2x8x8xf32>
    "tpu.trace_stop"() : () -> ()
    %cst_99 = arith.constant 0.353553385 : f32
    %247 = vector.broadcast %cst_99 : f32 to vector<2x8x8xf32>
    %248 = arith.mulf %246, %247 : vector<2x8x8xf32>
    %249 = vector.broadcast %6 : vector<1x8x8xf32> to vector<2x8x8xf32>
    %250 = arith.addf %248, %249 : vector<2x8x8xf32>
    %cst_100 = arith.constant dense<0xFF800000> : vector<2x8xf32>
    %251 = vector.multi_reduction <maximumf>, %250, %cst_100 [2] : vector<2x8x8xf32> to vector<2x8xf32>
    %252 = vector.shape_cast %251 : vector<2x8xf32> to vector<2x8x1xf32>
    %253 = vector.broadcast %252 : vector<2x8x1xf32> to vector<2x8x8xf32>
    %254 = arith.subf %250, %253 : vector<2x8x8xf32>
    %255 = math.exp %254 : vector<2x8x8xf32>
    %cst_101 = arith.constant dense<0.000000e+00> : vector<2x8xf32>
    %256 = vector.multi_reduction <add>, %255, %cst_101 [2] : vector<2x8x8xf32> to vector<2x8xf32>
    %257 = vector.shape_cast %256 : vector<2x8xf32> to vector<2x8x1xf32>
    %258 = tpu.reciprocal %257 {approx = true} : vector<2x8x1xf32> -> vector<2x8x1xf32>
    %259 = vector.broadcast %258 : vector<2x8x1xf32> to vector<2x8x8xf32>
    %260 = arith.mulf %255, %259 : vector<2x8x8xf32>
    %261 = arith.truncf %260 : vector<2x8x8xf32> to vector<2x8x8xbf16>
    "tpu.trace_start"() <{level = 10 : i32, message = "bqk,bkd->bqd"}> : () -> ()
    %cst_102 = arith.constant dense<0.000000e+00> : vector<2x8x8xf32>
    %262 = tpu.matmul %261, %245, %cst_102 {dimension_numbers = #tpu.dot_dimension_numbers<[2], [1], [1], [2], [0, 0, 0, 1, 1, 2], [0], [0]>} : vector<2x8x8xbf16>, vector<2x8x8xbf16>, vector<2x8x8xf32> -> vector<2x8x8xf32>
    "tpu.trace_stop"() : () -> ()
    %263 = vector.shape_cast %262 : vector<2x8x8xf32> to vector<16x8xf32>
    %264 = arith.truncf %263 : vector<16x8xf32> to vector<16x8xbf16>
    %c0_103 = arith.constant 0 : index
    %c0_104 = arith.constant 0 : index
    %c0_105 = arith.constant 0 : index
    %265 = vector.load %arg23[%c0_103, %c0_104, %c0_105] : memref<4x8x32xbf16, #tpu.memory_space<vmem>>, vector<1x8x32xbf16>
    %266 = vector.shape_cast %265 : vector<1x8x32xbf16> to vector<8x32xbf16>
    %cst_106 = arith.constant dense<0.000000e+00> : vector<16x32xf32>
    %267 = tpu.matmul %264, %266, %cst_106 {dimension_numbers = #tpu.dot_dimension_numbers<[1], [0], [0], [1], [0, 0, 1, 1], [], []>} : vector<16x8xbf16>, vector<8x32xbf16>, vector<16x32xf32> -> vector<16x32xf32>
    %268 = arith.addf %236, %267 : vector<16x32xf32>
    %269 = vector.extract_strided_slice %225 {offsets = [0, 8], sizes = [16, 8], strides = [1, 1]} : vector<16x32xf32> to vector<16x8xf32>
    %270 = vector.shape_cast %269 : vector<16x8xf32> to vector<2x8x8xf32>
    %271 = arith.truncf %270 : vector<2x8x8xf32> to vector<2x8x8xbf16>
    %272 = vector.extract_strided_slice %230 {offsets = [0, 8], sizes = [16, 8], strides = [1, 1]} : vector<16x32xf32> to vector<16x8xf32>
    %273 = vector.shape_cast %272 : vector<16x8xf32> to vector<2x8x8xf32>
    %274 = arith.truncf %273 : vector<2x8x8xf32> to vector<2x8x8xbf16>
    %275 = vector.extract_strided_slice %235 {offsets = [0, 8], sizes = [16, 8], strides = [1, 1]} : vector<16x32xf32> to vector<16x8xf32>
    %276 = vector.shape_cast %275 : vector<16x8xf32> to vector<2x8x8xf32>
    %277 = arith.truncf %276 : vector<2x8x8xf32> to vector<2x8x8xbf16>
    "tpu.trace_start"() <{level = 10 : i32, message = "bqd,bkd->bqk"}> : () -> ()
    %cst_107 = arith.constant dense<0.000000e+00> : vector<2x8x8xf32>
    %278 = tpu.matmul %271, %274, %cst_107 {dimension_numbers = #tpu.dot_dimension_numbers<[2], [2], [1], [1], [0, 0, 0, 1, 1, 1], [0], [0]>} : vector<2x8x8xbf16>, vector<2x8x8xbf16>, vector<2x8x8xf32> -> vector<2x8x8xf32>
    "tpu.trace_stop"() : () -> ()
    %cst_108 = arith.constant 0.353553385 : f32
    %279 = vector.broadcast %cst_108 : f32 to vector<2x8x8xf32>
    %280 = arith.mulf %278, %279 : vector<2x8x8xf32>
    %281 = vector.broadcast %6 : vector<1x8x8xf32> to vector<2x8x8xf32>
    %282 = arith.addf %280, %281 : vector<2x8x8xf32>
    %cst_109 = arith.constant dense<0xFF800000> : vector<2x8xf32>
    %283 = vector.multi_reduction <maximumf>, %282, %cst_109 [2] : vector<2x8x8xf32> to vector<2x8xf32>
    %284 = vector.shape_cast %283 : vector<2x8xf32> to vector<2x8x1xf32>
    %285 = vector.broadcast %284 : vector<2x8x1xf32> to vector<2x8x8xf32>
    %286 = arith.subf %282, %285 : vector<2x8x8xf32>
    %287 = math.exp %286 : vector<2x8x8xf32>
    %cst_110 = arith.constant dense<0.000000e+00> : vector<2x8xf32>
    %288 = vector.multi_reduction <add>, %287, %cst_110 [2] : vector<2x8x8xf32> to vector<2x8xf32>
    %289 = vector.shape_cast %288 : vector<2x8xf32> to vector<2x8x1xf32>
    %290 = tpu.reciprocal %289 {approx = true} : vector<2x8x1xf32> -> vector<2x8x1xf32>
    %291 = vector.broadcast %290 : vector<2x8x1xf32> to vector<2x8x8xf32>
    %292 = arith.mulf %287, %291 : vector<2x8x8xf32>
    %293 = arith.truncf %292 : vector<2x8x8xf32> to vector<2x8x8xbf16>
    "tpu.trace_start"() <{level = 10 : i32, message = "bqk,bkd->bqd"}> : () -> ()
    %cst_111 = arith.constant dense<0.000000e+00> : vector<2x8x8xf32>
    %294 = tpu.matmul %293, %277, %cst_111 {dimension_numbers = #tpu.dot_dimension_numbers<[2], [1], [1], [2], [0, 0, 0, 1, 1, 2], [0], [0]>} : vector<2x8x8xbf16>, vector<2x8x8xbf16>, vector<2x8x8xf32> -> vector<2x8x8xf32>
    "tpu.trace_stop"() : () -> ()
    %295 = vector.shape_cast %294 : vector<2x8x8xf32> to vector<16x8xf32>
    %296 = arith.truncf %295 : vector<16x8xf32> to vector<16x8xbf16>
    %c1_112 = arith.constant 1 : index
    %c0_113 = arith.constant 0 : index
    %c0_114 = arith.constant 0 : index
    %297 = vector.load %arg23[%c1_112, %c0_113, %c0_114] : memref<4x8x32xbf16, #tpu.memory_space<vmem>>, vector<1x8x32xbf16>
    %298 = vector.shape_cast %297 : vector<1x8x32xbf16> to vector<8x32xbf16>
    %cst_115 = arith.constant dense<0.000000e+00> : vector<16x32xf32>
    %299 = tpu.matmul %296, %298, %cst_115 {dimension_numbers = #tpu.dot_dimension_numbers<[1], [0], [0], [1], [0, 0, 1, 1], [], []>} : vector<16x8xbf16>, vector<8x32xbf16>, vector<16x32xf32> -> vector<16x32xf32>
    %300 = arith.addf %268, %299 : vector<16x32xf32>
    %301 = vector.extract_strided_slice %225 {offsets = [0, 16], sizes = [16, 8], strides = [1, 1]} : vector<16x32xf32> to vector<16x8xf32>
    %302 = vector.shape_cast %301 : vector<16x8xf32> to vector<2x8x8xf32>
    %303 = arith.truncf %302 : vector<2x8x8xf32> to vector<2x8x8xbf16>
    %304 = vector.extract_strided_slice %230 {offsets = [0, 16], sizes = [16, 8], strides = [1, 1]} : vector<16x32xf32> to vector<16x8xf32>
    %305 = vector.shape_cast %304 : vector<16x8xf32> to vector<2x8x8xf32>
    %306 = arith.truncf %305 : vector<2x8x8xf32> to vector<2x8x8xbf16>
    %307 = vector.extract_strided_slice %235 {offsets = [0, 16], sizes = [16, 8], strides = [1, 1]} : vector<16x32xf32> to vector<16x8xf32>
    %308 = vector.shape_cast %307 : vector<16x8xf32> to vector<2x8x8xf32>
    %309 = arith.truncf %308 : vector<2x8x8xf32> to vector<2x8x8xbf16>
    "tpu.trace_start"() <{level = 10 : i32, message = "bqd,bkd->bqk"}> : () -> ()
    %cst_116 = arith.constant dense<0.000000e+00> : vector<2x8x8xf32>
    %310 = tpu.matmul %303, %306, %cst_116 {dimension_numbers = #tpu.dot_dimension_numbers<[2], [2], [1], [1], [0, 0, 0, 1, 1, 1], [0], [0]>} : vector<2x8x8xbf16>, vector<2x8x8xbf16>, vector<2x8x8xf32> -> vector<2x8x8xf32>
    "tpu.trace_stop"() : () -> ()
    %cst_117 = arith.constant 0.353553385 : f32
    %311 = vector.broadcast %cst_117 : f32 to vector<2x8x8xf32>
    %312 = arith.mulf %310, %311 : vector<2x8x8xf32>
    %313 = vector.broadcast %6 : vector<1x8x8xf32> to vector<2x8x8xf32>
    %314 = arith.addf %312, %313 : vector<2x8x8xf32>
    %cst_118 = arith.constant dense<0xFF800000> : vector<2x8xf32>
    %315 = vector.multi_reduction <maximumf>, %314, %cst_118 [2] : vector<2x8x8xf32> to vector<2x8xf32>
    %316 = vector.shape_cast %315 : vector<2x8xf32> to vector<2x8x1xf32>
    %317 = vector.broadcast %316 : vector<2x8x1xf32> to vector<2x8x8xf32>
    %318 = arith.subf %314, %317 : vector<2x8x8xf32>
    %319 = math.exp %318 : vector<2x8x8xf32>
    %cst_119 = arith.constant dense<0.000000e+00> : vector<2x8xf32>
    %320 = vector.multi_reduction <add>, %319, %cst_119 [2] : vector<2x8x8xf32> to vector<2x8xf32>
    %321 = vector.shape_cast %320 : vector<2x8xf32> to vector<2x8x1xf32>
    %322 = tpu.reciprocal %321 {approx = true} : vector<2x8x1xf32> -> vector<2x8x1xf32>
    %323 = vector.broadcast %322 : vector<2x8x1xf32> to vector<2x8x8xf32>
    %324 = arith.mulf %319, %323 : vector<2x8x8xf32>
    %325 = arith.truncf %324 : vector<2x8x8xf32> to vector<2x8x8xbf16>
    "tpu.trace_start"() <{level = 10 : i32, message = "bqk,bkd->bqd"}> : () -> ()
    %cst_120 = arith.constant dense<0.000000e+00> : vector<2x8x8xf32>
    %326 = tpu.matmul %325, %309, %cst_120 {dimension_numbers = #tpu.dot_dimension_numbers<[2], [1], [1], [2], [0, 0, 0, 1, 1, 2], [0], [0]>} : vector<2x8x8xbf16>, vector<2x8x8xbf16>, vector<2x8x8xf32> -> vector<2x8x8xf32>
    "tpu.trace_stop"() : () -> ()
    %327 = vector.shape_cast %326 : vector<2x8x8xf32> to vector<16x8xf32>
    %328 = arith.truncf %327 : vector<16x8xf32> to vector<16x8xbf16>
    %c2_121 = arith.constant 2 : index
    %c0_122 = arith.constant 0 : index
    %c0_123 = arith.constant 0 : index
    %329 = vector.load %arg23[%c2_121, %c0_122, %c0_123] : memref<4x8x32xbf16, #tpu.memory_space<vmem>>, vector<1x8x32xbf16>
    %330 = vector.shape_cast %329 : vector<1x8x32xbf16> to vector<8x32xbf16>
    %cst_124 = arith.constant dense<0.000000e+00> : vector<16x32xf32>
    %331 = tpu.matmul %328, %330, %cst_124 {dimension_numbers = #tpu.dot_dimension_numbers<[1], [0], [0], [1], [0, 0, 1, 1], [], []>} : vector<16x8xbf16>, vector<8x32xbf16>, vector<16x32xf32> -> vector<16x32xf32>
    %332 = arith.addf %300, %331 : vector<16x32xf32>
    %333 = vector.extract_strided_slice %225 {offsets = [0, 24], sizes = [16, 8], strides = [1, 1]} : vector<16x32xf32> to vector<16x8xf32>
    %334 = vector.shape_cast %333 : vector<16x8xf32> to vector<2x8x8xf32>
    %335 = arith.truncf %334 : vector<2x8x8xf32> to vector<2x8x8xbf16>
    %336 = vector.extract_strided_slice %230 {offsets = [0, 24], sizes = [16, 8], strides = [1, 1]} : vector<16x32xf32> to vector<16x8xf32>
    %337 = vector.shape_cast %336 : vector<16x8xf32> to vector<2x8x8xf32>
    %338 = arith.truncf %337 : vector<2x8x8xf32> to vector<2x8x8xbf16>
    %339 = vector.extract_strided_slice %235 {offsets = [0, 24], sizes = [16, 8], strides = [1, 1]} : vector<16x32xf32> to vector<16x8xf32>
    %340 = vector.shape_cast %339 : vector<16x8xf32> to vector<2x8x8xf32>
    %341 = arith.truncf %340 : vector<2x8x8xf32> to vector<2x8x8xbf16>
    "tpu.trace_start"() <{level = 10 : i32, message = "bqd,bkd->bqk"}> : () -> ()
    %cst_125 = arith.constant dense<0.000000e+00> : vector<2x8x8xf32>
    %342 = tpu.matmul %335, %338, %cst_125 {dimension_numbers = #tpu.dot_dimension_numbers<[2], [2], [1], [1], [0, 0, 0, 1, 1, 1], [0], [0]>} : vector<2x8x8xbf16>, vector<2x8x8xbf16>, vector<2x8x8xf32> -> vector<2x8x8xf32>
    "tpu.trace_stop"() : () -> ()
    %cst_126 = arith.constant 0.353553385 : f32
    %343 = vector.broadcast %cst_126 : f32 to vector<2x8x8xf32>
    %344 = arith.mulf %342, %343 : vector<2x8x8xf32>
    %345 = vector.broadcast %6 : vector<1x8x8xf32> to vector<2x8x8xf32>
    %346 = arith.addf %344, %345 : vector<2x8x8xf32>
    %cst_127 = arith.constant dense<0xFF800000> : vector<2x8xf32>
    %347 = vector.multi_reduction <maximumf>, %346, %cst_127 [2] : vector<2x8x8xf32> to vector<2x8xf32>
    %348 = vector.shape_cast %347 : vector<2x8xf32> to vector<2x8x1xf32>
    %349 = vector.broadcast %348 : vector<2x8x1xf32> to vector<2x8x8xf32>
    %350 = arith.subf %346, %349 : vector<2x8x8xf32>
    %351 = math.exp %350 : vector<2x8x8xf32>
    %cst_128 = arith.constant dense<0.000000e+00> : vector<2x8xf32>
    %352 = vector.multi_reduction <add>, %351, %cst_128 [2] : vector<2x8x8xf32> to vector<2x8xf32>
    %353 = vector.shape_cast %352 : vector<2x8xf32> to vector<2x8x1xf32>
    %354 = tpu.reciprocal %353 {approx = true} : vector<2x8x1xf32> -> vector<2x8x1xf32>
    %355 = vector.broadcast %354 : vector<2x8x1xf32> to vector<2x8x8xf32>
    %356 = arith.mulf %351, %355 : vector<2x8x8xf32>
    %357 = arith.truncf %356 : vector<2x8x8xf32> to vector<2x8x8xbf16>
    "tpu.trace_start"() <{level = 10 : i32, message = "bqk,bkd->bqd"}> : () -> ()
    %cst_129 = arith.constant dense<0.000000e+00> : vector<2x8x8xf32>
    %358 = tpu.matmul %357, %341, %cst_129 {dimension_numbers = #tpu.dot_dimension_numbers<[2], [1], [1], [2], [0, 0, 0, 1, 1, 2], [0], [0]>} : vector<2x8x8xbf16>, vector<2x8x8xbf16>, vector<2x8x8xf32> -> vector<2x8x8xf32>
    "tpu.trace_stop"() : () -> ()
    %359 = vector.shape_cast %358 : vector<2x8x8xf32> to vector<16x8xf32>
    %360 = arith.truncf %359 : vector<16x8xf32> to vector<16x8xbf16>
    %c3_130 = arith.constant 3 : index
    %c0_131 = arith.constant 0 : index
    %c0_132 = arith.constant 0 : index
    %361 = vector.load %arg23[%c3_130, %c0_131, %c0_132] : memref<4x8x32xbf16, #tpu.memory_space<vmem>>, vector<1x8x32xbf16>
    %362 = vector.shape_cast %361 : vector<1x8x32xbf16> to vector<8x32xbf16>
    %cst_133 = arith.constant dense<0.000000e+00> : vector<16x32xf32>
    %363 = tpu.matmul %360, %362, %cst_133 {dimension_numbers = #tpu.dot_dimension_numbers<[1], [0], [0], [1], [0, 0, 1, 1], [], []>} : vector<16x8xbf16>, vector<8x32xbf16>, vector<16x32xf32> -> vector<16x32xf32>
    %364 = arith.addf %332, %363 : vector<16x32xf32>
    %c0_134 = arith.constant 0 : index
    %c0_135 = arith.constant 0 : index
    %365 = vector.load %arg24[%c0_134, %c0_135] : memref<1x32xf32, #tpu.memory_space<vmem>>, vector<1x32xf32>
    %366 = vector.broadcast %365 : vector<1x32xf32> to vector<16x32xf32>
    %367 = arith.addf %364, %366 : vector<16x32xf32>
    %368 = arith.addf %219, %367 : vector<16x32xf32>
    %c0_136 = arith.constant 0 : index
    %c0_137 = arith.constant 0 : index
    %369 = vector.load %arg29[%c0_136, %c0_137] : memref<1x32xf32, #tpu.memory_space<vmem>>, vector<1x32xf32>
    %c0_138 = arith.constant 0 : index
    %c0_139 = arith.constant 0 : index
    %370 = vector.load %arg30[%c0_138, %c0_139] : memref<1x32xf32, #tpu.memory_space<vmem>>, vector<1x32xf32>
    %cst_140 = arith.constant dense<0.000000e+00> : vector<16xf32>
    %371 = vector.multi_reduction <add>, %368, %cst_140 [1] : vector<16x32xf32> to vector<16xf32>
    %372 = vector.shape_cast %371 : vector<16xf32> to vector<16x1xf32>
    %cst_141 = arith.constant 3.200000e+01 : f32
    %373 = vector.broadcast %cst_141 : f32 to vector<16x1xf32>
    %374 = arith.divf %372, %373 : vector<16x1xf32>
    %375 = vector.broadcast %374 : vector<16x1xf32> to vector<16x32xf32>
    %376 = arith.subf %368, %375 : vector<16x32xf32>
    %377 = arith.mulf %376, %376 : vector<16x32xf32>
    %cst_142 = arith.constant dense<0.000000e+00> : vector<16xf32>
    %378 = vector.multi_reduction <add>, %377, %cst_142 [1] : vector<16x32xf32> to vector<16xf32>
    %379 = vector.shape_cast %378 : vector<16xf32> to vector<16x1xf32>
    %cst_143 = arith.constant 3.200000e+01 : f32
    %380 = vector.broadcast %cst_143 : f32 to vector<16x1xf32>
    %381 = arith.divf %379, %380 : vector<16x1xf32>
    %382 = vector.broadcast %374 : vector<16x1xf32> to vector<16x32xf32>
    %383 = arith.subf %368, %382 : vector<16x32xf32>
    %cst_144 = arith.constant 9.99999974E-6 : f32
    %384 = vector.broadcast %cst_144 : f32 to vector<16x1xf32>
    %385 = arith.addf %381, %384 : vector<16x1xf32>
    %386 = math.rsqrt %385 : vector<16x1xf32>
    %387 = vector.broadcast %386 : vector<16x1xf32> to vector<16x32xf32>
    %388 = arith.mulf %383, %387 : vector<16x32xf32>
    %389 = vector.broadcast %369 : vector<1x32xf32> to vector<16x32xf32>
    %390 = arith.mulf %388, %389 : vector<16x32xf32>
    %391 = vector.broadcast %370 : vector<1x32xf32> to vector<16x32xf32>
    %392 = arith.addf %390, %391 : vector<16x32xf32>
    %393 = arith.truncf %392 : vector<16x32xf32> to vector<16x32xbf16>
    %c0_145 = arith.constant 0 : index
    %c0_146 = arith.constant 0 : index
    %394 = vector.load %arg25[%c0_145, %c0_146] : memref<32x2048xbf16, #tpu.memory_space<vmem>>, vector<32x2048xbf16>
    %cst_147 = arith.constant dense<0.000000e+00> : vector<16x2048xf32>
    %395 = tpu.matmul %393, %394, %cst_147 {dimension_numbers = #tpu.dot_dimension_numbers<[1], [0], [0], [1], [0, 0, 1, 1], [], []>} : vector<16x32xbf16>, vector<32x2048xbf16>, vector<16x2048xf32> -> vector<16x2048xf32>
    %c0_148 = arith.constant 0 : index
    %c0_149 = arith.constant 0 : index
    %396 = vector.load %arg26[%c0_148, %c0_149] : memref<1x2048xf32, #tpu.memory_space<vmem>>, vector<1x2048xf32>
    %397 = vector.broadcast %396 : vector<1x2048xf32> to vector<16x2048xf32>
    %398 = arith.addf %395, %397 : vector<16x2048xf32>
    %cst_150 = arith.constant 0.000000e+00 : f32
    %399 = vector.broadcast %cst_150 : f32 to vector<16x2048xf32>
    %400 = arith.maximumf %398, %399 : vector<16x2048xf32>
    %401 = arith.truncf %400 : vector<16x2048xf32> to vector<16x2048xbf16>
    %c0_151 = arith.constant 0 : index
    %c0_152 = arith.constant 0 : index
    %402 = vector.load %arg27[%c0_151, %c0_152] : memref<2048x32xbf16, #tpu.memory_space<vmem>>, vector<2048x32xbf16>
    %cst_153 = arith.constant dense<0.000000e+00> : vector<16x32xf32>
    %403 = tpu.matmul %401, %402, %cst_153 {dimension_numbers = #tpu.dot_dimension_numbers<[1], [0], [0], [1], [0, 0, 1, 1], [], []>} : vector<16x2048xbf16>, vector<2048x32xbf16>, vector<16x32xf32> -> vector<16x32xf32>
    %c0_154 = arith.constant 0 : index
    %c0_155 = arith.constant 0 : index
    %404 = vector.load %arg28[%c0_154, %c0_155] : memref<1x32xf32, #tpu.memory_space<vmem>>, vector<1x32xf32>
    %405 = vector.broadcast %404 : vector<1x32xf32> to vector<16x32xf32>
    %406 = arith.addf %403, %405 : vector<16x32xf32>
    %407 = arith.addf %392, %406 : vector<16x32xf32>
    %c0_156 = arith.constant 0 : index
    %c0_157 = arith.constant 0 : index
    %408 = vector.load %arg31[%c0_156, %c0_157] : memref<1x32xf32, #tpu.memory_space<vmem>>, vector<1x32xf32>
    %c0_158 = arith.constant 0 : index
    %c0_159 = arith.constant 0 : index
    %409 = vector.load %arg32[%c0_158, %c0_159] : memref<1x32xf32, #tpu.memory_space<vmem>>, vector<1x32xf32>
    %cst_160 = arith.constant dense<0.000000e+00> : vector<16xf32>
    %410 = vector.multi_reduction <add>, %407, %cst_160 [1] : vector<16x32xf32> to vector<16xf32>
    %411 = vector.shape_cast %410 : vector<16xf32> to vector<16x1xf32>
    %cst_161 = arith.constant 3.200000e+01 : f32
    %412 = vector.broadcast %cst_161 : f32 to vector<16x1xf32>
    %413 = arith.divf %411, %412 : vector<16x1xf32>
    %414 = vector.broadcast %413 : vector<16x1xf32> to vector<16x32xf32>
    %415 = arith.subf %407, %414 : vector<16x32xf32>
    %416 = arith.mulf %415, %415 : vector<16x32xf32>
    %cst_162 = arith.constant dense<0.000000e+00> : vector<16xf32>
    %417 = vector.multi_reduction <add>, %416, %cst_162 [1] : vector<16x32xf32> to vector<16xf32>
    %418 = vector.shape_cast %417 : vector<16xf32> to vector<16x1xf32>
    %cst_163 = arith.constant 3.200000e+01 : f32
    %419 = vector.broadcast %cst_163 : f32 to vector<16x1xf32>
    %420 = arith.divf %418, %419 : vector<16x1xf32>
    %421 = vector.broadcast %413 : vector<16x1xf32> to vector<16x32xf32>
    %422 = arith.subf %407, %421 : vector<16x32xf32>
    %cst_164 = arith.constant 9.99999974E-6 : f32
    %423 = vector.broadcast %cst_164 : f32 to vector<16x1xf32>
    %424 = arith.addf %420, %423 : vector<16x1xf32>
    %425 = math.rsqrt %424 : vector<16x1xf32>
    %426 = vector.broadcast %425 : vector<16x1xf32> to vector<16x32xf32>
    %427 = arith.mulf %422, %426 : vector<16x32xf32>
    %428 = vector.broadcast %408 : vector<1x32xf32> to vector<16x32xf32>
    %429 = arith.mulf %427, %428 : vector<16x32xf32>
    %430 = vector.broadcast %409 : vector<1x32xf32> to vector<16x32xf32>
    %431 = arith.addf %429, %430 : vector<16x32xf32>
    %432 = arith.truncf %431 : vector<16x32xf32> to vector<16x32xbf16>
    %c0_165 = arith.constant 0 : index
    %c0_166 = arith.constant 0 : index
    %433 = vector.load %arg33[%c0_165, %c0_166] : memref<32x128xbf16, #tpu.memory_space<vmem>>, vector<32x128xbf16>
    %cst_167 = arith.constant dense<0.000000e+00> : vector<16x128xf32>
    %434 = tpu.matmul %432, %433, %cst_167 {dimension_numbers = #tpu.dot_dimension_numbers<[1], [0], [0], [1], [0, 0, 1, 1], [], []>} : vector<16x32xbf16>, vector<32x128xbf16>, vector<16x128xf32> -> vector<16x128xf32>
    %c0_168 = arith.constant 0 : index
    %c0_169 = arith.constant 0 : index
    %435 = vector.load %arg34[%c0_168, %c0_169] : memref<1x128xf32, #tpu.memory_space<vmem>>, vector<1x128xf32>
    %436 = vector.broadcast %435 : vector<1x128xf32> to vector<16x128xf32>
    %437 = arith.addf %434, %436 : vector<16x128xf32>
    %c0_170 = arith.constant 0 : index
    %c0_171 = arith.constant 0 : index
    %438 = vector.load %arg35[%c0_170, %c0_171] : memref<16x128xf32, #tpu.memory_space<vmem>>, vector<16x128xf32>
    tpu.vector_store %arg35[%c0_170, %c0_171], %437 {strides = array<i32>} : memref<16x128xf32, #tpu.memory_space<vmem>>, vector<16x128xf32>,
    return
  }
}

</mosaic_0001>

<llo_original>
// kernel: transformer_net_forward.1
$region0: #{transformer_net_forward.1}
  #allocation0 [shape = 'u32[]', space=smem, size = 0x4, offset = 0x4, fixed_abs, tag = 'smem constant byte address 0x4 - core index']
  #allocation1 [shape = 'u32[144,128]{1,0:T(1,128)}', space=vmem, size = 0x12000, scoped, tag = 'internal scratch']
  %s0 = inlined_call_operand.smem [shape: u32[36], index: -1, kind: input, shape index: {}]
  %s1 = sld [smem:[%s0]]
  %s2 = scalar_lea.smem %s0, 1
  %s3 = sld [smem:[%s2]]
  %s4 = scalar_lea.smem %s0, 2
  %s5 = sld [smem:[%s4]]
  %s6 = scalar_lea.smem %s0, 3
  %s7 = sld [smem:[%s6]]
  %s8 = scalar_lea.smem %s0, 4
  %s9 = sld [smem:[%s8]]
  %s10 = scalar_lea.smem %s0, 5
  %s11 = sld [smem:[%s10]]
  %s12 = scalar_lea.smem %s0, 6
  %s13 = sld [smem:[%s12]]
  %s14 = scalar_lea.smem %s0, 7
  %s15 = sld [smem:[%s14]]
  %s16 = scalar_lea.smem %s0, 8
  %s17 = sld [smem:[%s16]]
  %s18 = scalar_lea.smem %s0, 9
  %s19 = sld [smem:[%s18]]
  %s20 = scalar_lea.smem %s0, 10
  %s21 = sld [smem:[%s20]]
  %s22 = scalar_lea.smem %s0, 11
  %s23 = sld [smem:[%s22]]
  %s24 = scalar_lea.smem %s0, 12
  %s25 = sld [smem:[%s24]]
  %s26 = scalar_lea.smem %s0, 13
  %s27 = sld [smem:[%s26]]
  %s28 = scalar_lea.smem %s0, 14
  %s29 = sld [smem:[%s28]]
  %s30 = scalar_lea.smem %s0, 15
  %s31 = sld [smem:[%s30]]
  %s32 = scalar_lea.smem %s0, 16
  %s33 = sld [smem:[%s32]]
  %s34 = scalar_lea.smem %s0, 17
  %s35 = sld [smem:[%s34]]
  %s36 = scalar_lea.smem %s0, 18
  %s37 = sld [smem:[%s36]]
  %s38 = scalar_lea.smem %s0, 19
  %s39 = sld [smem:[%s38]]
  %s40 = scalar_lea.smem %s0, 20
  %s41 = sld [smem:[%s40]]
  %s42 = scalar_lea.smem %s0, 21
  %s43 = sld [smem:[%s42]]
  %s44 = scalar_lea.smem %s0, 22
  %s45 = sld [smem:[%s44]]
  %s46 = scalar_lea.smem %s0, 23
  %s47 = sld [smem:[%s46]]
  %s48 = scalar_lea.smem %s0, 24
  %s49 = sld [smem:[%s48]]
  %s50 = scalar_lea.smem %s0, 25
  %s51 = sld [smem:[%s50]]
  %s52 = scalar_lea.smem %s0, 26
  %s53 = sld [smem:[%s52]]
  %s54 = scalar_lea.smem %s0, 27
  %s55 = sld [smem:[%s54]]
  %s56 = scalar_lea.smem %s0, 28
  %s57 = sld [smem:[%s56]]
  %s58 = scalar_lea.smem %s0, 29
  %s59 = sld [smem:[%s58]]
  %s60 = scalar_lea.smem %s0, 30
  %s61 = sld [smem:[%s60]]
  %s62 = scalar_lea.smem %s0, 31
  %s63 = sld [smem:[%s62]]
  %s64 = scalar_lea.smem %s0, 32
  %s65 = sld [smem:[%s64]]
  %s66 = scalar_lea.smem %s0, 33
  %s67 = sld [smem:[%s66]]
  %s68 = scalar_lea.smem %s0, 34
  %s69 = sld [smem:[%s68]]
  %s70 = scalar_lea.smem %s0, 35
  %s71 = sld [smem:[%s70]]
  %s72 = sld [smem:[#allocation0]]
  $region150: #{transformer_net_forward.1} parent=0
    _
  %s74 = ssub.s32 1, %s72
  %s75 = scalar_select 0, %s74, %s72
  // Predicated region
  $region2: #{transformer_net_forward.1} parent=0 // pred_check
    _
  $region3: #{transformer_net_forward.1} parent=0 // pred_check_branch
    %77 = sbr.rel (0) target = $region5
  $region4: #{transformer_net_forward.1} parent=0 // pred_region
    _
  $region5: #{transformer_net_forward.1} parent=0 // pred_fallthru
    _
  // Predicated region
  $region6: #{transformer_net_forward.1} parent=0 // pred_check
    _
  $region7: #{transformer_net_forward.1} parent=0 // pred_check_branch
    %79 = sbr.rel (0) target = $region9
  $region8: #{transformer_net_forward.1} parent=0 // pred_region
    _
  $region9: #{transformer_net_forward.1} parent=0 // pred_fallthru
    _
  // Predicated region
  $region10: #{transformer_net_forward.1} parent=0 // pred_check
    _
  $region11: #{transformer_net_forward.1} parent=0 // pred_check_branch
    %81 = sbr.rel (0) target = $region13
  $region12: #{transformer_net_forward.1} parent=0 // pred_region
    _
  $region13: #{transformer_net_forward.1} parent=0 // pred_fallthru
    _
  // Predicated region
  $region14: #{transformer_net_forward.1} parent=0 // pred_check
    _
  $region15: #{transformer_net_forward.1} parent=0 // pred_check_branch
    %83 = sbr.rel (0) target = $region17
  $region16: #{transformer_net_forward.1} parent=0 // pred_region
    _
  $region17: #{transformer_net_forward.1} parent=0 // pred_fallthru
    _
  // Predicated region
  $region18: #{transformer_net_forward.1} parent=0 // pred_check
    _
  $region19: #{transformer_net_forward.1} parent=0 // pred_check_branch
    %85 = sbr.rel (0) target = $region21
  $region20: #{transformer_net_forward.1} parent=0 // pred_region
    _
  $region21: #{transformer_net_forward.1} parent=0 // pred_fallthru
    _
  // Predicated region
  $region22: #{transformer_net_forward.1} parent=0 // pred_check
    _
  $region23: #{transformer_net_forward.1} parent=0 // pred_check_branch
    %87 = sbr.rel (0) target = $region25
  $region24: #{transformer_net_forward.1} parent=0 // pred_region
    _
  $region25: #{transformer_net_forward.1} parent=0 // pred_fallthru
    _
  // Predicated region
  $region26: #{transformer_net_forward.1} parent=0 // pred_check
    _
  $region27: #{transformer_net_forward.1} parent=0 // pred_check_branch
    %89 = sbr.rel (0) target = $region29
  $region28: #{transformer_net_forward.1} parent=0 // pred_region
    _
  $region29: #{transformer_net_forward.1} parent=0 // pred_fallthru
    _
  // Predicated region
  $region30: #{transformer_net_forward.1} parent=0 // pred_check
    _
  $region31: #{transformer_net_forward.1} parent=0 // pred_check_branch
    %91 = sbr.rel (0) target = $region33
  $region32: #{transformer_net_forward.1} parent=0 // pred_region
    _
  $region33: #{transformer_net_forward.1} parent=0 // pred_fallthru
    _
  // Predicated region
  $region34: #{transformer_net_forward.1} parent=0 // pred_check
    _
  $region35: #{transformer_net_forward.1} parent=0 // pred_check_branch
    %93 = sbr.rel (0) target = $region37
  $region36: #{transformer_net_forward.1} parent=0 // pred_region
    _
  $region37: #{transformer_net_forward.1} parent=0 // pred_fallthru
    _
  // Predicated region
  $region38: #{transformer_net_forward.1} parent=0 // pred_check
    _
  $region39: #{transformer_net_forward.1} parent=0 // pred_check_branch
    %95 = sbr.rel (0) target = $region41
  $region40: #{transformer_net_forward.1} parent=0 // pred_region
    _
  $region41: #{transformer_net_forward.1} parent=0 // pred_fallthru
    _
  // Predicated region
  $region42: #{transformer_net_forward.1} parent=0 // pred_check
    _
  $region43: #{transformer_net_forward.1} parent=0 // pred_check_branch
    %97 = sbr.rel (0) target = $region45
  $region44: #{transformer_net_forward.1} parent=0 // pred_region
    _
  $region45: #{transformer_net_forward.1} parent=0 // pred_fallthru
    _
  // Predicated region
  $region46: #{transformer_net_forward.1} parent=0 // pred_check
    _
  $region47: #{transformer_net_forward.1} parent=0 // pred_check_branch
    %99 = sbr.rel (0) target = $region49
  $region48: #{transformer_net_forward.1} parent=0 // pred_region
    _
  $region49: #{transformer_net_forward.1} parent=0 // pred_fallthru
    _
  // Predicated region
  $region50: #{transformer_net_forward.1} parent=0 // pred_check
    _
  $region51: #{transformer_net_forward.1} parent=0 // pred_check_branch
    %101 = sbr.rel (0) target = $region53
  $region52: #{transformer_net_forward.1} parent=0 // pred_region
    _
  $region53: #{transformer_net_forward.1} parent=0 // pred_fallthru
    _
  // Predicated region
  $region54: #{transformer_net_forward.1} parent=0 // pred_check
    _
  $region55: #{transformer_net_forward.1} parent=0 // pred_check_branch
    %103 = sbr.rel (0) target = $region57
  $region56: #{transformer_net_forward.1} parent=0 // pred_region
    _
  $region57: #{transformer_net_forward.1} parent=0 // pred_fallthru
    _
  // Predicated region
  $region58: #{transformer_net_forward.1} parent=0 // pred_check
    _
  $region59: #{transformer_net_forward.1} parent=0 // pred_check_branch
    %105 = sbr.rel (0) target = $region61
  $region60: #{transformer_net_forward.1} parent=0 // pred_region
    _
  $region61: #{transformer_net_forward.1} parent=0 // pred_fallthru
    _
  // Predicated region
  $region62: #{transformer_net_forward.1} parent=0 // pred_check
    _
  $region63: #{transformer_net_forward.1} parent=0 // pred_check_branch
    %107 = sbr.rel (0) target = $region65
  $region64: #{transformer_net_forward.1} parent=0 // pred_region
    _
  $region65: #{transformer_net_forward.1} parent=0 // pred_fallthru
    _
  // Predicated region
  $region66: #{transformer_net_forward.1} parent=0 // pred_check
    _
  $region67: #{transformer_net_forward.1} parent=0 // pred_check_branch
    %109 = sbr.rel (0) target = $region69
  $region68: #{transformer_net_forward.1} parent=0 // pred_region
    _
  $region69: #{transformer_net_forward.1} parent=0 // pred_fallthru
    _
  // Predicated region
  $region70: #{transformer_net_forward.1} parent=0 // pred_check
    _
  $region71: #{transformer_net_forward.1} parent=0 // pred_check_branch
    %111 = sbr.rel (0) target = $region73
  $region72: #{transformer_net_forward.1} parent=0 // pred_region
    _
  $region73: #{transformer_net_forward.1} parent=0 // pred_fallthru
    _
  // Predicated region
  $region74: #{transformer_net_forward.1} parent=0 // pred_check
    _
  $region75: #{transformer_net_forward.1} parent=0 // pred_check_branch
    %113 = sbr.rel (0) target = $region77
  $region76: #{transformer_net_forward.1} parent=0 // pred_region
    _
  $region77: #{transformer_net_forward.1} parent=0 // pred_fallthru
    _
  // Predicated region
  $region78: #{transformer_net_forward.1} parent=0 // pred_check
    _
  $region79: #{transformer_net_forward.1} parent=0 // pred_check_branch
    %115 = sbr.rel (0) target = $region81
  $region80: #{transformer_net_forward.1} parent=0 // pred_region
    _
  $region81: #{transformer_net_forward.1} parent=0 // pred_fallthru
    _
  // Predicated region
  $region82: #{transformer_net_forward.1} parent=0 // pred_check
    _
  $region83: #{transformer_net_forward.1} parent=0 // pred_check_branch
    %117 = sbr.rel (0) target = $region85
  $region84: #{transformer_net_forward.1} parent=0 // pred_region
    _
  $region85: #{transformer_net_forward.1} parent=0 // pred_fallthru
    _
  // Predicated region
  $region86: #{transformer_net_forward.1} parent=0 // pred_check
    _
  $region87: #{transformer_net_forward.1} parent=0 // pred_check_branch
    %119 = sbr.rel (0) target = $region89
  $region88: #{transformer_net_forward.1} parent=0 // pred_region
    _
  $region89: #{transformer_net_forward.1} parent=0 // pred_fallthru
    _
  // Predicated region
  $region90: #{transformer_net_forward.1} parent=0 // pred_check
    _
  $region91: #{transformer_net_forward.1} parent=0 // pred_check_branch
    %121 = sbr.rel (0) target = $region93
  $region92: #{transformer_net_forward.1} parent=0 // pred_region
    _
  $region93: #{transformer_net_forward.1} parent=0 // pred_fallthru
    _
  // Predicated region
  $region94: #{transformer_net_forward.1} parent=0 // pred_check
    _
  $region95: #{transformer_net_forward.1} parent=0 // pred_check_branch
    %123 = sbr.rel (0) target = $region97
  $region96: #{transformer_net_forward.1} parent=0 // pred_region
    _
  $region97: #{transformer_net_forward.1} parent=0 // pred_fallthru
    _
  // Predicated region
  $region98: #{transformer_net_forward.1} parent=0 // pred_check
    _
  $region99: #{transformer_net_forward.1} parent=0 // pred_check_branch
    %125 = sbr.rel (0) target = $region101
  $region100: #{transformer_net_forward.1} parent=0 // pred_region
    _
  $region101: #{transformer_net_forward.1} parent=0 // pred_fallthru
    _
  // Predicated region
  $region102: #{transformer_net_forward.1} parent=0 // pred_check
    _
  $region103: #{transformer_net_forward.1} parent=0 // pred_check_branch
    %127 = sbr.rel (0) target = $region105
  $region104: #{transformer_net_forward.1} parent=0 // pred_region
    _
  $region105: #{transformer_net_forward.1} parent=0 // pred_fallthru
    _
  // Predicated region
  $region106: #{transformer_net_forward.1} parent=0 // pred_check
    _
  $region107: #{transformer_net_forward.1} parent=0 // pred_check_branch
    %129 = sbr.rel (0) target = $region109
  $region108: #{transformer_net_forward.1} parent=0 // pred_region
    _
  $region109: #{transformer_net_forward.1} parent=0 // pred_fallthru
    _
  // Predicated region
  $region110: #{transformer_net_forward.1} parent=0 // pred_check
    _
  $region111: #{transformer_net_forward.1} parent=0 // pred_check_branch
    %131 = sbr.rel (0) target = $region113
  $region112: #{transformer_net_forward.1} parent=0 // pred_region
    _
  $region113: #{transformer_net_forward.1} parent=0 // pred_fallthru
    _
  // Predicated region
  $region114: #{transformer_net_forward.1} parent=0 // pred_check
    _
  $region115: #{transformer_net_forward.1} parent=0 // pred_check_branch
    %133 = sbr.rel (0) target = $region117
  $region116: #{transformer_net_forward.1} parent=0 // pred_region
    _
  $region117: #{transformer_net_forward.1} parent=0 // pred_fallthru
    _
  // Predicated region
  $region118: #{transformer_net_forward.1} parent=0 // pred_check
    _
  $region119: #{transformer_net_forward.1} parent=0 // pred_check_branch
    %135 = sbr.rel (0) target = $region121
  $region120: #{transformer_net_forward.1} parent=0 // pred_region
    _
  $region121: #{transformer_net_forward.1} parent=0 // pred_fallthru
    _
  // Predicated region
  $region122: #{transformer_net_forward.1} parent=0 // pred_check
    _
  $region123: #{transformer_net_forward.1} parent=0 // pred_check_branch
    %137 = sbr.rel (0) target = $region125
  $region124: #{transformer_net_forward.1} parent=0 // pred_region
    _
  $region125: #{transformer_net_forward.1} parent=0 // pred_fallthru
    _
  // Predicated region
  $region126: #{transformer_net_forward.1} parent=0 // pred_check
    _
  $region127: #{transformer_net_forward.1} parent=0 // pred_check_branch
    %139 = sbr.rel (0) target = $region129
  $region128: #{transformer_net_forward.1} parent=0 // pred_region
    _
  $region129: #{transformer_net_forward.1} parent=0 // pred_fallthru
    _
  // Predicated region
  $region130: #{transformer_net_forward.1} parent=0 // pred_check
    _
  $region131: #{transformer_net_forward.1} parent=0 // pred_check_branch
    %141 = sbr.rel (0) target = $region133
  $region132: #{transformer_net_forward.1} parent=0 // pred_region
    _
  $region133: #{transformer_net_forward.1} parent=0 // pred_fallthru
    _
  // Predicated region
  $region134: #{transformer_net_forward.1} parent=0 // pred_check
    _
  $region135: #{transformer_net_forward.1} parent=0 // pred_check_branch
    %143 = sbr.rel (0) target = $region137
  $region136: #{transformer_net_forward.1} parent=0 // pred_region
    _
  $region137: #{transformer_net_forward.1} parent=0 // pred_fallthru
    _
  // Predicated region
  $region138: #{transformer_net_forward.1} parent=0 // pred_check
    _
  $region139: #{transformer_net_forward.1} parent=0 // pred_check_branch
    %145 = sbr.rel (0) target = $region141
  $region140: #{transformer_net_forward.1} parent=0 // pred_region
    _
  $region141: #{transformer_net_forward.1} parent=0 // pred_fallthru
    _
  %v147 = vlaneseq
  %v148 = vshrl.u32 %v147, 7
  %v149 = vlaneseq
  %v150 = vand.u32 %v149, 127
  %vm151 = vcmp.le.s32.totalorder %v150, %v148
  %v152 = vsel %vm151, 0.0, -1e+30
  %v153 = vld [vmem:[%s1] sm:$0xff]
  %v154 = vld [vmem:[%s1 + $0x8] sm:$0xff]
  %v155 = vpack.c.bf16 %v154, %v153
  %v156 = vld [vmem:[%s3] sm:$0xf]
  %v157 = vld [vmem:[%s3 + $0x4] sm:$0xf]
  %v158 = vld [vmem:[%s3 + $0x8] sm:$0xf]
  %v159 = vld [vmem:[%s3 + $0xc] sm:$0xf]
  %v160 = vld [vmem:[%s5] sm:$0x1]
  %v162 = vlaneseq
  %v163 = vshrl.u32 %v162, 7
  %v164 = vsub.s32 0, %v163
  %v165 = vrot.slane %v160, %v164
  %v171 = vunpack.c.l.b16 %v156
  %v172 = vunpack.c.l.b16 %v157
  %v173 = vunpack.c.l.b16 %v158
  %v174 = vunpack.c.l.b16 %v159
  %v175 = vpack.c.b16 %v172, %v171
  %v176 = vpack.c.b16 %v174, %v173
  %vm179 = vcmask 261120
  %v181 = vsel %vm179, %v155, 0
  %183 = vmatprep.subr.bf16.mxu0 0
  %184 = vmatpush1.bf16.msra.mxu0 0
  %185 = vmatprep.subr.bf16.mxu0 0
  %186 = vmatpush1.bf16.msra.mxu0 0
  %187 = vmatprep.subr.bf16.mxu0 0
  %188 = vmatpush1.bf16.msra.mxu0 0
  %189 = vmatprep.subr.bf16.mxu0 0
  %190 = vmatpush1.bf16.msra.mxu0 0
  %191 = vmatprep.subr.bf16.mxu0 0
  %192 = vmatpush1.bf16.msra.mxu0 0
  %193 = vmatprep.subr.bf16.mxu0 0
  %194 = vmatpush1.bf16.msra.mxu0 0
  %195 = vmatprep.subr.bf16.mxu0 0
  %196 = vmatpush1.bf16.msra.mxu0 %v176
  %197 = vmatprep.subr.bf16.mxu0 0
  %198 = vmatpush1.bf16.msra.mxu0 %v175
  %199 = vmatprep.subr.bf16.mxu0 0
  %200 = vmatpush2.bf16.msra.mxu0 0
  %201 = vmatprep.subr.bf16.mxu0 0
  %202 = vmatpush2.bf16.msra.mxu0 0
  %203 = vmatprep.subr.bf16.mxu0 0
  %204 = vmatpush2.bf16.msra.mxu0 0
  %205 = vmatprep.subr.bf16.mxu0 0
  %206 = vmatpush2.bf16.msra.mxu0 0
  %207 = vmatprep.subr.bf16.mxu0 0
  %208 = vmatpush2.bf16.msra.mxu0 0
  %209 = vmatprep.subr.bf16.mxu0 0
  %210 = vmatpush2.bf16.msra.mxu0 0
  %211 = vmatprep.subr.bf16.mxu0 0
  %212 = vmatpush2.bf16.msra.mxu0 0
  %213 = vmatprep.subr.bf16.mxu0 0
  %214 = vmatpush2.bf16.msra.mxu0 0
  %215 = vmatprep.mubr.bf16.mxu0 0
  %216 = vmatmul.mubr.bf16.gmra.mxu0 %v181
  %v217 = vpop.f32.mrf.mxu0
  %v218 = vadd.f32 %v165, %v217
  %v219 = vpop.f32.mrf.mxu0
  %v220 = vpop.f32.mrf.mxu0
  %v221 = vadd.f32 %v165, %v220
  %v222 = vpop.f32.mrf.mxu0
  %223 = vdwg.mxu0
  %v224 = vld [vmem:[%s7] sm:$0xf]
  %v225 = vld [vmem:[%s7 + $0x4] sm:$0xf]
  %v226 = vld [vmem:[%s7 + $0x8] sm:$0xf]
  %v227 = vld [vmem:[%s7 + $0xc] sm:$0xf]
  %v228 = vld [vmem:[%s9] sm:$0x1]
  %v230 = vlaneseq
  %v231 = vshrl.u32 %v230, 7
  %v232 = vsub.s32 0, %v231
  %v233 = vrot.slane %v228, %v232
  %v239 = vunpack.c.l.b16 %v224
  %v240 = vunpack.c.l.b16 %v225
  %v241 = vunpack.c.l.b16 %v226
  %v242 = vunpack.c.l.b16 %v227
  %v243 = vpack.c.b16 %v240, %v239
  %v244 = vpack.c.b16 %v242, %v241
  %247 = vmatprep.subr.bf16.mxu0 0
  %248 = vmatpush1.bf16.msra.mxu0 0
  %249 = vmatprep.subr.bf16.mxu0 0
  %250 = vmatpush1.bf16.msra.mxu0 0
  %251 = vmatprep.subr.bf16.mxu0 0
  %252 = vmatpush1.bf16.msra.mxu0 0
  %253 = vmatprep.subr.bf16.mxu0 0
  %254 = vmatpush1.bf16.msra.mxu0 0
  %255 = vmatprep.subr.bf16.mxu0 0
  %256 = vmatpush1.bf16.msra.mxu0 0
  %257 = vmatprep.subr.bf16.mxu0 0
  %258 = vmatpush1.bf16.msra.mxu0 0
  %259 = vmatprep.subr.bf16.mxu0 0
  %260 = vmatpush1.bf16.msra.mxu0 %v244
  %261 = vmatprep.subr.bf16.mxu0 0
  %262 = vmatpush1.bf16.msra.mxu0 %v243
  %263 = vmatprep.subr.bf16.mxu0 0
  %264 = vmatpush2.bf16.msra.mxu0 0
  %265 = vmatprep.subr.bf16.mxu0 0
  %266 = vmatpush2.bf16.msra.mxu0 0
  %267 = vmatprep.subr.bf16.mxu0 0
  %268 = vmatpush2.bf16.msra.mxu0 0
  %269 = vmatprep.subr.bf16.mxu0 0
  %270 = vmatpush2.bf16.msra.mxu0 0
  %271 = vmatprep.subr.bf16.mxu0 0
  %272 = vmatpush2.bf16.msra.mxu0 0
  %273 = vmatprep.subr.bf16.mxu0 0
  %274 = vmatpush2.bf16.msra.mxu0 0
  %275 = vmatprep.subr.bf16.mxu0 0
  %276 = vmatpush2.bf16.msra.mxu0 0
  %277 = vmatprep.subr.bf16.mxu0 0
  %278 = vmatpush2.bf16.msra.mxu0 0
  %279 = vmatprep.mubr.bf16.mxu0 0
  %280 = vmatmul.mubr.bf16.gmra.mxu0 %v181
  %v281 = vpop.f32.mrf.mxu0
  %v282 = vadd.f32 %v233, %v281
  %v283 = vpop.f32.mrf.mxu0
  %v284 = vpop.f32.mrf.mxu0
  %v285 = vadd.f32 %v233, %v284
  %v286 = vpop.f32.mrf.mxu0
  %287 = vdwg.mxu0
  %v288 = vld [vmem:[%s11] sm:$0xf]
  %v289 = vld [vmem:[%s11 + $0x4] sm:$0xf]
  %v290 = vld [vmem:[%s11 + $0x8] sm:$0xf]
  %v291 = vld [vmem:[%s11 + $0xc] sm:$0xf]
  %v292 = vld [vmem:[%s13] sm:$0x1]
  %v294 = vlaneseq
  %v295 = vshrl.u32 %v294, 7
  %v296 = vsub.s32 0, %v295
  %v297 = vrot.slane %v292, %v296
  %v303 = vunpack.c.l.b16 %v288
  %v304 = vunpack.c.l.b16 %v289
  %v305 = vunpack.c.l.b16 %v290
  %v306 = vunpack.c.l.b16 %v291
  %v307 = vpack.c.b16 %v304, %v303
  %v308 = vpack.c.b16 %v306, %v305
  %311 = vmatprep.subr.bf16.mxu0 0
  %312 = vmatpush1.bf16.msra.mxu0 0
  %313 = vmatprep.subr.bf16.mxu0 0
  %314 = vmatpush1.bf16.msra.mxu0 0
  %315 = vmatprep.subr.bf16.mxu0 0
  %316 = vmatpush1.bf16.msra.mxu0 0
  %317 = vmatprep.subr.bf16.mxu0 0
  %318 = vmatpush1.bf16.msra.mxu0 0
  %319 = vmatprep.subr.bf16.mxu0 0
  %320 = vmatpush1.bf16.msra.mxu0 0
  %321 = vmatprep.subr.bf16.mxu0 0
  %322 = vmatpush1.bf16.msra.mxu0 0
  %323 = vmatprep.subr.bf16.mxu0 0
  %324 = vmatpush1.bf16.msra.mxu0 %v308
  %325 = vmatprep.subr.bf16.mxu0 0
  %326 = vmatpush1.bf16.msra.mxu0 %v307
  %327 = vmatprep.subr.bf16.mxu0 0
  %328 = vmatpush2.bf16.msra.mxu0 0
  %329 = vmatprep.subr.bf16.mxu0 0
  %330 = vmatpush2.bf16.msra.mxu0 0
  %331 = vmatprep.subr.bf16.mxu0 0
  %332 = vmatpush2.bf16.msra.mxu0 0
  %333 = vmatprep.subr.bf16.mxu0 0
  %334 = vmatpush2.bf16.msra.mxu0 0
  %335 = vmatprep.subr.bf16.mxu0 0
  %336 = vmatpush2.bf16.msra.mxu0 0
  %337 = vmatprep.subr.bf16.mxu0 0
  %338 = vmatpush2.bf16.msra.mxu0 0
  %339 = vmatprep.subr.bf16.mxu0 0
  %340 = vmatpush2.bf16.msra.mxu0 0
  %341 = vmatprep.subr.bf16.mxu0 0
  %342 = vmatpush2.bf16.msra.mxu0 0
  %343 = vmatprep.mubr.bf16.mxu0 0
  %344 = vmatmul.mubr.bf16.gmra.mxu0 %v181
  %v345 = vpop.f32.mrf.mxu0
  %v346 = vadd.f32 %v297, %v345
  %v347 = vpop.f32.mrf.mxu0
  %v348 = vpop.f32.mrf.mxu0
  %v349 = vadd.f32 %v297, %v348
  %v350 = vpop.f32.mrf.mxu0
  %351 = vdwg.mxu0
  %v352 = vpack.c.bf16 %v218, %v218
  %v353 = vpack.c.bf16 %v221, %v221
  %v354 = vpack.c.bf16 %v282, %v282
  %v355 = vpack.c.bf16 %v285, %v285
  %v356 = vpack.c.bf16 %v346, %v346
  %v357 = vpack.c.bf16 %v349, %v349
  %vm358 = vcmask 64512
  %v360 = vsel %vm358, %v352, 0
  %v363 = vsel %vm358, %v354, 0
  %365 = vmatprep.subr.bf16.mxu0 0
  %366 = vmatpush1.bf16.xpose.msra.mxu0 0
  %367 = vmatprep.subr.bf16.mxu0 0
  %368 = vmatpush1.bf16.xpose.msra.mxu0 0
  %369 = vmatprep.subr.bf16.mxu0 0
  %370 = vmatpush1.bf16.xpose.msra.mxu0 0
  %371 = vmatprep.subr.bf16.mxu0 0
  %372 = vmatpush1.bf16.xpose.msra.mxu0 0
  %373 = vmatprep.subr.bf16.mxu0 0
  %374 = vmatpush1.bf16.xpose.msra.mxu0 0
  %375 = vmatprep.subr.bf16.mxu0 0
  %376 = vmatpush1.bf16.xpose.msra.mxu0 0
  %377 = vmatprep.subr.bf16.mxu0 0
  %378 = vmatpush1.bf16.xpose.msra.mxu0 0
  %379 = vmatprep.subr.bf16.mxu0 0
  %380 = vmatpush1.bf16.xpose.msra.mxu0 %v363
  %381 = vmatprep.subr.bf16.mxu0 0
  %382 = vmatpush2.bf16.xpose.msra.mxu0 0
  %383 = vmatprep.subr.bf16.mxu0 0
  %384 = vmatpush2.bf16.xpose.msra.mxu0 0
  %385 = vmatprep.subr.bf16.mxu0 0
  %386 = vmatpush2.bf16.xpose.msra.mxu0 0
  %387 = vmatprep.subr.bf16.mxu0 0
  %388 = vmatpush2.bf16.xpose.msra.mxu0 0
  %389 = vmatprep.subr.bf16.mxu0 0
  %390 = vmatpush2.bf16.xpose.msra.mxu0 0
  %391 = vmatprep.subr.bf16.mxu0 0
  %392 = vmatpush2.bf16.xpose.msra.mxu0 0
  %393 = vmatprep.subr.bf16.mxu0 0
  %394 = vmatpush2.bf16.xpose.msra.mxu0 0
  %395 = vmatprep.subr.bf16.mxu0 0
  %396 = vmatpush2.bf16.xpose.msra.mxu0 0
  %397 = vmatprep.mubr.bf16.mxu0 0
  %398 = vmatmul.mubr.bf16.gmra.mxu0 %v360
  %v399 = vpop.f32.mrf.mxu0
  %v400 = vadd.f32 0.0, %v399
  %v401 = vpop.f32.mrf.mxu0
  %v402 = vpop.f32.mrf.mxu0
  %v403 = vpop.f32.mrf.mxu0
  %404 = vdwg.mxu0
  %v406 = vsel %vm358, %v353, 0
  %v409 = vsel %vm358, %v355, 0
  %411 = vmatprep.subr.bf16.mxu0 0
  %412 = vmatpush1.bf16.xpose.msra.mxu0 0
  %413 = vmatprep.subr.bf16.mxu0 0
  %414 = vmatpush1.bf16.xpose.msra.mxu0 0
  %415 = vmatprep.subr.bf16.mxu0 0
  %416 = vmatpush1.bf16.xpose.msra.mxu0 0
  %417 = vmatprep.subr.bf16.mxu0 0
  %418 = vmatpush1.bf16.xpose.msra.mxu0 0
  %419 = vmatprep.subr.bf16.mxu0 0
  %420 = vmatpush1.bf16.xpose.msra.mxu0 0
  %421 = vmatprep.subr.bf16.mxu0 0
  %422 = vmatpush1.bf16.xpose.msra.mxu0 0
  %423 = vmatprep.subr.bf16.mxu0 0
  %424 = vmatpush1.bf16.xpose.msra.mxu0 0
  %425 = vmatprep.subr.bf16.mxu0 0
  %426 = vmatpush1.bf16.xpose.msra.mxu0 %v409
  %427 = vmatprep.subr.bf16.mxu0 0
  %428 = vmatpush2.bf16.xpose.msra.mxu0 0
  %429 = vmatprep.subr.bf16.mxu0 0
  %430 = vmatpush2.bf16.xpose.msra.mxu0 0
  %431 = vmatprep.subr.bf16.mxu0 0
  %432 = vmatpush2.bf16.xpose.msra.mxu0 0
  %433 = vmatprep.subr.bf16.mxu0 0
  %434 = vmatpush2.bf16.xpose.msra.mxu0 0
  %435 = vmatprep.subr.bf16.mxu0 0
  %436 = vmatpush2.bf16.xpose.msra.mxu0 0
  %437 = vmatprep.subr.bf16.mxu0 0
  %438 = vmatpush2.bf16.xpose.msra.mxu0 0
  %439 = vmatprep.subr.bf16.mxu0 0
  %440 = vmatpush2.bf16.xpose.msra.mxu0 0
  %441 = vmatprep.subr.bf16.mxu0 0
  %442 = vmatpush2.bf16.xpose.msra.mxu0 0
  %443 = vmatprep.mubr.bf16.mxu0 0
  %444 = vmatmul.mubr.bf16.gmra.mxu0 %v406
  %v445 = vpop.f32.mrf.mxu0
  %v446 = vadd.f32 0.0, %v445
  %v447 = vpop.f32.mrf.mxu0
  %v448 = vpop.f32.mrf.mxu0
  %v449 = vpop.f32.mrf.mxu0
  %450 = vdwg.mxu0
  %v451 = vmul.f32 %v400, 0.35355338
  %v452 = vmul.f32 %v446, 0.35355338
  %v453 = vadd.f32 %v451, %v152
  %v454 = vadd.f32 %v452, %v152
  %v455 = vsel %vm358, %v453, -inf
  %456 = vmax.xlane.f32.xlu0 %v455
  %v457 = vpop.xlane.xlu0 %456
  %v458 = vsel %vm358, %v454, -inf
  %459 = vmax.xlane.f32.xlu0 %v458
  %v460 = vpop.xlane.xlu0 %459
  %v461 = vsub.f32 %v453, %v457
  %v462 = vsub.f32 %v454, %v460
  %v463 = vmul.f32 %v461, 1.442695
  %v464 = vpow.pop %v463
  %v465 = vmul.f32 %v462, 1.442695
  %v466 = vpow.pop %v465
  %v467 = vsel %vm358, %v464, 0.0
  %468 = vadd.xlane.f32.xlu0 %v467
  %v469 = vpop.xlane.xlu0 %468
  %v470 = vsel %vm358, %v466, 0.0
  %471 = vadd.xlane.f32.xlu0 %v470
  %v472 = vpop.xlane.xlu0 %471
  %v473 = vrcp.pop %v469
  %v474 = vrcp.pop %v472
  %v475 = vmul.f32 %v464, %v473
  %v476 = vmul.f32 %v466, %v474
  %v477 = vpack.c.bf16 %v475, %v475
  %v478 = vpack.c.bf16 %v476, %v476
  %v480 = vsel %vm358, %v477, 0
  %vm482 = vcmask 1043456
  %v484 = vsel %vm482, %v356, 0
  %486 = vmatprep.subr.bf16.mxu0 0
  %487 = vmatpush1.bf16.msra.mxu0 0
  %488 = vmatprep.subr.bf16.mxu0 0
  %489 = vmatpush1.bf16.msra.mxu0 0
  %490 = vmatprep.subr.bf16.mxu0 0
  %491 = vmatpush1.bf16.msra.mxu0 0
  %492 = vmatprep.subr.bf16.mxu0 0
  %493 = vmatpush1.bf16.msra.mxu0 0
  %494 = vmatprep.subr.bf16.mxu0 0
  %495 = vmatpush1.bf16.msra.mxu0 0
  %496 = vmatprep.subr.bf16.mxu0 0
  %497 = vmatpush1.bf16.msra.mxu0 0
  %498 = vmatprep.subr.bf16.mxu0 0
  %499 = vmatpush1.bf16.msra.mxu0 0
  %500 = vmatprep.subr.bf16.mxu0 0
  %501 = vmatpush1.bf16.msra.mxu0 %v484
  %502 = vmatprep.subr.bf16.mxu0 0
  %503 = vmatpush2.bf16.msra.mxu0 0
  %504 = vmatprep.subr.bf16.mxu0 0
  %505 = vmatpush2.bf16.msra.mxu0 0
  %506 = vmatprep.subr.bf16.mxu0 0
  %507 = vmatpush2.bf16.msra.mxu0 0
  %508 = vmatprep.subr.bf16.mxu0 0
  %509 = vmatpush2.bf16.msra.mxu0 0
  %510 = vmatprep.subr.bf16.mxu0 0
  %511 = vmatpush2.bf16.msra.mxu0 0
  %512 = vmatprep.subr.bf16.mxu0 0
  %513 = vmatpush2.bf16.msra.mxu0 0
  %514 = vmatprep.subr.bf16.mxu0 0
  %515 = vmatpush2.bf16.msra.mxu0 0
  %516 = vmatprep.subr.bf16.mxu0 0
  %517 = vmatpush2.bf16.msra.mxu0 0
  %518 = vmatprep.mubr.bf16.mxu0 0
  %519 = vmatmul.mubr.bf16.gmra.mxu0 %v480
  %v520 = vpop.f32.mrf.mxu0
  %v521 = vadd.f32 0.0, %v520
  %v522 = vpop.f32.mrf.mxu0
  %v523 = vpop.f32.mrf.mxu0
  %v524 = vpop.f32.mrf.mxu0
  %525 = vdwg.mxu0
  %v527 = vsel %vm358, %v478, 0
  %v530 = vsel %vm482, %v357, 0
  %532 = vmatprep.subr.bf16.mxu0 0
  %533 = vmatpush1.bf16.msra.mxu0 0
  %534 = vmatprep.subr.bf16.mxu0 0
  %535 = vmatpush1.bf16.msra.mxu0 0
  %536 = vmatprep.subr.bf16.mxu0 0
  %537 = vmatpush1.bf16.msra.mxu0 0
  %538 = vmatprep.subr.bf16.mxu0 0
  %539 = vmatpush1.bf16.msra.mxu0 0
  %540 = vmatprep.subr.bf16.mxu0 0
  %541 = vmatpush1.bf16.msra.mxu0 0
  %542 = vmatprep.subr.bf16.mxu0 0
  %543 = vmatpush1.bf16.msra.mxu0 0
  %544 = vmatprep.subr.bf16.mxu0 0
  %545 = vmatpush1.bf16.msra.mxu0 0
  %546 = vmatprep.subr.bf16.mxu0 0
  %547 = vmatpush1.bf16.msra.mxu0 %v530
  %548 = vmatprep.subr.bf16.mxu0 0
  %549 = vmatpush2.bf16.msra.mxu0 0
  %550 = vmatprep.subr.bf16.mxu0 0
  %551 = vmatpush2.bf16.msra.mxu0 0
  %552 = vmatprep.subr.bf16.mxu0 0
  %553 = vmatpush2.bf16.msra.mxu0 0
  %554 = vmatprep.subr.bf16.mxu0 0
  %555 = vmatpush2.bf16.msra.mxu0 0
  %556 = vmatprep.subr.bf16.mxu0 0
  %557 = vmatpush2.bf16.msra.mxu0 0
  %558 = vmatprep.subr.bf16.mxu0 0
  %559 = vmatpush2.bf16.msra.mxu0 0
  %560 = vmatprep.subr.bf16.mxu0 0
  %561 = vmatpush2.bf16.msra.mxu0 0
  %562 = vmatprep.subr.bf16.mxu0 0
  %563 = vmatpush2.bf16.msra.mxu0 0
  %564 = vmatprep.mubr.bf16.mxu0 0
  %565 = vmatmul.mubr.bf16.gmra.mxu0 %v527
  %v566 = vpop.f32.mrf.mxu0
  %v567 = vadd.f32 0.0, %v566
  %v568 = vpop.f32.mrf.mxu0
  %v569 = vpop.f32.mrf.mxu0
  %v570 = vpop.f32.mrf.mxu0
  %571 = vdwg.mxu0
  %v572 = vpack.c.bf16 %v567, %v521
  %v573 = vld [vmem:[%s15] sm:$0xf]
  %575 = vrot.lane.b32.xlu0 %v352, 120
  %v576 = vpop.permute.xlu0 %575
  %578 = vrot.lane.b32.xlu0 %v354, 120
  %v579 = vpop.permute.xlu0 %578
  %v581 = vsel %vm358, %v576, 0
  %v584 = vsel %vm358, %v579, 0
  %586 = vmatprep.subr.bf16.mxu0 0
  %587 = vmatpush1.bf16.xpose.msra.mxu0 0
  %588 = vmatprep.subr.bf16.mxu0 0
  %589 = vmatpush1.bf16.xpose.msra.mxu0 0
  %590 = vmatprep.subr.bf16.mxu0 0
  %591 = vmatpush1.bf16.xpose.msra.mxu0 0
  %592 = vmatprep.subr.bf16.mxu0 0
  %593 = vmatpush1.bf16.xpose.msra.mxu0 0
  %594 = vmatprep.subr.bf16.mxu0 0
  %595 = vmatpush1.bf16.xpose.msra.mxu0 0
  %596 = vmatprep.subr.bf16.mxu0 0
  %597 = vmatpush1.bf16.xpose.msra.mxu0 0
  %598 = vmatprep.subr.bf16.mxu0 0
  %599 = vmatpush1.bf16.xpose.msra.mxu0 0
  %600 = vmatprep.subr.bf16.mxu0 0
  %601 = vmatpush1.bf16.xpose.msra.mxu0 %v584
  %602 = vmatprep.subr.bf16.mxu0 0
  %603 = vmatpush2.bf16.xpose.msra.mxu0 0
  %604 = vmatprep.subr.bf16.mxu0 0
  %605 = vmatpush2.bf16.xpose.msra.mxu0 0
  %606 = vmatprep.subr.bf16.mxu0 0
  %607 = vmatpush2.bf16.xpose.msra.mxu0 0
  %608 = vmatprep.subr.bf16.mxu0 0
  %609 = vmatpush2.bf16.xpose.msra.mxu0 0
  %610 = vmatprep.subr.bf16.mxu0 0
  %611 = vmatpush2.bf16.xpose.msra.mxu0 0
  %612 = vmatprep.subr.bf16.mxu0 0
  %613 = vmatpush2.bf16.xpose.msra.mxu0 0
  %614 = vmatprep.subr.bf16.mxu0 0
  %615 = vmatpush2.bf16.xpose.msra.mxu0 0
  %616 = vmatprep.subr.bf16.mxu0 0
  %617 = vmatpush2.bf16.xpose.msra.mxu0 0
  %618 = vmatprep.mubr.bf16.mxu0 0
  %619 = vmatmul.mubr.bf16.gmra.mxu0 %v581
  %v620 = vpop.f32.mrf.mxu0
  %v621 = vadd.f32 0.0, %v620
  %v622 = vpop.f32.mrf.mxu0
  %v623 = vpop.f32.mrf.mxu0
  %v624 = vpop.f32.mrf.mxu0
  %625 = vdwg.mxu0
  %627 = vrot.lane.b32.xlu0 %v353, 120
  %v628 = vpop.permute.xlu0 %627
  %630 = vrot.lane.b32.xlu0 %v355, 120
  %v631 = vpop.permute.xlu0 %630
  %v633 = vsel %vm358, %v628, 0
  %v636 = vsel %vm358, %v631, 0
  %638 = vmatprep.subr.bf16.mxu0 0
  %639 = vmatpush1.bf16.xpose.msra.mxu0 0
  %640 = vmatprep.subr.bf16.mxu0 0
  %641 = vmatpush1.bf16.xpose.msra.mxu0 0
  %642 = vmatprep.subr.bf16.mxu0 0
  %643 = vmatpush1.bf16.xpose.msra.mxu0 0
  %644 = vmatprep.subr.bf16.mxu0 0
  %645 = vmatpush1.bf16.xpose.msra.mxu0 0
  %646 = vmatprep.subr.bf16.mxu0 0
  %647 = vmatpush1.bf16.xpose.msra.mxu0 0
  %648 = vmatprep.subr.bf16.mxu0 0
  %649 = vmatpush1.bf16.xpose.msra.mxu0 0
  %650 = vmatprep.subr.bf16.mxu0 0
  %651 = vmatpush1.bf16.xpose.msra.mxu0 0
  %652 = vmatprep.subr.bf16.mxu0 0
  %653 = vmatpush1.bf16.xpose.msra.mxu0 %v636
  %654 = vmatprep.subr.bf16.mxu0 0
  %655 = vmatpush2.bf16.xpose.msra.mxu0 0
  %656 = vmatprep.subr.bf16.mxu0 0
  %657 = vmatpush2.bf16.xpose.msra.mxu0 0
  %658 = vmatprep.subr.bf16.mxu0 0
  %659 = vmatpush2.bf16.xpose.msra.mxu0 0
  %660 = vmatprep.subr.bf16.mxu0 0
  %661 = vmatpush2.bf16.xpose.msra.mxu0 0
  %662 = vmatprep.subr.bf16.mxu0 0
  %663 = vmatpush2.bf16.xpose.msra.mxu0 0
  %664 = vmatprep.subr.bf16.mxu0 0
  %665 = vmatpush2.bf16.xpose.msra.mxu0 0
  %666 = vmatprep.subr.bf16.mxu0 0
  %667 = vmatpush2.bf16.xpose.msra.mxu0 0
  %668 = vmatprep.subr.bf16.mxu0 0
  %669 = vmatpush2.bf16.xpose.msra.mxu0 0
  %670 = vmatprep.mubr.bf16.mxu0 0
  %671 = vmatmul.mubr.bf16.gmra.mxu0 %v633
  %v672 = vpop.f32.mrf.mxu0
  %v673 = vadd.f32 0.0, %v672
  %v674 = vpop.f32.mrf.mxu0
  %v675 = vpop.f32.mrf.mxu0
  %v676 = vpop.f32.mrf.mxu0
  %677 = vdwg.mxu0
  %v678 = vmul.f32 %v621, 0.35355338
  %v679 = vmul.f32 %v673, 0.35355338
  %v680 = vadd.f32 %v678, %v152
  %v681 = vadd.f32 %v679, %v152
  %v682 = vsel %vm358, %v680, -inf
  %683 = vmax.xlane.f32.xlu0 %v682
  %v684 = vpop.xlane.xlu0 %683
  %v685 = vsel %vm358, %v681, -inf
  %686 = vmax.xlane.f32.xlu0 %v685
  %v687 = vpop.xlane.xlu0 %686
  %v688 = vsub.f32 %v680, %v684
  %v689 = vsub.f32 %v681, %v687
  %v690 = vmul.f32 %v688, 1.442695
  %v691 = vpow.pop %v690
  %v692 = vmul.f32 %v689, 1.442695
  %v693 = vpow.pop %v692
  %v694 = vsel %vm358, %v691, 0.0
  %695 = vadd.xlane.f32.xlu0 %v694
  %v696 = vpop.xlane.xlu0 %695
  %v697 = vsel %vm358, %v693, 0.0
  %698 = vadd.xlane.f32.xlu0 %v697
  %v699 = vpop.xlane.xlu0 %698
  %v700 = vrcp.pop %v696
  %v701 = vrcp.pop %v699
  %v702 = vmul.f32 %v691, %v700
  %v703 = vmul.f32 %v693, %v701
  %v704 = vpack.c.bf16 %v702, %v702
  %v705 = vpack.c.bf16 %v703, %v703
  %707 = vrot.lane.b32.xlu0 %v356, 120
  %v708 = vpop.permute.xlu0 %707
  %v710 = vsel %vm358, %v704, 0
  %v713 = vsel %vm482, %v708, 0
  %715 = vmatprep.subr.bf16.mxu0 0
  %716 = vmatpush1.bf16.msra.mxu0 0
  %717 = vmatprep.subr.bf16.mxu0 0
  %718 = vmatpush1.bf16.msra.mxu0 0
  %719 = vmatprep.subr.bf16.mxu0 0
  %720 = vmatpush1.bf16.msra.mxu0 0
  %721 = vmatprep.subr.bf16.mxu0 0
  %722 = vmatpush1.bf16.msra.mxu0 0
  %723 = vmatprep.subr.bf16.mxu0 0
  %724 = vmatpush1.bf16.msra.mxu0 0
  %725 = vmatprep.subr.bf16.mxu0 0
  %726 = vmatpush1.bf16.msra.mxu0 0
  %727 = vmatprep.subr.bf16.mxu0 0
  %728 = vmatpush1.bf16.msra.mxu0 0
  %729 = vmatprep.subr.bf16.mxu0 0
  %730 = vmatpush1.bf16.msra.mxu0 %v713
  %731 = vmatprep.subr.bf16.mxu0 0
  %732 = vmatpush2.bf16.msra.mxu0 0
  %733 = vmatprep.subr.bf16.mxu0 0
  %734 = vmatpush2.bf16.msra.mxu0 0
  %735 = vmatprep.subr.bf16.mxu0 0
  %736 = vmatpush2.bf16.msra.mxu0 0
  %737 = vmatprep.subr.bf16.mxu0 0
  %738 = vmatpush2.bf16.msra.mxu0 0
  %739 = vmatprep.subr.bf16.mxu0 0
  %740 = vmatpush2.bf16.msra.mxu0 0
  %741 = vmatprep.subr.bf16.mxu0 0
  %742 = vmatpush2.bf16.msra.mxu0 0
  %743 = vmatprep.subr.bf16.mxu0 0
  %744 = vmatpush2.bf16.msra.mxu0 0
  %745 = vmatprep.subr.bf16.mxu0 0
  %746 = vmatpush2.bf16.msra.mxu0 0
  %747 = vmatprep.mubr.bf16.mxu0 0
  %748 = vmatmul.mubr.bf16.gmra.mxu0 %v710
  %v749 = vpop.f32.mrf.mxu0
  %v750 = vadd.f32 0.0, %v749
  %v751 = vpop.f32.mrf.mxu0
  %v752 = vpop.f32.mrf.mxu0
  %v753 = vpop.f32.mrf.mxu0
  %754 = vdwg.mxu0
  %756 = vrot.lane.b32.xlu0 %v357, 120
  %v757 = vpop.permute.xlu0 %756
  %v759 = vsel %vm358, %v705, 0
  %v762 = vsel %vm482, %v757, 0
  %764 = vmatprep.subr.bf16.mxu0 0
  %765 = vmatpush1.bf16.msra.mxu0 0
  %766 = vmatprep.subr.bf16.mxu0 0
  %767 = vmatpush1.bf16.msra.mxu0 0
  %768 = vmatprep.subr.bf16.mxu0 0
  %769 = vmatpush1.bf16.msra.mxu0 0
  %770 = vmatprep.subr.bf16.mxu0 0
  %771 = vmatpush1.bf16.msra.mxu0 0
  %772 = vmatprep.subr.bf16.mxu0 0
  %773 = vmatpush1.bf16.msra.mxu0 0
  %774 = vmatprep.subr.bf16.mxu0 0
  %775 = vmatpush1.bf16.msra.mxu0 0
  %776 = vmatprep.subr.bf16.mxu0 0
  %777 = vmatpush1.bf16.msra.mxu0 0
  %778 = vmatprep.subr.bf16.mxu0 0
  %779 = vmatpush1.bf16.msra.mxu0 %v762
  %780 = vmatprep.subr.bf16.mxu0 0
  %781 = vmatpush2.bf16.msra.mxu0 0
  %782 = vmatprep.subr.bf16.mxu0 0
  %783 = vmatpush2.bf16.msra.mxu0 0
  %784 = vmatprep.subr.bf16.mxu0 0
  %785 = vmatpush2.bf16.msra.mxu0 0
  %786 = vmatprep.subr.bf16.mxu0 0
  %787 = vmatpush2.bf16.msra.mxu0 0
  %788 = vmatprep.subr.bf16.mxu0 0
  %789 = vmatpush2.bf16.msra.mxu0 0
  %790 = vmatprep.subr.bf16.mxu0 0
  %791 = vmatpush2.bf16.msra.mxu0 0
  %792 = vmatprep.subr.bf16.mxu0 0
  %793 = vmatpush2.bf16.msra.mxu0 0
  %794 = vmatprep.subr.bf16.mxu0 0
  %795 = vmatpush2.bf16.msra.mxu0 0
  %796 = vmatprep.mubr.bf16.mxu0 0
  %797 = vmatmul.mubr.bf16.gmra.mxu0 %v759
  %v798 = vpop.f32.mrf.mxu0
  %v799 = vadd.f32 0.0, %v798
  %v800 = vpop.f32.mrf.mxu0
  %v801 = vpop.f32.mrf.mxu0
  %v802 = vpop.f32.mrf.mxu0
  %803 = vdwg.mxu0
  %v804 = vpack.c.bf16 %v799, %v750
  %s805 = scalar_lea.vmem %s15, 4
  %v806 = vld [vmem:[%s805] sm:$0xf]
  %v808 = vsel %vm358, %v804, 0
  %v811 = vsel %vm482, %v806, 0
  %813 = vmatprep.subr.bf16.mxu0 0
  %814 = vmatpush1.bf16.msra.mxu0 0
  %815 = vmatprep.subr.bf16.mxu0 0
  %816 = vmatpush1.bf16.msra.mxu0 0
  %817 = vmatprep.subr.bf16.mxu0 0
  %818 = vmatpush1.bf16.msra.mxu0 0
  %819 = vmatprep.subr.bf16.mxu0 0
  %820 = vmatpush1.bf16.msra.mxu0 0
  %821 = vmatprep.subr.bf16.mxu0 0
  %822 = vmatpush1.bf16.msra.mxu0 0
  %823 = vmatprep.subr.bf16.mxu0 0
  %824 = vmatpush1.bf16.msra.mxu0 0
  %825 = vmatprep.subr.bf16.mxu0 0
  %826 = vmatpush1.bf16.msra.mxu0 0
  %827 = vmatprep.subr.bf16.mxu0 0
  %828 = vmatpush1.bf16.msra.mxu0 %v811
  %829 = vmatprep.subr.bf16.mxu0 0
  %830 = vmatpush2.bf16.msra.mxu0 0
  %831 = vmatprep.subr.bf16.mxu0 0
  %832 = vmatpush2.bf16.msra.mxu0 0
  %833 = vmatprep.subr.bf16.mxu0 0
  %834 = vmatpush2.bf16.msra.mxu0 0
  %835 = vmatprep.subr.bf16.mxu0 0
  %836 = vmatpush2.bf16.msra.mxu0 0
  %837 = vmatprep.subr.bf16.mxu0 0
  %838 = vmatpush2.bf16.msra.mxu0 0
  %839 = vmatprep.subr.bf16.mxu0 0
  %840 = vmatpush2.bf16.msra.mxu0 0
  %841 = vmatprep.subr.bf16.mxu0 0
  %842 = vmatpush2.bf16.msra.mxu0 0
  %843 = vmatprep.subr.bf16.mxu0 0
  %844 = vmatpush2.bf16.msra.mxu0 0
  %845 = vmatprep.mubr.bf16.mxu0 0
  %846 = vmatmul.mubr.bf16.gmra.mxu0 %v808
  %v847 = vpop.f32.mrf.mxu0
  %v848 = vadd.f32 0.0, %v847
  %v849 = vpop.f32.mrf.mxu0
  %v850 = vpop.f32.mrf.mxu0
  %v851 = vadd.f32 0.0, %v850
  %v852 = vpop.f32.mrf.mxu0
  %853 = vdwg.mxu0
  %v855 = vsel %vm358, %v572, 0
  %v858 = vsel %vm482, %v573, 0
  %860 = vmatprep.subr.bf16.mxu0 0
  %861 = vmatpush1.bf16.msra.mxu0 0
  %862 = vmatprep.subr.bf16.mxu0 0
  %863 = vmatpush1.bf16.msra.mxu0 0
  %864 = vmatprep.subr.bf16.mxu0 0
  %865 = vmatpush1.bf16.msra.mxu0 0
  %866 = vmatprep.subr.bf16.mxu0 0
  %867 = vmatpush1.bf16.msra.mxu0 0
  %868 = vmatprep.subr.bf16.mxu0 0
  %869 = vmatpush1.bf16.msra.mxu0 0
  %870 = vmatprep.subr.bf16.mxu0 0
  %871 = vmatpush1.bf16.msra.mxu0 0
  %872 = vmatprep.subr.bf16.mxu0 0
  %873 = vmatpush1.bf16.msra.mxu0 0
  %874 = vmatprep.subr.bf16.mxu0 0
  %875 = vmatpush1.bf16.msra.mxu0 %v858
  %876 = vmatprep.subr.bf16.mxu0 0
  %877 = vmatpush2.bf16.msra.mxu0 0
  %878 = vmatprep.subr.bf16.mxu0 0
  %879 = vmatpush2.bf16.msra.mxu0 0
  %880 = vmatprep.subr.bf16.mxu0 0
  %881 = vmatpush2.bf16.msra.mxu0 0
  %882 = vmatprep.subr.bf16.mxu0 0
  %883 = vmatpush2.bf16.msra.mxu0 0
  %884 = vmatprep.subr.bf16.mxu0 0
  %885 = vmatpush2.bf16.msra.mxu0 0
  %886 = vmatprep.subr.bf16.mxu0 0
  %887 = vmatpush2.bf16.msra.mxu0 0
  %888 = vmatprep.subr.bf16.mxu0 0
  %889 = vmatpush2.bf16.msra.mxu0 0
  %890 = vmatprep.subr.bf16.mxu0 0
  %891 = vmatpush2.bf16.msra.mxu0 0
  %892 = vmatprep.mubr.bf16.mxu0 0
  %893 = vmatmul.mubr.bf16.gmra.mxu0 %v855
  %v894 = vpop.f32.mrf.mxu0
  %v895 = vadd.f32 %v848, %v894
  %v896 = vpop.f32.mrf.mxu0
  %v897 = vpop.f32.mrf.mxu0
  %v898 = vadd.f32 %v851, %v897
  %v899 = vpop.f32.mrf.mxu0
  %900 = vdwg.mxu0
  %901 = vrot.lane.b32.xlu0 %v352, 112
  %v902 = vpop.permute.xlu0 %901
  %903 = vrot.lane.b32.xlu0 %v354, 112
  %v904 = vpop.permute.xlu0 %903
  %v906 = vsel %vm358, %v902, 0
  %v909 = vsel %vm358, %v904, 0
  %911 = vmatprep.subr.bf16.mxu0 0
  %912 = vmatpush1.bf16.xpose.msra.mxu0 0
  %913 = vmatprep.subr.bf16.mxu0 0
  %914 = vmatpush1.bf16.xpose.msra.mxu0 0
  %915 = vmatprep.subr.bf16.mxu0 0
  %916 = vmatpush1.bf16.xpose.msra.mxu0 0
  %917 = vmatprep.subr.bf16.mxu0 0
  %918 = vmatpush1.bf16.xpose.msra.mxu0 0
  %919 = vmatprep.subr.bf16.mxu0 0
  %920 = vmatpush1.bf16.xpose.msra.mxu0 0
  %921 = vmatprep.subr.bf16.mxu0 0
  %922 = vmatpush1.bf16.xpose.msra.mxu0 0
  %923 = vmatprep.subr.bf16.mxu0 0
  %924 = vmatpush1.bf16.xpose.msra.mxu0 0
  %925 = vmatprep.subr.bf16.mxu0 0
  %926 = vmatpush1.bf16.xpose.msra.mxu0 %v909
  %927 = vmatprep.subr.bf16.mxu0 0
  %928 = vmatpush2.bf16.xpose.msra.mxu0 0
  %929 = vmatprep.subr.bf16.mxu0 0
  %930 = vmatpush2.bf16.xpose.msra.mxu0 0
  %931 = vmatprep.subr.bf16.mxu0 0
  %932 = vmatpush2.bf16.xpose.msra.mxu0 0
  %933 = vmatprep.subr.bf16.mxu0 0
  %934 = vmatpush2.bf16.xpose.msra.mxu0 0
  %935 = vmatprep.subr.bf16.mxu0 0
  %936 = vmatpush2.bf16.xpose.msra.mxu0 0
  %937 = vmatprep.subr.bf16.mxu0 0
  %938 = vmatpush2.bf16.xpose.msra.mxu0 0
  %939 = vmatprep.subr.bf16.mxu0 0
  %940 = vmatpush2.bf16.xpose.msra.mxu0 0
  %941 = vmatprep.subr.bf16.mxu0 0
  %942 = vmatpush2.bf16.xpose.msra.mxu0 0
  %943 = vmatprep.mubr.bf16.mxu0 0
  %944 = vmatmul.mubr.bf16.gmra.mxu0 %v906
  %v945 = vpop.f32.mrf.mxu0
  %v946 = vadd.f32 0.0, %v945
  %v947 = vpop.f32.mrf.mxu0
  %v948 = vpop.f32.mrf.mxu0
  %v949 = vpop.f32.mrf.mxu0
  %950 = vdwg.mxu0
  %951 = vrot.lane.b32.xlu0 %v353, 112
  %v952 = vpop.permute.xlu0 %951
  %953 = vrot.lane.b32.xlu0 %v355, 112
  %v954 = vpop.permute.xlu0 %953
  %v956 = vsel %vm358, %v952, 0
  %v959 = vsel %vm358, %v954, 0
  %961 = vmatprep.subr.bf16.mxu0 0
  %962 = vmatpush1.bf16.xpose.msra.mxu0 0
  %963 = vmatprep.subr.bf16.mxu0 0
  %964 = vmatpush1.bf16.xpose.msra.mxu0 0
  %965 = vmatprep.subr.bf16.mxu0 0
  %966 = vmatpush1.bf16.xpose.msra.mxu0 0
  %967 = vmatprep.subr.bf16.mxu0 0
  %968 = vmatpush1.bf16.xpose.msra.mxu0 0
  %969 = vmatprep.subr.bf16.mxu0 0
  %970 = vmatpush1.bf16.xpose.msra.mxu0 0
  %971 = vmatprep.subr.bf16.mxu0 0
  %972 = vmatpush1.bf16.xpose.msra.mxu0 0
  %973 = vmatprep.subr.bf16.mxu0 0
  %974 = vmatpush1.bf16.xpose.msra.mxu0 0
  %975 = vmatprep.subr.bf16.mxu0 0
  %976 = vmatpush1.bf16.xpose.msra.mxu0 %v959
  %977 = vmatprep.subr.bf16.mxu0 0
  %978 = vmatpush2.bf16.xpose.msra.mxu0 0
  %979 = vmatprep.subr.bf16.mxu0 0
  %980 = vmatpush2.bf16.xpose.msra.mxu0 0
  %981 = vmatprep.subr.bf16.mxu0 0
  %982 = vmatpush2.bf16.xpose.msra.mxu0 0
  %983 = vmatprep.subr.bf16.mxu0 0
  %984 = vmatpush2.bf16.xpose.msra.mxu0 0
  %985 = vmatprep.subr.bf16.mxu0 0
  %986 = vmatpush2.bf16.xpose.msra.mxu0 0
  %987 = vmatprep.subr.bf16.mxu0 0
  %988 = vmatpush2.bf16.xpose.msra.mxu0 0
  %989 = vmatprep.subr.bf16.mxu0 0
  %990 = vmatpush2.bf16.xpose.msra.mxu0 0
  %991 = vmatprep.subr.bf16.mxu0 0
  %992 = vmatpush2.bf16.xpose.msra.mxu0 0
  %993 = vmatprep.mubr.bf16.mxu0 0
  %994 = vmatmul.mubr.bf16.gmra.mxu0 %v956
  %v995 = vpop.f32.mrf.mxu0
  %v996 = vadd.f32 0.0, %v995
  %v997 = vpop.f32.mrf.mxu0
  %v998 = vpop.f32.mrf.mxu0
  %v999 = vpop.f32.mrf.mxu0
  %1000 = vdwg.mxu0
  %v1001 = vmul.f32 %v946, 0.35355338
  %v1002 = vmul.f32 %v996, 0.35355338
  %v1003 = vadd.f32 %v1001, %v152
  %v1004 = vadd.f32 %v1002, %v152
  %v1005 = vsel %vm358, %v1003, -inf
  %1006 = vmax.xlane.f32.xlu0 %v1005
  %v1007 = vpop.xlane.xlu0 %1006
  %v1008 = vsel %vm358, %v1004, -inf
  %1009 = vmax.xlane.f32.xlu0 %v1008
  %v1010 = vpop.xlane.xlu0 %1009
  %v1011 = vsub.f32 %v1003, %v1007
  %v1012 = vsub.f32 %v1004, %v1010
  %v1013 = vmul.f32 %v1011, 1.442695
  %v1014 = vpow.pop %v1013
  %v1015 = vmul.f32 %v1012, 1.442695
  %v1016 = vpow.pop %v1015
  %v1017 = vsel %vm358, %v1014, 0.0
  %1018 = vadd.xlane.f32.xlu0 %v1017
  %v1019 = vpop.xlane.xlu0 %1018
  %v1020 = vsel %vm358, %v1016, 0.0
  %1021 = vadd.xlane.f32.xlu0 %v1020
  %v1022 = vpop.xlane.xlu0 %1021
  %v1023 = vrcp.pop %v1019
  %v1024 = vrcp.pop %v1022
  %v1025 = vmul.f32 %v1014, %v1023
  %v1026 = vmul.f32 %v1016, %v1024
  %v1027 = vpack.c.bf16 %v1025, %v1025
  %v1028 = vpack.c.bf16 %v1026, %v1026
  %1029 = vrot.lane.b32.xlu0 %v356, 112
  %v1030 = vpop.permute.xlu0 %1029
  %v1032 = vsel %vm358, %v1027, 0
  %v1035 = vsel %vm482, %v1030, 0
  %1037 = vmatprep.subr.bf16.mxu0 0
  %1038 = vmatpush1.bf16.msra.mxu0 0
  %1039 = vmatprep.subr.bf16.mxu0 0
  %1040 = vmatpush1.bf16.msra.mxu0 0
  %1041 = vmatprep.subr.bf16.mxu0 0
  %1042 = vmatpush1.bf16.msra.mxu0 0
  %1043 = vmatprep.subr.bf16.mxu0 0
  %1044 = vmatpush1.bf16.msra.mxu0 0
  %1045 = vmatprep.subr.bf16.mxu0 0
  %1046 = vmatpush1.bf16.msra.mxu0 0
  %1047 = vmatprep.subr.bf16.mxu0 0
  %1048 = vmatpush1.bf16.msra.mxu0 0
  %1049 = vmatprep.subr.bf16.mxu0 0
  %1050 = vmatpush1.bf16.msra.mxu0 0
  %1051 = vmatprep.subr.bf16.mxu0 0
  %1052 = vmatpush1.bf16.msra.mxu0 %v1035
  %1053 = vmatprep.subr.bf16.mxu0 0
  %1054 = vmatpush2.bf16.msra.mxu0 0
  %1055 = vmatprep.subr.bf16.mxu0 0
  %1056 = vmatpush2.bf16.msra.mxu0 0
  %1057 = vmatprep.subr.bf16.mxu0 0
  %1058 = vmatpush2.bf16.msra.mxu0 0
  %1059 = vmatprep.subr.bf16.mxu0 0
  %1060 = vmatpush2.bf16.msra.mxu0 0
  %1061 = vmatprep.subr.bf16.mxu0 0
  %1062 = vmatpush2.bf16.msra.mxu0 0
  %1063 = vmatprep.subr.bf16.mxu0 0
  %1064 = vmatpush2.bf16.msra.mxu0 0
  %1065 = vmatprep.subr.bf16.mxu0 0
  %1066 = vmatpush2.bf16.msra.mxu0 0
  %1067 = vmatprep.subr.bf16.mxu0 0
  %1068 = vmatpush2.bf16.msra.mxu0 0
  %1069 = vmatprep.mubr.bf16.mxu0 0
  %1070 = vmatmul.mubr.bf16.gmra.mxu0 %v1032
  %v1071 = vpop.f32.mrf.mxu0
  %v1072 = vadd.f32 0.0, %v1071
  %v1073 = vpop.f32.mrf.mxu0
  %v1074 = vpop.f32.mrf.mxu0
  %v1075 = vpop.f32.mrf.mxu0
  %1076 = vdwg.mxu0
  %1077 = vrot.lane.b32.xlu0 %v357, 112
  %v1078 = vpop.permute.xlu0 %1077
  %v1080 = vsel %vm358, %v1028, 0
  %v1083 = vsel %vm482, %v1078, 0
  %1085 = vmatprep.subr.bf16.mxu0 0
  %1086 = vmatpush1.bf16.msra.mxu0 0
  %1087 = vmatprep.subr.bf16.mxu0 0
  %1088 = vmatpush1.bf16.msra.mxu0 0
  %1089 = vmatprep.subr.bf16.mxu0 0
  %1090 = vmatpush1.bf16.msra.mxu0 0
  %1091 = vmatprep.subr.bf16.mxu0 0
  %1092 = vmatpush1.bf16.msra.mxu0 0
  %1093 = vmatprep.subr.bf16.mxu0 0
  %1094 = vmatpush1.bf16.msra.mxu0 0
  %1095 = vmatprep.subr.bf16.mxu0 0
  %1096 = vmatpush1.bf16.msra.mxu0 0
  %1097 = vmatprep.subr.bf16.mxu0 0
  %1098 = vmatpush1.bf16.msra.mxu0 0
  %1099 = vmatprep.subr.bf16.mxu0 0
  %1100 = vmatpush1.bf16.msra.mxu0 %v1083
  %1101 = vmatprep.subr.bf16.mxu0 0
  %1102 = vmatpush2.bf16.msra.mxu0 0
  %1103 = vmatprep.subr.bf16.mxu0 0
  %1104 = vmatpush2.bf16.msra.mxu0 0
  %1105 = vmatprep.subr.bf16.mxu0 0
  %1106 = vmatpush2.bf16.msra.mxu0 0
  %1107 = vmatprep.subr.bf16.mxu0 0
  %1108 = vmatpush2.bf16.msra.mxu0 0
  %1109 = vmatprep.subr.bf16.mxu0 0
  %1110 = vmatpush2.bf16.msra.mxu0 0
  %1111 = vmatprep.subr.bf16.mxu0 0
  %1112 = vmatpush2.bf16.msra.mxu0 0
  %1113 = vmatprep.subr.bf16.mxu0 0
  %1114 = vmatpush2.bf16.msra.mxu0 0
  %1115 = vmatprep.subr.bf16.mxu0 0
  %1116 = vmatpush2.bf16.msra.mxu0 0
  %1117 = vmatprep.mubr.bf16.mxu0 0
  %1118 = vmatmul.mubr.bf16.gmra.mxu0 %v1080
  %v1119 = vpop.f32.mrf.mxu0
  %v1120 = vadd.f32 0.0, %v1119
  %v1121 = vpop.f32.mrf.mxu0
  %v1122 = vpop.f32.mrf.mxu0
  %v1123 = vpop.f32.mrf.mxu0
  %1124 = vdwg.mxu0
  %v1125 = vpack.c.bf16 %v1120, %v1072
  %s1126 = scalar_lea.vmem %s15, 8
  %v1127 = vld [vmem:[%s1126] sm:$0xf]
  %v1129 = vsel %vm358, %v1125, 0
  %v1132 = vsel %vm482, %v1127, 0
  %1134 = vmatprep.subr.bf16.mxu0 0
  %1135 = vmatpush1.bf16.msra.mxu0 0
  %1136 = vmatprep.subr.bf16.mxu0 0
  %1137 = vmatpush1.bf16.msra.mxu0 0
  %1138 = vmatprep.subr.bf16.mxu0 0
  %1139 = vmatpush1.bf16.msra.mxu0 0
  %1140 = vmatprep.subr.bf16.mxu0 0
  %1141 = vmatpush1.bf16.msra.mxu0 0
  %1142 = vmatprep.subr.bf16.mxu0 0
  %1143 = vmatpush1.bf16.msra.mxu0 0
  %1144 = vmatprep.subr.bf16.mxu0 0
  %1145 = vmatpush1.bf16.msra.mxu0 0
  %1146 = vmatprep.subr.bf16.mxu0 0
  %1147 = vmatpush1.bf16.msra.mxu0 0
  %1148 = vmatprep.subr.bf16.mxu0 0
  %1149 = vmatpush1.bf16.msra.mxu0 %v1132
  %1150 = vmatprep.subr.bf16.mxu0 0
  %1151 = vmatpush2.bf16.msra.mxu0 0
  %1152 = vmatprep.subr.bf16.mxu0 0
  %1153 = vmatpush2.bf16.msra.mxu0 0
  %1154 = vmatprep.subr.bf16.mxu0 0
  %1155 = vmatpush2.bf16.msra.mxu0 0
  %1156 = vmatprep.subr.bf16.mxu0 0
  %1157 = vmatpush2.bf16.msra.mxu0 0
  %1158 = vmatprep.subr.bf16.mxu0 0
  %1159 = vmatpush2.bf16.msra.mxu0 0
  %1160 = vmatprep.subr.bf16.mxu0 0
  %1161 = vmatpush2.bf16.msra.mxu0 0
  %1162 = vmatprep.subr.bf16.mxu0 0
  %1163 = vmatpush2.bf16.msra.mxu0 0
  %1164 = vmatprep.subr.bf16.mxu0 0
  %1165 = vmatpush2.bf16.msra.mxu0 0
  %1166 = vmatprep.mubr.bf16.mxu0 0
  %1167 = vmatmul.mubr.bf16.gmra.mxu0 %v1129
  %v1168 = vpop.f32.mrf.mxu0
  %v1169 = vadd.f32 0.0, %v1168
  %v1170 = vpop.f32.mrf.mxu0
  %v1171 = vpop.f32.mrf.mxu0
  %v1172 = vadd.f32 0.0, %v1171
  %v1173 = vpop.f32.mrf.mxu0
  %1174 = vdwg.mxu0
  %v1175 = vadd.f32 %v895, %v1169
  %v1176 = vadd.f32 %v898, %v1172
  %1177 = vrot.lane.b32.xlu0 %v352, 104
  %v1178 = vpop.permute.xlu0 %1177
  %1179 = vrot.lane.b32.xlu0 %v354, 104
  %v1180 = vpop.permute.xlu0 %1179
  %v1182 = vsel %vm358, %v1178, 0
  %v1185 = vsel %vm358, %v1180, 0
  %1187 = vmatprep.subr.bf16.mxu0 0
  %1188 = vmatpush1.bf16.xpose.msra.mxu0 0
  %1189 = vmatprep.subr.bf16.mxu0 0
  %1190 = vmatpush1.bf16.xpose.msra.mxu0 0
  %1191 = vmatprep.subr.bf16.mxu0 0
  %1192 = vmatpush1.bf16.xpose.msra.mxu0 0
  %1193 = vmatprep.subr.bf16.mxu0 0
  %1194 = vmatpush1.bf16.xpose.msra.mxu0 0
  %1195 = vmatprep.subr.bf16.mxu0 0
  %1196 = vmatpush1.bf16.xpose.msra.mxu0 0
  %1197 = vmatprep.subr.bf16.mxu0 0
  %1198 = vmatpush1.bf16.xpose.msra.mxu0 0
  %1199 = vmatprep.subr.bf16.mxu0 0
  %1200 = vmatpush1.bf16.xpose.msra.mxu0 0
  %1201 = vmatprep.subr.bf16.mxu0 0
  %1202 = vmatpush1.bf16.xpose.msra.mxu0 %v1185
  %1203 = vmatprep.subr.bf16.mxu0 0
  %1204 = vmatpush2.bf16.xpose.msra.mxu0 0
  %1205 = vmatprep.subr.bf16.mxu0 0
  %1206 = vmatpush2.bf16.xpose.msra.mxu0 0
  %1207 = vmatprep.subr.bf16.mxu0 0
  %1208 = vmatpush2.bf16.xpose.msra.mxu0 0
  %1209 = vmatprep.subr.bf16.mxu0 0
  %1210 = vmatpush2.bf16.xpose.msra.mxu0 0
  %1211 = vmatprep.subr.bf16.mxu0 0
  %1212 = vmatpush2.bf16.xpose.msra.mxu0 0
  %1213 = vmatprep.subr.bf16.mxu0 0
  %1214 = vmatpush2.bf16.xpose.msra.mxu0 0
  %1215 = vmatprep.subr.bf16.mxu0 0
  %1216 = vmatpush2.bf16.xpose.msra.mxu0 0
  %1217 = vmatprep.subr.bf16.mxu0 0
  %1218 = vmatpush2.bf16.xpose.msra.mxu0 0
  %1219 = vmatprep.mubr.bf16.mxu0 0
  %1220 = vmatmul.mubr.bf16.gmra.mxu0 %v1182
  %v1221 = vpop.f32.mrf.mxu0
  %v1222 = vadd.f32 0.0, %v1221
  %v1223 = vpop.f32.mrf.mxu0
  %v1224 = vpop.f32.mrf.mxu0
  %v1225 = vpop.f32.mrf.mxu0
  %1226 = vdwg.mxu0
  %1227 = vrot.lane.b32.xlu0 %v353, 104
  %v1228 = vpop.permute.xlu0 %1227
  %1229 = vrot.lane.b32.xlu0 %v355, 104
  %v1230 = vpop.permute.xlu0 %1229
  %v1232 = vsel %vm358, %v1228, 0
  %v1235 = vsel %vm358, %v1230, 0
  %1237 = vmatprep.subr.bf16.mxu0 0
  %1238 = vmatpush1.bf16.xpose.msra.mxu0 0
  %1239 = vmatprep.subr.bf16.mxu0 0
  %1240 = vmatpush1.bf16.xpose.msra.mxu0 0
  %1241 = vmatprep.subr.bf16.mxu0 0
  %1242 = vmatpush1.bf16.xpose.msra.mxu0 0
  %1243 = vmatprep.subr.bf16.mxu0 0
  %1244 = vmatpush1.bf16.xpose.msra.mxu0 0
  %1245 = vmatprep.subr.bf16.mxu0 0
  %1246 = vmatpush1.bf16.xpose.msra.mxu0 0
  %1247 = vmatprep.subr.bf16.mxu0 0
  %1248 = vmatpush1.bf16.xpose.msra.mxu0 0
  %1249 = vmatprep.subr.bf16.mxu0 0
  %1250 = vmatpush1.bf16.xpose.msra.mxu0 0
  %1251 = vmatprep.subr.bf16.mxu0 0
  %1252 = vmatpush1.bf16.xpose.msra.mxu0 %v1235
  %1253 = vmatprep.subr.bf16.mxu0 0
  %1254 = vmatpush2.bf16.xpose.msra.mxu0 0
  %1255 = vmatprep.subr.bf16.mxu0 0
  %1256 = vmatpush2.bf16.xpose.msra.mxu0 0
  %1257 = vmatprep.subr.bf16.mxu0 0
  %1258 = vmatpush2.bf16.xpose.msra.mxu0 0
  %1259 = vmatprep.subr.bf16.mxu0 0
  %1260 = vmatpush2.bf16.xpose.msra.mxu0 0
  %1261 = vmatprep.subr.bf16.mxu0 0
  %1262 = vmatpush2.bf16.xpose.msra.mxu0 0
  %1263 = vmatprep.subr.bf16.mxu0 0
  %1264 = vmatpush2.bf16.xpose.msra.mxu0 0
  %1265 = vmatprep.subr.bf16.mxu0 0
  %1266 = vmatpush2.bf16.xpose.msra.mxu0 0
  %1267 = vmatprep.subr.bf16.mxu0 0
  %1268 = vmatpush2.bf16.xpose.msra.mxu0 0
  %1269 = vmatprep.mubr.bf16.mxu0 0
  %1270 = vmatmul.mubr.bf16.gmra.mxu0 %v1232
  %v1271 = vpop.f32.mrf.mxu0
  %v1272 = vadd.f32 0.0, %v1271
  %v1273 = vpop.f32.mrf.mxu0
  %v1274 = vpop.f32.mrf.mxu0
  %v1275 = vpop.f32.mrf.mxu0
  %1276 = vdwg.mxu0
  %v1277 = vmul.f32 %v1222, 0.35355338
  %v1278 = vmul.f32 %v1272, 0.35355338
  %v1279 = vadd.f32 %v1277, %v152
  %v1280 = vadd.f32 %v1278, %v152
  %v1281 = vsel %vm358, %v1279, -inf
  %1282 = vmax.xlane.f32.xlu0 %v1281
  %v1283 = vpop.xlane.xlu0 %1282
  %v1284 = vsel %vm358, %v1280, -inf
  %1285 = vmax.xlane.f32.xlu0 %v1284
  %v1286 = vpop.xlane.xlu0 %1285
  %v1287 = vsub.f32 %v1279, %v1283
  %v1288 = vsub.f32 %v1280, %v1286
  %v1289 = vmul.f32 %v1287, 1.442695
  %v1290 = vpow.pop %v1289
  %v1291 = vmul.f32 %v1288, 1.442695
  %v1292 = vpow.pop %v1291
  %v1293 = vsel %vm358, %v1290, 0.0
  %1294 = vadd.xlane.f32.xlu0 %v1293
  %v1295 = vpop.xlane.xlu0 %1294
  %v1296 = vsel %vm358, %v1292, 0.0
  %1297 = vadd.xlane.f32.xlu0 %v1296
  %v1298 = vpop.xlane.xlu0 %1297
  %v1299 = vrcp.pop %v1295
  %v1300 = vrcp.pop %v1298
  %v1301 = vmul.f32 %v1290, %v1299
  %v1302 = vmul.f32 %v1292, %v1300
  %v1303 = vpack.c.bf16 %v1301, %v1301
  %v1304 = vpack.c.bf16 %v1302, %v1302
  %1305 = vrot.lane.b32.xlu0 %v356, 104
  %v1306 = vpop.permute.xlu0 %1305
  %v1308 = vsel %vm358, %v1303, 0
  %v1311 = vsel %vm482, %v1306, 0
  %1313 = vmatprep.subr.bf16.mxu0 0
  %1314 = vmatpush1.bf16.msra.mxu0 0
  %1315 = vmatprep.subr.bf16.mxu0 0
  %1316 = vmatpush1.bf16.msra.mxu0 0
  %1317 = vmatprep.subr.bf16.mxu0 0
  %1318 = vmatpush1.bf16.msra.mxu0 0
  %1319 = vmatprep.subr.bf16.mxu0 0
  %1320 = vmatpush1.bf16.msra.mxu0 0
  %1321 = vmatprep.subr.bf16.mxu0 0
  %1322 = vmatpush1.bf16.msra.mxu0 0
  %1323 = vmatprep.subr.bf16.mxu0 0
  %1324 = vmatpush1.bf16.msra.mxu0 0
  %1325 = vmatprep.subr.bf16.mxu0 0
  %1326 = vmatpush1.bf16.msra.mxu0 0
  %1327 = vmatprep.subr.bf16.mxu0 0
  %1328 = vmatpush1.bf16.msra.mxu0 %v1311
  %1329 = vmatprep.subr.bf16.mxu0 0
  %1330 = vmatpush2.bf16.msra.mxu0 0
  %1331 = vmatprep.subr.bf16.mxu0 0
  %1332 = vmatpush2.bf16.msra.mxu0 0
  %1333 = vmatprep.subr.bf16.mxu0 0
  %1334 = vmatpush2.bf16.msra.mxu0 0
  %1335 = vmatprep.subr.bf16.mxu0 0
  %1336 = vmatpush2.bf16.msra.mxu0 0
  %1337 = vmatprep.subr.bf16.mxu0 0
  %1338 = vmatpush2.bf16.msra.mxu0 0
  %1339 = vmatprep.subr.bf16.mxu0 0
  %1340 = vmatpush2.bf16.msra.mxu0 0
  %1341 = vmatprep.subr.bf16.mxu0 0
  %1342 = vmatpush2.bf16.msra.mxu0 0
  %1343 = vmatprep.subr.bf16.mxu0 0
  %1344 = vmatpush2.bf16.msra.mxu0 0
  %1345 = vmatprep.mubr.bf16.mxu0 0
  %1346 = vmatmul.mubr.bf16.gmra.mxu0 %v1308
  %v1347 = vpop.f32.mrf.mxu0
  %v1348 = vadd.f32 0.0, %v1347
  %v1349 = vpop.f32.mrf.mxu0
  %v1350 = vpop.f32.mrf.mxu0
  %v1351 = vpop.f32.mrf.mxu0
  %1352 = vdwg.mxu0
  %1353 = vrot.lane.b32.xlu0 %v357, 104
  %v1354 = vpop.permute.xlu0 %1353
  %v1356 = vsel %vm358, %v1304, 0
  %v1359 = vsel %vm482, %v1354, 0
  %1361 = vmatprep.subr.bf16.mxu0 0
  %1362 = vmatpush1.bf16.msra.mxu0 0
  %1363 = vmatprep.subr.bf16.mxu0 0
  %1364 = vmatpush1.bf16.msra.mxu0 0
  %1365 = vmatprep.subr.bf16.mxu0 0
  %1366 = vmatpush1.bf16.msra.mxu0 0
  %1367 = vmatprep.subr.bf16.mxu0 0
  %1368 = vmatpush1.bf16.msra.mxu0 0
  %1369 = vmatprep.subr.bf16.mxu0 0
  %1370 = vmatpush1.bf16.msra.mxu0 0
  %1371 = vmatprep.subr.bf16.mxu0 0
  %1372 = vmatpush1.bf16.msra.mxu0 0
  %1373 = vmatprep.subr.bf16.mxu0 0
  %1374 = vmatpush1.bf16.msra.mxu0 0
  %1375 = vmatprep.subr.bf16.mxu0 0
  %1376 = vmatpush1.bf16.msra.mxu0 %v1359
  %1377 = vmatprep.subr.bf16.mxu0 0
  %1378 = vmatpush2.bf16.msra.mxu0 0
  %1379 = vmatprep.subr.bf16.mxu0 0
  %1380 = vmatpush2.bf16.msra.mxu0 0
  %1381 = vmatprep.subr.bf16.mxu0 0
  %1382 = vmatpush2.bf16.msra.mxu0 0
  %1383 = vmatprep.subr.bf16.mxu0 0
  %1384 = vmatpush2.bf16.msra.mxu0 0
  %1385 = vmatprep.subr.bf16.mxu0 0
  %1386 = vmatpush2.bf16.msra.mxu0 0
  %1387 = vmatprep.subr.bf16.mxu0 0
  %1388 = vmatpush2.bf16.msra.mxu0 0
  %1389 = vmatprep.subr.bf16.mxu0 0
  %1390 = vmatpush2.bf16.msra.mxu0 0
  %1391 = vmatprep.subr.bf16.mxu0 0
  %1392 = vmatpush2.bf16.msra.mxu0 0
  %1393 = vmatprep.mubr.bf16.mxu0 0
  %1394 = vmatmul.mubr.bf16.gmra.mxu0 %v1356
  %v1395 = vpop.f32.mrf.mxu0
  %v1396 = vadd.f32 0.0, %v1395
  %v1397 = vpop.f32.mrf.mxu0
  %v1398 = vpop.f32.mrf.mxu0
  %v1399 = vpop.f32.mrf.mxu0
  %1400 = vdwg.mxu0
  %v1401 = vpack.c.bf16 %v1396, %v1348
  %s1402 = scalar_lea.vmem %s15, 12
  %v1403 = vld [vmem:[%s1402] sm:$0xf]
  %v1405 = vsel %vm358, %v1401, 0
  %v1408 = vsel %vm482, %v1403, 0
  %1410 = vmatprep.subr.bf16.mxu0 0
  %1411 = vmatpush1.bf16.msra.mxu0 0
  %1412 = vmatprep.subr.bf16.mxu0 0
  %1413 = vmatpush1.bf16.msra.mxu0 0
  %1414 = vmatprep.subr.bf16.mxu0 0
  %1415 = vmatpush1.bf16.msra.mxu0 0
  %1416 = vmatprep.subr.bf16.mxu0 0
  %1417 = vmatpush1.bf16.msra.mxu0 0
  %1418 = vmatprep.subr.bf16.mxu0 0
  %1419 = vmatpush1.bf16.msra.mxu0 0
  %1420 = vmatprep.subr.bf16.mxu0 0
  %1421 = vmatpush1.bf16.msra.mxu0 0
  %1422 = vmatprep.subr.bf16.mxu0 0
  %1423 = vmatpush1.bf16.msra.mxu0 0
  %1424 = vmatprep.subr.bf16.mxu0 0
  %1425 = vmatpush1.bf16.msra.mxu0 %v1408
  %1426 = vmatprep.subr.bf16.mxu0 0
  %1427 = vmatpush2.bf16.msra.mxu0 0
  %1428 = vmatprep.subr.bf16.mxu0 0
  %1429 = vmatpush2.bf16.msra.mxu0 0
  %1430 = vmatprep.subr.bf16.mxu0 0
  %1431 = vmatpush2.bf16.msra.mxu0 0
  %1432 = vmatprep.subr.bf16.mxu0 0
  %1433 = vmatpush2.bf16.msra.mxu0 0
  %1434 = vmatprep.subr.bf16.mxu0 0
  %1435 = vmatpush2.bf16.msra.mxu0 0
  %1436 = vmatprep.subr.bf16.mxu0 0
  %1437 = vmatpush2.bf16.msra.mxu0 0
  %1438 = vmatprep.subr.bf16.mxu0 0
  %1439 = vmatpush2.bf16.msra.mxu0 0
  %1440 = vmatprep.subr.bf16.mxu0 0
  %1441 = vmatpush2.bf16.msra.mxu0 0
  %1442 = vmatprep.mubr.bf16.mxu0 0
  %1443 = vmatmul.mubr.bf16.gmra.mxu0 %v1405
  %v1444 = vpop.f32.mrf.mxu0
  %v1445 = vadd.f32 0.0, %v1444
  %v1446 = vpop.f32.mrf.mxu0
  %v1447 = vpop.f32.mrf.mxu0
  %v1448 = vadd.f32 0.0, %v1447
  %v1449 = vpop.f32.mrf.mxu0
  %1450 = vdwg.mxu0
  %v1451 = vadd.f32 %v1175, %v1445
  %v1452 = vadd.f32 %v1176, %v1448
  %v1453 = vld [vmem:[%s17] sm:$0x1]
  %v1455 = vlaneseq
  %v1456 = vshrl.u32 %v1455, 7
  %v1457 = vsub.s32 0, %v1456
  %v1458 = vrot.slane %v1453, %v1457
  %v1460 = vadd.f32 %v1451, %v1458
  %v1461 = vadd.f32 %v1452, %v1458
  %v1462 = vadd.f32 %v153, %v1460
  %v1463 = vadd.f32 %v154, %v1461
  %v1464 = vld [vmem:[%s27] sm:$0x1]
  %v1465 = vld [vmem:[%s29] sm:$0x1]
  %v1466 = vsel %vm179, %v1462, 0.0
  %1467 = vadd.xlane.f32.xlu0 %v1466
  %v1468 = vpop.xlane.xlu0 %1467
  %v1469 = vsel %vm179, %v1463, 0.0
  %1470 = vadd.xlane.f32.xlu0 %v1469
  %v1471 = vpop.xlane.xlu0 %1470
  %v1472 = vrcp.pop 32.0
  %v1473 = vmul.f32 %v1468, %v1472
  %v1474 = vmul.f32 %v1471, %v1472
  %v1475 = vsub.f32 %v1462, %v1473
  %v1476 = vsub.f32 %v1463, %v1474
  %v1477 = vmul.f32 %v1475, %v1475
  %v1478 = vmul.f32 %v1476, %v1476
  %v1479 = vsel %vm179, %v1477, 0.0
  %1480 = vadd.xlane.f32.xlu0 %v1479
  %v1481 = vpop.xlane.xlu0 %1480
  %v1482 = vsel %vm179, %v1478, 0.0
  %1483 = vadd.xlane.f32.xlu0 %v1482
  %v1484 = vpop.xlane.xlu0 %1483
  %v1485 = vmul.f32 %v1481, %v1472
  %v1486 = vmul.f32 %v1484, %v1472
  %v1487 = vadd.f32 %v1485, 1e-05
  %v1488 = vadd.f32 %v1486, 1e-05
  %v1489 = vrsqrt.pop %v1487
  %v1490 = vrsqrt.pop %v1488
  %v1491 = vmul.f32 %v1475, %v1489
  %v1492 = vmul.f32 %v1476, %v1490
  %v1494 = vlaneseq
  %v1495 = vshrl.u32 %v1494, 7
  %v1496 = vsub.s32 0, %v1495
  %v1497 = vrot.slane %v1464, %v1496
  %v1499 = vmul.f32 %v1491, %v1497
  %v1500 = vmul.f32 %v1492, %v1497
  %v1502 = vlaneseq
  %v1503 = vshrl.u32 %v1502, 7
  %v1504 = vsub.s32 0, %v1503
  %v1505 = vrot.slane %v1465, %v1504
  %v1507 = vadd.f32 %v1499, %v1505
  %v1508 = vadd.f32 %v1500, %v1505
  %v1509 = vpack.c.bf16 %v1508, %v1507
  %v1510 = vld [vmem:[%s19] sm:$0xff]
  %v1511 = vld [vmem:[%s19 + $0x8] sm:$0xff]
  %v1512 = vld [vmem:[%s19 + $0x10] sm:$0xff]
  %v1513 = vld [vmem:[%s19 + $0x18] sm:$0xff]
  %v1514 = vld [vmem:[%s19 + $0x20] sm:$0xff]
  %v1515 = vld [vmem:[%s19 + $0x28] sm:$0xff]
  %v1516 = vld [vmem:[%s19 + $0x30] sm:$0xff]
  %v1517 = vld [vmem:[%s19 + $0x38] sm:$0xff]
  %v1518 = vld [vmem:[%s19 + $0x40] sm:$0xff]
  %v1519 = vld [vmem:[%s19 + $0x48] sm:$0xff]
  %v1520 = vld [vmem:[%s19 + $0x50] sm:$0xff]
  %v1521 = vld [vmem:[%s19 + $0x58] sm:$0xff]
  %v1522 = vld [vmem:[%s19 + $0x60] sm:$0xff]
  %v1523 = vld [vmem:[%s19 + $0x68] sm:$0xff]
  %v1524 = vld [vmem:[%s19 + $0x70] sm:$0xff]
  %v1525 = vld [vmem:[%s19 + $0x78] sm:$0xff]
  %v1526 = vld [vmem:[%s19 + $0x80] sm:$0xff]
  %v1527 = vld [vmem:[%s19 + $0x88] sm:$0xff]
  %v1528 = vld [vmem:[%s19 + $0x90] sm:$0xff]
  %v1529 = vld [vmem:[%s19 + $0x98] sm:$0xff]
  %v1530 = vld [vmem:[%s19 + $0xa0] sm:$0xff]
  %v1531 = vld [vmem:[%s19 + $0xa8] sm:$0xff]
  %v1532 = vld [vmem:[%s19 + $0xb0] sm:$0xff]
  %v1533 = vld [vmem:[%s19 + $0xb8] sm:$0xff]
  %v1534 = vld [vmem:[%s19 + $0xc0] sm:$0xff]
  %v1535 = vld [vmem:[%s19 + $0xc8] sm:$0xff]
  %v1536 = vld [vmem:[%s19 + $0xd0] sm:$0xff]
  %v1537 = vld [vmem:[%s19 + $0xd8] sm:$0xff]
  %v1538 = vld [vmem:[%s19 + $0xe0] sm:$0xff]
  %v1539 = vld [vmem:[%s19 + $0xe8] sm:$0xff]
  %v1540 = vld [vmem:[%s19 + $0xf0] sm:$0xff]
  %v1541 = vld [vmem:[%s19 + $0xf8] sm:$0xff]
  %v1542 = vld [vmem:[%s21] sm:$0xff]
  %v1543 = vld [vmem:[%s21 + $0x8] sm:$0xff]
  %v1546 = vlaneseq
  %v1547 = vshrl.u32 %v1546, 7
  %v1548 = vsub.s32 0, %v1547
  %v1549 = vrot.slane %v1542, %v1548
  %v1550 = vlaneseq
  %v1551 = vshrl.u32 %v1550, 7
  %v1552 = vsub.s32 1, %v1551
  %v1553 = vrot.slane %v1542, %v1552
  %v1554 = vlaneseq
  %v1555 = vshrl.u32 %v1554, 7
  %v1556 = vsub.s32 2, %v1555
  %v1557 = vrot.slane %v1542, %v1556
  %v1558 = vlaneseq
  %v1559 = vshrl.u32 %v1558, 7
  %v1560 = vsub.s32 3, %v1559
  %v1561 = vrot.slane %v1542, %v1560
  %v1562 = vlaneseq
  %v1563 = vshrl.u32 %v1562, 7
  %v1564 = vsub.s32 4, %v1563
  %v1565 = vrot.slane %v1542, %v1564
  %v1566 = vlaneseq
  %v1567 = vshrl.u32 %v1566, 7
  %v1568 = vsub.s32 5, %v1567
  %v1569 = vrot.slane %v1542, %v1568
  %v1570 = vlaneseq
  %v1571 = vshrl.u32 %v1570, 7
  %v1572 = vsub.s32 6, %v1571
  %v1573 = vrot.slane %v1542, %v1572
  %v1574 = vlaneseq
  %v1575 = vshrl.u32 %v1574, 7
  %v1576 = vsub.s32 7, %v1575
  %v1577 = vrot.slane %v1542, %v1576
  %v1578 = vlaneseq
  %v1579 = vshrl.u32 %v1578, 7
  %v1580 = vsub.s32 0, %v1579
  %v1581 = vrot.slane %v1543, %v1580
  %v1582 = vlaneseq
  %v1583 = vshrl.u32 %v1582, 7
  %v1584 = vsub.s32 1, %v1583
  %v1585 = vrot.slane %v1543, %v1584
  %v1586 = vlaneseq
  %v1587 = vshrl.u32 %v1586, 7
  %v1588 = vsub.s32 2, %v1587
  %v1589 = vrot.slane %v1543, %v1588
  %v1590 = vlaneseq
  %v1591 = vshrl.u32 %v1590, 7
  %v1592 = vsub.s32 3, %v1591
  %v1593 = vrot.slane %v1543, %v1592
  %v1594 = vlaneseq
  %v1595 = vshrl.u32 %v1594, 7
  %v1596 = vsub.s32 4, %v1595
  %v1597 = vrot.slane %v1543, %v1596
  %v1598 = vlaneseq
  %v1599 = vshrl.u32 %v1598, 7
  %v1600 = vsub.s32 5, %v1599
  %v1601 = vrot.slane %v1543, %v1600
  %v1602 = vlaneseq
  %v1603 = vshrl.u32 %v1602, 7
  %v1604 = vsub.s32 6, %v1603
  %v1605 = vrot.slane %v1543, %v1604
  %v1606 = vlaneseq
  %v1607 = vshrl.u32 %v1606, 7
  %v1608 = vsub.s32 7, %v1607
  %v1609 = vrot.slane %v1543, %v1608
  %v1658 = vunpack.c.l.b16 %v1510
  %v1659 = vunpack.c.h.b16 %v1510
  %v1660 = vunpack.c.l.b16 %v1511
  %v1661 = vunpack.c.h.b16 %v1511
  %v1662 = vunpack.c.l.b16 %v1512
  %v1663 = vunpack.c.h.b16 %v1512
  %v1664 = vunpack.c.l.b16 %v1513
  %v1665 = vunpack.c.h.b16 %v1513
  %v1666 = vunpack.c.l.b16 %v1514
  %v1667 = vunpack.c.h.b16 %v1514
  %v1668 = vunpack.c.l.b16 %v1515
  %v1669 = vunpack.c.h.b16 %v1515
  %v1670 = vunpack.c.l.b16 %v1516
  %v1671 = vunpack.c.h.b16 %v1516
  %v1672 = vunpack.c.l.b16 %v1517
  %v1673 = vunpack.c.h.b16 %v1517
  %v1674 = vunpack.c.l.b16 %v1518
  %v1675 = vunpack.c.h.b16 %v1518
  %v1676 = vunpack.c.l.b16 %v1519
  %v1677 = vunpack.c.h.b16 %v1519
  %v1678 = vunpack.c.l.b16 %v1520
  %v1679 = vunpack.c.h.b16 %v1520
  %v1680 = vunpack.c.l.b16 %v1521
  %v1681 = vunpack.c.h.b16 %v1521
  %v1682 = vunpack.c.l.b16 %v1522
  %v1683 = vunpack.c.h.b16 %v1522
  %v1684 = vunpack.c.l.b16 %v1523
  %v1685 = vunpack.c.h.b16 %v1523
  %v1686 = vunpack.c.l.b16 %v1524
  %v1687 = vunpack.c.h.b16 %v1524
  %v1688 = vunpack.c.l.b16 %v1525
  %v1689 = vunpack.c.h.b16 %v1525
  %v1690 = vunpack.c.l.b16 %v1526
  %v1691 = vunpack.c.h.b16 %v1526
  %v1692 = vunpack.c.l.b16 %v1527
  %v1693 = vunpack.c.h.b16 %v1527
  %v1694 = vunpack.c.l.b16 %v1528
  %v1695 = vunpack.c.h.b16 %v1528
  %v1696 = vunpack.c.l.b16 %v1529
  %v1697 = vunpack.c.h.b16 %v1529
  %v1698 = vunpack.c.l.b16 %v1530
  %v1699 = vunpack.c.h.b16 %v1530
  %v1700 = vunpack.c.l.b16 %v1531
  %v1701 = vunpack.c.h.b16 %v1531
  %v1702 = vunpack.c.l.b16 %v1532
  %v1703 = vunpack.c.h.b16 %v1532
  %v1704 = vunpack.c.l.b16 %v1533
  %v1705 = vunpack.c.h.b16 %v1533
  %v1706 = vunpack.c.l.b16 %v1534
  %v1707 = vunpack.c.h.b16 %v1534
  %v1708 = vunpack.c.l.b16 %v1535
  %v1709 = vunpack.c.h.b16 %v1535
  %v1710 = vunpack.c.l.b16 %v1536
  %v1711 = vunpack.c.h.b16 %v1536
  %v1712 = vunpack.c.l.b16 %v1537
  %v1713 = vunpack.c.h.b16 %v1537
  %v1714 = vunpack.c.l.b16 %v1538
  %v1715 = vunpack.c.h.b16 %v1538
  %v1716 = vunpack.c.l.b16 %v1539
  %v1717 = vunpack.c.h.b16 %v1539
  %v1718 = vunpack.c.l.b16 %v1540
  %v1719 = vunpack.c.h.b16 %v1540
  %v1720 = vunpack.c.l.b16 %v1541
  %v1721 = vunpack.c.h.b16 %v1541
  %v1722 = vpack.c.b16 %v1674, %v1658
  %v1723 = vpack.c.b16 %v1675, %v1659
  %v1724 = vpack.c.b16 %v1676, %v1660
  %v1725 = vpack.c.b16 %v1677, %v1661
  %v1726 = vpack.c.b16 %v1678, %v1662
  %v1727 = vpack.c.b16 %v1679, %v1663
  %v1728 = vpack.c.b16 %v1680, %v1664
  %v1729 = vpack.c.b16 %v1681, %v1665
  %v1730 = vpack.c.b16 %v1682, %v1666
  %v1731 = vpack.c.b16 %v1683, %v1667
  %v1732 = vpack.c.b16 %v1684, %v1668
  %v1733 = vpack.c.b16 %v1685, %v1669
  %v1734 = vpack.c.b16 %v1686, %v1670
  %v1735 = vpack.c.b16 %v1687, %v1671
  %v1736 = vpack.c.b16 %v1688, %v1672
  %v1737 = vpack.c.b16 %v1689, %v1673
  %v1738 = vpack.c.b16 %v1706, %v1690
  %v1739 = vpack.c.b16 %v1707, %v1691
  %v1740 = vpack.c.b16 %v1708, %v1692
  %v1741 = vpack.c.b16 %v1709, %v1693
  %v1742 = vpack.c.b16 %v1710, %v1694
  %v1743 = vpack.c.b16 %v1711, %v1695
  %v1744 = vpack.c.b16 %v1712, %v1696
  %v1745 = vpack.c.b16 %v1713, %v1697
  %v1746 = vpack.c.b16 %v1714, %v1698
  %v1747 = vpack.c.b16 %v1715, %v1699
  %v1748 = vpack.c.b16 %v1716, %v1700
  %v1749 = vpack.c.b16 %v1717, %v1701
  %v1750 = vpack.c.b16 %v1718, %v1702
  %v1751 = vpack.c.b16 %v1719, %v1703
  %v1752 = vpack.c.b16 %v1720, %v1704
  %v1753 = vpack.c.b16 %v1721, %v1705
  %v1787 = vsel %vm179, %v1509, 0
  %1789 = vmatprep.subr.bf16.mxu0 0
  %1790 = vmatpush1.bf16.msra.mxu0 0
  %1791 = vmatprep.subr.bf16.mxu0 0
  %1792 = vmatpush1.bf16.msra.mxu0 0
  %1793 = vmatprep.subr.bf16.mxu0 0
  %1794 = vmatpush1.bf16.msra.mxu0 0
  %1795 = vmatprep.subr.bf16.mxu0 0
  %1796 = vmatpush1.bf16.msra.mxu0 0
  %1797 = vmatprep.subr.bf16.mxu0 0
  %1798 = vmatpush1.bf16.msra.mxu0 0
  %1799 = vmatprep.subr.bf16.mxu0 0
  %1800 = vmatpush1.bf16.msra.mxu0 0
  %1801 = vmatprep.subr.bf16.mxu0 %v1739
  %1802 = vmatpush1.bf16.msra.mxu0 %v1738
  %1803 = vmatprep.subr.bf16.mxu0 %v1723
  %1804 = vmatpush1.bf16.msra.mxu0 %v1722
  %1805 = vmatprep.subr.bf16.mxu0 0
  %1806 = vmatpush2.bf16.msra.mxu0 0
  %1807 = vmatprep.subr.bf16.mxu0 0
  %1808 = vmatpush2.bf16.msra.mxu0 0
  %1809 = vmatprep.subr.bf16.mxu0 0
  %1810 = vmatpush2.bf16.msra.mxu0 0
  %1811 = vmatprep.subr.bf16.mxu0 0
  %1812 = vmatpush2.bf16.msra.mxu0 0
  %1813 = vmatprep.subr.bf16.mxu0 0
  %1814 = vmatpush2.bf16.msra.mxu0 0
  %1815 = vmatprep.subr.bf16.mxu0 0
  %1816 = vmatpush2.bf16.msra.mxu0 0
  %1817 = vmatprep.subr.bf16.mxu0 0
  %1818 = vmatpush2.bf16.msra.mxu0 0
  %1819 = vmatprep.subr.bf16.mxu0 0
  %1820 = vmatpush2.bf16.msra.mxu0 0
  %1821 = vmatprep.mubr.bf16.mxu0 0
  %1822 = vmatmul.mubr.bf16.gmra.mxu0 %v1787
  %v1823 = vpop.f32.mrf.mxu0
  %v1824 = vadd.f32 %v1549, %v1823
  %v1825 = vpop.f32.mrf.mxu0
  %v1826 = vadd.f32 %v1553, %v1825
  %v1827 = vpop.f32.mrf.mxu0
  %v1828 = vadd.f32 %v1549, %v1827
  %v1829 = vpop.f32.mrf.mxu0
  %v1830 = vadd.f32 %v1553, %v1829
  %1831 = vdwg.mxu0
  %1832 = vmatprep.subr.bf16.mxu0 0
  %1833 = vmatpush1.bf16.msra.mxu0 0
  %1834 = vmatprep.subr.bf16.mxu0 0
  %1835 = vmatpush1.bf16.msra.mxu0 0
  %1836 = vmatprep.subr.bf16.mxu0 0
  %1837 = vmatpush1.bf16.msra.mxu0 0
  %1838 = vmatprep.subr.bf16.mxu0 0
  %1839 = vmatpush1.bf16.msra.mxu0 0
  %1840 = vmatprep.subr.bf16.mxu0 0
  %1841 = vmatpush1.bf16.msra.mxu0 0
  %1842 = vmatprep.subr.bf16.mxu0 0
  %1843 = vmatpush1.bf16.msra.mxu0 0
  %1844 = vmatprep.subr.bf16.mxu0 %v1741
  %1845 = vmatpush1.bf16.msra.mxu0 %v1740
  %1846 = vmatprep.subr.bf16.mxu0 %v1725
  %1847 = vmatpush1.bf16.msra.mxu0 %v1724
  %1848 = vmatprep.subr.bf16.mxu0 0
  %1849 = vmatpush2.bf16.msra.mxu0 0
  %1850 = vmatprep.subr.bf16.mxu0 0
  %1851 = vmatpush2.bf16.msra.mxu0 0
  %1852 = vmatprep.subr.bf16.mxu0 0
  %1853 = vmatpush2.bf16.msra.mxu0 0
  %1854 = vmatprep.subr.bf16.mxu0 0
  %1855 = vmatpush2.bf16.msra.mxu0 0
  %1856 = vmatprep.subr.bf16.mxu0 0
  %1857 = vmatpush2.bf16.msra.mxu0 0
  %1858 = vmatprep.subr.bf16.mxu0 0
  %1859 = vmatpush2.bf16.msra.mxu0 0
  %1860 = vmatprep.subr.bf16.mxu0 0
  %1861 = vmatpush2.bf16.msra.mxu0 0
  %1862 = vmatprep.subr.bf16.mxu0 0
  %1863 = vmatpush2.bf16.msra.mxu0 0
  %1864 = vmatprep.mubr.bf16.mxu0 0
  %1865 = vmatmul.mubr.bf16.gmra.mxu0 %v1787
  %v1866 = vpop.f32.mrf.mxu0
  %v1867 = vadd.f32 %v1557, %v1866
  %v1868 = vpop.f32.mrf.mxu0
  %v1869 = vadd.f32 %v1561, %v1868
  %v1870 = vpop.f32.mrf.mxu0
  %v1871 = vadd.f32 %v1557, %v1870
  %v1872 = vpop.f32.mrf.mxu0
  %v1873 = vadd.f32 %v1561, %v1872
  %1874 = vdwg.mxu0
  %1875 = vmatprep.subr.bf16.mxu0 0
  %1876 = vmatpush1.bf16.msra.mxu0 0
  %1877 = vmatprep.subr.bf16.mxu0 0
  %1878 = vmatpush1.bf16.msra.mxu0 0
  %1879 = vmatprep.subr.bf16.mxu0 0
  %1880 = vmatpush1.bf16.msra.mxu0 0
  %1881 = vmatprep.subr.bf16.mxu0 0
  %1882 = vmatpush1.bf16.msra.mxu0 0
  %1883 = vmatprep.subr.bf16.mxu0 0
  %1884 = vmatpush1.bf16.msra.mxu0 0
  %1885 = vmatprep.subr.bf16.mxu0 0
  %1886 = vmatpush1.bf16.msra.mxu0 0
  %1887 = vmatprep.subr.bf16.mxu0 %v1743
  %1888 = vmatpush1.bf16.msra.mxu0 %v1742
  %1889 = vmatprep.subr.bf16.mxu0 %v1727
  %1890 = vmatpush1.bf16.msra.mxu0 %v1726
  %1891 = vmatprep.subr.bf16.mxu0 0
  %1892 = vmatpush2.bf16.msra.mxu0 0
  %1893 = vmatprep.subr.bf16.mxu0 0
  %1894 = vmatpush2.bf16.msra.mxu0 0
  %1895 = vmatprep.subr.bf16.mxu0 0
  %1896 = vmatpush2.bf16.msra.mxu0 0
  %1897 = vmatprep.subr.bf16.mxu0 0
  %1898 = vmatpush2.bf16.msra.mxu0 0
  %1899 = vmatprep.subr.bf16.mxu0 0
  %1900 = vmatpush2.bf16.msra.mxu0 0
  %1901 = vmatprep.subr.bf16.mxu0 0
  %1902 = vmatpush2.bf16.msra.mxu0 0
  %1903 = vmatprep.subr.bf16.mxu0 0
  %1904 = vmatpush2.bf16.msra.mxu0 0
  %1905 = vmatprep.subr.bf16.mxu0 0
  %1906 = vmatpush2.bf16.msra.mxu0 0
  %1907 = vmatprep.mubr.bf16.mxu0 0
  %1908 = vmatmul.mubr.bf16.gmra.mxu0 %v1787
  %v1909 = vpop.f32.mrf.mxu0
  %v1910 = vadd.f32 %v1565, %v1909
  %v1911 = vpop.f32.mrf.mxu0
  %v1912 = vadd.f32 %v1569, %v1911
  %v1913 = vpop.f32.mrf.mxu0
  %v1914 = vadd.f32 %v1565, %v1913
  %v1915 = vpop.f32.mrf.mxu0
  %v1916 = vadd.f32 %v1569, %v1915
  %1917 = vdwg.mxu0
  %1918 = vmatprep.subr.bf16.mxu0 0
  %1919 = vmatpush1.bf16.msra.mxu0 0
  %1920 = vmatprep.subr.bf16.mxu0 0
  %1921 = vmatpush1.bf16.msra.mxu0 0
  %1922 = vmatprep.subr.bf16.mxu0 0
  %1923 = vmatpush1.bf16.msra.mxu0 0
  %1924 = vmatprep.subr.bf16.mxu0 0
  %1925 = vmatpush1.bf16.msra.mxu0 0
  %1926 = vmatprep.subr.bf16.mxu0 0
  %1927 = vmatpush1.bf16.msra.mxu0 0
  %1928 = vmatprep.subr.bf16.mxu0 0
  %1929 = vmatpush1.bf16.msra.mxu0 0
  %1930 = vmatprep.subr.bf16.mxu0 %v1745
  %1931 = vmatpush1.bf16.msra.mxu0 %v1744
  %1932 = vmatprep.subr.bf16.mxu0 %v1729
  %1933 = vmatpush1.bf16.msra.mxu0 %v1728
  %1934 = vmatprep.subr.bf16.mxu0 0
  %1935 = vmatpush2.bf16.msra.mxu0 0
  %1936 = vmatprep.subr.bf16.mxu0 0
  %1937 = vmatpush2.bf16.msra.mxu0 0
  %1938 = vmatprep.subr.bf16.mxu0 0
  %1939 = vmatpush2.bf16.msra.mxu0 0
  %1940 = vmatprep.subr.bf16.mxu0 0
  %1941 = vmatpush2.bf16.msra.mxu0 0
  %1942 = vmatprep.subr.bf16.mxu0 0
  %1943 = vmatpush2.bf16.msra.mxu0 0
  %1944 = vmatprep.subr.bf16.mxu0 0
  %1945 = vmatpush2.bf16.msra.mxu0 0
  %1946 = vmatprep.subr.bf16.mxu0 0
  %1947 = vmatpush2.bf16.msra.mxu0 0
  %1948 = vmatprep.subr.bf16.mxu0 0
  %1949 = vmatpush2.bf16.msra.mxu0 0
  %1950 = vmatprep.mubr.bf16.mxu0 0
  %1951 = vmatmul.mubr.bf16.gmra.mxu0 %v1787
  %v1952 = vpop.f32.mrf.mxu0
  %v1953 = vadd.f32 %v1573, %v1952
  %v1954 = vpop.f32.mrf.mxu0
  %v1955 = vadd.f32 %v1577, %v1954
  %v1956 = vpop.f32.mrf.mxu0
  %v1957 = vadd.f32 %v1573, %v1956
  %v1958 = vpop.f32.mrf.mxu0
  %v1959 = vadd.f32 %v1577, %v1958
  %1960 = vdwg.mxu0
  %1961 = vmatprep.subr.bf16.mxu0 0
  %1962 = vmatpush1.bf16.msra.mxu0 0
  %1963 = vmatprep.subr.bf16.mxu0 0
  %1964 = vmatpush1.bf16.msra.mxu0 0
  %1965 = vmatprep.subr.bf16.mxu0 0
  %1966 = vmatpush1.bf16.msra.mxu0 0
  %1967 = vmatprep.subr.bf16.mxu0 0
  %1968 = vmatpush1.bf16.msra.mxu0 0
  %1969 = vmatprep.subr.bf16.mxu0 0
  %1970 = vmatpush1.bf16.msra.mxu0 0
  %1971 = vmatprep.subr.bf16.mxu0 0
  %1972 = vmatpush1.bf16.msra.mxu0 0
  %1973 = vmatprep.subr.bf16.mxu0 %v1747
  %1974 = vmatpush1.bf16.msra.mxu0 %v1746
  %1975 = vmatprep.subr.bf16.mxu0 %v1731
  %1976 = vmatpush1.bf16.msra.mxu0 %v1730
  %1977 = vmatprep.subr.bf16.mxu0 0
  %1978 = vmatpush2.bf16.msra.mxu0 0
  %1979 = vmatprep.subr.bf16.mxu0 0
  %1980 = vmatpush2.bf16.msra.mxu0 0
  %1981 = vmatprep.subr.bf16.mxu0 0
  %1982 = vmatpush2.bf16.msra.mxu0 0
  %1983 = vmatprep.subr.bf16.mxu0 0
  %1984 = vmatpush2.bf16.msra.mxu0 0
  %1985 = vmatprep.subr.bf16.mxu0 0
  %1986 = vmatpush2.bf16.msra.mxu0 0
  %1987 = vmatprep.subr.bf16.mxu0 0
  %1988 = vmatpush2.bf16.msra.mxu0 0
  %1989 = vmatprep.subr.bf16.mxu0 0
  %1990 = vmatpush2.bf16.msra.mxu0 0
  %1991 = vmatprep.subr.bf16.mxu0 0
  %1992 = vmatpush2.bf16.msra.mxu0 0
  %1993 = vmatprep.mubr.bf16.mxu0 0
  %1994 = vmatmul.mubr.bf16.gmra.mxu0 %v1787
  %v1995 = vpop.f32.mrf.mxu0
  %v1996 = vadd.f32 %v1581, %v1995
  %v1997 = vpop.f32.mrf.mxu0
  %v1998 = vadd.f32 %v1585, %v1997
  %v1999 = vpop.f32.mrf.mxu0
  %v2000 = vadd.f32 %v1581, %v1999
  %v2001 = vpop.f32.mrf.mxu0
  %v2002 = vadd.f32 %v1585, %v2001
  %2003 = vdwg.mxu0
  %2004 = vmatprep.subr.bf16.mxu0 0
  %2005 = vmatpush1.bf16.msra.mxu0 0
  %2006 = vmatprep.subr.bf16.mxu0 0
  %2007 = vmatpush1.bf16.msra.mxu0 0
  %2008 = vmatprep.subr.bf16.mxu0 0
  %2009 = vmatpush1.bf16.msra.mxu0 0
  %2010 = vmatprep.subr.bf16.mxu0 0
  %2011 = vmatpush1.bf16.msra.mxu0 0
  %2012 = vmatprep.subr.bf16.mxu0 0
  %2013 = vmatpush1.bf16.msra.mxu0 0
  %2014 = vmatprep.subr.bf16.mxu0 0
  %2015 = vmatpush1.bf16.msra.mxu0 0
  %2016 = vmatprep.subr.bf16.mxu0 %v1749
  %2017 = vmatpush1.bf16.msra.mxu0 %v1748
  %2018 = vmatprep.subr.bf16.mxu0 %v1733
  %2019 = vmatpush1.bf16.msra.mxu0 %v1732
  %2020 = vmatprep.subr.bf16.mxu0 0
  %2021 = vmatpush2.bf16.msra.mxu0 0
  %2022 = vmatprep.subr.bf16.mxu0 0
  %2023 = vmatpush2.bf16.msra.mxu0 0
  %2024 = vmatprep.subr.bf16.mxu0 0
  %2025 = vmatpush2.bf16.msra.mxu0 0
  %2026 = vmatprep.subr.bf16.mxu0 0
  %2027 = vmatpush2.bf16.msra.mxu0 0
  %2028 = vmatprep.subr.bf16.mxu0 0
  %2029 = vmatpush2.bf16.msra.mxu0 0
  %2030 = vmatprep.subr.bf16.mxu0 0
  %2031 = vmatpush2.bf16.msra.mxu0 0
  %2032 = vmatprep.subr.bf16.mxu0 0
  %2033 = vmatpush2.bf16.msra.mxu0 0
  %2034 = vmatprep.subr.bf16.mxu0 0
  %2035 = vmatpush2.bf16.msra.mxu0 0
  %2036 = vmatprep.mubr.bf16.mxu0 0
  %2037 = vmatmul.mubr.bf16.gmra.mxu0 %v1787
  %v2038 = vpop.f32.mrf.mxu0
  %v2039 = vadd.f32 %v1589, %v2038
  %v2040 = vpop.f32.mrf.mxu0
  %v2041 = vadd.f32 %v1593, %v2040
  %v2042 = vpop.f32.mrf.mxu0
  %v2043 = vadd.f32 %v1589, %v2042
  %v2044 = vpop.f32.mrf.mxu0
  %v2045 = vadd.f32 %v1593, %v2044
  %2046 = vdwg.mxu0
  %2047 = vmatprep.subr.bf16.mxu0 0
  %2048 = vmatpush1.bf16.msra.mxu0 0
  %2049 = vmatprep.subr.bf16.mxu0 0
  %2050 = vmatpush1.bf16.msra.mxu0 0
  %2051 = vmatprep.subr.bf16.mxu0 0
  %2052 = vmatpush1.bf16.msra.mxu0 0
  %2053 = vmatprep.subr.bf16.mxu0 0
  %2054 = vmatpush1.bf16.msra.mxu0 0
  %2055 = vmatprep.subr.bf16.mxu0 0
  %2056 = vmatpush1.bf16.msra.mxu0 0
  %2057 = vmatprep.subr.bf16.mxu0 0
  %2058 = vmatpush1.bf16.msra.mxu0 0
  %2059 = vmatprep.subr.bf16.mxu0 %v1751
  %2060 = vmatpush1.bf16.msra.mxu0 %v1750
  %2061 = vmatprep.subr.bf16.mxu0 %v1735
  %2062 = vmatpush1.bf16.msra.mxu0 %v1734
  %2063 = vmatprep.subr.bf16.mxu0 0
  %2064 = vmatpush2.bf16.msra.mxu0 0
  %2065 = vmatprep.subr.bf16.mxu0 0
  %2066 = vmatpush2.bf16.msra.mxu0 0
  %2067 = vmatprep.subr.bf16.mxu0 0
  %2068 = vmatpush2.bf16.msra.mxu0 0
  %2069 = vmatprep.subr.bf16.mxu0 0
  %2070 = vmatpush2.bf16.msra.mxu0 0
  %2071 = vmatprep.subr.bf16.mxu0 0
  %2072 = vmatpush2.bf16.msra.mxu0 0
  %2073 = vmatprep.subr.bf16.mxu0 0
  %2074 = vmatpush2.bf16.msra.mxu0 0
  %2075 = vmatprep.subr.bf16.mxu0 0
  %2076 = vmatpush2.bf16.msra.mxu0 0
  %2077 = vmatprep.subr.bf16.mxu0 0
  %2078 = vmatpush2.bf16.msra.mxu0 0
  %2079 = vmatprep.mubr.bf16.mxu0 0
  %2080 = vmatmul.mubr.bf16.gmra.mxu0 %v1787
  %v2081 = vpop.f32.mrf.mxu0
  %v2082 = vadd.f32 %v1597, %v2081
  %v2083 = vpop.f32.mrf.mxu0
  %v2084 = vadd.f32 %v1601, %v2083
  %v2085 = vpop.f32.mrf.mxu0
  %v2086 = vadd.f32 %v1597, %v2085
  %v2087 = vpop.f32.mrf.mxu0
  %v2088 = vadd.f32 %v1601, %v2087
  %2089 = vdwg.mxu0
  %2090 = vmatprep.subr.bf16.mxu0 0
  %2091 = vmatpush1.bf16.msra.mxu0 0
  %2092 = vmatprep.subr.bf16.mxu0 0
  %2093 = vmatpush1.bf16.msra.mxu0 0
  %2094 = vmatprep.subr.bf16.mxu0 0
  %2095 = vmatpush1.bf16.msra.mxu0 0
  %2096 = vmatprep.subr.bf16.mxu0 0
  %2097 = vmatpush1.bf16.msra.mxu0 0
  %2098 = vmatprep.subr.bf16.mxu0 0
  %2099 = vmatpush1.bf16.msra.mxu0 0
  %2100 = vmatprep.subr.bf16.mxu0 0
  %2101 = vmatpush1.bf16.msra.mxu0 0
  %2102 = vmatprep.subr.bf16.mxu0 %v1753
  %2103 = vmatpush1.bf16.msra.mxu0 %v1752
  %2104 = vmatprep.subr.bf16.mxu0 %v1737
  %2105 = vmatpush1.bf16.msra.mxu0 %v1736
  %2106 = vmatprep.subr.bf16.mxu0 0
  %2107 = vmatpush2.bf16.msra.mxu0 0
  %2108 = vmatprep.subr.bf16.mxu0 0
  %2109 = vmatpush2.bf16.msra.mxu0 0
  %2110 = vmatprep.subr.bf16.mxu0 0
  %2111 = vmatpush2.bf16.msra.mxu0 0
  %2112 = vmatprep.subr.bf16.mxu0 0
  %2113 = vmatpush2.bf16.msra.mxu0 0
  %2114 = vmatprep.subr.bf16.mxu0 0
  %2115 = vmatpush2.bf16.msra.mxu0 0
  %2116 = vmatprep.subr.bf16.mxu0 0
  %2117 = vmatpush2.bf16.msra.mxu0 0
  %2118 = vmatprep.subr.bf16.mxu0 0
  %2119 = vmatpush2.bf16.msra.mxu0 0
  %2120 = vmatprep.subr.bf16.mxu0 0
  %2121 = vmatpush2.bf16.msra.mxu0 0
  %2122 = vmatprep.mubr.bf16.mxu0 0
  %2123 = vmatmul.mubr.bf16.gmra.mxu0 %v1787
  %v2124 = vpop.f32.mrf.mxu0
  %v2125 = vadd.f32 %v1605, %v2124
  %v2126 = vpop.f32.mrf.mxu0
  %v2127 = vadd.f32 %v1609, %v2126
  %v2128 = vpop.f32.mrf.mxu0
  %v2129 = vadd.f32 %v1605, %v2128
  %v2130 = vpop.f32.mrf.mxu0
  %v2131 = vadd.f32 %v1609, %v2130
  %2132 = vdwg.mxu0
  %v2133 = vmax.f32 %v1824, 0.0
  %v2134 = vmax.f32 %v1826, 0.0
  %v2135 = vmax.f32 %v1867, 0.0
  %v2136 = vmax.f32 %v1869, 0.0
  %v2137 = vmax.f32 %v1910, 0.0
  %v2138 = vmax.f32 %v1912, 0.0
  %v2139 = vmax.f32 %v1953, 0.0
  %v2140 = vmax.f32 %v1955, 0.0
  %v2141 = vmax.f32 %v1996, 0.0
  %v2142 = vmax.f32 %v1998, 0.0
  %v2143 = vmax.f32 %v2039, 0.0
  %v2144 = vmax.f32 %v2041, 0.0
  %v2145 = vmax.f32 %v2082, 0.0
  %v2146 = vmax.f32 %v2084, 0.0
  %v2147 = vmax.f32 %v2125, 0.0
  %v2148 = vmax.f32 %v2127, 0.0
  %v2149 = vmax.f32 %v1828, 0.0
  %v2150 = vmax.f32 %v1830, 0.0
  %v2151 = vmax.f32 %v1871, 0.0
  %v2152 = vmax.f32 %v1873, 0.0
  %v2153 = vmax.f32 %v1914, 0.0
  %v2154 = vmax.f32 %v1916, 0.0
  %v2155 = vmax.f32 %v1957, 0.0
  %v2156 = vmax.f32 %v1959, 0.0
  %v2157 = vmax.f32 %v2000, 0.0
  %v2158 = vmax.f32 %v2002, 0.0
  %v2159 = vmax.f32 %v2043, 0.0
  %v2160 = vmax.f32 %v2045, 0.0
  %v2161 = vmax.f32 %v2086, 0.0
  %v2162 = vmax.f32 %v2088, 0.0
  %v2163 = vmax.f32 %v2129, 0.0
  %v2164 = vmax.f32 %v2131, 0.0
  %v2165 = vpack.c.bf16 %v2149, %v2133
  %v2166 = vpack.c.bf16 %v2150, %v2134
  %v2167 = vpack.c.bf16 %v2151, %v2135
  %v2168 = vpack.c.bf16 %v2152, %v2136
  %v2169 = vpack.c.bf16 %v2153, %v2137
  %v2170 = vpack.c.bf16 %v2154, %v2138
  %v2171 = vpack.c.bf16 %v2155, %v2139
  %v2172 = vpack.c.bf16 %v2156, %v2140
  %v2173 = vpack.c.bf16 %v2157, %v2141
  %v2174 = vpack.c.bf16 %v2158, %v2142
  %v2175 = vpack.c.bf16 %v2159, %v2143
  %v2176 = vpack.c.bf16 %v2160, %v2144
  %v2177 = vpack.c.bf16 %v2161, %v2145
  %v2178 = vpack.c.bf16 %v2162, %v2146
  %v2179 = vpack.c.bf16 %v2163, %v2147
  %v2180 = vpack.c.bf16 %v2164, %v2148
  %v2181 = vld [vmem:[%s23] sm:$0xf]
  %v2182 = vld [vmem:[%s23 + $0x4] sm:$0xf]
  %v2183 = vld [vmem:[%s23 + $0x8] sm:$0xf]
  %v2184 = vld [vmem:[%s23 + $0xc] sm:$0xf]
  %v2185 = vld [vmem:[%s23 + $0x10] sm:$0xf]
  %v2186 = vld [vmem:[%s23 + $0x14] sm:$0xf]
  %v2187 = vld [vmem:[%s23 + $0x18] sm:$0xf]
  %v2188 = vld [vmem:[%s23 + $0x1c] sm:$0xf]
  %v2189 = vld [vmem:[%s23 + $0x20] sm:$0xf]
  %v2190 = vld [vmem:[%s23 + $0x24] sm:$0xf]
  %v2191 = vld [vmem:[%s23 + $0x28] sm:$0xf]
  %v2192 = vld [vmem:[%s23 + $0x2c] sm:$0xf]
  %v2193 = vld [vmem:[%s23 + $0x30] sm:$0xf]
  %v2194 = vld [vmem:[%s23 + $0x34] sm:$0xf]
  %v2195 = vld [vmem:[%s23 + $0x38] sm:$0xf]
  %v2196 = vld [vmem:[%s23 + $0x3c] sm:$0xf]
  %v2197 = vld [vmem:[%s23 + $0x40] sm:$0xf]
  %v2198 = vld [vmem:[%s23 + $0x44] sm:$0xf]
  %v2199 = vld [vmem:[%s23 + $0x48] sm:$0xf]
  %v2200 = vld [vmem:[%s23 + $0x4c] sm:$0xf]
  %v2201 = vld [vmem:[%s23 + $0x50] sm:$0xf]
  %v2202 = vld [vmem:[%s23 + $0x54] sm:$0xf]
  %v2203 = vld [vmem:[%s23 + $0x58] sm:$0xf]
  %v2204 = vld [vmem:[%s23 + $0x5c] sm:$0xf]
  %v2205 = vld [vmem:[%s23 + $0x60] sm:$0xf]
  %v2206 = vld [vmem:[%s23 + $0x64] sm:$0xf]
  %v2207 = vld [vmem:[%s23 + $0x68] sm:$0xf]
  %v2208 = vld [vmem:[%s23 + $0x6c] sm:$0xf]
  %v2209 = vld [vmem:[%s23 + $0x70] sm:$0xf]
  %v2210 = vld [vmem:[%s23 + $0x74] sm:$0xf]
  %v2211 = vld [vmem:[%s23 + $0x78] sm:$0xf]
  %v2212 = vld [vmem:[%s23 + $0x7c] sm:$0xf]
  %v2213 = vld [vmem:[%s23 + $0x80] sm:$0xf]
  %v2214 = vld [vmem:[%s23 + $0x84] sm:$0xf]
  %v2215 = vld [vmem:[%s23 + $0x88] sm:$0xf]
  %v2216 = vld [vmem:[%s23 + $0x8c] sm:$0xf]
  %v2217 = vld [vmem:[%s23 + $0x90] sm:$0xf]
  %v2218 = vld [vmem:[%s23 + $0x94] sm:$0xf]
  %v2219 = vld [vmem:[%s23 + $0x98] sm:$0xf]
  %v2220 = vld [vmem:[%s23 + $0x9c] sm:$0xf]
  %v2221 = vld [vmem:[%s23 + $0xa0] sm:$0xf]
  %v2222 = vld [vmem:[%s23 + $0xa4] sm:$0xf]
  %v2223 = vld [vmem:[%s23 + $0xa8] sm:$0xf]
  %v2224 = vld [vmem:[%s23 + $0xac] sm:$0xf]
  %v2225 = vld [vmem:[%s23 + $0xb0] sm:$0xf]
  %v2226 = vld [vmem:[%s23 + $0xb4] sm:$0xf]
  %v2227 = vld [vmem:[%s23 + $0xb8] sm:$0xf]
  %v2228 = vld [vmem:[%s23 + $0xbc] sm:$0xf]
  %v2229 = vld [vmem:[%s23 + $0xc0] sm:$0xf]
  %v2230 = vld [vmem:[%s23 + $0xc4] sm:$0xf]
  %v2231 = vld [vmem:[%s23 + $0xc8] sm:$0xf]
  %v2232 = vld [vmem:[%s23 + $0xcc] sm:$0xf]
  %v2233 = vld [vmem:[%s23 + $0xd0] sm:$0xf]
  %v2234 = vld [vmem:[%s23 + $0xd4] sm:$0xf]
  %v2235 = vld [vmem:[%s23 + $0xd8] sm:$0xf]
  %v2236 = vld [vmem:[%s23 + $0xdc] sm:$0xf]
  %v2237 = vld [vmem:[%s23 + $0xe0] sm:$0xf]
  %v2238 = vld [vmem:[%s23 + $0xe4] sm:$0xf]
  %v2239 = vld [vmem:[%s23 + $0xe8] sm:$0xf]
  %v2240 = vld [vmem:[%s23 + $0xec] sm:$0xf]
  %v2241 = vld [vmem:[%s23 + $0xf0] sm:$0xf]
  %v2242 = vld [vmem:[%s23 + $0xf4] sm:$0xf]
  %v2243 = vld [vmem:[%s23 + $0xf8] sm:$0xf]
  %v2244 = vld [vmem:[%s23 + $0xfc] sm:$0xf]
  %v2245 = vld [vmem:[%s23 + $0x100] sm:$0xf]
  %v2246 = vld [vmem:[%s23 + $0x104] sm:$0xf]
  %v2247 = vld [vmem:[%s23 + $0x108] sm:$0xf]
  %v2248 = vld [vmem:[%s23 + $0x10c] sm:$0xf]
  %v2249 = vld [vmem:[%s23 + $0x110] sm:$0xf]
  %v2250 = vld [vmem:[%s23 + $0x114] sm:$0xf]
  %v2251 = vld [vmem:[%s23 + $0x118] sm:$0xf]
  %v2252 = vld [vmem:[%s23 + $0x11c] sm:$0xf]
  %v2253 = vld [vmem:[%s23 + $0x120] sm:$0xf]
  %v2254 = vld [vmem:[%s23 + $0x124] sm:$0xf]
  %v2255 = vld [vmem:[%s23 + $0x128] sm:$0xf]
  %v2256 = vld [vmem:[%s23 + $0x12c] sm:$0xf]
  %v2257 = vld [vmem:[%s23 + $0x130] sm:$0xf]
  %v2258 = vld [vmem:[%s23 + $0x134] sm:$0xf]
  %v2259 = vld [vmem:[%s23 + $0x138] sm:$0xf]
  %v2260 = vld [vmem:[%s23 + $0x13c] sm:$0xf]
  %v2261 = vld [vmem:[%s23 + $0x140] sm:$0xf]
  %v2262 = vld [vmem:[%s23 + $0x144] sm:$0xf]
  %v2263 = vld [vmem:[%s23 + $0x148] sm:$0xf]
  %v2264 = vld [vmem:[%s23 + $0x14c] sm:$0xf]
  %v2265 = vld [vmem:[%s23 + $0x150] sm:$0xf]
  %v2266 = vld [vmem:[%s23 + $0x154] sm:$0xf]
  %v2267 = vld [vmem:[%s23 + $0x158] sm:$0xf]
  %v2268 = vld [vmem:[%s23 + $0x15c] sm:$0xf]
  %v2269 = vld [vmem:[%s23 + $0x160] sm:$0xf]
  %v2270 = vld [vmem:[%s23 + $0x164] sm:$0xf]
  %v2271 = vld [vmem:[%s23 + $0x168] sm:$0xf]
  %v2272 = vld [vmem:[%s23 + $0x16c] sm:$0xf]
  %v2273 = vld [vmem:[%s23 + $0x170] sm:$0xf]
  %v2274 = vld [vmem:[%s23 + $0x174] sm:$0xf]
  %v2275 = vld [vmem:[%s23 + $0x178] sm:$0xf]
  %v2276 = vld [vmem:[%s23 + $0x17c] sm:$0xf]
  %v2277 = vld [vmem:[%s23 + $0x180] sm:$0xf]
  %v2278 = vld [vmem:[%s23 + $0x184] sm:$0xf]
  %v2279 = vld [vmem:[%s23 + $0x188] sm:$0xf]
  %v2280 = vld [vmem:[%s23 + $0x18c] sm:$0xf]
  %v2281 = vld [vmem:[%s23 + $0x190] sm:$0xf]
  %v2282 = vld [vmem:[%s23 + $0x194] sm:$0xf]
  %v2283 = vld [vmem:[%s23 + $0x198] sm:$0xf]
  %v2284 = vld [vmem:[%s23 + $0x19c] sm:$0xf]
  %v2285 = vld [vmem:[%s23 + $0x1a0] sm:$0xf]
  %v2286 = vld [vmem:[%s23 + $0x1a4] sm:$0xf]
  %v2287 = vld [vmem:[%s23 + $0x1a8] sm:$0xf]
  %v2288 = vld [vmem:[%s23 + $0x1ac] sm:$0xf]
  %v2289 = vld [vmem:[%s23 + $0x1b0] sm:$0xf]
  %v2290 = vld [vmem:[%s23 + $0x1b4] sm:$0xf]
  %v2291 = vld [vmem:[%s23 + $0x1b8] sm:$0xf]
  %v2292 = vld [vmem:[%s23 + $0x1bc] sm:$0xf]
  %v2293 = vld [vmem:[%s23 + $0x1c0] sm:$0xf]
  %v2294 = vld [vmem:[%s23 + $0x1c4] sm:$0xf]
  %v2295 = vld [vmem:[%s23 + $0x1c8] sm:$0xf]
  %v2296 = vld [vmem:[%s23 + $0x1cc] sm:$0xf]
  %v2297 = vld [vmem:[%s23 + $0x1d0] sm:$0xf]
  %v2298 = vld [vmem:[%s23 + $0x1d4] sm:$0xf]
  %v2299 = vld [vmem:[%s23 + $0x1d8] sm:$0xf]
  %v2300 = vld [vmem:[%s23 + $0x1dc] sm:$0xf]
  %v2301 = vld [vmem:[%s23 + $0x1e0] sm:$0xf]
  %v2302 = vld [vmem:[%s23 + $0x1e4] sm:$0xf]
  %v2303 = vld [vmem:[%s23 + $0x1e8] sm:$0xf]
  %v2304 = vld [vmem:[%s23 + $0x1ec] sm:$0xf]
  %v2305 = vld [vmem:[%s23 + $0x1f0] sm:$0xf]
  %v2306 = vld [vmem:[%s23 + $0x1f4] sm:$0xf]
  %v2307 = vld [vmem:[%s23 + $0x1f8] sm:$0xf]
  %v2308 = vld [vmem:[%s23 + $0x1fc] sm:$0xf]
  %v2309 = vld [vmem:[%s23 + $0x200] sm:$0xf]
  %v2310 = vld [vmem:[%s23 + $0x204] sm:$0xf]
  %v2311 = vld [vmem:[%s23 + $0x208] sm:$0xf]
  %v2312 = vld [vmem:[%s23 + $0x20c] sm:$0xf]
  %v2313 = vld [vmem:[%s23 + $0x210] sm:$0xf]
  %v2314 = vld [vmem:[%s23 + $0x214] sm:$0xf]
  %v2315 = vld [vmem:[%s23 + $0x218] sm:$0xf]
  %v2316 = vld [vmem:[%s23 + $0x21c] sm:$0xf]
  %v2317 = vld [vmem:[%s23 + $0x220] sm:$0xf]
  %v2318 = vld [vmem:[%s23 + $0x224] sm:$0xf]
  %v2319 = vld [vmem:[%s23 + $0x228] sm:$0xf]
  %v2320 = vld [vmem:[%s23 + $0x22c] sm:$0xf]
  %v2321 = vld [vmem:[%s23 + $0x230] sm:$0xf]
  %v2322 = vld [vmem:[%s23 + $0x234] sm:$0xf]
  %v2323 = vld [vmem:[%s23 + $0x238] sm:$0xf]
  %v2324 = vld [vmem:[%s23 + $0x23c] sm:$0xf]
  %v2325 = vld [vmem:[%s23 + $0x240] sm:$0xf]
  %v2326 = vld [vmem:[%s23 + $0x244] sm:$0xf]
  %v2327 = vld [vmem:[%s23 + $0x248] sm:$0xf]
  %v2328 = vld [vmem:[%s23 + $0x24c] sm:$0xf]
  %v2329 = vld [vmem:[%s23 + $0x250] sm:$0xf]
  %v2330 = vld [vmem:[%s23 + $0x254] sm:$0xf]
  %v2331 = vld [vmem:[%s23 + $0x258] sm:$0xf]
  %v2332 = vld [vmem:[%s23 + $0x25c] sm:$0xf]
  %v2333 = vld [vmem:[%s23 + $0x260] sm:$0xf]
  %v2334 = vld [vmem:[%s23 + $0x264] sm:$0xf]
  %v2335 = vld [vmem:[%s23 + $0x268] sm:$0xf]
  %v2336 = vld [vmem:[%s23 + $0x26c] sm:$0xf]
  %v2337 = vld [vmem:[%s23 + $0x270] sm:$0xf]
  %v2338 = vld [vmem:[%s23 + $0x274] sm:$0xf]
  %v2339 = vld [vmem:[%s23 + $0x278] sm:$0xf]
  %v2340 = vld [vmem:[%s23 + $0x27c] sm:$0xf]
  %v2341 = vld [vmem:[%s23 + $0x280] sm:$0xf]
  %v2342 = vld [vmem:[%s23 + $0x284] sm:$0xf]
  %v2343 = vld [vmem:[%s23 + $0x288] sm:$0xf]
  %v2344 = vld [vmem:[%s23 + $0x28c] sm:$0xf]
  %v2345 = vld [vmem:[%s23 + $0x290] sm:$0xf]
  %v2346 = vld [vmem:[%s23 + $0x294] sm:$0xf]
  %v2347 = vld [vmem:[%s23 + $0x298] sm:$0xf]
  %v2348 = vld [vmem:[%s23 + $0x29c] sm:$0xf]
  %v2349 = vld [vmem:[%s23 + $0x2a0] sm:$0xf]
  %v2350 = vld [vmem:[%s23 + $0x2a4] sm:$0xf]
  %v2351 = vld [vmem:[%s23 + $0x2a8] sm:$0xf]
  %v2352 = vld [vmem:[%s23 + $0x2ac] sm:$0xf]
  %v2353 = vld [vmem:[%s23 + $0x2b0] sm:$0xf]
  %v2354 = vld [vmem:[%s23 + $0x2b4] sm:$0xf]
  %v2355 = vld [vmem:[%s23 + $0x2b8] sm:$0xf]
  %v2356 = vld [vmem:[%s23 + $0x2bc] sm:$0xf]
  %v2357 = vld [vmem:[%s23 + $0x2c0] sm:$0xf]
  %v2358 = vld [vmem:[%s23 + $0x2c4] sm:$0xf]
  %v2359 = vld [vmem:[%s23 + $0x2c8] sm:$0xf]
  %v2360 = vld [vmem:[%s23 + $0x2cc] sm:$0xf]
  %v2361 = vld [vmem:[%s23 + $0x2d0] sm:$0xf]
  %v2362 = vld [vmem:[%s23 + $0x2d4] sm:$0xf]
  %v2363 = vld [vmem:[%s23 + $0x2d8] sm:$0xf]
  %v2364 = vld [vmem:[%s23 + $0x2dc] sm:$0xf]
  %v2365 = vld [vmem:[%s23 + $0x2e0] sm:$0xf]
  %v2366 = vld [vmem:[%s23 + $0x2e4] sm:$0xf]
  %v2367 = vld [vmem:[%s23 + $0x2e8] sm:$0xf]
  %v2368 = vld [vmem:[%s23 + $0x2ec] sm:$0xf]
  %v2369 = vld [vmem:[%s23 + $0x2f0] sm:$0xf]
  %v2370 = vld [vmem:[%s23 + $0x2f4] sm:$0xf]
  %v2371 = vld [vmem:[%s23 + $0x2f8] sm:$0xf]
  %v2372 = vld [vmem:[%s23 + $0x2fc] sm:$0xf]
  %v2373 = vld [vmem:[%s23 + $0x300] sm:$0xf]
  %v2374 = vld [vmem:[%s23 + $0x304] sm:$0xf]
  %v2375 = vld [vmem:[%s23 + $0x308] sm:$0xf]
  %v2376 = vld [vmem:[%s23 + $0x30c] sm:$0xf]
  %v2377 = vld [vmem:[%s23 + $0x310] sm:$0xf]
  %v2378 = vld [vmem:[%s23 + $0x314] sm:$0xf]
  %v2379 = vld [vmem:[%s23 + $0x318] sm:$0xf]
  %v2380 = vld [vmem:[%s23 + $0x31c] sm:$0xf]
  %v2381 = vld [vmem:[%s23 + $0x320] sm:$0xf]
  %v2382 = vld [vmem:[%s23 + $0x324] sm:$0xf]
  %v2383 = vld [vmem:[%s23 + $0x328] sm:$0xf]
  %v2384 = vld [vmem:[%s23 + $0x32c] sm:$0xf]
  %v2385 = vld [vmem:[%s23 + $0x330] sm:$0xf]
  %v2386 = vld [vmem:[%s23 + $0x334] sm:$0xf]
  %v2387 = vld [vmem:[%s23 + $0x338] sm:$0xf]
  %v2388 = vld [vmem:[%s23 + $0x33c] sm:$0xf]
  %v2389 = vld [vmem:[%s23 + $0x340] sm:$0xf]
  %v2390 = vld [vmem:[%s23 + $0x344] sm:$0xf]
  %v2391 = vld [vmem:[%s23 + $0x348] sm:$0xf]
  %v2392 = vld [vmem:[%s23 + $0x34c] sm:$0xf]
  %v2393 = vld [vmem:[%s23 + $0x350] sm:$0xf]
  %v2394 = vld [vmem:[%s23 + $0x354] sm:$0xf]
  %v2395 = vld [vmem:[%s23 + $0x358] sm:$0xf]
  %v2396 = vld [vmem:[%s23 + $0x35c] sm:$0xf]
  %v2397 = vld [vmem:[%s23 + $0x360] sm:$0xf]
  %v2398 = vld [vmem:[%s23 + $0x364] sm:$0xf]
  %v2399 = vld [vmem:[%s23 + $0x368] sm:$0xf]
  %v2400 = vld [vmem:[%s23 + $0x36c] sm:$0xf]
  %v2401 = vld [vmem:[%s23 + $0x370] sm:$0xf]
  %v2402 = vld [vmem:[%s23 + $0x374] sm:$0xf]
  %v2403 = vld [vmem:[%s23 + $0x378] sm:$0xf]
  %v2404 = vld [vmem:[%s23 + $0x37c] sm:$0xf]
  %v2405 = vld [vmem:[%s23 + $0x380] sm:$0xf]
  %v2406 = vld [vmem:[%s23 + $0x384] sm:$0xf]
  %v2407 = vld [vmem:[%s23 + $0x388] sm:$0xf]
  %v2408 = vld [vmem:[%s23 + $0x38c] sm:$0xf]
  %v2409 = vld [vmem:[%s23 + $0x390] sm:$0xf]
  %v2410 = vld [vmem:[%s23 + $0x394] sm:$0xf]
  %v2411 = vld [vmem:[%s23 + $0x398] sm:$0xf]
  %v2412 = vld [vmem:[%s23 + $0x39c] sm:$0xf]
  %v2413 = vld [vmem:[%s23 + $0x3a0] sm:$0xf]
  %v2414 = vld [vmem:[%s23 + $0x3a4] sm:$0xf]
  %v2415 = vld [vmem:[%s23 + $0x3a8] sm:$0xf]
  %v2416 = vld [vmem:[%s23 + $0x3ac] sm:$0xf]
  %v2417 = vld [vmem:[%s23 + $0x3b0] sm:$0xf]
  %v2418 = vld [vmem:[%s23 + $0x3b4] sm:$0xf]
  %v2419 = vld [vmem:[%s23 + $0x3b8] sm:$0xf]
  %v2420 = vld [vmem:[%s23 + $0x3bc] sm:$0xf]
  %v2421 = vld [vmem:[%s23 + $0x3c0] sm:$0xf]
  %v2422 = vld [vmem:[%s23 + $0x3c4] sm:$0xf]
  %v2423 = vld [vmem:[%s23 + $0x3c8] sm:$0xf]
  %v2424 = vld [vmem:[%s23 + $0x3cc] sm:$0xf]
  %v2425 = vld [vmem:[%s23 + $0x3d0] sm:$0xf]
  %v2426 = vld [vmem:[%s23 + $0x3d4] sm:$0xf]
  %v2427 = vld [vmem:[%s23 + $0x3d8] sm:$0xf]
  %v2428 = vld [vmem:[%s23 + $0x3dc] sm:$0xf]
  %v2429 = vld [vmem:[%s23 + $0x3e0] sm:$0xf]
  %v2430 = vld [vmem:[%s23 + $0x3e4] sm:$0xf]
  %v2431 = vld [vmem:[%s23 + $0x3e8] sm:$0xf]
  %v2432 = vld [vmem:[%s23 + $0x3ec] sm:$0xf]
  %v2433 = vld [vmem:[%s23 + $0x3f0] sm:$0xf]
  %v2434 = vld [vmem:[%s23 + $0x3f4] sm:$0xf]
  %v2435 = vld [vmem:[%s23 + $0x3f8] sm:$0xf]
  %v2436 = vld [vmem:[%s23 + $0x3fc] sm:$0xf]
  %v2437 = vld [vmem:[%s25] sm:$0x1]
  %v2439 = vlaneseq
  %v2440 = vshrl.u32 %v2439, 7
  %v2441 = vsub.s32 0, %v2440
  %v2442 = vrot.slane %v2437, %v2441
  %v2700 = vunpack.c.l.b16 %v2181
  %v2701 = vunpack.c.l.b16 %v2182
  %v2702 = vunpack.c.l.b16 %v2183
  %v2703 = vunpack.c.l.b16 %v2184
  %v2704 = vunpack.c.l.b16 %v2185
  %v2705 = vunpack.c.l.b16 %v2186
  %v2706 = vunpack.c.l.b16 %v2187
  %v2707 = vunpack.c.l.b16 %v2188
  %v2708 = vunpack.c.l.b16 %v2189
  %v2709 = vunpack.c.l.b16 %v2190
  %v2710 = vunpack.c.l.b16 %v2191
  %v2711 = vunpack.c.l.b16 %v2192
  %v2712 = vunpack.c.l.b16 %v2193
  %v2713 = vunpack.c.l.b16 %v2194
  %v2714 = vunpack.c.l.b16 %v2195
  %v2715 = vunpack.c.l.b16 %v2196
  %v2716 = vunpack.c.l.b16 %v2197
  %v2717 = vunpack.c.l.b16 %v2198
  %v2718 = vunpack.c.l.b16 %v2199
  %v2719 = vunpack.c.l.b16 %v2200
  %v2720 = vunpack.c.l.b16 %v2201
  %v2721 = vunpack.c.l.b16 %v2202
  %v2722 = vunpack.c.l.b16 %v2203
  %v2723 = vunpack.c.l.b16 %v2204
  %v2724 = vunpack.c.l.b16 %v2205
  %v2725 = vunpack.c.l.b16 %v2206
  %v2726 = vunpack.c.l.b16 %v2207
  %v2727 = vunpack.c.l.b16 %v2208
  %v2728 = vunpack.c.l.b16 %v2209
  %v2729 = vunpack.c.l.b16 %v2210
  %v2730 = vunpack.c.l.b16 %v2211
  %v2731 = vunpack.c.l.b16 %v2212
  %v2732 = vunpack.c.l.b16 %v2213
  %v2733 = vunpack.c.l.b16 %v2214
  %v2734 = vunpack.c.l.b16 %v2215
  %v2735 = vunpack.c.l.b16 %v2216
  %v2736 = vunpack.c.l.b16 %v2217
  %v2737 = vunpack.c.l.b16 %v2218
  %v2738 = vunpack.c.l.b16 %v2219
  %v2739 = vunpack.c.l.b16 %v2220
  %v2740 = vunpack.c.l.b16 %v2221
  %v2741 = vunpack.c.l.b16 %v2222
  %v2742 = vunpack.c.l.b16 %v2223
  %v2743 = vunpack.c.l.b16 %v2224
  %v2744 = vunpack.c.l.b16 %v2225
  %v2745 = vunpack.c.l.b16 %v2226
  %v2746 = vunpack.c.l.b16 %v2227
  %v2747 = vunpack.c.l.b16 %v2228
  %v2748 = vunpack.c.l.b16 %v2229
  %v2749 = vunpack.c.l.b16 %v2230
  %v2750 = vunpack.c.l.b16 %v2231
  %v2751 = vunpack.c.l.b16 %v2232
  %v2752 = vunpack.c.l.b16 %v2233
  %v2753 = vunpack.c.l.b16 %v2234
  %v2754 = vunpack.c.l.b16 %v2235
  %v2755 = vunpack.c.l.b16 %v2236
  %v2756 = vunpack.c.l.b16 %v2237
  %v2757 = vunpack.c.l.b16 %v2238
  %v2758 = vunpack.c.l.b16 %v2239
  %v2759 = vunpack.c.l.b16 %v2240
  %v2760 = vunpack.c.l.b16 %v2241
  %v2761 = vunpack.c.l.b16 %v2242
  %v2762 = vunpack.c.l.b16 %v2243
  %v2763 = vunpack.c.l.b16 %v2244
  %v2764 = vunpack.c.l.b16 %v2245
  %v2765 = vunpack.c.l.b16 %v2246
  %v2766 = vunpack.c.l.b16 %v2247
  %v2767 = vunpack.c.l.b16 %v2248
  %v2768 = vunpack.c.l.b16 %v2249
  %v2769 = vunpack.c.l.b16 %v2250
  %v2770 = vunpack.c.l.b16 %v2251
  %v2771 = vunpack.c.l.b16 %v2252
  %v2772 = vunpack.c.l.b16 %v2253
  %v2773 = vunpack.c.l.b16 %v2254
  %v2774 = vunpack.c.l.b16 %v2255
  %v2775 = vunpack.c.l.b16 %v2256
  %v2776 = vunpack.c.l.b16 %v2257
  %v2777 = vunpack.c.l.b16 %v2258
  %v2778 = vunpack.c.l.b16 %v2259
  %v2779 = vunpack.c.l.b16 %v2260
  %v2780 = vunpack.c.l.b16 %v2261
  %v2781 = vunpack.c.l.b16 %v2262
  %v2782 = vunpack.c.l.b16 %v2263
  %v2783 = vunpack.c.l.b16 %v2264
  %v2784 = vunpack.c.l.b16 %v2265
  %v2785 = vunpack.c.l.b16 %v2266
  %v2786 = vunpack.c.l.b16 %v2267
  %v2787 = vunpack.c.l.b16 %v2268
  %v2788 = vunpack.c.l.b16 %v2269
  %v2789 = vunpack.c.l.b16 %v2270
  %v2790 = vunpack.c.l.b16 %v2271
  %v2791 = vunpack.c.l.b16 %v2272
  %v2792 = vunpack.c.l.b16 %v2273
  %v2793 = vunpack.c.l.b16 %v2274
  %v2794 = vunpack.c.l.b16 %v2275
  %v2795 = vunpack.c.l.b16 %v2276
  %v2796 = vunpack.c.l.b16 %v2277
  %v2797 = vunpack.c.l.b16 %v2278
  %v2798 = vunpack.c.l.b16 %v2279
  %v2799 = vunpack.c.l.b16 %v2280
  %v2800 = vunpack.c.l.b16 %v2281
  %v2801 = vunpack.c.l.b16 %v2282
  %v2802 = vunpack.c.l.b16 %v2283
  %v2803 = vunpack.c.l.b16 %v2284
  %v2804 = vunpack.c.l.b16 %v2285
  %v2805 = vunpack.c.l.b16 %v2286
  %v2806 = vunpack.c.l.b16 %v2287
  %v2807 = vunpack.c.l.b16 %v2288
  %v2808 = vunpack.c.l.b16 %v2289
  %v2809 = vunpack.c.l.b16 %v2290
  %v2810 = vunpack.c.l.b16 %v2291
  %v2811 = vunpack.c.l.b16 %v2292
  %v2812 = vunpack.c.l.b16 %v2293
  %v2813 = vunpack.c.l.b16 %v2294
  %v2814 = vunpack.c.l.b16 %v2295
  %v2815 = vunpack.c.l.b16 %v2296
  %v2816 = vunpack.c.l.b16 %v2297
  %v2817 = vunpack.c.l.b16 %v2298
  %v2818 = vunpack.c.l.b16 %v2299
  %v2819 = vunpack.c.l.b16 %v2300
  %v2820 = vunpack.c.l.b16 %v2301
  %v2821 = vunpack.c.l.b16 %v2302
  %v2822 = vunpack.c.l.b16 %v2303
  %v2823 = vunpack.c.l.b16 %v2304
  %v2824 = vunpack.c.l.b16 %v2305
  %v2825 = vunpack.c.l.b16 %v2306
  %v2826 = vunpack.c.l.b16 %v2307
  %v2827 = vunpack.c.l.b16 %v2308
  %v2828 = vunpack.c.l.b16 %v2309
  %v2829 = vunpack.c.l.b16 %v2310
  %v2830 = vunpack.c.l.b16 %v2311
  %v2831 = vunpack.c.l.b16 %v2312
  %v2832 = vunpack.c.l.b16 %v2313
  %v2833 = vunpack.c.l.b16 %v2314
  %v2834 = vunpack.c.l.b16 %v2315
  %v2835 = vunpack.c.l.b16 %v2316
  %v2836 = vunpack.c.l.b16 %v2317
  %v2837 = vunpack.c.l.b16 %v2318
  %v2838 = vunpack.c.l.b16 %v2319
  %v2839 = vunpack.c.l.b16 %v2320
  %v2840 = vunpack.c.l.b16 %v2321
  %v2841 = vunpack.c.l.b16 %v2322
  %v2842 = vunpack.c.l.b16 %v2323
  %v2843 = vunpack.c.l.b16 %v2324
  %v2844 = vunpack.c.l.b16 %v2325
  %v2845 = vunpack.c.l.b16 %v2326
  %v2846 = vunpack.c.l.b16 %v2327
  %v2847 = vunpack.c.l.b16 %v2328
  %v2848 = vunpack.c.l.b16 %v2329
  %v2849 = vunpack.c.l.b16 %v2330
  %v2850 = vunpack.c.l.b16 %v2331
  %v2851 = vunpack.c.l.b16 %v2332
  %v2852 = vunpack.c.l.b16 %v2333
  %v2853 = vunpack.c.l.b16 %v2334
  %v2854 = vunpack.c.l.b16 %v2335
  %v2855 = vunpack.c.l.b16 %v2336
  %v2856 = vunpack.c.l.b16 %v2337
  %v2857 = vunpack.c.l.b16 %v2338
  %v2858 = vunpack.c.l.b16 %v2339
  %v2859 = vunpack.c.l.b16 %v2340
  %v2860 = vunpack.c.l.b16 %v2341
  %v2861 = vunpack.c.l.b16 %v2342
  %v2862 = vunpack.c.l.b16 %v2343
  %v2863 = vunpack.c.l.b16 %v2344
  %v2864 = vunpack.c.l.b16 %v2345
  %v2865 = vunpack.c.l.b16 %v2346
  %v2866 = vunpack.c.l.b16 %v2347
  %v2867 = vunpack.c.l.b16 %v2348
  %v2868 = vunpack.c.l.b16 %v2349
  %v2869 = vunpack.c.l.b16 %v2350
  %v2870 = vunpack.c.l.b16 %v2351
  %v2871 = vunpack.c.l.b16 %v2352
  %v2872 = vunpack.c.l.b16 %v2353
  %v2873 = vunpack.c.l.b16 %v2354
  %v2874 = vunpack.c.l.b16 %v2355
  %v2875 = vunpack.c.l.b16 %v2356
  %v2876 = vunpack.c.l.b16 %v2357
  %v2877 = vunpack.c.l.b16 %v2358
  %v2878 = vunpack.c.l.b16 %v2359
  %v2879 = vunpack.c.l.b16 %v2360
  %v2880 = vunpack.c.l.b16 %v2361
  %v2881 = vunpack.c.l.b16 %v2362
  %v2882 = vunpack.c.l.b16 %v2363
  %v2883 = vunpack.c.l.b16 %v2364
  %v2884 = vunpack.c.l.b16 %v2365
  %v2885 = vunpack.c.l.b16 %v2366
  %v2886 = vunpack.c.l.b16 %v2367
  %v2887 = vunpack.c.l.b16 %v2368
  %v2888 = vunpack.c.l.b16 %v2369
  %v2889 = vunpack.c.l.b16 %v2370
  %v2890 = vunpack.c.l.b16 %v2371
  %v2891 = vunpack.c.l.b16 %v2372
  %v2892 = vunpack.c.l.b16 %v2373
  %v2893 = vunpack.c.l.b16 %v2374
  %v2894 = vunpack.c.l.b16 %v2375
  %v2895 = vunpack.c.l.b16 %v2376
  %v2896 = vunpack.c.l.b16 %v2377
  %v2897 = vunpack.c.l.b16 %v2378
  %v2898 = vunpack.c.l.b16 %v2379
  %v2899 = vunpack.c.l.b16 %v2380
  %v2900 = vunpack.c.l.b16 %v2381
  %v2901 = vunpack.c.l.b16 %v2382
  %v2902 = vunpack.c.l.b16 %v2383
  %v2903 = vunpack.c.l.b16 %v2384
  %v2904 = vunpack.c.l.b16 %v2385
  %v2905 = vunpack.c.l.b16 %v2386
  %v2906 = vunpack.c.l.b16 %v2387
  %v2907 = vunpack.c.l.b16 %v2388
  %v2908 = vunpack.c.l.b16 %v2389
  %v2909 = vunpack.c.l.b16 %v2390
  %v2910 = vunpack.c.l.b16 %v2391
  %v2911 = vunpack.c.l.b16 %v2392
  %v2912 = vunpack.c.l.b16 %v2393
  %v2913 = vunpack.c.l.b16 %v2394
  %v2914 = vunpack.c.l.b16 %v2395
  %v2915 = vunpack.c.l.b16 %v2396
  %v2916 = vunpack.c.l.b16 %v2397
  %v2917 = vunpack.c.l.b16 %v2398
  %v2918 = vunpack.c.l.b16 %v2399
  %v2919 = vunpack.c.l.b16 %v2400
  %v2920 = vunpack.c.l.b16 %v2401
  %v2921 = vunpack.c.l.b16 %v2402
  %v2922 = vunpack.c.l.b16 %v2403
  %v2923 = vunpack.c.l.b16 %v2404
  %v2924 = vunpack.c.l.b16 %v2405
  %v2925 = vunpack.c.l.b16 %v2406
  %v2926 = vunpack.c.l.b16 %v2407
  %v2927 = vunpack.c.l.b16 %v2408
  %v2928 = vunpack.c.l.b16 %v2409
  %v2929 = vunpack.c.l.b16 %v2410
  %v2930 = vunpack.c.l.b16 %v2411
  %v2931 = vunpack.c.l.b16 %v2412
  %v2932 = vunpack.c.l.b16 %v2413
  %v2933 = vunpack.c.l.b16 %v2414
  %v2934 = vunpack.c.l.b16 %v2415
  %v2935 = vunpack.c.l.b16 %v2416
  %v2936 = vunpack.c.l.b16 %v2417
  %v2937 = vunpack.c.l.b16 %v2418
  %v2938 = vunpack.c.l.b16 %v2419
  %v2939 = vunpack.c.l.b16 %v2420
  %v2940 = vunpack.c.l.b16 %v2421
  %v2941 = vunpack.c.l.b16 %v2422
  %v2942 = vunpack.c.l.b16 %v2423
  %v2943 = vunpack.c.l.b16 %v2424
  %v2944 = vunpack.c.l.b16 %v2425
  %v2945 = vunpack.c.l.b16 %v2426
  %v2946 = vunpack.c.l.b16 %v2427
  %v2947 = vunpack.c.l.b16 %v2428
  %v2948 = vunpack.c.l.b16 %v2429
  %v2949 = vunpack.c.l.b16 %v2430
  %v2950 = vunpack.c.l.b16 %v2431
  %v2951 = vunpack.c.l.b16 %v2432
  %v2952 = vunpack.c.l.b16 %v2433
  %v2953 = vunpack.c.l.b16 %v2434
  %v2954 = vunpack.c.l.b16 %v2435
  %v2955 = vunpack.c.l.b16 %v2436
  %v2956 = vpack.c.b16 %v2701, %v2700
  %v2957 = vpack.c.b16 %v2703, %v2702
  %v2958 = vpack.c.b16 %v2705, %v2704
  %v2959 = vpack.c.b16 %v2707, %v2706
  %v2960 = vpack.c.b16 %v2709, %v2708
  %v2961 = vpack.c.b16 %v2711, %v2710
  %v2962 = vpack.c.b16 %v2713, %v2712
  %v2963 = vpack.c.b16 %v2715, %v2714
  %v2964 = vpack.c.b16 %v2717, %v2716
  %v2965 = vpack.c.b16 %v2719, %v2718
  %v2966 = vpack.c.b16 %v2721, %v2720
  %v2967 = vpack.c.b16 %v2723, %v2722
  %v2968 = vpack.c.b16 %v2725, %v2724
  %v2969 = vpack.c.b16 %v2727, %v2726
  %v2970 = vpack.c.b16 %v2729, %v2728
  %v2971 = vpack.c.b16 %v2731, %v2730
  %v2972 = vpack.c.b16 %v2733, %v2732
  %v2973 = vpack.c.b16 %v2735, %v2734
  %v2974 = vpack.c.b16 %v2737, %v2736
  %v2975 = vpack.c.b16 %v2739, %v2738
  %v2976 = vpack.c.b16 %v2741, %v2740
  %v2977 = vpack.c.b16 %v2743, %v2742
  %v2978 = vpack.c.b16 %v2745, %v2744
  %v2979 = vpack.c.b16 %v2747, %v2746
  %v2980 = vpack.c.b16 %v2749, %v2748
  %v2981 = vpack.c.b16 %v2751, %v2750
  %v2982 = vpack.c.b16 %v2753, %v2752
  %v2983 = vpack.c.b16 %v2755, %v2754
  %v2984 = vpack.c.b16 %v2757, %v2756
  %v2985 = vpack.c.b16 %v2759, %v2758
  %v2986 = vpack.c.b16 %v2761, %v2760
  %v2987 = vpack.c.b16 %v2763, %v2762
  %v2988 = vpack.c.b16 %v2765, %v2764
  %v2989 = vpack.c.b16 %v2767, %v2766
  %v2990 = vpack.c.b16 %v2769, %v2768
  %v2991 = vpack.c.b16 %v2771, %v2770
  %v2992 = vpack.c.b16 %v2773, %v2772
  %v2993 = vpack.c.b16 %v2775, %v2774
  %v2994 = vpack.c.b16 %v2777, %v2776
  %v2995 = vpack.c.b16 %v2779, %v2778
  %v2996 = vpack.c.b16 %v2781, %v2780
  %v2997 = vpack.c.b16 %v2783, %v2782
  %v2998 = vpack.c.b16 %v2785, %v2784
  %v2999 = vpack.c.b16 %v2787, %v2786
  %v3000 = vpack.c.b16 %v2789, %v2788
  %v3001 = vpack.c.b16 %v2791, %v2790
  %v3002 = vpack.c.b16 %v2793, %v2792
  %v3003 = vpack.c.b16 %v2795, %v2794
  %v3004 = vpack.c.b16 %v2797, %v2796
  %v3005 = vpack.c.b16 %v2799, %v2798
  %v3006 = vpack.c.b16 %v2801, %v2800
  %v3007 = vpack.c.b16 %v2803, %v2802
  %v3008 = vpack.c.b16 %v2805, %v2804
  %v3009 = vpack.c.b16 %v2807, %v2806
  %v3010 = vpack.c.b16 %v2809, %v2808
  %v3011 = vpack.c.b16 %v2811, %v2810
  %v3012 = vpack.c.b16 %v2813, %v2812
  %v3013 = vpack.c.b16 %v2815, %v2814
  %v3014 = vpack.c.b16 %v2817, %v2816
  %v3015 = vpack.c.b16 %v2819, %v2818
  %v3016 = vpack.c.b16 %v2821, %v2820
  %v3017 = vpack.c.b16 %v2823, %v2822
  %v3018 = vpack.c.b16 %v2825, %v2824
  %v3019 = vpack.c.b16 %v2827, %v2826
  %v3020 = vpack.c.b16 %v2829, %v2828
  %v3021 = vpack.c.b16 %v2831, %v2830
  %v3022 = vpack.c.b16 %v2833, %v2832
  %v3023 = vpack.c.b16 %v2835, %v2834
  %v3024 = vpack.c.b16 %v2837, %v2836
  %v3025 = vpack.c.b16 %v2839, %v2838
  %v3026 = vpack.c.b16 %v2841, %v2840
  %v3027 = vpack.c.b16 %v2843, %v2842
  %v3028 = vpack.c.b16 %v2845, %v2844
  %v3029 = vpack.c.b16 %v2847, %v2846
  %v3030 = vpack.c.b16 %v2849, %v2848
  %v3031 = vpack.c.b16 %v2851, %v2850
  %v3032 = vpack.c.b16 %v2853, %v2852
  %v3033 = vpack.c.b16 %v2855, %v2854
  %v3034 = vpack.c.b16 %v2857, %v2856
  %v3035 = vpack.c.b16 %v2859, %v2858
  %v3036 = vpack.c.b16 %v2861, %v2860
  %v3037 = vpack.c.b16 %v2863, %v2862
  %v3038 = vpack.c.b16 %v2865, %v2864
  %v3039 = vpack.c.b16 %v2867, %v2866
  %v3040 = vpack.c.b16 %v2869, %v2868
  %v3041 = vpack.c.b16 %v2871, %v2870
  %v3042 = vpack.c.b16 %v2873, %v2872
  %v3043 = vpack.c.b16 %v2875, %v2874
  %v3044 = vpack.c.b16 %v2877, %v2876
  %v3045 = vpack.c.b16 %v2879, %v2878
  %v3046 = vpack.c.b16 %v2881, %v2880
  %v3047 = vpack.c.b16 %v2883, %v2882
  %v3048 = vpack.c.b16 %v2885, %v2884
  %v3049 = vpack.c.b16 %v2887, %v2886
  %v3050 = vpack.c.b16 %v2889, %v2888
  %v3051 = vpack.c.b16 %v2891, %v2890
  %v3052 = vpack.c.b16 %v2893, %v2892
  %v3053 = vpack.c.b16 %v2895, %v2894
  %v3054 = vpack.c.b16 %v2897, %v2896
  %v3055 = vpack.c.b16 %v2899, %v2898
  %v3056 = vpack.c.b16 %v2901, %v2900
  %v3057 = vpack.c.b16 %v2903, %v2902
  %v3058 = vpack.c.b16 %v2905, %v2904
  %v3059 = vpack.c.b16 %v2907, %v2906
  %v3060 = vpack.c.b16 %v2909, %v2908
  %v3061 = vpack.c.b16 %v2911, %v2910
  %v3062 = vpack.c.b16 %v2913, %v2912
  %v3063 = vpack.c.b16 %v2915, %v2914
  %v3064 = vpack.c.b16 %v2917, %v2916
  %v3065 = vpack.c.b16 %v2919, %v2918
  %v3066 = vpack.c.b16 %v2921, %v2920
  %v3067 = vpack.c.b16 %v2923, %v2922
  %v3068 = vpack.c.b16 %v2925, %v2924
  %v3069 = vpack.c.b16 %v2927, %v2926
  %v3070 = vpack.c.b16 %v2929, %v2928
  %v3071 = vpack.c.b16 %v2931, %v2930
  %v3072 = vpack.c.b16 %v2933, %v2932
  %v3073 = vpack.c.b16 %v2935, %v2934
  %v3074 = vpack.c.b16 %v2937, %v2936
  %v3075 = vpack.c.b16 %v2939, %v2938
  %v3076 = vpack.c.b16 %v2941, %v2940
  %v3077 = vpack.c.b16 %v2943, %v2942
  %v3078 = vpack.c.b16 %v2945, %v2944
  %v3079 = vpack.c.b16 %v2947, %v2946
  %v3080 = vpack.c.b16 %v2949, %v2948
  %v3081 = vpack.c.b16 %v2951, %v2950
  %v3082 = vpack.c.b16 %v2953, %v2952
  %v3083 = vpack.c.b16 %v2955, %v2954
  %3212 = vmatprep.subr.bf16.mxu0 0
  %3213 = vmatpush1.bf16.msra.mxu0 %v2963
  %3214 = vmatprep.subr.bf16.mxu0 0
  %3215 = vmatpush1.bf16.msra.mxu0 %v2962
  %3216 = vmatprep.subr.bf16.mxu0 0
  %3217 = vmatpush1.bf16.msra.mxu0 %v2961
  %3218 = vmatprep.subr.bf16.mxu0 0
  %3219 = vmatpush1.bf16.msra.mxu0 %v2960
  %3220 = vmatprep.subr.bf16.mxu0 0
  %3221 = vmatpush1.bf16.msra.mxu0 %v2959
  %3222 = vmatprep.subr.bf16.mxu0 0
  %3223 = vmatpush1.bf16.msra.mxu0 %v2958
  %3224 = vmatprep.subr.bf16.mxu0 0
  %3225 = vmatpush1.bf16.msra.mxu0 %v2957
  %3226 = vmatprep.subr.bf16.mxu0 0
  %3227 = vmatpush1.bf16.msra.mxu0 %v2956
  %3228 = vmatprep.subr.bf16.mxu0 0
  %3229 = vmatpush2.bf16.msra.mxu0 %v2971
  %3230 = vmatprep.subr.bf16.mxu0 0
  %3231 = vmatpush2.bf16.msra.mxu0 %v2970
  %3232 = vmatprep.subr.bf16.mxu0 0
  %3233 = vmatpush2.bf16.msra.mxu0 %v2969
  %3234 = vmatprep.subr.bf16.mxu0 0
  %3235 = vmatpush2.bf16.msra.mxu0 %v2968
  %3236 = vmatprep.subr.bf16.mxu0 0
  %3237 = vmatpush2.bf16.msra.mxu0 %v2967
  %3238 = vmatprep.subr.bf16.mxu0 0
  %3239 = vmatpush2.bf16.msra.mxu0 %v2966
  %3240 = vmatprep.subr.bf16.mxu0 0
  %3241 = vmatpush2.bf16.msra.mxu0 %v2965
  %3242 = vmatprep.subr.bf16.mxu0 0
  %3243 = vmatpush2.bf16.msra.mxu0 %v2964
  %3244 = vmatprep.mubr.bf16.mxu0 %v2166
  %3245 = vmatmul.mubr.bf16.gmra.mxu0 %v2165
  %v3246 = vpop.f32.mrf.mxu0
  %v3247 = vadd.f32 %v2442, %v3246
  %v3248 = vpop.f32.mrf.mxu0
  %v3249 = vpop.f32.mrf.mxu0
  %v3250 = vadd.f32 %v2442, %v3249
  %v3251 = vpop.f32.mrf.mxu0
  %3252 = vdwg.mxu0
  %3253 = vmatprep.subr.bf16.mxu0 0
  %3254 = vmatpush1.bf16.msra.mxu0 %v2979
  %3255 = vmatprep.subr.bf16.mxu0 0
  %3256 = vmatpush1.bf16.msra.mxu0 %v2978
  %3257 = vmatprep.subr.bf16.mxu0 0
  %3258 = vmatpush1.bf16.msra.mxu0 %v2977
  %3259 = vmatprep.subr.bf16.mxu0 0
  %3260 = vmatpush1.bf16.msra.mxu0 %v2976
  %3261 = vmatprep.subr.bf16.mxu0 0
  %3262 = vmatpush1.bf16.msra.mxu0 %v2975
  %3263 = vmatprep.subr.bf16.mxu0 0
  %3264 = vmatpush1.bf16.msra.mxu0 %v2974
  %3265 = vmatprep.subr.bf16.mxu0 0
  %3266 = vmatpush1.bf16.msra.mxu0 %v2973
  %3267 = vmatprep.subr.bf16.mxu0 0
  %3268 = vmatpush1.bf16.msra.mxu0 %v2972
  %3269 = vmatprep.subr.bf16.mxu0 0
  %3270 = vmatpush2.bf16.msra.mxu0 %v2987
  %3271 = vmatprep.subr.bf16.mxu0 0
  %3272 = vmatpush2.bf16.msra.mxu0 %v2986
  %3273 = vmatprep.subr.bf16.mxu0 0
  %3274 = vmatpush2.bf16.msra.mxu0 %v2985
  %3275 = vmatprep.subr.bf16.mxu0 0
  %3276 = vmatpush2.bf16.msra.mxu0 %v2984
  %3277 = vmatprep.subr.bf16.mxu0 0
  %3278 = vmatpush2.bf16.msra.mxu0 %v2983
  %3279 = vmatprep.subr.bf16.mxu0 0
  %3280 = vmatpush2.bf16.msra.mxu0 %v2982
  %3281 = vmatprep.subr.bf16.mxu0 0
  %3282 = vmatpush2.bf16.msra.mxu0 %v2981
  %3283 = vmatprep.subr.bf16.mxu0 0
  %3284 = vmatpush2.bf16.msra.mxu0 %v2980
  %3285 = vmatprep.mubr.bf16.mxu0 %v2168
  %3286 = vmatmul.mubr.bf16.gmra.mxu0 %v2167
  %v3287 = vpop.f32.mrf.mxu0
  %v3288 = vadd.f32 %v3247, %v3287
  %v3289 = vpop.f32.mrf.mxu0
  %v3290 = vpop.f32.mrf.mxu0
  %v3291 = vadd.f32 %v3250, %v3290
  %v3292 = vpop.f32.mrf.mxu0
  %3293 = vdwg.mxu0
  %3294 = vmatprep.subr.bf16.mxu0 0
  %3295 = vmatpush1.bf16.msra.mxu0 %v2995
  %3296 = vmatprep.subr.bf16.mxu0 0
  %3297 = vmatpush1.bf16.msra.mxu0 %v2994
  %3298 = vmatprep.subr.bf16.mxu0 0
  %3299 = vmatpush1.bf16.msra.mxu0 %v2993
  %3300 = vmatprep.subr.bf16.mxu0 0
  %3301 = vmatpush1.bf16.msra.mxu0 %v2992
  %3302 = vmatprep.subr.bf16.mxu0 0
  %3303 = vmatpush1.bf16.msra.mxu0 %v2991
  %3304 = vmatprep.subr.bf16.mxu0 0
  %3305 = vmatpush1.bf16.msra.mxu0 %v2990
  %3306 = vmatprep.subr.bf16.mxu0 0
  %3307 = vmatpush1.bf16.msra.mxu0 %v2989
  %3308 = vmatprep.subr.bf16.mxu0 0
  %3309 = vmatpush1.bf16.msra.mxu0 %v2988
  %3310 = vmatprep.subr.bf16.mxu0 0
  %3311 = vmatpush2.bf16.msra.mxu0 %v3003
  %3312 = vmatprep.subr.bf16.mxu0 0
  %3313 = vmatpush2.bf16.msra.mxu0 %v3002
  %3314 = vmatprep.subr.bf16.mxu0 0
  %3315 = vmatpush2.bf16.msra.mxu0 %v3001
  %3316 = vmatprep.subr.bf16.mxu0 0
  %3317 = vmatpush2.bf16.msra.mxu0 %v3000
  %3318 = vmatprep.subr.bf16.mxu0 0
  %3319 = vmatpush2.bf16.msra.mxu0 %v2999
  %3320 = vmatprep.subr.bf16.mxu0 0
  %3321 = vmatpush2.bf16.msra.mxu0 %v2998
  %3322 = vmatprep.subr.bf16.mxu0 0
  %3323 = vmatpush2.bf16.msra.mxu0 %v2997
  %3324 = vmatprep.subr.bf16.mxu0 0
  %3325 = vmatpush2.bf16.msra.mxu0 %v2996
  %3326 = vmatprep.mubr.bf16.mxu0 %v2170
  %3327 = vmatmul.mubr.bf16.gmra.mxu0 %v2169
  %v3328 = vpop.f32.mrf.mxu0
  %v3329 = vadd.f32 %v3288, %v3328
  %v3330 = vpop.f32.mrf.mxu0
  %v3331 = vpop.f32.mrf.mxu0
  %v3332 = vadd.f32 %v3291, %v3331
  %v3333 = vpop.f32.mrf.mxu0
  %3334 = vdwg.mxu0
  %3335 = vmatprep.subr.bf16.mxu0 0
  %3336 = vmatpush1.bf16.msra.mxu0 %v3011
  %3337 = vmatprep.subr.bf16.mxu0 0
  %3338 = vmatpush1.bf16.msra.mxu0 %v3010
  %3339 = vmatprep.subr.bf16.mxu0 0
  %3340 = vmatpush1.bf16.msra.mxu0 %v3009
  %3341 = vmatprep.subr.bf16.mxu0 0
  %3342 = vmatpush1.bf16.msra.mxu0 %v3008
  %3343 = vmatprep.subr.bf16.mxu0 0
  %3344 = vmatpush1.bf16.msra.mxu0 %v3007
  %3345 = vmatprep.subr.bf16.mxu0 0
  %3346 = vmatpush1.bf16.msra.mxu0 %v3006
  %3347 = vmatprep.subr.bf16.mxu0 0
  %3348 = vmatpush1.bf16.msra.mxu0 %v3005
  %3349 = vmatprep.subr.bf16.mxu0 0
  %3350 = vmatpush1.bf16.msra.mxu0 %v3004
  %3351 = vmatprep.subr.bf16.mxu0 0
  %3352 = vmatpush2.bf16.msra.mxu0 %v3019
  %3353 = vmatprep.subr.bf16.mxu0 0
  %3354 = vmatpush2.bf16.msra.mxu0 %v3018
  %3355 = vmatprep.subr.bf16.mxu0 0
  %3356 = vmatpush2.bf16.msra.mxu0 %v3017
  %3357 = vmatprep.subr.bf16.mxu0 0
  %3358 = vmatpush2.bf16.msra.mxu0 %v3016
  %3359 = vmatprep.subr.bf16.mxu0 0
  %3360 = vmatpush2.bf16.msra.mxu0 %v3015
  %3361 = vmatprep.subr.bf16.mxu0 0
  %3362 = vmatpush2.bf16.msra.mxu0 %v3014
  %3363 = vmatprep.subr.bf16.mxu0 0
  %3364 = vmatpush2.bf16.msra.mxu0 %v3013
  %3365 = vmatprep.subr.bf16.mxu0 0
  %3366 = vmatpush2.bf16.msra.mxu0 %v3012
  %3367 = vmatprep.mubr.bf16.mxu0 %v2172
  %3368 = vmatmul.mubr.bf16.gmra.mxu0 %v2171
  %v3369 = vpop.f32.mrf.mxu0
  %v3370 = vadd.f32 %v3329, %v3369
  %v3371 = vpop.f32.mrf.mxu0
  %v3372 = vpop.f32.mrf.mxu0
  %v3373 = vadd.f32 %v3332, %v3372
  %v3374 = vpop.f32.mrf.mxu0
  %3375 = vdwg.mxu0
  %3376 = vmatprep.subr.bf16.mxu0 0
  %3377 = vmatpush1.bf16.msra.mxu0 %v3027
  %3378 = vmatprep.subr.bf16.mxu0 0
  %3379 = vmatpush1.bf16.msra.mxu0 %v3026
  %3380 = vmatprep.subr.bf16.mxu0 0
  %3381 = vmatpush1.bf16.msra.mxu0 %v3025
  %3382 = vmatprep.subr.bf16.mxu0 0
  %3383 = vmatpush1.bf16.msra.mxu0 %v3024
  %3384 = vmatprep.subr.bf16.mxu0 0
  %3385 = vmatpush1.bf16.msra.mxu0 %v3023
  %3386 = vmatprep.subr.bf16.mxu0 0
  %3387 = vmatpush1.bf16.msra.mxu0 %v3022
  %3388 = vmatprep.subr.bf16.mxu0 0
  %3389 = vmatpush1.bf16.msra.mxu0 %v3021
  %3390 = vmatprep.subr.bf16.mxu0 0
  %3391 = vmatpush1.bf16.msra.mxu0 %v3020
  %3392 = vmatprep.subr.bf16.mxu0 0
  %3393 = vmatpush2.bf16.msra.mxu0 %v3035
  %3394 = vmatprep.subr.bf16.mxu0 0
  %3395 = vmatpush2.bf16.msra.mxu0 %v3034
  %3396 = vmatprep.subr.bf16.mxu0 0
  %3397 = vmatpush2.bf16.msra.mxu0 %v3033
  %3398 = vmatprep.subr.bf16.mxu0 0
  %3399 = vmatpush2.bf16.msra.mxu0 %v3032
  %3400 = vmatprep.subr.bf16.mxu0 0
  %3401 = vmatpush2.bf16.msra.mxu0 %v3031
  %3402 = vmatprep.subr.bf16.mxu0 0
  %3403 = vmatpush2.bf16.msra.mxu0 %v3030
  %3404 = vmatprep.subr.bf16.mxu0 0
  %3405 = vmatpush2.bf16.msra.mxu0 %v3029
  %3406 = vmatprep.subr.bf16.mxu0 0
  %3407 = vmatpush2.bf16.msra.mxu0 %v3028
  %3408 = vmatprep.mubr.bf16.mxu0 %v2174
  %3409 = vmatmul.mubr.bf16.gmra.mxu0 %v2173
  %v3410 = vpop.f32.mrf.mxu0
  %v3411 = vadd.f32 %v3370, %v3410
  %v3412 = vpop.f32.mrf.mxu0
  %v3413 = vpop.f32.mrf.mxu0
  %v3414 = vadd.f32 %v3373, %v3413
  %v3415 = vpop.f32.mrf.mxu0
  %3416 = vdwg.mxu0
  %3417 = vmatprep.subr.bf16.mxu0 0
  %3418 = vmatpush1.bf16.msra.mxu0 %v3043
  %3419 = vmatprep.subr.bf16.mxu0 0
  %3420 = vmatpush1.bf16.msra.mxu0 %v3042
  %3421 = vmatprep.subr.bf16.mxu0 0
  %3422 = vmatpush1.bf16.msra.mxu0 %v3041
  %3423 = vmatprep.subr.bf16.mxu0 0
  %3424 = vmatpush1.bf16.msra.mxu0 %v3040
  %3425 = vmatprep.subr.bf16.mxu0 0
  %3426 = vmatpush1.bf16.msra.mxu0 %v3039
  %3427 = vmatprep.subr.bf16.mxu0 0
  %3428 = vmatpush1.bf16.msra.mxu0 %v3038
  %3429 = vmatprep.subr.bf16.mxu0 0
  %3430 = vmatpush1.bf16.msra.mxu0 %v3037
  %3431 = vmatprep.subr.bf16.mxu0 0
  %3432 = vmatpush1.bf16.msra.mxu0 %v3036
  %3433 = vmatprep.subr.bf16.mxu0 0
  %3434 = vmatpush2.bf16.msra.mxu0 %v3051
  %3435 = vmatprep.subr.bf16.mxu0 0
  %3436 = vmatpush2.bf16.msra.mxu0 %v3050
  %3437 = vmatprep.subr.bf16.mxu0 0
  %3438 = vmatpush2.bf16.msra.mxu0 %v3049
  %3439 = vmatprep.subr.bf16.mxu0 0
  %3440 = vmatpush2.bf16.msra.mxu0 %v3048
  %3441 = vmatprep.subr.bf16.mxu0 0
  %3442 = vmatpush2.bf16.msra.mxu0 %v3047
  %3443 = vmatprep.subr.bf16.mxu0 0
  %3444 = vmatpush2.bf16.msra.mxu0 %v3046
  %3445 = vmatprep.subr.bf16.mxu0 0
  %3446 = vmatpush2.bf16.msra.mxu0 %v3045
  %3447 = vmatprep.subr.bf16.mxu0 0
  %3448 = vmatpush2.bf16.msra.mxu0 %v3044
  %3449 = vmatprep.mubr.bf16.mxu0 %v2176
  %3450 = vmatmul.mubr.bf16.gmra.mxu0 %v2175
  %v3451 = vpop.f32.mrf.mxu0
  %v3452 = vadd.f32 %v3411, %v3451
  %v3453 = vpop.f32.mrf.mxu0
  %v3454 = vpop.f32.mrf.mxu0
  %v3455 = vadd.f32 %v3414, %v3454
  %v3456 = vpop.f32.mrf.mxu0
  %3457 = vdwg.mxu0
  %3458 = vmatprep.subr.bf16.mxu0 0
  %3459 = vmatpush1.bf16.msra.mxu0 %v3059
  %3460 = vmatprep.subr.bf16.mxu0 0
  %3461 = vmatpush1.bf16.msra.mxu0 %v3058
  %3462 = vmatprep.subr.bf16.mxu0 0
  %3463 = vmatpush1.bf16.msra.mxu0 %v3057
  %3464 = vmatprep.subr.bf16.mxu0 0
  %3465 = vmatpush1.bf16.msra.mxu0 %v3056
  %3466 = vmatprep.subr.bf16.mxu0 0
  %3467 = vmatpush1.bf16.msra.mxu0 %v3055
  %3468 = vmatprep.subr.bf16.mxu0 0
  %3469 = vmatpush1.bf16.msra.mxu0 %v3054
  %3470 = vmatprep.subr.bf16.mxu0 0
  %3471 = vmatpush1.bf16.msra.mxu0 %v3053
  %3472 = vmatprep.subr.bf16.mxu0 0
  %3473 = vmatpush1.bf16.msra.mxu0 %v3052
  %3474 = vmatprep.subr.bf16.mxu0 0
  %3475 = vmatpush2.bf16.msra.mxu0 %v3067
  %3476 = vmatprep.subr.bf16.mxu0 0
  %3477 = vmatpush2.bf16.msra.mxu0 %v3066
  %3478 = vmatprep.subr.bf16.mxu0 0
  %3479 = vmatpush2.bf16.msra.mxu0 %v3065
  %3480 = vmatprep.subr.bf16.mxu0 0
  %3481 = vmatpush2.bf16.msra.mxu0 %v3064
  %3482 = vmatprep.subr.bf16.mxu0 0
  %3483 = vmatpush2.bf16.msra.mxu0 %v3063
  %3484 = vmatprep.subr.bf16.mxu0 0
  %3485 = vmatpush2.bf16.msra.mxu0 %v3062
  %3486 = vmatprep.subr.bf16.mxu0 0
  %3487 = vmatpush2.bf16.msra.mxu0 %v3061
  %3488 = vmatprep.subr.bf16.mxu0 0
  %3489 = vmatpush2.bf16.msra.mxu0 %v3060
  %3490 = vmatprep.mubr.bf16.mxu0 %v2178
  %3491 = vmatmul.mubr.bf16.gmra.mxu0 %v2177
  %v3492 = vpop.f32.mrf.mxu0
  %v3493 = vadd.f32 %v3452, %v3492
  %v3494 = vpop.f32.mrf.mxu0
  %v3495 = vpop.f32.mrf.mxu0
  %v3496 = vadd.f32 %v3455, %v3495
  %v3497 = vpop.f32.mrf.mxu0
  %3498 = vdwg.mxu0
  %3499 = vmatprep.subr.bf16.mxu0 0
  %3500 = vmatpush1.bf16.msra.mxu0 %v3075
  %3501 = vmatprep.subr.bf16.mxu0 0
  %3502 = vmatpush1.bf16.msra.mxu0 %v3074
  %3503 = vmatprep.subr.bf16.mxu0 0
  %3504 = vmatpush1.bf16.msra.mxu0 %v3073
  %3505 = vmatprep.subr.bf16.mxu0 0
  %3506 = vmatpush1.bf16.msra.mxu0 %v3072
  %3507 = vmatprep.subr.bf16.mxu0 0
  %3508 = vmatpush1.bf16.msra.mxu0 %v3071
  %3509 = vmatprep.subr.bf16.mxu0 0
  %3510 = vmatpush1.bf16.msra.mxu0 %v3070
  %3511 = vmatprep.subr.bf16.mxu0 0
  %3512 = vmatpush1.bf16.msra.mxu0 %v3069
  %3513 = vmatprep.subr.bf16.mxu0 0
  %3514 = vmatpush1.bf16.msra.mxu0 %v3068
  %3515 = vmatprep.subr.bf16.mxu0 0
  %3516 = vmatpush2.bf16.msra.mxu0 %v3083
  %3517 = vmatprep.subr.bf16.mxu0 0
  %3518 = vmatpush2.bf16.msra.mxu0 %v3082
  %3519 = vmatprep.subr.bf16.mxu0 0
  %3520 = vmatpush2.bf16.msra.mxu0 %v3081
  %3521 = vmatprep.subr.bf16.mxu0 0
  %3522 = vmatpush2.bf16.msra.mxu0 %v3080
  %3523 = vmatprep.subr.bf16.mxu0 0
  %3524 = vmatpush2.bf16.msra.mxu0 %v3079
  %3525 = vmatprep.subr.bf16.mxu0 0
  %3526 = vmatpush2.bf16.msra.mxu0 %v3078
  %3527 = vmatprep.subr.bf16.mxu0 0
  %3528 = vmatpush2.bf16.msra.mxu0 %v3077
  %3529 = vmatprep.subr.bf16.mxu0 0
  %3530 = vmatpush2.bf16.msra.mxu0 %v3076
  %3531 = vmatprep.mubr.bf16.mxu0 %v2180
  %3532 = vmatmul.mubr.bf16.gmra.mxu0 %v2179
  %v3533 = vpop.f32.mrf.mxu0
  %v3534 = vadd.f32 %v3493, %v3533
  %v3535 = vpop.f32.mrf.mxu0
  %v3536 = vpop.f32.mrf.mxu0
  %v3537 = vadd.f32 %v3496, %v3536
  %v3538 = vpop.f32.mrf.mxu0
  %3539 = vdwg.mxu0
  %v3540 = vadd.f32 %v1507, %v3534
  %v3541 = vadd.f32 %v1508, %v3537
  %v3542 = vld [vmem:[%s31] sm:$0x1]
  %v3543 = vld [vmem:[%s33] sm:$0x1]
  %v3544 = vsel %vm179, %v3540, 0.0
  %3545 = vadd.xlane.f32.xlu0 %v3544
  %v3546 = vpop.xlane.xlu0 %3545
  %v3547 = vsel %vm179, %v3541, 0.0
  %3548 = vadd.xlane.f32.xlu0 %v3547
  %v3549 = vpop.xlane.xlu0 %3548
  %v3550 = vmul.f32 %v3546, %v1472
  %v3551 = vmul.f32 %v3549, %v1472
  %v3552 = vsub.f32 %v3540, %v3550
  %v3553 = vsub.f32 %v3541, %v3551
  %v3554 = vmul.f32 %v3552, %v3552
  %v3555 = vmul.f32 %v3553, %v3553
  %v3556 = vsel %vm179, %v3554, 0.0
  %3557 = vadd.xlane.f32.xlu0 %v3556
  %v3558 = vpop.xlane.xlu0 %3557
  %v3559 = vsel %vm179, %v3555, 0.0
  %3560 = vadd.xlane.f32.xlu0 %v3559
  %v3561 = vpop.xlane.xlu0 %3560
  %v3562 = vmul.f32 %v3558, %v1472
  %v3563 = vmul.f32 %v3561, %v1472
  %v3564 = vadd.f32 %v3562, 1e-05
  %v3565 = vadd.f32 %v3563, 1e-05
  %v3566 = vrsqrt.pop %v3564
  %v3567 = vrsqrt.pop %v3565
  %v3568 = vmul.f32 %v3552, %v3566
  %v3569 = vmul.f32 %v3553, %v3567
  %v3571 = vlaneseq
  %v3572 = vshrl.u32 %v3571, 7
  %v3573 = vsub.s32 0, %v3572
  %v3574 = vrot.slane %v3542, %v3573
  %v3576 = vmul.f32 %v3568, %v3574
  %v3577 = vmul.f32 %v3569, %v3574
  %v3579 = vlaneseq
  %v3580 = vshrl.u32 %v3579, 7
  %v3581 = vsub.s32 0, %v3580
  %v3582 = vrot.slane %v3543, %v3581
  %v3584 = vadd.f32 %v3576, %v3582
  %v3585 = vadd.f32 %v3577, %v3582
  %v3586 = vpack.c.bf16 %v3585, %v3584
  %v3587 = vld [vmem:[%s35] sm:$0xf]
  %v3588 = vld [vmem:[%s35 + $0x4] sm:$0xf]
  %v3589 = vld [vmem:[%s35 + $0x8] sm:$0xf]
  %v3590 = vld [vmem:[%s35 + $0xc] sm:$0xf]
  %v3591 = vld [vmem:[%s37] sm:$0x1]
  %v3593 = vlaneseq
  %v3594 = vshrl.u32 %v3593, 7
  %v3595 = vsub.s32 0, %v3594
  %v3596 = vrot.slane %v3591, %v3595
  %v3602 = vunpack.c.l.b16 %v3587
  %v3603 = vunpack.c.l.b16 %v3588
  %v3604 = vunpack.c.l.b16 %v3589
  %v3605 = vunpack.c.l.b16 %v3590
  %v3606 = vpack.c.b16 %v3603, %v3602
  %v3607 = vpack.c.b16 %v3605, %v3604
  %v3611 = vsel %vm179, %v3586, 0
  %3613 = vmatprep.subr.bf16.mxu0 0
  %3614 = vmatpush1.bf16.msra.mxu0 0
  %3615 = vmatprep.subr.bf16.mxu0 0
  %3616 = vmatpush1.bf16.msra.mxu0 0
  %3617 = vmatprep.subr.bf16.mxu0 0
  %3618 = vmatpush1.bf16.msra.mxu0 0
  %3619 = vmatprep.subr.bf16.mxu0 0
  %3620 = vmatpush1.bf16.msra.mxu0 0
  %3621 = vmatprep.subr.bf16.mxu0 0
  %3622 = vmatpush1.bf16.msra.mxu0 0
  %3623 = vmatprep.subr.bf16.mxu0 0
  %3624 = vmatpush1.bf16.msra.mxu0 0
  %3625 = vmatprep.subr.bf16.mxu0 0
  %3626 = vmatpush1.bf16.msra.mxu0 %v3607
  %3627 = vmatprep.subr.bf16.mxu0 0
  %3628 = vmatpush1.bf16.msra.mxu0 %v3606
  %3629 = vmatprep.subr.bf16.mxu0 0
  %3630 = vmatpush2.bf16.msra.mxu0 0
  %3631 = vmatprep.subr.bf16.mxu0 0
  %3632 = vmatpush2.bf16.msra.mxu0 0
  %3633 = vmatprep.subr.bf16.mxu0 0
  %3634 = vmatpush2.bf16.msra.mxu0 0
  %3635 = vmatprep.subr.bf16.mxu0 0
  %3636 = vmatpush2.bf16.msra.mxu0 0
  %3637 = vmatprep.subr.bf16.mxu0 0
  %3638 = vmatpush2.bf16.msra.mxu0 0
  %3639 = vmatprep.subr.bf16.mxu0 0
  %3640 = vmatpush2.bf16.msra.mxu0 0
  %3641 = vmatprep.subr.bf16.mxu0 0
  %3642 = vmatpush2.bf16.msra.mxu0 0
  %3643 = vmatprep.subr.bf16.mxu0 0
  %3644 = vmatpush2.bf16.msra.mxu0 0
  %3645 = vmatprep.mubr.bf16.mxu0 0
  %3646 = vmatmul.mubr.bf16.gmra.mxu0 %v3611
  %v3647 = vpop.f32.mrf.mxu0
  %v3648 = vadd.f32 %v3596, %v3647
  %v3649 = vpop.f32.mrf.mxu0
  %v3650 = vpop.f32.mrf.mxu0
  %v3651 = vadd.f32 %v3596, %v3650
  %v3652 = vpop.f32.mrf.mxu0
  %3653 = vdwg.mxu0
  %v3654 = vld [vmem:[%s39] sm:$0xf]
  %v3655 = vld [vmem:[%s39 + $0x4] sm:$0xf]
  %v3656 = vld [vmem:[%s39 + $0x8] sm:$0xf]
  %v3657 = vld [vmem:[%s39 + $0xc] sm:$0xf]
  %v3658 = vld [vmem:[%s41] sm:$0x1]
  %v3660 = vlaneseq
  %v3661 = vshrl.u32 %v3660, 7
  %v3662 = vsub.s32 0, %v3661
  %v3663 = vrot.slane %v3658, %v3662
  %v3669 = vunpack.c.l.b16 %v3654
  %v3670 = vunpack.c.l.b16 %v3655
  %v3671 = vunpack.c.l.b16 %v3656
  %v3672 = vunpack.c.l.b16 %v3657
  %v3673 = vpack.c.b16 %v3670, %v3669
  %v3674 = vpack.c.b16 %v3672, %v3671
  %3677 = vmatprep.subr.bf16.mxu0 0
  %3678 = vmatpush1.bf16.msra.mxu0 0
  %3679 = vmatprep.subr.bf16.mxu0 0
  %3680 = vmatpush1.bf16.msra.mxu0 0
  %3681 = vmatprep.subr.bf16.mxu0 0
  %3682 = vmatpush1.bf16.msra.mxu0 0
  %3683 = vmatprep.subr.bf16.mxu0 0
  %3684 = vmatpush1.bf16.msra.mxu0 0
  %3685 = vmatprep.subr.bf16.mxu0 0
  %3686 = vmatpush1.bf16.msra.mxu0 0
  %3687 = vmatprep.subr.bf16.mxu0 0
  %3688 = vmatpush1.bf16.msra.mxu0 0
  %3689 = vmatprep.subr.bf16.mxu0 0
  %3690 = vmatpush1.bf16.msra.mxu0 %v3674
  %3691 = vmatprep.subr.bf16.mxu0 0
  %3692 = vmatpush1.bf16.msra.mxu0 %v3673
  %3693 = vmatprep.subr.bf16.mxu0 0
  %3694 = vmatpush2.bf16.msra.mxu0 0
  %3695 = vmatprep.subr.bf16.mxu0 0
  %3696 = vmatpush2.bf16.msra.mxu0 0
  %3697 = vmatprep.subr.bf16.mxu0 0
  %3698 = vmatpush2.bf16.msra.mxu0 0
  %3699 = vmatprep.subr.bf16.mxu0 0
  %3700 = vmatpush2.bf16.msra.mxu0 0
  %3701 = vmatprep.subr.bf16.mxu0 0
  %3702 = vmatpush2.bf16.msra.mxu0 0
  %3703 = vmatprep.subr.bf16.mxu0 0
  %3704 = vmatpush2.bf16.msra.mxu0 0
  %3705 = vmatprep.subr.bf16.mxu0 0
  %3706 = vmatpush2.bf16.msra.mxu0 0
  %3707 = vmatprep.subr.bf16.mxu0 0
  %3708 = vmatpush2.bf16.msra.mxu0 0
  %3709 = vmatprep.mubr.bf16.mxu0 0
  %3710 = vmatmul.mubr.bf16.gmra.mxu0 %v3611
  %v3711 = vpop.f32.mrf.mxu0
  %v3712 = vadd.f32 %v3663, %v3711
  %v3713 = vpop.f32.mrf.mxu0
  %v3714 = vpop.f32.mrf.mxu0
  %v3715 = vadd.f32 %v3663, %v3714
  %v3716 = vpop.f32.mrf.mxu0
  %3717 = vdwg.mxu0
  %v3718 = vld [vmem:[%s43] sm:$0xf]
  %v3719 = vld [vmem:[%s43 + $0x4] sm:$0xf]
  %v3720 = vld [vmem:[%s43 + $0x8] sm:$0xf]
  %v3721 = vld [vmem:[%s43 + $0xc] sm:$0xf]
  %v3722 = vld [vmem:[%s45] sm:$0x1]
  %v3724 = vlaneseq
  %v3725 = vshrl.u32 %v3724, 7
  %v3726 = vsub.s32 0, %v3725
  %v3727 = vrot.slane %v3722, %v3726
  %v3733 = vunpack.c.l.b16 %v3718
  %v3734 = vunpack.c.l.b16 %v3719
  %v3735 = vunpack.c.l.b16 %v3720
  %v3736 = vunpack.c.l.b16 %v3721
  %v3737 = vpack.c.b16 %v3734, %v3733
  %v3738 = vpack.c.b16 %v3736, %v3735
  %3741 = vmatprep.subr.bf16.mxu0 0
  %3742 = vmatpush1.bf16.msra.mxu0 0
  %3743 = vmatprep.subr.bf16.mxu0 0
  %3744 = vmatpush1.bf16.msra.mxu0 0
  %3745 = vmatprep.subr.bf16.mxu0 0
  %3746 = vmatpush1.bf16.msra.mxu0 0
  %3747 = vmatprep.subr.bf16.mxu0 0
  %3748 = vmatpush1.bf16.msra.mxu0 0
  %3749 = vmatprep.subr.bf16.mxu0 0
  %3750 = vmatpush1.bf16.msra.mxu0 0
  %3751 = vmatprep.subr.bf16.mxu0 0
  %3752 = vmatpush1.bf16.msra.mxu0 0
  %3753 = vmatprep.subr.bf16.mxu0 0
  %3754 = vmatpush1.bf16.msra.mxu0 %v3738
  %3755 = vmatprep.subr.bf16.mxu0 0
  %3756 = vmatpush1.bf16.msra.mxu0 %v3737
  %3757 = vmatprep.subr.bf16.mxu0 0
  %3758 = vmatpush2.bf16.msra.mxu0 0
  %3759 = vmatprep.subr.bf16.mxu0 0
  %3760 = vmatpush2.bf16.msra.mxu0 0
  %3761 = vmatprep.subr.bf16.mxu0 0
  %3762 = vmatpush2.bf16.msra.mxu0 0
  %3763 = vmatprep.subr.bf16.mxu0 0
  %3764 = vmatpush2.bf16.msra.mxu0 0
  %3765 = vmatprep.subr.bf16.mxu0 0
  %3766 = vmatpush2.bf16.msra.mxu0 0
  %3767 = vmatprep.subr.bf16.mxu0 0
  %3768 = vmatpush2.bf16.msra.mxu0 0
  %3769 = vmatprep.subr.bf16.mxu0 0
  %3770 = vmatpush2.bf16.msra.mxu0 0
  %3771 = vmatprep.subr.bf16.mxu0 0
  %3772 = vmatpush2.bf16.msra.mxu0 0
  %3773 = vmatprep.mubr.bf16.mxu0 0
  %3774 = vmatmul.mubr.bf16.gmra.mxu0 %v3611
  %v3775 = vpop.f32.mrf.mxu0
  %v3776 = vadd.f32 %v3727, %v3775
  %v3777 = vpop.f32.mrf.mxu0
  %v3778 = vpop.f32.mrf.mxu0
  %v3779 = vadd.f32 %v3727, %v3778
  %v3780 = vpop.f32.mrf.mxu0
  %3781 = vdwg.mxu0
  %v3782 = vpack.c.bf16 %v3648, %v3648
  %v3783 = vpack.c.bf16 %v3651, %v3651
  %v3784 = vpack.c.bf16 %v3712, %v3712
  %v3785 = vpack.c.bf16 %v3715, %v3715
  %v3786 = vpack.c.bf16 %v3776, %v3776
  %v3787 = vpack.c.bf16 %v3779, %v3779
  %v3789 = vsel %vm358, %v3782, 0
  %v3792 = vsel %vm358, %v3784, 0
  %3794 = vmatprep.subr.bf16.mxu0 0
  %3795 = vmatpush1.bf16.xpose.msra.mxu0 0
  %3796 = vmatprep.subr.bf16.mxu0 0
  %3797 = vmatpush1.bf16.xpose.msra.mxu0 0
  %3798 = vmatprep.subr.bf16.mxu0 0
  %3799 = vmatpush1.bf16.xpose.msra.mxu0 0
  %3800 = vmatprep.subr.bf16.mxu0 0
  %3801 = vmatpush1.bf16.xpose.msra.mxu0 0
  %3802 = vmatprep.subr.bf16.mxu0 0
  %3803 = vmatpush1.bf16.xpose.msra.mxu0 0
  %3804 = vmatprep.subr.bf16.mxu0 0
  %3805 = vmatpush1.bf16.xpose.msra.mxu0 0
  %3806 = vmatprep.subr.bf16.mxu0 0
  %3807 = vmatpush1.bf16.xpose.msra.mxu0 0
  %3808 = vmatprep.subr.bf16.mxu0 0
  %3809 = vmatpush1.bf16.xpose.msra.mxu0 %v3792
  %3810 = vmatprep.subr.bf16.mxu0 0
  %3811 = vmatpush2.bf16.xpose.msra.mxu0 0
  %3812 = vmatprep.subr.bf16.mxu0 0
  %3813 = vmatpush2.bf16.xpose.msra.mxu0 0
  %3814 = vmatprep.subr.bf16.mxu0 0
  %3815 = vmatpush2.bf16.xpose.msra.mxu0 0
  %3816 = vmatprep.subr.bf16.mxu0 0
  %3817 = vmatpush2.bf16.xpose.msra.mxu0 0
  %3818 = vmatprep.subr.bf16.mxu0 0
  %3819 = vmatpush2.bf16.xpose.msra.mxu0 0
  %3820 = vmatprep.subr.bf16.mxu0 0
  %3821 = vmatpush2.bf16.xpose.msra.mxu0 0
  %3822 = vmatprep.subr.bf16.mxu0 0
  %3823 = vmatpush2.bf16.xpose.msra.mxu0 0
  %3824 = vmatprep.subr.bf16.mxu0 0
  %3825 = vmatpush2.bf16.xpose.msra.mxu0 0
  %3826 = vmatprep.mubr.bf16.mxu0 0
  %3827 = vmatmul.mubr.bf16.gmra.mxu0 %v3789
  %v3828 = vpop.f32.mrf.mxu0
  %v3829 = vadd.f32 0.0, %v3828
  %v3830 = vpop.f32.mrf.mxu0
  %v3831 = vpop.f32.mrf.mxu0
  %v3832 = vpop.f32.mrf.mxu0
  %3833 = vdwg.mxu0
  %v3835 = vsel %vm358, %v3783, 0
  %v3838 = vsel %vm358, %v3785, 0
  %3840 = vmatprep.subr.bf16.mxu0 0
  %3841 = vmatpush1.bf16.xpose.msra.mxu0 0
  %3842 = vmatprep.subr.bf16.mxu0 0
  %3843 = vmatpush1.bf16.xpose.msra.mxu0 0
  %3844 = vmatprep.subr.bf16.mxu0 0
  %3845 = vmatpush1.bf16.xpose.msra.mxu0 0
  %3846 = vmatprep.subr.bf16.mxu0 0
  %3847 = vmatpush1.bf16.xpose.msra.mxu0 0
  %3848 = vmatprep.subr.bf16.mxu0 0
  %3849 = vmatpush1.bf16.xpose.msra.mxu0 0
  %3850 = vmatprep.subr.bf16.mxu0 0
  %3851 = vmatpush1.bf16.xpose.msra.mxu0 0
  %3852 = vmatprep.subr.bf16.mxu0 0
  %3853 = vmatpush1.bf16.xpose.msra.mxu0 0
  %3854 = vmatprep.subr.bf16.mxu0 0
  %3855 = vmatpush1.bf16.xpose.msra.mxu0 %v3838
  %3856 = vmatprep.subr.bf16.mxu0 0
  %3857 = vmatpush2.bf16.xpose.msra.mxu0 0
  %3858 = vmatprep.subr.bf16.mxu0 0
  %3859 = vmatpush2.bf16.xpose.msra.mxu0 0
  %3860 = vmatprep.subr.bf16.mxu0 0
  %3861 = vmatpush2.bf16.xpose.msra.mxu0 0
  %3862 = vmatprep.subr.bf16.mxu0 0
  %3863 = vmatpush2.bf16.xpose.msra.mxu0 0
  %3864 = vmatprep.subr.bf16.mxu0 0
  %3865 = vmatpush2.bf16.xpose.msra.mxu0 0
  %3866 = vmatprep.subr.bf16.mxu0 0
  %3867 = vmatpush2.bf16.xpose.msra.mxu0 0
  %3868 = vmatprep.subr.bf16.mxu0 0
  %3869 = vmatpush2.bf16.xpose.msra.mxu0 0
  %3870 = vmatprep.subr.bf16.mxu0 0
  %3871 = vmatpush2.bf16.xpose.msra.mxu0 0
  %3872 = vmatprep.mubr.bf16.mxu0 0
  %3873 = vmatmul.mubr.bf16.gmra.mxu0 %v3835
  %v3874 = vpop.f32.mrf.mxu0
  %v3875 = vadd.f32 0.0, %v3874
  %v3876 = vpop.f32.mrf.mxu0
  %v3877 = vpop.f32.mrf.mxu0
  %v3878 = vpop.f32.mrf.mxu0
  %3879 = vdwg.mxu0
  %v3880 = vmul.f32 %v3829, 0.35355338
  %v3881 = vmul.f32 %v3875, 0.35355338
  %v3882 = vadd.f32 %v3880, %v152
  %v3883 = vadd.f32 %v3881, %v152
  %v3884 = vsel %vm358, %v3882, -inf
  %3885 = vmax.xlane.f32.xlu0 %v3884
  %v3886 = vpop.xlane.xlu0 %3885
  %v3887 = vsel %vm358, %v3883, -inf
  %3888 = vmax.xlane.f32.xlu0 %v3887
  %v3889 = vpop.xlane.xlu0 %3888
  %v3890 = vsub.f32 %v3882, %v3886
  %v3891 = vsub.f32 %v3883, %v3889
  %v3892 = vmul.f32 %v3890, 1.442695
  %v3893 = vpow.pop %v3892
  %v3894 = vmul.f32 %v3891, 1.442695
  %v3895 = vpow.pop %v3894
  %v3896 = vsel %vm358, %v3893, 0.0
  %3897 = vadd.xlane.f32.xlu0 %v3896
  %v3898 = vpop.xlane.xlu0 %3897
  %v3899 = vsel %vm358, %v3895, 0.0
  %3900 = vadd.xlane.f32.xlu0 %v3899
  %v3901 = vpop.xlane.xlu0 %3900
  %v3902 = vrcp.pop %v3898
  %v3903 = vrcp.pop %v3901
  %v3904 = vmul.f32 %v3893, %v3902
  %v3905 = vmul.f32 %v3895, %v3903
  %v3906 = vpack.c.bf16 %v3904, %v3904
  %v3907 = vpack.c.bf16 %v3905, %v3905
  %v3909 = vsel %vm358, %v3906, 0
  %v3912 = vsel %vm482, %v3786, 0
  %3914 = vmatprep.subr.bf16.mxu0 0
  %3915 = vmatpush1.bf16.msra.mxu0 0
  %3916 = vmatprep.subr.bf16.mxu0 0
  %3917 = vmatpush1.bf16.msra.mxu0 0
  %3918 = vmatprep.subr.bf16.mxu0 0
  %3919 = vmatpush1.bf16.msra.mxu0 0
  %3920 = vmatprep.subr.bf16.mxu0 0
  %3921 = vmatpush1.bf16.msra.mxu0 0
  %3922 = vmatprep.subr.bf16.mxu0 0
  %3923 = vmatpush1.bf16.msra.mxu0 0
  %3924 = vmatprep.subr.bf16.mxu0 0
  %3925 = vmatpush1.bf16.msra.mxu0 0
  %3926 = vmatprep.subr.bf16.mxu0 0
  %3927 = vmatpush1.bf16.msra.mxu0 0
  %3928 = vmatprep.subr.bf16.mxu0 0
  %3929 = vmatpush1.bf16.msra.mxu0 %v3912
  %3930 = vmatprep.subr.bf16.mxu0 0
  %3931 = vmatpush2.bf16.msra.mxu0 0
  %3932 = vmatprep.subr.bf16.mxu0 0
  %3933 = vmatpush2.bf16.msra.mxu0 0
  %3934 = vmatprep.subr.bf16.mxu0 0
  %3935 = vmatpush2.bf16.msra.mxu0 0
  %3936 = vmatprep.subr.bf16.mxu0 0
  %3937 = vmatpush2.bf16.msra.mxu0 0
  %3938 = vmatprep.subr.bf16.mxu0 0
  %3939 = vmatpush2.bf16.msra.mxu0 0
  %3940 = vmatprep.subr.bf16.mxu0 0
  %3941 = vmatpush2.bf16.msra.mxu0 0
  %3942 = vmatprep.subr.bf16.mxu0 0
  %3943 = vmatpush2.bf16.msra.mxu0 0
  %3944 = vmatprep.subr.bf16.mxu0 0
  %3945 = vmatpush2.bf16.msra.mxu0 0
  %3946 = vmatprep.mubr.bf16.mxu0 0
  %3947 = vmatmul.mubr.bf16.gmra.mxu0 %v3909
  %v3948 = vpop.f32.mrf.mxu0
  %v3949 = vadd.f32 0.0, %v3948
  %v3950 = vpop.f32.mrf.mxu0
  %v3951 = vpop.f32.mrf.mxu0
  %v3952 = vpop.f32.mrf.mxu0
  %3953 = vdwg.mxu0
  %v3955 = vsel %vm358, %v3907, 0
  %v3958 = vsel %vm482, %v3787, 0
  %3960 = vmatprep.subr.bf16.mxu0 0
  %3961 = vmatpush1.bf16.msra.mxu0 0
  %3962 = vmatprep.subr.bf16.mxu0 0
  %3963 = vmatpush1.bf16.msra.mxu0 0
  %3964 = vmatprep.subr.bf16.mxu0 0
  %3965 = vmatpush1.bf16.msra.mxu0 0
  %3966 = vmatprep.subr.bf16.mxu0 0
  %3967 = vmatpush1.bf16.msra.mxu0 0
  %3968 = vmatprep.subr.bf16.mxu0 0
  %3969 = vmatpush1.bf16.msra.mxu0 0
  %3970 = vmatprep.subr.bf16.mxu0 0
  %3971 = vmatpush1.bf16.msra.mxu0 0
  %3972 = vmatprep.subr.bf16.mxu0 0
  %3973 = vmatpush1.bf16.msra.mxu0 0
  %3974 = vmatprep.subr.bf16.mxu0 0
  %3975 = vmatpush1.bf16.msra.mxu0 %v3958
  %3976 = vmatprep.subr.bf16.mxu0 0
  %3977 = vmatpush2.bf16.msra.mxu0 0
  %3978 = vmatprep.subr.bf16.mxu0 0
  %3979 = vmatpush2.bf16.msra.mxu0 0
  %3980 = vmatprep.subr.bf16.mxu0 0
  %3981 = vmatpush2.bf16.msra.mxu0 0
  %3982 = vmatprep.subr.bf16.mxu0 0
  %3983 = vmatpush2.bf16.msra.mxu0 0
  %3984 = vmatprep.subr.bf16.mxu0 0
  %3985 = vmatpush2.bf16.msra.mxu0 0
  %3986 = vmatprep.subr.bf16.mxu0 0
  %3987 = vmatpush2.bf16.msra.mxu0 0
  %3988 = vmatprep.subr.bf16.mxu0 0
  %3989 = vmatpush2.bf16.msra.mxu0 0
  %3990 = vmatprep.subr.bf16.mxu0 0
  %3991 = vmatpush2.bf16.msra.mxu0 0
  %3992 = vmatprep.mubr.bf16.mxu0 0
  %3993 = vmatmul.mubr.bf16.gmra.mxu0 %v3955
  %v3994 = vpop.f32.mrf.mxu0
  %v3995 = vadd.f32 0.0, %v3994
  %v3996 = vpop.f32.mrf.mxu0
  %v3997 = vpop.f32.mrf.mxu0
  %v3998 = vpop.f32.mrf.mxu0
  %3999 = vdwg.mxu0
  %v4000 = vpack.c.bf16 %v3995, %v3949
  %v4001 = vld [vmem:[%s47] sm:$0xf]
  %4003 = vrot.lane.b32.xlu0 %v3782, 120
  %v4004 = vpop.permute.xlu0 %4003
  %4006 = vrot.lane.b32.xlu0 %v3784, 120
  %v4007 = vpop.permute.xlu0 %4006
  %v4009 = vsel %vm358, %v4004, 0
  %v4012 = vsel %vm358, %v4007, 0
  %4014 = vmatprep.subr.bf16.mxu0 0
  %4015 = vmatpush1.bf16.xpose.msra.mxu0 0
  %4016 = vmatprep.subr.bf16.mxu0 0
  %4017 = vmatpush1.bf16.xpose.msra.mxu0 0
  %4018 = vmatprep.subr.bf16.mxu0 0
  %4019 = vmatpush1.bf16.xpose.msra.mxu0 0
  %4020 = vmatprep.subr.bf16.mxu0 0
  %4021 = vmatpush1.bf16.xpose.msra.mxu0 0
  %4022 = vmatprep.subr.bf16.mxu0 0
  %4023 = vmatpush1.bf16.xpose.msra.mxu0 0
  %4024 = vmatprep.subr.bf16.mxu0 0
  %4025 = vmatpush1.bf16.xpose.msra.mxu0 0
  %4026 = vmatprep.subr.bf16.mxu0 0
  %4027 = vmatpush1.bf16.xpose.msra.mxu0 0
  %4028 = vmatprep.subr.bf16.mxu0 0
  %4029 = vmatpush1.bf16.xpose.msra.mxu0 %v4012
  %4030 = vmatprep.subr.bf16.mxu0 0
  %4031 = vmatpush2.bf16.xpose.msra.mxu0 0
  %4032 = vmatprep.subr.bf16.mxu0 0
  %4033 = vmatpush2.bf16.xpose.msra.mxu0 0
  %4034 = vmatprep.subr.bf16.mxu0 0
  %4035 = vmatpush2.bf16.xpose.msra.mxu0 0
  %4036 = vmatprep.subr.bf16.mxu0 0
  %4037 = vmatpush2.bf16.xpose.msra.mxu0 0
  %4038 = vmatprep.subr.bf16.mxu0 0
  %4039 = vmatpush2.bf16.xpose.msra.mxu0 0
  %4040 = vmatprep.subr.bf16.mxu0 0
  %4041 = vmatpush2.bf16.xpose.msra.mxu0 0
  %4042 = vmatprep.subr.bf16.mxu0 0
  %4043 = vmatpush2.bf16.xpose.msra.mxu0 0
  %4044 = vmatprep.subr.bf16.mxu0 0
  %4045 = vmatpush2.bf16.xpose.msra.mxu0 0
  %4046 = vmatprep.mubr.bf16.mxu0 0
  %4047 = vmatmul.mubr.bf16.gmra.mxu0 %v4009
  %v4048 = vpop.f32.mrf.mxu0
  %v4049 = vadd.f32 0.0, %v4048
  %v4050 = vpop.f32.mrf.mxu0
  %v4051 = vpop.f32.mrf.mxu0
  %v4052 = vpop.f32.mrf.mxu0
  %4053 = vdwg.mxu0
  %4055 = vrot.lane.b32.xlu0 %v3783, 120
  %v4056 = vpop.permute.xlu0 %4055
  %4058 = vrot.lane.b32.xlu0 %v3785, 120
  %v4059 = vpop.permute.xlu0 %4058
  %v4061 = vsel %vm358, %v4056, 0
  %v4064 = vsel %vm358, %v4059, 0
  %4066 = vmatprep.subr.bf16.mxu0 0
  %4067 = vmatpush1.bf16.xpose.msra.mxu0 0
  %4068 = vmatprep.subr.bf16.mxu0 0
  %4069 = vmatpush1.bf16.xpose.msra.mxu0 0
  %4070 = vmatprep.subr.bf16.mxu0 0
  %4071 = vmatpush1.bf16.xpose.msra.mxu0 0
  %4072 = vmatprep.subr.bf16.mxu0 0
  %4073 = vmatpush1.bf16.xpose.msra.mxu0 0
  %4074 = vmatprep.subr.bf16.mxu0 0
  %4075 = vmatpush1.bf16.xpose.msra.mxu0 0
  %4076 = vmatprep.subr.bf16.mxu0 0
  %4077 = vmatpush1.bf16.xpose.msra.mxu0 0
  %4078 = vmatprep.subr.bf16.mxu0 0
  %4079 = vmatpush1.bf16.xpose.msra.mxu0 0
  %4080 = vmatprep.subr.bf16.mxu0 0
  %4081 = vmatpush1.bf16.xpose.msra.mxu0 %v4064
  %4082 = vmatprep.subr.bf16.mxu0 0
  %4083 = vmatpush2.bf16.xpose.msra.mxu0 0
  %4084 = vmatprep.subr.bf16.mxu0 0
  %4085 = vmatpush2.bf16.xpose.msra.mxu0 0
  %4086 = vmatprep.subr.bf16.mxu0 0
  %4087 = vmatpush2.bf16.xpose.msra.mxu0 0
  %4088 = vmatprep.subr.bf16.mxu0 0
  %4089 = vmatpush2.bf16.xpose.msra.mxu0 0
  %4090 = vmatprep.subr.bf16.mxu0 0
  %4091 = vmatpush2.bf16.xpose.msra.mxu0 0
  %4092 = vmatprep.subr.bf16.mxu0 0
  %4093 = vmatpush2.bf16.xpose.msra.mxu0 0
  %4094 = vmatprep.subr.bf16.mxu0 0
  %4095 = vmatpush2.bf16.xpose.msra.mxu0 0
  %4096 = vmatprep.subr.bf16.mxu0 0
  %4097 = vmatpush2.bf16.xpose.msra.mxu0 0
  %4098 = vmatprep.mubr.bf16.mxu0 0
  %4099 = vmatmul.mubr.bf16.gmra.mxu0 %v4061
  %v4100 = vpop.f32.mrf.mxu0
  %v4101 = vadd.f32 0.0, %v4100
  %v4102 = vpop.f32.mrf.mxu0
  %v4103 = vpop.f32.mrf.mxu0
  %v4104 = vpop.f32.mrf.mxu0
  %4105 = vdwg.mxu0
  %v4106 = vmul.f32 %v4049, 0.35355338
  %v4107 = vmul.f32 %v4101, 0.35355338
  %v4108 = vadd.f32 %v4106, %v152
  %v4109 = vadd.f32 %v4107, %v152
  %v4110 = vsel %vm358, %v4108, -inf
  %4111 = vmax.xlane.f32.xlu0 %v4110
  %v4112 = vpop.xlane.xlu0 %4111
  %v4113 = vsel %vm358, %v4109, -inf
  %4114 = vmax.xlane.f32.xlu0 %v4113
  %v4115 = vpop.xlane.xlu0 %4114
  %v4116 = vsub.f32 %v4108, %v4112
  %v4117 = vsub.f32 %v4109, %v4115
  %v4118 = vmul.f32 %v4116, 1.442695
  %v4119 = vpow.pop %v4118
  %v4120 = vmul.f32 %v4117, 1.442695
  %v4121 = vpow.pop %v4120
  %v4122 = vsel %vm358, %v4119, 0.0
  %4123 = vadd.xlane.f32.xlu0 %v4122
  %v4124 = vpop.xlane.xlu0 %4123
  %v4125 = vsel %vm358, %v4121, 0.0
  %4126 = vadd.xlane.f32.xlu0 %v4125
  %v4127 = vpop.xlane.xlu0 %4126
  %v4128 = vrcp.pop %v4124
  %v4129 = vrcp.pop %v4127
  %v4130 = vmul.f32 %v4119, %v4128
  %v4131 = vmul.f32 %v4121, %v4129
  %v4132 = vpack.c.bf16 %v4130, %v4130
  %v4133 = vpack.c.bf16 %v4131, %v4131
  %4135 = vrot.lane.b32.xlu0 %v3786, 120
  %v4136 = vpop.permute.xlu0 %4135
  %v4138 = vsel %vm358, %v4132, 0
  %v4141 = vsel %vm482, %v4136, 0
  %4143 = vmatprep.subr.bf16.mxu0 0
  %4144 = vmatpush1.bf16.msra.mxu0 0
  %4145 = vmatprep.subr.bf16.mxu0 0
  %4146 = vmatpush1.bf16.msra.mxu0 0
  %4147 = vmatprep.subr.bf16.mxu0 0
  %4148 = vmatpush1.bf16.msra.mxu0 0
  %4149 = vmatprep.subr.bf16.mxu0 0
  %4150 = vmatpush1.bf16.msra.mxu0 0
  %4151 = vmatprep.subr.bf16.mxu0 0
  %4152 = vmatpush1.bf16.msra.mxu0 0
  %4153 = vmatprep.subr.bf16.mxu0 0
  %4154 = vmatpush1.bf16.msra.mxu0 0
  %4155 = vmatprep.subr.bf16.mxu0 0
  %4156 = vmatpush1.bf16.msra.mxu0 0
  %4157 = vmatprep.subr.bf16.mxu0 0
  %4158 = vmatpush1.bf16.msra.mxu0 %v4141
  %4159 = vmatprep.subr.bf16.mxu0 0
  %4160 = vmatpush2.bf16.msra.mxu0 0
  %4161 = vmatprep.subr.bf16.mxu0 0
  %4162 = vmatpush2.bf16.msra.mxu0 0
  %4163 = vmatprep.subr.bf16.mxu0 0
  %4164 = vmatpush2.bf16.msra.mxu0 0
  %4165 = vmatprep.subr.bf16.mxu0 0
  %4166 = vmatpush2.bf16.msra.mxu0 0
  %4167 = vmatprep.subr.bf16.mxu0 0
  %4168 = vmatpush2.bf16.msra.mxu0 0
  %4169 = vmatprep.subr.bf16.mxu0 0
  %4170 = vmatpush2.bf16.msra.mxu0 0
  %4171 = vmatprep.subr.bf16.mxu0 0
  %4172 = vmatpush2.bf16.msra.mxu0 0
  %4173 = vmatprep.subr.bf16.mxu0 0
  %4174 = vmatpush2.bf16.msra.mxu0 0
  %4175 = vmatprep.mubr.bf16.mxu0 0
  %4176 = vmatmul.mubr.bf16.gmra.mxu0 %v4138
  %v4177 = vpop.f32.mrf.mxu0
  %v4178 = vadd.f32 0.0, %v4177
  %v4179 = vpop.f32.mrf.mxu0
  %v4180 = vpop.f32.mrf.mxu0
  %v4181 = vpop.f32.mrf.mxu0
  %4182 = vdwg.mxu0
  %4184 = vrot.lane.b32.xlu0 %v3787, 120
  %v4185 = vpop.permute.xlu0 %4184
  %v4187 = vsel %vm358, %v4133, 0
  %v4190 = vsel %vm482, %v4185, 0
  %4192 = vmatprep.subr.bf16.mxu0 0
  %4193 = vmatpush1.bf16.msra.mxu0 0
  %4194 = vmatprep.subr.bf16.mxu0 0
  %4195 = vmatpush1.bf16.msra.mxu0 0
  %4196 = vmatprep.subr.bf16.mxu0 0
  %4197 = vmatpush1.bf16.msra.mxu0 0
  %4198 = vmatprep.subr.bf16.mxu0 0
  %4199 = vmatpush1.bf16.msra.mxu0 0
  %4200 = vmatprep.subr.bf16.mxu0 0
  %4201 = vmatpush1.bf16.msra.mxu0 0
  %4202 = vmatprep.subr.bf16.mxu0 0
  %4203 = vmatpush1.bf16.msra.mxu0 0
  %4204 = vmatprep.subr.bf16.mxu0 0
  %4205 = vmatpush1.bf16.msra.mxu0 0
  %4206 = vmatprep.subr.bf16.mxu0 0
  %4207 = vmatpush1.bf16.msra.mxu0 %v4190
  %4208 = vmatprep.subr.bf16.mxu0 0
  %4209 = vmatpush2.bf16.msra.mxu0 0
  %4210 = vmatprep.subr.bf16.mxu0 0
  %4211 = vmatpush2.bf16.msra.mxu0 0
  %4212 = vmatprep.subr.bf16.mxu0 0
  %4213 = vmatpush2.bf16.msra.mxu0 0
  %4214 = vmatprep.subr.bf16.mxu0 0
  %4215 = vmatpush2.bf16.msra.mxu0 0
  %4216 = vmatprep.subr.bf16.mxu0 0
  %4217 = vmatpush2.bf16.msra.mxu0 0
  %4218 = vmatprep.subr.bf16.mxu0 0
  %4219 = vmatpush2.bf16.msra.mxu0 0
  %4220 = vmatprep.subr.bf16.mxu0 0
  %4221 = vmatpush2.bf16.msra.mxu0 0
  %4222 = vmatprep.subr.bf16.mxu0 0
  %4223 = vmatpush2.bf16.msra.mxu0 0
  %4224 = vmatprep.mubr.bf16.mxu0 0
  %4225 = vmatmul.mubr.bf16.gmra.mxu0 %v4187
  %v4226 = vpop.f32.mrf.mxu0
  %v4227 = vadd.f32 0.0, %v4226
  %v4228 = vpop.f32.mrf.mxu0
  %v4229 = vpop.f32.mrf.mxu0
  %v4230 = vpop.f32.mrf.mxu0
  %4231 = vdwg.mxu0
  %v4232 = vpack.c.bf16 %v4227, %v4178
  %s4233 = scalar_lea.vmem %s47, 4
  %v4234 = vld [vmem:[%s4233] sm:$0xf]
  %v4236 = vsel %vm358, %v4232, 0
  %v4239 = vsel %vm482, %v4234, 0
  %4241 = vmatprep.subr.bf16.mxu0 0
  %4242 = vmatpush1.bf16.msra.mxu0 0
  %4243 = vmatprep.subr.bf16.mxu0 0
  %4244 = vmatpush1.bf16.msra.mxu0 0
  %4245 = vmatprep.subr.bf16.mxu0 0
  %4246 = vmatpush1.bf16.msra.mxu0 0
  %4247 = vmatprep.subr.bf16.mxu0 0
  %4248 = vmatpush1.bf16.msra.mxu0 0
  %4249 = vmatprep.subr.bf16.mxu0 0
  %4250 = vmatpush1.bf16.msra.mxu0 0
  %4251 = vmatprep.subr.bf16.mxu0 0
  %4252 = vmatpush1.bf16.msra.mxu0 0
  %4253 = vmatprep.subr.bf16.mxu0 0
  %4254 = vmatpush1.bf16.msra.mxu0 0
  %4255 = vmatprep.subr.bf16.mxu0 0
  %4256 = vmatpush1.bf16.msra.mxu0 %v4239
  %4257 = vmatprep.subr.bf16.mxu0 0
  %4258 = vmatpush2.bf16.msra.mxu0 0
  %4259 = vmatprep.subr.bf16.mxu0 0
  %4260 = vmatpush2.bf16.msra.mxu0 0
  %4261 = vmatprep.subr.bf16.mxu0 0
  %4262 = vmatpush2.bf16.msra.mxu0 0
  %4263 = vmatprep.subr.bf16.mxu0 0
  %4264 = vmatpush2.bf16.msra.mxu0 0
  %4265 = vmatprep.subr.bf16.mxu0 0
  %4266 = vmatpush2.bf16.msra.mxu0 0
  %4267 = vmatprep.subr.bf16.mxu0 0
  %4268 = vmatpush2.bf16.msra.mxu0 0
  %4269 = vmatprep.subr.bf16.mxu0 0
  %4270 = vmatpush2.bf16.msra.mxu0 0
  %4271 = vmatprep.subr.bf16.mxu0 0
  %4272 = vmatpush2.bf16.msra.mxu0 0
  %4273 = vmatprep.mubr.bf16.mxu0 0
  %4274 = vmatmul.mubr.bf16.gmra.mxu0 %v4236
  %v4275 = vpop.f32.mrf.mxu0
  %v4276 = vadd.f32 0.0, %v4275
  %v4277 = vpop.f32.mrf.mxu0
  %v4278 = vpop.f32.mrf.mxu0
  %v4279 = vadd.f32 0.0, %v4278
  %v4280 = vpop.f32.mrf.mxu0
  %4281 = vdwg.mxu0
  %v4283 = vsel %vm358, %v4000, 0
  %v4286 = vsel %vm482, %v4001, 0
  %4288 = vmatprep.subr.bf16.mxu0 0
  %4289 = vmatpush1.bf16.msra.mxu0 0
  %4290 = vmatprep.subr.bf16.mxu0 0
  %4291 = vmatpush1.bf16.msra.mxu0 0
  %4292 = vmatprep.subr.bf16.mxu0 0
  %4293 = vmatpush1.bf16.msra.mxu0 0
  %4294 = vmatprep.subr.bf16.mxu0 0
  %4295 = vmatpush1.bf16.msra.mxu0 0
  %4296 = vmatprep.subr.bf16.mxu0 0
  %4297 = vmatpush1.bf16.msra.mxu0 0
  %4298 = vmatprep.subr.bf16.mxu0 0
  %4299 = vmatpush1.bf16.msra.mxu0 0
  %4300 = vmatprep.subr.bf16.mxu0 0
  %4301 = vmatpush1.bf16.msra.mxu0 0
  %4302 = vmatprep.subr.bf16.mxu0 0
  %4303 = vmatpush1.bf16.msra.mxu0 %v4286
  %4304 = vmatprep.subr.bf16.mxu0 0
  %4305 = vmatpush2.bf16.msra.mxu0 0
  %4306 = vmatprep.subr.bf16.mxu0 0
  %4307 = vmatpush2.bf16.msra.mxu0 0
  %4308 = vmatprep.subr.bf16.mxu0 0
  %4309 = vmatpush2.bf16.msra.mxu0 0
  %4310 = vmatprep.subr.bf16.mxu0 0
  %4311 = vmatpush2.bf16.msra.mxu0 0
  %4312 = vmatprep.subr.bf16.mxu0 0
  %4313 = vmatpush2.bf16.msra.mxu0 0
  %4314 = vmatprep.subr.bf16.mxu0 0
  %4315 = vmatpush2.bf16.msra.mxu0 0
  %4316 = vmatprep.subr.bf16.mxu0 0
  %4317 = vmatpush2.bf16.msra.mxu0 0
  %4318 = vmatprep.subr.bf16.mxu0 0
  %4319 = vmatpush2.bf16.msra.mxu0 0
  %4320 = vmatprep.mubr.bf16.mxu0 0
  %4321 = vmatmul.mubr.bf16.gmra.mxu0 %v4283
  %v4322 = vpop.f32.mrf.mxu0
  %v4323 = vadd.f32 %v4276, %v4322
  %v4324 = vpop.f32.mrf.mxu0
  %v4325 = vpop.f32.mrf.mxu0
  %v4326 = vadd.f32 %v4279, %v4325
  %v4327 = vpop.f32.mrf.mxu0
  %4328 = vdwg.mxu0
  %4329 = vrot.lane.b32.xlu0 %v3782, 112
  %v4330 = vpop.permute.xlu0 %4329
  %4331 = vrot.lane.b32.xlu0 %v3784, 112
  %v4332 = vpop.permute.xlu0 %4331
  %v4334 = vsel %vm358, %v4330, 0
  %v4337 = vsel %vm358, %v4332, 0
  %4339 = vmatprep.subr.bf16.mxu0 0
  %4340 = vmatpush1.bf16.xpose.msra.mxu0 0
  %4341 = vmatprep.subr.bf16.mxu0 0
  %4342 = vmatpush1.bf16.xpose.msra.mxu0 0
  %4343 = vmatprep.subr.bf16.mxu0 0
  %4344 = vmatpush1.bf16.xpose.msra.mxu0 0
  %4345 = vmatprep.subr.bf16.mxu0 0
  %4346 = vmatpush1.bf16.xpose.msra.mxu0 0
  %4347 = vmatprep.subr.bf16.mxu0 0
  %4348 = vmatpush1.bf16.xpose.msra.mxu0 0
  %4349 = vmatprep.subr.bf16.mxu0 0
  %4350 = vmatpush1.bf16.xpose.msra.mxu0 0
  %4351 = vmatprep.subr.bf16.mxu0 0
  %4352 = vmatpush1.bf16.xpose.msra.mxu0 0
  %4353 = vmatprep.subr.bf16.mxu0 0
  %4354 = vmatpush1.bf16.xpose.msra.mxu0 %v4337
  %4355 = vmatprep.subr.bf16.mxu0 0
  %4356 = vmatpush2.bf16.xpose.msra.mxu0 0
  %4357 = vmatprep.subr.bf16.mxu0 0
  %4358 = vmatpush2.bf16.xpose.msra.mxu0 0
  %4359 = vmatprep.subr.bf16.mxu0 0
  %4360 = vmatpush2.bf16.xpose.msra.mxu0 0
  %4361 = vmatprep.subr.bf16.mxu0 0
  %4362 = vmatpush2.bf16.xpose.msra.mxu0 0
  %4363 = vmatprep.subr.bf16.mxu0 0
  %4364 = vmatpush2.bf16.xpose.msra.mxu0 0
  %4365 = vmatprep.subr.bf16.mxu0 0
  %4366 = vmatpush2.bf16.xpose.msra.mxu0 0
  %4367 = vmatprep.subr.bf16.mxu0 0
  %4368 = vmatpush2.bf16.xpose.msra.mxu0 0
  %4369 = vmatprep.subr.bf16.mxu0 0
  %4370 = vmatpush2.bf16.xpose.msra.mxu0 0
  %4371 = vmatprep.mubr.bf16.mxu0 0
  %4372 = vmatmul.mubr.bf16.gmra.mxu0 %v4334
  %v4373 = vpop.f32.mrf.mxu0
  %v4374 = vadd.f32 0.0, %v4373
  %v4375 = vpop.f32.mrf.mxu0
  %v4376 = vpop.f32.mrf.mxu0
  %v4377 = vpop.f32.mrf.mxu0
  %4378 = vdwg.mxu0
  %4379 = vrot.lane.b32.xlu0 %v3783, 112
  %v4380 = vpop.permute.xlu0 %4379
  %4381 = vrot.lane.b32.xlu0 %v3785, 112
  %v4382 = vpop.permute.xlu0 %4381
  %v4384 = vsel %vm358, %v4380, 0
  %v4387 = vsel %vm358, %v4382, 0
  %4389 = vmatprep.subr.bf16.mxu0 0
  %4390 = vmatpush1.bf16.xpose.msra.mxu0 0
  %4391 = vmatprep.subr.bf16.mxu0 0
  %4392 = vmatpush1.bf16.xpose.msra.mxu0 0
  %4393 = vmatprep.subr.bf16.mxu0 0
  %4394 = vmatpush1.bf16.xpose.msra.mxu0 0
  %4395 = vmatprep.subr.bf16.mxu0 0
  %4396 = vmatpush1.bf16.xpose.msra.mxu0 0
  %4397 = vmatprep.subr.bf16.mxu0 0
  %4398 = vmatpush1.bf16.xpose.msra.mxu0 0
  %4399 = vmatprep.subr.bf16.mxu0 0
  %4400 = vmatpush1.bf16.xpose.msra.mxu0 0
  %4401 = vmatprep.subr.bf16.mxu0 0
  %4402 = vmatpush1.bf16.xpose.msra.mxu0 0
  %4403 = vmatprep.subr.bf16.mxu0 0
  %4404 = vmatpush1.bf16.xpose.msra.mxu0 %v4387
  %4405 = vmatprep.subr.bf16.mxu0 0
  %4406 = vmatpush2.bf16.xpose.msra.mxu0 0
  %4407 = vmatprep.subr.bf16.mxu0 0
  %4408 = vmatpush2.bf16.xpose.msra.mxu0 0
  %4409 = vmatprep.subr.bf16.mxu0 0
  %4410 = vmatpush2.bf16.xpose.msra.mxu0 0
  %4411 = vmatprep.subr.bf16.mxu0 0
  %4412 = vmatpush2.bf16.xpose.msra.mxu0 0
  %4413 = vmatprep.subr.bf16.mxu0 0
  %4414 = vmatpush2.bf16.xpose.msra.mxu0 0
  %4415 = vmatprep.subr.bf16.mxu0 0
  %4416 = vmatpush2.bf16.xpose.msra.mxu0 0
  %4417 = vmatprep.subr.bf16.mxu0 0
  %4418 = vmatpush2.bf16.xpose.msra.mxu0 0
  %4419 = vmatprep.subr.bf16.mxu0 0
  %4420 = vmatpush2.bf16.xpose.msra.mxu0 0
  %4421 = vmatprep.mubr.bf16.mxu0 0
  %4422 = vmatmul.mubr.bf16.gmra.mxu0 %v4384
  %v4423 = vpop.f32.mrf.mxu0
  %v4424 = vadd.f32 0.0, %v4423
  %v4425 = vpop.f32.mrf.mxu0
  %v4426 = vpop.f32.mrf.mxu0
  %v4427 = vpop.f32.mrf.mxu0
  %4428 = vdwg.mxu0
  %v4429 = vmul.f32 %v4374, 0.35355338
  %v4430 = vmul.f32 %v4424, 0.35355338
  %v4431 = vadd.f32 %v4429, %v152
  %v4432 = vadd.f32 %v4430, %v152
  %v4433 = vsel %vm358, %v4431, -inf
  %4434 = vmax.xlane.f32.xlu0 %v4433
  %v4435 = vpop.xlane.xlu0 %4434
  %v4436 = vsel %vm358, %v4432, -inf
  %4437 = vmax.xlane.f32.xlu0 %v4436
  %v4438 = vpop.xlane.xlu0 %4437
  %v4439 = vsub.f32 %v4431, %v4435
  %v4440 = vsub.f32 %v4432, %v4438
  %v4441 = vmul.f32 %v4439, 1.442695
  %v4442 = vpow.pop %v4441
  %v4443 = vmul.f32 %v4440, 1.442695
  %v4444 = vpow.pop %v4443
  %v4445 = vsel %vm358, %v4442, 0.0
  %4446 = vadd.xlane.f32.xlu0 %v4445
  %v4447 = vpop.xlane.xlu0 %4446
  %v4448 = vsel %vm358, %v4444, 0.0
  %4449 = vadd.xlane.f32.xlu0 %v4448
  %v4450 = vpop.xlane.xlu0 %4449
  %v4451 = vrcp.pop %v4447
  %v4452 = vrcp.pop %v4450
  %v4453 = vmul.f32 %v4442, %v4451
  %v4454 = vmul.f32 %v4444, %v4452
  %v4455 = vpack.c.bf16 %v4453, %v4453
  %v4456 = vpack.c.bf16 %v4454, %v4454
  %4457 = vrot.lane.b32.xlu0 %v3786, 112
  %v4458 = vpop.permute.xlu0 %4457
  %v4460 = vsel %vm358, %v4455, 0
  %v4463 = vsel %vm482, %v4458, 0
  %4465 = vmatprep.subr.bf16.mxu0 0
  %4466 = vmatpush1.bf16.msra.mxu0 0
  %4467 = vmatprep.subr.bf16.mxu0 0
  %4468 = vmatpush1.bf16.msra.mxu0 0
  %4469 = vmatprep.subr.bf16.mxu0 0
  %4470 = vmatpush1.bf16.msra.mxu0 0
  %4471 = vmatprep.subr.bf16.mxu0 0
  %4472 = vmatpush1.bf16.msra.mxu0 0
  %4473 = vmatprep.subr.bf16.mxu0 0
  %4474 = vmatpush1.bf16.msra.mxu0 0
  %4475 = vmatprep.subr.bf16.mxu0 0
  %4476 = vmatpush1.bf16.msra.mxu0 0
  %4477 = vmatprep.subr.bf16.mxu0 0
  %4478 = vmatpush1.bf16.msra.mxu0 0
  %4479 = vmatprep.subr.bf16.mxu0 0
  %4480 = vmatpush1.bf16.msra.mxu0 %v4463
  %4481 = vmatprep.subr.bf16.mxu0 0
  %4482 = vmatpush2.bf16.msra.mxu0 0
  %4483 = vmatprep.subr.bf16.mxu0 0
  %4484 = vmatpush2.bf16.msra.mxu0 0
  %4485 = vmatprep.subr.bf16.mxu0 0
  %4486 = vmatpush2.bf16.msra.mxu0 0
  %4487 = vmatprep.subr.bf16.mxu0 0
  %4488 = vmatpush2.bf16.msra.mxu0 0
  %4489 = vmatprep.subr.bf16.mxu0 0
  %4490 = vmatpush2.bf16.msra.mxu0 0
  %4491 = vmatprep.subr.bf16.mxu0 0
  %4492 = vmatpush2.bf16.msra.mxu0 0
  %4493 = vmatprep.subr.bf16.mxu0 0
  %4494 = vmatpush2.bf16.msra.mxu0 0
  %4495 = vmatprep.subr.bf16.mxu0 0
  %4496 = vmatpush2.bf16.msra.mxu0 0
  %4497 = vmatprep.mubr.bf16.mxu0 0
  %4498 = vmatmul.mubr.bf16.gmra.mxu0 %v4460
  %v4499 = vpop.f32.mrf.mxu0
  %v4500 = vadd.f32 0.0, %v4499
  %v4501 = vpop.f32.mrf.mxu0
  %v4502 = vpop.f32.mrf.mxu0
  %v4503 = vpop.f32.mrf.mxu0
  %4504 = vdwg.mxu0
  %4505 = vrot.lane.b32.xlu0 %v3787, 112
  %v4506 = vpop.permute.xlu0 %4505
  %v4508 = vsel %vm358, %v4456, 0
  %v4511 = vsel %vm482, %v4506, 0
  %4513 = vmatprep.subr.bf16.mxu0 0
  %4514 = vmatpush1.bf16.msra.mxu0 0
  %4515 = vmatprep.subr.bf16.mxu0 0
  %4516 = vmatpush1.bf16.msra.mxu0 0
  %4517 = vmatprep.subr.bf16.mxu0 0
  %4518 = vmatpush1.bf16.msra.mxu0 0
  %4519 = vmatprep.subr.bf16.mxu0 0
  %4520 = vmatpush1.bf16.msra.mxu0 0
  %4521 = vmatprep.subr.bf16.mxu0 0
  %4522 = vmatpush1.bf16.msra.mxu0 0
  %4523 = vmatprep.subr.bf16.mxu0 0
  %4524 = vmatpush1.bf16.msra.mxu0 0
  %4525 = vmatprep.subr.bf16.mxu0 0
  %4526 = vmatpush1.bf16.msra.mxu0 0
  %4527 = vmatprep.subr.bf16.mxu0 0
  %4528 = vmatpush1.bf16.msra.mxu0 %v4511
  %4529 = vmatprep.subr.bf16.mxu0 0
  %4530 = vmatpush2.bf16.msra.mxu0 0
  %4531 = vmatprep.subr.bf16.mxu0 0
  %4532 = vmatpush2.bf16.msra.mxu0 0
  %4533 = vmatprep.subr.bf16.mxu0 0
  %4534 = vmatpush2.bf16.msra.mxu0 0
  %4535 = vmatprep.subr.bf16.mxu0 0
  %4536 = vmatpush2.bf16.msra.mxu0 0
  %4537 = vmatprep.subr.bf16.mxu0 0
  %4538 = vmatpush2.bf16.msra.mxu0 0
  %4539 = vmatprep.subr.bf16.mxu0 0
  %4540 = vmatpush2.bf16.msra.mxu0 0
  %4541 = vmatprep.subr.bf16.mxu0 0
  %4542 = vmatpush2.bf16.msra.mxu0 0
  %4543 = vmatprep.subr.bf16.mxu0 0
  %4544 = vmatpush2.bf16.msra.mxu0 0
  %4545 = vmatprep.mubr.bf16.mxu0 0
  %4546 = vmatmul.mubr.bf16.gmra.mxu0 %v4508
  %v4547 = vpop.f32.mrf.mxu0
  %v4548 = vadd.f32 0.0, %v4547
  %v4549 = vpop.f32.mrf.mxu0
  %v4550 = vpop.f32.mrf.mxu0
  %v4551 = vpop.f32.mrf.mxu0
  %4552 = vdwg.mxu0
  %v4553 = vpack.c.bf16 %v4548, %v4500
  %s4554 = scalar_lea.vmem %s47, 8
  %v4555 = vld [vmem:[%s4554] sm:$0xf]
  %v4557 = vsel %vm358, %v4553, 0
  %v4560 = vsel %vm482, %v4555, 0
  %4562 = vmatprep.subr.bf16.mxu0 0
  %4563 = vmatpush1.bf16.msra.mxu0 0
  %4564 = vmatprep.subr.bf16.mxu0 0
  %4565 = vmatpush1.bf16.msra.mxu0 0
  %4566 = vmatprep.subr.bf16.mxu0 0
  %4567 = vmatpush1.bf16.msra.mxu0 0
  %4568 = vmatprep.subr.bf16.mxu0 0
  %4569 = vmatpush1.bf16.msra.mxu0 0
  %4570 = vmatprep.subr.bf16.mxu0 0
  %4571 = vmatpush1.bf16.msra.mxu0 0
  %4572 = vmatprep.subr.bf16.mxu0 0
  %4573 = vmatpush1.bf16.msra.mxu0 0
  %4574 = vmatprep.subr.bf16.mxu0 0
  %4575 = vmatpush1.bf16.msra.mxu0 0
  %4576 = vmatprep.subr.bf16.mxu0 0
  %4577 = vmatpush1.bf16.msra.mxu0 %v4560
  %4578 = vmatprep.subr.bf16.mxu0 0
  %4579 = vmatpush2.bf16.msra.mxu0 0
  %4580 = vmatprep.subr.bf16.mxu0 0
  %4581 = vmatpush2.bf16.msra.mxu0 0
  %4582 = vmatprep.subr.bf16.mxu0 0
  %4583 = vmatpush2.bf16.msra.mxu0 0
  %4584 = vmatprep.subr.bf16.mxu0 0
  %4585 = vmatpush2.bf16.msra.mxu0 0
  %4586 = vmatprep.subr.bf16.mxu0 0
  %4587 = vmatpush2.bf16.msra.mxu0 0
  %4588 = vmatprep.subr.bf16.mxu0 0
  %4589 = vmatpush2.bf16.msra.mxu0 0
  %4590 = vmatprep.subr.bf16.mxu0 0
  %4591 = vmatpush2.bf16.msra.mxu0 0
  %4592 = vmatprep.subr.bf16.mxu0 0
  %4593 = vmatpush2.bf16.msra.mxu0 0
  %4594 = vmatprep.mubr.bf16.mxu0 0
  %4595 = vmatmul.mubr.bf16.gmra.mxu0 %v4557
  %v4596 = vpop.f32.mrf.mxu0
  %v4597 = vadd.f32 0.0, %v4596
  %v4598 = vpop.f32.mrf.mxu0
  %v4599 = vpop.f32.mrf.mxu0
  %v4600 = vadd.f32 0.0, %v4599
  %v4601 = vpop.f32.mrf.mxu0
  %4602 = vdwg.mxu0
  %v4603 = vadd.f32 %v4323, %v4597
  %v4604 = vadd.f32 %v4326, %v4600
  %4605 = vrot.lane.b32.xlu0 %v3782, 104
  %v4606 = vpop.permute.xlu0 %4605
  %4607 = vrot.lane.b32.xlu0 %v3784, 104
  %v4608 = vpop.permute.xlu0 %4607
  %v4610 = vsel %vm358, %v4606, 0
  %v4613 = vsel %vm358, %v4608, 0
  %4615 = vmatprep.subr.bf16.mxu0 0
  %4616 = vmatpush1.bf16.xpose.msra.mxu0 0
  %4617 = vmatprep.subr.bf16.mxu0 0
  %4618 = vmatpush1.bf16.xpose.msra.mxu0 0
  %4619 = vmatprep.subr.bf16.mxu0 0
  %4620 = vmatpush1.bf16.xpose.msra.mxu0 0
  %4621 = vmatprep.subr.bf16.mxu0 0
  %4622 = vmatpush1.bf16.xpose.msra.mxu0 0
  %4623 = vmatprep.subr.bf16.mxu0 0
  %4624 = vmatpush1.bf16.xpose.msra.mxu0 0
  %4625 = vmatprep.subr.bf16.mxu0 0
  %4626 = vmatpush1.bf16.xpose.msra.mxu0 0
  %4627 = vmatprep.subr.bf16.mxu0 0
  %4628 = vmatpush1.bf16.xpose.msra.mxu0 0
  %4629 = vmatprep.subr.bf16.mxu0 0
  %4630 = vmatpush1.bf16.xpose.msra.mxu0 %v4613
  %4631 = vmatprep.subr.bf16.mxu0 0
  %4632 = vmatpush2.bf16.xpose.msra.mxu0 0
  %4633 = vmatprep.subr.bf16.mxu0 0
  %4634 = vmatpush2.bf16.xpose.msra.mxu0 0
  %4635 = vmatprep.subr.bf16.mxu0 0
  %4636 = vmatpush2.bf16.xpose.msra.mxu0 0
  %4637 = vmatprep.subr.bf16.mxu0 0
  %4638 = vmatpush2.bf16.xpose.msra.mxu0 0
  %4639 = vmatprep.subr.bf16.mxu0 0
  %4640 = vmatpush2.bf16.xpose.msra.mxu0 0
  %4641 = vmatprep.subr.bf16.mxu0 0
  %4642 = vmatpush2.bf16.xpose.msra.mxu0 0
  %4643 = vmatprep.subr.bf16.mxu0 0
  %4644 = vmatpush2.bf16.xpose.msra.mxu0 0
  %4645 = vmatprep.subr.bf16.mxu0 0
  %4646 = vmatpush2.bf16.xpose.msra.mxu0 0
  %4647 = vmatprep.mubr.bf16.mxu0 0
  %4648 = vmatmul.mubr.bf16.gmra.mxu0 %v4610
  %v4649 = vpop.f32.mrf.mxu0
  %v4650 = vadd.f32 0.0, %v4649
  %v4651 = vpop.f32.mrf.mxu0
  %v4652 = vpop.f32.mrf.mxu0
  %v4653 = vpop.f32.mrf.mxu0
  %4654 = vdwg.mxu0
  %4655 = vrot.lane.b32.xlu0 %v3783, 104
  %v4656 = vpop.permute.xlu0 %4655
  %4657 = vrot.lane.b32.xlu0 %v3785, 104
  %v4658 = vpop.permute.xlu0 %4657
  %v4660 = vsel %vm358, %v4656, 0
  %v4663 = vsel %vm358, %v4658, 0
  %4665 = vmatprep.subr.bf16.mxu0 0
  %4666 = vmatpush1.bf16.xpose.msra.mxu0 0
  %4667 = vmatprep.subr.bf16.mxu0 0
  %4668 = vmatpush1.bf16.xpose.msra.mxu0 0
  %4669 = vmatprep.subr.bf16.mxu0 0
  %4670 = vmatpush1.bf16.xpose.msra.mxu0 0
  %4671 = vmatprep.subr.bf16.mxu0 0
  %4672 = vmatpush1.bf16.xpose.msra.mxu0 0
  %4673 = vmatprep.subr.bf16.mxu0 0
  %4674 = vmatpush1.bf16.xpose.msra.mxu0 0
  %4675 = vmatprep.subr.bf16.mxu0 0
  %4676 = vmatpush1.bf16.xpose.msra.mxu0 0
  %4677 = vmatprep.subr.bf16.mxu0 0
  %4678 = vmatpush1.bf16.xpose.msra.mxu0 0
  %4679 = vmatprep.subr.bf16.mxu0 0
  %4680 = vmatpush1.bf16.xpose.msra.mxu0 %v4663
  %4681 = vmatprep.subr.bf16.mxu0 0
  %4682 = vmatpush2.bf16.xpose.msra.mxu0 0
  %4683 = vmatprep.subr.bf16.mxu0 0
  %4684 = vmatpush2.bf16.xpose.msra.mxu0 0
  %4685 = vmatprep.subr.bf16.mxu0 0
  %4686 = vmatpush2.bf16.xpose.msra.mxu0 0
  %4687 = vmatprep.subr.bf16.mxu0 0
  %4688 = vmatpush2.bf16.xpose.msra.mxu0 0
  %4689 = vmatprep.subr.bf16.mxu0 0
  %4690 = vmatpush2.bf16.xpose.msra.mxu0 0
  %4691 = vmatprep.subr.bf16.mxu0 0
  %4692 = vmatpush2.bf16.xpose.msra.mxu0 0
  %4693 = vmatprep.subr.bf16.mxu0 0
  %4694 = vmatpush2.bf16.xpose.msra.mxu0 0
  %4695 = vmatprep.subr.bf16.mxu0 0
  %4696 = vmatpush2.bf16.xpose.msra.mxu0 0
  %4697 = vmatprep.mubr.bf16.mxu0 0
  %4698 = vmatmul.mubr.bf16.gmra.mxu0 %v4660
  %v4699 = vpop.f32.mrf.mxu0
  %v4700 = vadd.f32 0.0, %v4699
  %v4701 = vpop.f32.mrf.mxu0
  %v4702 = vpop.f32.mrf.mxu0
  %v4703 = vpop.f32.mrf.mxu0
  %4704 = vdwg.mxu0
  %v4705 = vmul.f32 %v4650, 0.35355338
  %v4706 = vmul.f32 %v4700, 0.35355338
  %v4707 = vadd.f32 %v4705, %v152
  %v4708 = vadd.f32 %v4706, %v152
  %v4709 = vsel %vm358, %v4707, -inf
  %4710 = vmax.xlane.f32.xlu0 %v4709
  %v4711 = vpop.xlane.xlu0 %4710
  %v4712 = vsel %vm358, %v4708, -inf
  %4713 = vmax.xlane.f32.xlu0 %v4712
  %v4714 = vpop.xlane.xlu0 %4713
  %v4715 = vsub.f32 %v4707, %v4711
  %v4716 = vsub.f32 %v4708, %v4714
  %v4717 = vmul.f32 %v4715, 1.442695
  %v4718 = vpow.pop %v4717
  %v4719 = vmul.f32 %v4716, 1.442695
  %v4720 = vpow.pop %v4719
  %v4721 = vsel %vm358, %v4718, 0.0
  %4722 = vadd.xlane.f32.xlu0 %v4721
  %v4723 = vpop.xlane.xlu0 %4722
  %v4724 = vsel %vm358, %v4720, 0.0
  %4725 = vadd.xlane.f32.xlu0 %v4724
  %v4726 = vpop.xlane.xlu0 %4725
  %v4727 = vrcp.pop %v4723
  %v4728 = vrcp.pop %v4726
  %v4729 = vmul.f32 %v4718, %v4727
  %v4730 = vmul.f32 %v4720, %v4728
  %v4731 = vpack.c.bf16 %v4729, %v4729
  %v4732 = vpack.c.bf16 %v4730, %v4730
  %4733 = vrot.lane.b32.xlu0 %v3786, 104
  %v4734 = vpop.permute.xlu0 %4733
  %v4736 = vsel %vm358, %v4731, 0
  %v4739 = vsel %vm482, %v4734, 0
  %4741 = vmatprep.subr.bf16.mxu0 0
  %4742 = vmatpush1.bf16.msra.mxu0 0
  %4743 = vmatprep.subr.bf16.mxu0 0
  %4744 = vmatpush1.bf16.msra.mxu0 0
  %4745 = vmatprep.subr.bf16.mxu0 0
  %4746 = vmatpush1.bf16.msra.mxu0 0
  %4747 = vmatprep.subr.bf16.mxu0 0
  %4748 = vmatpush1.bf16.msra.mxu0 0
  %4749 = vmatprep.subr.bf16.mxu0 0
  %4750 = vmatpush1.bf16.msra.mxu0 0
  %4751 = vmatprep.subr.bf16.mxu0 0
  %4752 = vmatpush1.bf16.msra.mxu0 0
  %4753 = vmatprep.subr.bf16.mxu0 0
  %4754 = vmatpush1.bf16.msra.mxu0 0
  %4755 = vmatprep.subr.bf16.mxu0 0
  %4756 = vmatpush1.bf16.msra.mxu0 %v4739
  %4757 = vmatprep.subr.bf16.mxu0 0
  %4758 = vmatpush2.bf16.msra.mxu0 0
  %4759 = vmatprep.subr.bf16.mxu0 0
  %4760 = vmatpush2.bf16.msra.mxu0 0
  %4761 = vmatprep.subr.bf16.mxu0 0
  %4762 = vmatpush2.bf16.msra.mxu0 0
  %4763 = vmatprep.subr.bf16.mxu0 0
  %4764 = vmatpush2.bf16.msra.mxu0 0
  %4765 = vmatprep.subr.bf16.mxu0 0
  %4766 = vmatpush2.bf16.msra.mxu0 0
  %4767 = vmatprep.subr.bf16.mxu0 0
  %4768 = vmatpush2.bf16.msra.mxu0 0
  %4769 = vmatprep.subr.bf16.mxu0 0
  %4770 = vmatpush2.bf16.msra.mxu0 0
  %4771 = vmatprep.subr.bf16.mxu0 0
  %4772 = vmatpush2.bf16.msra.mxu0 0
  %4773 = vmatprep.mubr.bf16.mxu0 0
  %4774 = vmatmul.mubr.bf16.gmra.mxu0 %v4736
  %v4775 = vpop.f32.mrf.mxu0
  %v4776 = vadd.f32 0.0, %v4775
  %v4777 = vpop.f32.mrf.mxu0
  %v4778 = vpop.f32.mrf.mxu0
  %v4779 = vpop.f32.mrf.mxu0
  %4780 = vdwg.mxu0
  %4781 = vrot.lane.b32.xlu0 %v3787, 104
  %v4782 = vpop.permute.xlu0 %4781
  %v4784 = vsel %vm358, %v4732, 0
  %v4787 = vsel %vm482, %v4782, 0
  %4789 = vmatprep.subr.bf16.mxu0 0
  %4790 = vmatpush1.bf16.msra.mxu0 0
  %4791 = vmatprep.subr.bf16.mxu0 0
  %4792 = vmatpush1.bf16.msra.mxu0 0
  %4793 = vmatprep.subr.bf16.mxu0 0
  %4794 = vmatpush1.bf16.msra.mxu0 0
  %4795 = vmatprep.subr.bf16.mxu0 0
  %4796 = vmatpush1.bf16.msra.mxu0 0
  %4797 = vmatprep.subr.bf16.mxu0 0
  %4798 = vmatpush1.bf16.msra.mxu0 0
  %4799 = vmatprep.subr.bf16.mxu0 0
  %4800 = vmatpush1.bf16.msra.mxu0 0
  %4801 = vmatprep.subr.bf16.mxu0 0
  %4802 = vmatpush1.bf16.msra.mxu0 0
  %4803 = vmatprep.subr.bf16.mxu0 0
  %4804 = vmatpush1.bf16.msra.mxu0 %v4787
  %4805 = vmatprep.subr.bf16.mxu0 0
  %4806 = vmatpush2.bf16.msra.mxu0 0
  %4807 = vmatprep.subr.bf16.mxu0 0
  %4808 = vmatpush2.bf16.msra.mxu0 0
  %4809 = vmatprep.subr.bf16.mxu0 0
  %4810 = vmatpush2.bf16.msra.mxu0 0
  %4811 = vmatprep.subr.bf16.mxu0 0
  %4812 = vmatpush2.bf16.msra.mxu0 0
  %4813 = vmatprep.subr.bf16.mxu0 0
  %4814 = vmatpush2.bf16.msra.mxu0 0
  %4815 = vmatprep.subr.bf16.mxu0 0
  %4816 = vmatpush2.bf16.msra.mxu0 0
  %4817 = vmatprep.subr.bf16.mxu0 0
  %4818 = vmatpush2.bf16.msra.mxu0 0
  %4819 = vmatprep.subr.bf16.mxu0 0
  %4820 = vmatpush2.bf16.msra.mxu0 0
  %4821 = vmatprep.mubr.bf16.mxu0 0
  %4822 = vmatmul.mubr.bf16.gmra.mxu0 %v4784
  %v4823 = vpop.f32.mrf.mxu0
  %v4824 = vadd.f32 0.0, %v4823
  %v4825 = vpop.f32.mrf.mxu0
  %v4826 = vpop.f32.mrf.mxu0
  %v4827 = vpop.f32.mrf.mxu0
  %4828 = vdwg.mxu0
  %v4829 = vpack.c.bf16 %v4824, %v4776
  %s4830 = scalar_lea.vmem %s47, 12
  %v4831 = vld [vmem:[%s4830] sm:$0xf]
  %v4833 = vsel %vm358, %v4829, 0
  %v4836 = vsel %vm482, %v4831, 0
  %4838 = vmatprep.subr.bf16.mxu0 0
  %4839 = vmatpush1.bf16.msra.mxu0 0
  %4840 = vmatprep.subr.bf16.mxu0 0
  %4841 = vmatpush1.bf16.msra.mxu0 0
  %4842 = vmatprep.subr.bf16.mxu0 0
  %4843 = vmatpush1.bf16.msra.mxu0 0
  %4844 = vmatprep.subr.bf16.mxu0 0
  %4845 = vmatpush1.bf16.msra.mxu0 0
  %4846 = vmatprep.subr.bf16.mxu0 0
  %4847 = vmatpush1.bf16.msra.mxu0 0
  %4848 = vmatprep.subr.bf16.mxu0 0
  %4849 = vmatpush1.bf16.msra.mxu0 0
  %4850 = vmatprep.subr.bf16.mxu0 0
  %4851 = vmatpush1.bf16.msra.mxu0 0
  %4852 = vmatprep.subr.bf16.mxu0 0
  %4853 = vmatpush1.bf16.msra.mxu0 %v4836
  %4854 = vmatprep.subr.bf16.mxu0 0
  %4855 = vmatpush2.bf16.msra.mxu0 0
  %4856 = vmatprep.subr.bf16.mxu0 0
  %4857 = vmatpush2.bf16.msra.mxu0 0
  %4858 = vmatprep.subr.bf16.mxu0 0
  %4859 = vmatpush2.bf16.msra.mxu0 0
  %4860 = vmatprep.subr.bf16.mxu0 0
  %4861 = vmatpush2.bf16.msra.mxu0 0
  %4862 = vmatprep.subr.bf16.mxu0 0
  %4863 = vmatpush2.bf16.msra.mxu0 0
  %4864 = vmatprep.subr.bf16.mxu0 0
  %4865 = vmatpush2.bf16.msra.mxu0 0
  %4866 = vmatprep.subr.bf16.mxu0 0
  %4867 = vmatpush2.bf16.msra.mxu0 0
  %4868 = vmatprep.subr.bf16.mxu0 0
  %4869 = vmatpush2.bf16.msra.mxu0 0
  %4870 = vmatprep.mubr.bf16.mxu0 0
  %4871 = vmatmul.mubr.bf16.gmra.mxu0 %v4833
  %v4872 = vpop.f32.mrf.mxu0
  %v4873 = vadd.f32 0.0, %v4872
  %v4874 = vpop.f32.mrf.mxu0
  %v4875 = vpop.f32.mrf.mxu0
  %v4876 = vadd.f32 0.0, %v4875
  %v4877 = vpop.f32.mrf.mxu0
  %4878 = vdwg.mxu0
  %v4879 = vadd.f32 %v4603, %v4873
  %v4880 = vadd.f32 %v4604, %v4876
  %v4881 = vld [vmem:[%s49] sm:$0x1]
  %v4883 = vlaneseq
  %v4884 = vshrl.u32 %v4883, 7
  %v4885 = vsub.s32 0, %v4884
  %v4886 = vrot.slane %v4881, %v4885
  %v4888 = vadd.f32 %v4879, %v4886
  %v4889 = vadd.f32 %v4880, %v4886
  %v4890 = vadd.f32 %v3584, %v4888
  %v4891 = vadd.f32 %v3585, %v4889
  %v4892 = vld [vmem:[%s59] sm:$0x1]
  %v4893 = vld [vmem:[%s61] sm:$0x1]
  %v4894 = vsel %vm179, %v4890, 0.0
  %4895 = vadd.xlane.f32.xlu0 %v4894
  %v4896 = vpop.xlane.xlu0 %4895
  %v4897 = vsel %vm179, %v4891, 0.0
  %4898 = vadd.xlane.f32.xlu0 %v4897
  %v4899 = vpop.xlane.xlu0 %4898
  %v4900 = vmul.f32 %v4896, %v1472
  %v4901 = vmul.f32 %v4899, %v1472
  %v4902 = vsub.f32 %v4890, %v4900
  %v4903 = vsub.f32 %v4891, %v4901
  %v4904 = vmul.f32 %v4902, %v4902
  %v4905 = vmul.f32 %v4903, %v4903
  %v4906 = vsel %vm179, %v4904, 0.0
  %4907 = vadd.xlane.f32.xlu0 %v4906
  %v4908 = vpop.xlane.xlu0 %4907
  %v4909 = vsel %vm179, %v4905, 0.0
  %4910 = vadd.xlane.f32.xlu0 %v4909
  %v4911 = vpop.xlane.xlu0 %4910
  %v4912 = vmul.f32 %v4908, %v1472
  %v4913 = vmul.f32 %v4911, %v1472
  %v4914 = vadd.f32 %v4912, 1e-05
  %v4915 = vadd.f32 %v4913, 1e-05
  %v4916 = vrsqrt.pop %v4914
  %v4917 = vrsqrt.pop %v4915
  %v4918 = vmul.f32 %v4902, %v4916
  %v4919 = vmul.f32 %v4903, %v4917
  %v4921 = vlaneseq
  %v4922 = vshrl.u32 %v4921, 7
  %v4923 = vsub.s32 0, %v4922
  %v4924 = vrot.slane %v4892, %v4923
  %v4926 = vmul.f32 %v4918, %v4924
  %v4927 = vmul.f32 %v4919, %v4924
  %v4929 = vlaneseq
  %v4930 = vshrl.u32 %v4929, 7
  %v4931 = vsub.s32 0, %v4930
  %v4932 = vrot.slane %v4893, %v4931
  %v4934 = vadd.f32 %v4926, %v4932
  %v4935 = vadd.f32 %v4927, %v4932
  %v4936 = vpack.c.bf16 %v4935, %v4934
  %v4937 = vld [vmem:[%s51] sm:$0xff]
  %v4938 = vld [vmem:[%s51 + $0x8] sm:$0xff]
  %v4939 = vld [vmem:[%s51 + $0x10] sm:$0xff]
  %v4940 = vld [vmem:[%s51 + $0x18] sm:$0xff]
  %v4941 = vld [vmem:[%s51 + $0x20] sm:$0xff]
  %v4942 = vld [vmem:[%s51 + $0x28] sm:$0xff]
  %v4943 = vld [vmem:[%s51 + $0x30] sm:$0xff]
  %v4944 = vld [vmem:[%s51 + $0x38] sm:$0xff]
  %v4945 = vld [vmem:[%s51 + $0x40] sm:$0xff]
  %v4946 = vld [vmem:[%s51 + $0x48] sm:$0xff]
  %v4947 = vld [vmem:[%s51 + $0x50] sm:$0xff]
  %v4948 = vld [vmem:[%s51 + $0x58] sm:$0xff]
  %v4949 = vld [vmem:[%s51 + $0x60] sm:$0xff]
  %v4950 = vld [vmem:[%s51 + $0x68] sm:$0xff]
  %v4951 = vld [vmem:[%s51 + $0x70] sm:$0xff]
  %v4952 = vld [vmem:[%s51 + $0x78] sm:$0xff]
  %v4953 = vld [vmem:[%s51 + $0x80] sm:$0xff]
  %v4954 = vld [vmem:[%s51 + $0x88] sm:$0xff]
  %v4955 = vld [vmem:[%s51 + $0x90] sm:$0xff]
  %v4956 = vld [vmem:[%s51 + $0x98] sm:$0xff]
  %v4957 = vld [vmem:[%s51 + $0xa0] sm:$0xff]
  %v4958 = vld [vmem:[%s51 + $0xa8] sm:$0xff]
  %v4959 = vld [vmem:[%s51 + $0xb0] sm:$0xff]
  %v4960 = vld [vmem:[%s51 + $0xb8] sm:$0xff]
  %v4961 = vld [vmem:[%s51 + $0xc0] sm:$0xff]
  %v4962 = vld [vmem:[%s51 + $0xc8] sm:$0xff]
  %v4963 = vld [vmem:[%s51 + $0xd0] sm:$0xff]
  %v4964 = vld [vmem:[%s51 + $0xd8] sm:$0xff]
  %v4965 = vld [vmem:[%s51 + $0xe0] sm:$0xff]
  %v4966 = vld [vmem:[%s51 + $0xe8] sm:$0xff]
  %v4967 = vld [vmem:[%s51 + $0xf0] sm:$0xff]
  %v4968 = vld [vmem:[%s51 + $0xf8] sm:$0xff]
  %v4969 = vld [vmem:[%s53] sm:$0xff]
  %v4970 = vld [vmem:[%s53 + $0x8] sm:$0xff]
  %v4973 = vlaneseq
  %v4974 = vshrl.u32 %v4973, 7
  %v4975 = vsub.s32 0, %v4974
  %v4976 = vrot.slane %v4969, %v4975
  %v4977 = vlaneseq
  %v4978 = vshrl.u32 %v4977, 7
  %v4979 = vsub.s32 1, %v4978
  %v4980 = vrot.slane %v4969, %v4979
  %v4981 = vlaneseq
  %v4982 = vshrl.u32 %v4981, 7
  %v4983 = vsub.s32 2, %v4982
  %v4984 = vrot.slane %v4969, %v4983
  %v4985 = vlaneseq
  %v4986 = vshrl.u32 %v4985, 7
  %v4987 = vsub.s32 3, %v4986
  %v4988 = vrot.slane %v4969, %v4987
  %v4989 = vlaneseq
  %v4990 = vshrl.u32 %v4989, 7
  %v4991 = vsub.s32 4, %v4990
  %v4992 = vrot.slane %v4969, %v4991
  %v4993 = vlaneseq
  %v4994 = vshrl.u32 %v4993, 7
  %v4995 = vsub.s32 5, %v4994
  %v4996 = vrot.slane %v4969, %v4995
  %v4997 = vlaneseq
  %v4998 = vshrl.u32 %v4997, 7
  %v4999 = vsub.s32 6, %v4998
  %v5000 = vrot.slane %v4969, %v4999
  %v5001 = vlaneseq
  %v5002 = vshrl.u32 %v5001, 7
  %v5003 = vsub.s32 7, %v5002
  %v5004 = vrot.slane %v4969, %v5003
  %v5005 = vlaneseq
  %v5006 = vshrl.u32 %v5005, 7
  %v5007 = vsub.s32 0, %v5006
  %v5008 = vrot.slane %v4970, %v5007
  %v5009 = vlaneseq
  %v5010 = vshrl.u32 %v5009, 7
  %v5011 = vsub.s32 1, %v5010
  %v5012 = vrot.slane %v4970, %v5011
  %v5013 = vlaneseq
  %v5014 = vshrl.u32 %v5013, 7
  %v5015 = vsub.s32 2, %v5014
  %v5016 = vrot.slane %v4970, %v5015
  %v5017 = vlaneseq
  %v5018 = vshrl.u32 %v5017, 7
  %v5019 = vsub.s32 3, %v5018
  %v5020 = vrot.slane %v4970, %v5019
  %v5021 = vlaneseq
  %v5022 = vshrl.u32 %v5021, 7
  %v5023 = vsub.s32 4, %v5022
  %v5024 = vrot.slane %v4970, %v5023
  %v5025 = vlaneseq
  %v5026 = vshrl.u32 %v5025, 7
  %v5027 = vsub.s32 5, %v5026
  %v5028 = vrot.slane %v4970, %v5027
  %v5029 = vlaneseq
  %v5030 = vshrl.u32 %v5029, 7
  %v5031 = vsub.s32 6, %v5030
  %v5032 = vrot.slane %v4970, %v5031
  %v5033 = vlaneseq
  %v5034 = vshrl.u32 %v5033, 7
  %v5035 = vsub.s32 7, %v5034
  %v5036 = vrot.slane %v4970, %v5035
  %v5085 = vunpack.c.l.b16 %v4937
  %v5086 = vunpack.c.h.b16 %v4937
  %v5087 = vunpack.c.l.b16 %v4938
  %v5088 = vunpack.c.h.b16 %v4938
  %v5089 = vunpack.c.l.b16 %v4939
  %v5090 = vunpack.c.h.b16 %v4939
  %v5091 = vunpack.c.l.b16 %v4940
  %v5092 = vunpack.c.h.b16 %v4940
  %v5093 = vunpack.c.l.b16 %v4941
  %v5094 = vunpack.c.h.b16 %v4941
  %v5095 = vunpack.c.l.b16 %v4942
  %v5096 = vunpack.c.h.b16 %v4942
  %v5097 = vunpack.c.l.b16 %v4943
  %v5098 = vunpack.c.h.b16 %v4943
  %v5099 = vunpack.c.l.b16 %v4944
  %v5100 = vunpack.c.h.b16 %v4944
  %v5101 = vunpack.c.l.b16 %v4945
  %v5102 = vunpack.c.h.b16 %v4945
  %v5103 = vunpack.c.l.b16 %v4946
  %v5104 = vunpack.c.h.b16 %v4946
  %v5105 = vunpack.c.l.b16 %v4947
  %v5106 = vunpack.c.h.b16 %v4947
  %v5107 = vunpack.c.l.b16 %v4948
  %v5108 = vunpack.c.h.b16 %v4948
  %v5109 = vunpack.c.l.b16 %v4949
  %v5110 = vunpack.c.h.b16 %v4949
  %v5111 = vunpack.c.l.b16 %v4950
  %v5112 = vunpack.c.h.b16 %v4950
  %v5113 = vunpack.c.l.b16 %v4951
  %v5114 = vunpack.c.h.b16 %v4951
  %v5115 = vunpack.c.l.b16 %v4952
  %v5116 = vunpack.c.h.b16 %v4952
  %v5117 = vunpack.c.l.b16 %v4953
  %v5118 = vunpack.c.h.b16 %v4953
  %v5119 = vunpack.c.l.b16 %v4954
  %v5120 = vunpack.c.h.b16 %v4954
  %v5121 = vunpack.c.l.b16 %v4955
  %v5122 = vunpack.c.h.b16 %v4955
  %v5123 = vunpack.c.l.b16 %v4956
  %v5124 = vunpack.c.h.b16 %v4956
  %v5125 = vunpack.c.l.b16 %v4957
  %v5126 = vunpack.c.h.b16 %v4957
  %v5127 = vunpack.c.l.b16 %v4958
  %v5128 = vunpack.c.h.b16 %v4958
  %v5129 = vunpack.c.l.b16 %v4959
  %v5130 = vunpack.c.h.b16 %v4959
  %v5131 = vunpack.c.l.b16 %v4960
  %v5132 = vunpack.c.h.b16 %v4960
  %v5133 = vunpack.c.l.b16 %v4961
  %v5134 = vunpack.c.h.b16 %v4961
  %v5135 = vunpack.c.l.b16 %v4962
  %v5136 = vunpack.c.h.b16 %v4962
  %v5137 = vunpack.c.l.b16 %v4963
  %v5138 = vunpack.c.h.b16 %v4963
  %v5139 = vunpack.c.l.b16 %v4964
  %v5140 = vunpack.c.h.b16 %v4964
  %v5141 = vunpack.c.l.b16 %v4965
  %v5142 = vunpack.c.h.b16 %v4965
  %v5143 = vunpack.c.l.b16 %v4966
  %v5144 = vunpack.c.h.b16 %v4966
  %v5145 = vunpack.c.l.b16 %v4967
  %v5146 = vunpack.c.h.b16 %v4967
  %v5147 = vunpack.c.l.b16 %v4968
  %v5148 = vunpack.c.h.b16 %v4968
  %v5149 = vpack.c.b16 %v5101, %v5085
  %v5150 = vpack.c.b16 %v5102, %v5086
  %v5151 = vpack.c.b16 %v5103, %v5087
  %v5152 = vpack.c.b16 %v5104, %v5088
  %v5153 = vpack.c.b16 %v5105, %v5089
  %v5154 = vpack.c.b16 %v5106, %v5090
  %v5155 = vpack.c.b16 %v5107, %v5091
  %v5156 = vpack.c.b16 %v5108, %v5092
  %v5157 = vpack.c.b16 %v5109, %v5093
  %v5158 = vpack.c.b16 %v5110, %v5094
  %v5159 = vpack.c.b16 %v5111, %v5095
  %v5160 = vpack.c.b16 %v5112, %v5096
  %v5161 = vpack.c.b16 %v5113, %v5097
  %v5162 = vpack.c.b16 %v5114, %v5098
  %v5163 = vpack.c.b16 %v5115, %v5099
  %v5164 = vpack.c.b16 %v5116, %v5100
  %v5165 = vpack.c.b16 %v5133, %v5117
  %v5166 = vpack.c.b16 %v5134, %v5118
  %v5167 = vpack.c.b16 %v5135, %v5119
  %v5168 = vpack.c.b16 %v5136, %v5120
  %v5169 = vpack.c.b16 %v5137, %v5121
  %v5170 = vpack.c.b16 %v5138, %v5122
  %v5171 = vpack.c.b16 %v5139, %v5123
  %v5172 = vpack.c.b16 %v5140, %v5124
  %v5173 = vpack.c.b16 %v5141, %v5125
  %v5174 = vpack.c.b16 %v5142, %v5126
  %v5175 = vpack.c.b16 %v5143, %v5127
  %v5176 = vpack.c.b16 %v5144, %v5128
  %v5177 = vpack.c.b16 %v5145, %v5129
  %v5178 = vpack.c.b16 %v5146, %v5130
  %v5179 = vpack.c.b16 %v5147, %v5131
  %v5180 = vpack.c.b16 %v5148, %v5132
  %v5214 = vsel %vm179, %v4936, 0
  %5216 = vmatprep.subr.bf16.mxu0 0
  %5217 = vmatpush1.bf16.msra.mxu0 0
  %5218 = vmatprep.subr.bf16.mxu0 0
  %5219 = vmatpush1.bf16.msra.mxu0 0
  %5220 = vmatprep.subr.bf16.mxu0 0
  %5221 = vmatpush1.bf16.msra.mxu0 0
  %5222 = vmatprep.subr.bf16.mxu0 0
  %5223 = vmatpush1.bf16.msra.mxu0 0
  %5224 = vmatprep.subr.bf16.mxu0 0
  %5225 = vmatpush1.bf16.msra.mxu0 0
  %5226 = vmatprep.subr.bf16.mxu0 0
  %5227 = vmatpush1.bf16.msra.mxu0 0
  %5228 = vmatprep.subr.bf16.mxu0 %v5166
  %5229 = vmatpush1.bf16.msra.mxu0 %v5165
  %5230 = vmatprep.subr.bf16.mxu0 %v5150
  %5231 = vmatpush1.bf16.msra.mxu0 %v5149
  %5232 = vmatprep.subr.bf16.mxu0 0
  %5233 = vmatpush2.bf16.msra.mxu0 0
  %5234 = vmatprep.subr.bf16.mxu0 0
  %5235 = vmatpush2.bf16.msra.mxu0 0
  %5236 = vmatprep.subr.bf16.mxu0 0
  %5237 = vmatpush2.bf16.msra.mxu0 0
  %5238 = vmatprep.subr.bf16.mxu0 0
  %5239 = vmatpush2.bf16.msra.mxu0 0
  %5240 = vmatprep.subr.bf16.mxu0 0
  %5241 = vmatpush2.bf16.msra.mxu0 0
  %5242 = vmatprep.subr.bf16.mxu0 0
  %5243 = vmatpush2.bf16.msra.mxu0 0
  %5244 = vmatprep.subr.bf16.mxu0 0
  %5245 = vmatpush2.bf16.msra.mxu0 0
  %5246 = vmatprep.subr.bf16.mxu0 0
  %5247 = vmatpush2.bf16.msra.mxu0 0
  %5248 = vmatprep.mubr.bf16.mxu0 0
  %5249 = vmatmul.mubr.bf16.gmra.mxu0 %v5214
  %v5250 = vpop.f32.mrf.mxu0
  %v5251 = vadd.f32 %v4976, %v5250
  %v5252 = vpop.f32.mrf.mxu0
  %v5253 = vadd.f32 %v4980, %v5252
  %v5254 = vpop.f32.mrf.mxu0
  %v5255 = vadd.f32 %v4976, %v5254
  %v5256 = vpop.f32.mrf.mxu0
  %v5257 = vadd.f32 %v4980, %v5256
  %5258 = vdwg.mxu0
  %5259 = vmatprep.subr.bf16.mxu0 0
  %5260 = vmatpush1.bf16.msra.mxu0 0
  %5261 = vmatprep.subr.bf16.mxu0 0
  %5262 = vmatpush1.bf16.msra.mxu0 0
  %5263 = vmatprep.subr.bf16.mxu0 0
  %5264 = vmatpush1.bf16.msra.mxu0 0
  %5265 = vmatprep.subr.bf16.mxu0 0
  %5266 = vmatpush1.bf16.msra.mxu0 0
  %5267 = vmatprep.subr.bf16.mxu0 0
  %5268 = vmatpush1.bf16.msra.mxu0 0
  %5269 = vmatprep.subr.bf16.mxu0 0
  %5270 = vmatpush1.bf16.msra.mxu0 0
  %5271 = vmatprep.subr.bf16.mxu0 %v5168
  %5272 = vmatpush1.bf16.msra.mxu0 %v5167
  %5273 = vmatprep.subr.bf16.mxu0 %v5152
  %5274 = vmatpush1.bf16.msra.mxu0 %v5151
  %5275 = vmatprep.subr.bf16.mxu0 0
  %5276 = vmatpush2.bf16.msra.mxu0 0
  %5277 = vmatprep.subr.bf16.mxu0 0
  %5278 = vmatpush2.bf16.msra.mxu0 0
  %5279 = vmatprep.subr.bf16.mxu0 0
  %5280 = vmatpush2.bf16.msra.mxu0 0
  %5281 = vmatprep.subr.bf16.mxu0 0
  %5282 = vmatpush2.bf16.msra.mxu0 0
  %5283 = vmatprep.subr.bf16.mxu0 0
  %5284 = vmatpush2.bf16.msra.mxu0 0
  %5285 = vmatprep.subr.bf16.mxu0 0
  %5286 = vmatpush2.bf16.msra.mxu0 0
  %5287 = vmatprep.subr.bf16.mxu0 0
  %5288 = vmatpush2.bf16.msra.mxu0 0
  %5289 = vmatprep.subr.bf16.mxu0 0
  %5290 = vmatpush2.bf16.msra.mxu0 0
  %5291 = vmatprep.mubr.bf16.mxu0 0
  %5292 = vmatmul.mubr.bf16.gmra.mxu0 %v5214
  %v5293 = vpop.f32.mrf.mxu0
  %v5294 = vadd.f32 %v4984, %v5293
  %v5295 = vpop.f32.mrf.mxu0
  %v5296 = vadd.f32 %v4988, %v5295
  %v5297 = vpop.f32.mrf.mxu0
  %v5298 = vadd.f32 %v4984, %v5297
  %v5299 = vpop.f32.mrf.mxu0
  %v5300 = vadd.f32 %v4988, %v5299
  %5301 = vdwg.mxu0
  %5302 = vmatprep.subr.bf16.mxu0 0
  %5303 = vmatpush1.bf16.msra.mxu0 0
  %5304 = vmatprep.subr.bf16.mxu0 0
  %5305 = vmatpush1.bf16.msra.mxu0 0
  %5306 = vmatprep.subr.bf16.mxu0 0
  %5307 = vmatpush1.bf16.msra.mxu0 0
  %5308 = vmatprep.subr.bf16.mxu0 0
  %5309 = vmatpush1.bf16.msra.mxu0 0
  %5310 = vmatprep.subr.bf16.mxu0 0
  %5311 = vmatpush1.bf16.msra.mxu0 0
  %5312 = vmatprep.subr.bf16.mxu0 0
  %5313 = vmatpush1.bf16.msra.mxu0 0
  %5314 = vmatprep.subr.bf16.mxu0 %v5170
  %5315 = vmatpush1.bf16.msra.mxu0 %v5169
  %5316 = vmatprep.subr.bf16.mxu0 %v5154
  %5317 = vmatpush1.bf16.msra.mxu0 %v5153
  %5318 = vmatprep.subr.bf16.mxu0 0
  %5319 = vmatpush2.bf16.msra.mxu0 0
  %5320 = vmatprep.subr.bf16.mxu0 0
  %5321 = vmatpush2.bf16.msra.mxu0 0
  %5322 = vmatprep.subr.bf16.mxu0 0
  %5323 = vmatpush2.bf16.msra.mxu0 0
  %5324 = vmatprep.subr.bf16.mxu0 0
  %5325 = vmatpush2.bf16.msra.mxu0 0
  %5326 = vmatprep.subr.bf16.mxu0 0
  %5327 = vmatpush2.bf16.msra.mxu0 0
  %5328 = vmatprep.subr.bf16.mxu0 0
  %5329 = vmatpush2.bf16.msra.mxu0 0
  %5330 = vmatprep.subr.bf16.mxu0 0
  %5331 = vmatpush2.bf16.msra.mxu0 0
  %5332 = vmatprep.subr.bf16.mxu0 0
  %5333 = vmatpush2.bf16.msra.mxu0 0
  %5334 = vmatprep.mubr.bf16.mxu0 0
  %5335 = vmatmul.mubr.bf16.gmra.mxu0 %v5214
  %v5336 = vpop.f32.mrf.mxu0
  %v5337 = vadd.f32 %v4992, %v5336
  %v5338 = vpop.f32.mrf.mxu0
  %v5339 = vadd.f32 %v4996, %v5338
  %v5340 = vpop.f32.mrf.mxu0
  %v5341 = vadd.f32 %v4992, %v5340
  %v5342 = vpop.f32.mrf.mxu0
  %v5343 = vadd.f32 %v4996, %v5342
  %5344 = vdwg.mxu0
  %5345 = vmatprep.subr.bf16.mxu0 0
  %5346 = vmatpush1.bf16.msra.mxu0 0
  %5347 = vmatprep.subr.bf16.mxu0 0
  %5348 = vmatpush1.bf16.msra.mxu0 0
  %5349 = vmatprep.subr.bf16.mxu0 0
  %5350 = vmatpush1.bf16.msra.mxu0 0
  %5351 = vmatprep.subr.bf16.mxu0 0
  %5352 = vmatpush1.bf16.msra.mxu0 0
  %5353 = vmatprep.subr.bf16.mxu0 0
  %5354 = vmatpush1.bf16.msra.mxu0 0
  %5355 = vmatprep.subr.bf16.mxu0 0
  %5356 = vmatpush1.bf16.msra.mxu0 0
  %5357 = vmatprep.subr.bf16.mxu0 %v5172
  %5358 = vmatpush1.bf16.msra.mxu0 %v5171
  %5359 = vmatprep.subr.bf16.mxu0 %v5156
  %5360 = vmatpush1.bf16.msra.mxu0 %v5155
  %5361 = vmatprep.subr.bf16.mxu0 0
  %5362 = vmatpush2.bf16.msra.mxu0 0
  %5363 = vmatprep.subr.bf16.mxu0 0
  %5364 = vmatpush2.bf16.msra.mxu0 0
  %5365 = vmatprep.subr.bf16.mxu0 0
  %5366 = vmatpush2.bf16.msra.mxu0 0
  %5367 = vmatprep.subr.bf16.mxu0 0
  %5368 = vmatpush2.bf16.msra.mxu0 0
  %5369 = vmatprep.subr.bf16.mxu0 0
  %5370 = vmatpush2.bf16.msra.mxu0 0
  %5371 = vmatprep.subr.bf16.mxu0 0
  %5372 = vmatpush2.bf16.msra.mxu0 0
  %5373 = vmatprep.subr.bf16.mxu0 0
  %5374 = vmatpush2.bf16.msra.mxu0 0
  %5375 = vmatprep.subr.bf16.mxu0 0
  %5376 = vmatpush2.bf16.msra.mxu0 0
  %5377 = vmatprep.mubr.bf16.mxu0 0
  %5378 = vmatmul.mubr.bf16.gmra.mxu0 %v5214
  %v5379 = vpop.f32.mrf.mxu0
  %v5380 = vadd.f32 %v5000, %v5379
  %v5381 = vpop.f32.mrf.mxu0
  %v5382 = vadd.f32 %v5004, %v5381
  %v5383 = vpop.f32.mrf.mxu0
  %v5384 = vadd.f32 %v5000, %v5383
  %v5385 = vpop.f32.mrf.mxu0
  %v5386 = vadd.f32 %v5004, %v5385
  %5387 = vdwg.mxu0
  %5388 = vmatprep.subr.bf16.mxu0 0
  %5389 = vmatpush1.bf16.msra.mxu0 0
  %5390 = vmatprep.subr.bf16.mxu0 0
  %5391 = vmatpush1.bf16.msra.mxu0 0
  %5392 = vmatprep.subr.bf16.mxu0 0
  %5393 = vmatpush1.bf16.msra.mxu0 0
  %5394 = vmatprep.subr.bf16.mxu0 0
  %5395 = vmatpush1.bf16.msra.mxu0 0
  %5396 = vmatprep.subr.bf16.mxu0 0
  %5397 = vmatpush1.bf16.msra.mxu0 0
  %5398 = vmatprep.subr.bf16.mxu0 0
  %5399 = vmatpush1.bf16.msra.mxu0 0
  %5400 = vmatprep.subr.bf16.mxu0 %v5174
  %5401 = vmatpush1.bf16.msra.mxu0 %v5173
  %5402 = vmatprep.subr.bf16.mxu0 %v5158
  %5403 = vmatpush1.bf16.msra.mxu0 %v5157
  %5404 = vmatprep.subr.bf16.mxu0 0
  %5405 = vmatpush2.bf16.msra.mxu0 0
  %5406 = vmatprep.subr.bf16.mxu0 0
  %5407 = vmatpush2.bf16.msra.mxu0 0
  %5408 = vmatprep.subr.bf16.mxu0 0
  %5409 = vmatpush2.bf16.msra.mxu0 0
  %5410 = vmatprep.subr.bf16.mxu0 0
  %5411 = vmatpush2.bf16.msra.mxu0 0
  %5412 = vmatprep.subr.bf16.mxu0 0
  %5413 = vmatpush2.bf16.msra.mxu0 0
  %5414 = vmatprep.subr.bf16.mxu0 0
  %5415 = vmatpush2.bf16.msra.mxu0 0
  %5416 = vmatprep.subr.bf16.mxu0 0
  %5417 = vmatpush2.bf16.msra.mxu0 0
  %5418 = vmatprep.subr.bf16.mxu0 0
  %5419 = vmatpush2.bf16.msra.mxu0 0
  %5420 = vmatprep.mubr.bf16.mxu0 0
  %5421 = vmatmul.mubr.bf16.gmra.mxu0 %v5214
  %v5422 = vpop.f32.mrf.mxu0
  %v5423 = vadd.f32 %v5008, %v5422
  %v5424 = vpop.f32.mrf.mxu0
  %v5425 = vadd.f32 %v5012, %v5424
  %v5426 = vpop.f32.mrf.mxu0
  %v5427 = vadd.f32 %v5008, %v5426
  %v5428 = vpop.f32.mrf.mxu0
  %v5429 = vadd.f32 %v5012, %v5428
  %5430 = vdwg.mxu0
  %5431 = vmatprep.subr.bf16.mxu0 0
  %5432 = vmatpush1.bf16.msra.mxu0 0
  %5433 = vmatprep.subr.bf16.mxu0 0
  %5434 = vmatpush1.bf16.msra.mxu0 0
  %5435 = vmatprep.subr.bf16.mxu0 0
  %5436 = vmatpush1.bf16.msra.mxu0 0
  %5437 = vmatprep.subr.bf16.mxu0 0
  %5438 = vmatpush1.bf16.msra.mxu0 0
  %5439 = vmatprep.subr.bf16.mxu0 0
  %5440 = vmatpush1.bf16.msra.mxu0 0
  %5441 = vmatprep.subr.bf16.mxu0 0
  %5442 = vmatpush1.bf16.msra.mxu0 0
  %5443 = vmatprep.subr.bf16.mxu0 %v5176
  %5444 = vmatpush1.bf16.msra.mxu0 %v5175
  %5445 = vmatprep.subr.bf16.mxu0 %v5160
  %5446 = vmatpush1.bf16.msra.mxu0 %v5159
  %5447 = vmatprep.subr.bf16.mxu0 0
  %5448 = vmatpush2.bf16.msra.mxu0 0
  %5449 = vmatprep.subr.bf16.mxu0 0
  %5450 = vmatpush2.bf16.msra.mxu0 0
  %5451 = vmatprep.subr.bf16.mxu0 0
  %5452 = vmatpush2.bf16.msra.mxu0 0
  %5453 = vmatprep.subr.bf16.mxu0 0
  %5454 = vmatpush2.bf16.msra.mxu0 0
  %5455 = vmatprep.subr.bf16.mxu0 0
  %5456 = vmatpush2.bf16.msra.mxu0 0
  %5457 = vmatprep.subr.bf16.mxu0 0
  %5458 = vmatpush2.bf16.msra.mxu0 0
  %5459 = vmatprep.subr.bf16.mxu0 0
  %5460 = vmatpush2.bf16.msra.mxu0 0
  %5461 = vmatprep.subr.bf16.mxu0 0
  %5462 = vmatpush2.bf16.msra.mxu0 0
  %5463 = vmatprep.mubr.bf16.mxu0 0
  %5464 = vmatmul.mubr.bf16.gmra.mxu0 %v5214
  %v5465 = vpop.f32.mrf.mxu0
  %v5466 = vadd.f32 %v5016, %v5465
  %v5467 = vpop.f32.mrf.mxu0
  %v5468 = vadd.f32 %v5020, %v5467
  %v5469 = vpop.f32.mrf.mxu0
  %v5470 = vadd.f32 %v5016, %v5469
  %v5471 = vpop.f32.mrf.mxu0
  %v5472 = vadd.f32 %v5020, %v5471
  %5473 = vdwg.mxu0
  %5474 = vmatprep.subr.bf16.mxu0 0
  %5475 = vmatpush1.bf16.msra.mxu0 0
  %5476 = vmatprep.subr.bf16.mxu0 0
  %5477 = vmatpush1.bf16.msra.mxu0 0
  %5478 = vmatprep.subr.bf16.mxu0 0
  %5479 = vmatpush1.bf16.msra.mxu0 0
  %5480 = vmatprep.subr.bf16.mxu0 0
  %5481 = vmatpush1.bf16.msra.mxu0 0
  %5482 = vmatprep.subr.bf16.mxu0 0
  %5483 = vmatpush1.bf16.msra.mxu0 0
  %5484 = vmatprep.subr.bf16.mxu0 0
  %5485 = vmatpush1.bf16.msra.mxu0 0
  %5486 = vmatprep.subr.bf16.mxu0 %v5178
  %5487 = vmatpush1.bf16.msra.mxu0 %v5177
  %5488 = vmatprep.subr.bf16.mxu0 %v5162
  %5489 = vmatpush1.bf16.msra.mxu0 %v5161
  %5490 = vmatprep.subr.bf16.mxu0 0
  %5491 = vmatpush2.bf16.msra.mxu0 0
  %5492 = vmatprep.subr.bf16.mxu0 0
  %5493 = vmatpush2.bf16.msra.mxu0 0
  %5494 = vmatprep.subr.bf16.mxu0 0
  %5495 = vmatpush2.bf16.msra.mxu0 0
  %5496 = vmatprep.subr.bf16.mxu0 0
  %5497 = vmatpush2.bf16.msra.mxu0 0
  %5498 = vmatprep.subr.bf16.mxu0 0
  %5499 = vmatpush2.bf16.msra.mxu0 0
  %5500 = vmatprep.subr.bf16.mxu0 0
  %5501 = vmatpush2.bf16.msra.mxu0 0
  %5502 = vmatprep.subr.bf16.mxu0 0
  %5503 = vmatpush2.bf16.msra.mxu0 0
  %5504 = vmatprep.subr.bf16.mxu0 0
  %5505 = vmatpush2.bf16.msra.mxu0 0
  %5506 = vmatprep.mubr.bf16.mxu0 0
  %5507 = vmatmul.mubr.bf16.gmra.mxu0 %v5214
  %v5508 = vpop.f32.mrf.mxu0
  %v5509 = vadd.f32 %v5024, %v5508
  %v5510 = vpop.f32.mrf.mxu0
  %v5511 = vadd.f32 %v5028, %v5510
  %v5512 = vpop.f32.mrf.mxu0
  %v5513 = vadd.f32 %v5024, %v5512
  %v5514 = vpop.f32.mrf.mxu0
  %v5515 = vadd.f32 %v5028, %v5514
  %5516 = vdwg.mxu0
  %5517 = vmatprep.subr.bf16.mxu0 0
  %5518 = vmatpush1.bf16.msra.mxu0 0
  %5519 = vmatprep.subr.bf16.mxu0 0
  %5520 = vmatpush1.bf16.msra.mxu0 0
  %5521 = vmatprep.subr.bf16.mxu0 0
  %5522 = vmatpush1.bf16.msra.mxu0 0
  %5523 = vmatprep.subr.bf16.mxu0 0
  %5524 = vmatpush1.bf16.msra.mxu0 0
  %5525 = vmatprep.subr.bf16.mxu0 0
  %5526 = vmatpush1.bf16.msra.mxu0 0
  %5527 = vmatprep.subr.bf16.mxu0 0
  %5528 = vmatpush1.bf16.msra.mxu0 0
  %5529 = vmatprep.subr.bf16.mxu0 %v5180
  %5530 = vmatpush1.bf16.msra.mxu0 %v5179
  %5531 = vmatprep.subr.bf16.mxu0 %v5164
  %5532 = vmatpush1.bf16.msra.mxu0 %v5163
  %5533 = vmatprep.subr.bf16.mxu0 0
  %5534 = vmatpush2.bf16.msra.mxu0 0
  %5535 = vmatprep.subr.bf16.mxu0 0
  %5536 = vmatpush2.bf16.msra.mxu0 0
  %5537 = vmatprep.subr.bf16.mxu0 0
  %5538 = vmatpush2.bf16.msra.mxu0 0
  %5539 = vmatprep.subr.bf16.mxu0 0
  %5540 = vmatpush2.bf16.msra.mxu0 0
  %5541 = vmatprep.subr.bf16.mxu0 0
  %5542 = vmatpush2.bf16.msra.mxu0 0
  %5543 = vmatprep.subr.bf16.mxu0 0
  %5544 = vmatpush2.bf16.msra.mxu0 0
  %5545 = vmatprep.subr.bf16.mxu0 0
  %5546 = vmatpush2.bf16.msra.mxu0 0
  %5547 = vmatprep.subr.bf16.mxu0 0
  %5548 = vmatpush2.bf16.msra.mxu0 0
  %5549 = vmatprep.mubr.bf16.mxu0 0
  %5550 = vmatmul.mubr.bf16.gmra.mxu0 %v5214
  %v5551 = vpop.f32.mrf.mxu0
  %v5552 = vadd.f32 %v5032, %v5551
  %v5553 = vpop.f32.mrf.mxu0
  %v5554 = vadd.f32 %v5036, %v5553
  %v5555 = vpop.f32.mrf.mxu0
  %v5556 = vadd.f32 %v5032, %v5555
  %v5557 = vpop.f32.mrf.mxu0
  %v5558 = vadd.f32 %v5036, %v5557
  %5559 = vdwg.mxu0
  %v5560 = vmax.f32 %v5251, 0.0
  %v5561 = vmax.f32 %v5253, 0.0
  %v5562 = vmax.f32 %v5294, 0.0
  %v5563 = vmax.f32 %v5296, 0.0
  %v5564 = vmax.f32 %v5337, 0.0
  %v5565 = vmax.f32 %v5339, 0.0
  %v5566 = vmax.f32 %v5380, 0.0
  %v5567 = vmax.f32 %v5382, 0.0
  %v5568 = vmax.f32 %v5423, 0.0
  %v5569 = vmax.f32 %v5425, 0.0
  %v5570 = vmax.f32 %v5466, 0.0
  %v5571 = vmax.f32 %v5468, 0.0
  %v5572 = vmax.f32 %v5509, 0.0
  %v5573 = vmax.f32 %v5511, 0.0
  %v5574 = vmax.f32 %v5552, 0.0
  %v5575 = vmax.f32 %v5554, 0.0
  %v5576 = vmax.f32 %v5255, 0.0
  %v5577 = vmax.f32 %v5257, 0.0
  %v5578 = vmax.f32 %v5298, 0.0
  %v5579 = vmax.f32 %v5300, 0.0
  %v5580 = vmax.f32 %v5341, 0.0
  %v5581 = vmax.f32 %v5343, 0.0
  %v5582 = vmax.f32 %v5384, 0.0
  %v5583 = vmax.f32 %v5386, 0.0
  %v5584 = vmax.f32 %v5427, 0.0
  %v5585 = vmax.f32 %v5429, 0.0
  %v5586 = vmax.f32 %v5470, 0.0
  %v5587 = vmax.f32 %v5472, 0.0
  %v5588 = vmax.f32 %v5513, 0.0
  %v5589 = vmax.f32 %v5515, 0.0
  %v5590 = vmax.f32 %v5556, 0.0
  %v5591 = vmax.f32 %v5558, 0.0
  %v5592 = vpack.c.bf16 %v5576, %v5560
  %v5593 = vpack.c.bf16 %v5577, %v5561
  %v5594 = vpack.c.bf16 %v5578, %v5562
  %v5595 = vpack.c.bf16 %v5579, %v5563
  %v5596 = vpack.c.bf16 %v5580, %v5564
  %v5597 = vpack.c.bf16 %v5581, %v5565
  %v5598 = vpack.c.bf16 %v5582, %v5566
  %v5599 = vpack.c.bf16 %v5583, %v5567
  %v5600 = vpack.c.bf16 %v5584, %v5568
  %v5601 = vpack.c.bf16 %v5585, %v5569
  %v5602 = vpack.c.bf16 %v5586, %v5570
  %v5603 = vpack.c.bf16 %v5587, %v5571
  %v5604 = vpack.c.bf16 %v5588, %v5572
  %v5605 = vpack.c.bf16 %v5589, %v5573
  %v5606 = vpack.c.bf16 %v5590, %v5574
  %v5607 = vpack.c.bf16 %v5591, %v5575
  %v5608 = vld [vmem:[%s55] sm:$0xf]
  %v5609 = vld [vmem:[%s55 + $0x4] sm:$0xf]
  %v5610 = vld [vmem:[%s55 + $0x8] sm:$0xf]
  %v5611 = vld [vmem:[%s55 + $0xc] sm:$0xf]
  %v5612 = vld [vmem:[%s55 + $0x10] sm:$0xf]
  %v5613 = vld [vmem:[%s55 + $0x14] sm:$0xf]
  %v5614 = vld [vmem:[%s55 + $0x18] sm:$0xf]
  %v5615 = vld [vmem:[%s55 + $0x1c] sm:$0xf]
  %v5616 = vld [vmem:[%s55 + $0x20] sm:$0xf]
  %v5617 = vld [vmem:[%s55 + $0x24] sm:$0xf]
  %v5618 = vld [vmem:[%s55 + $0x28] sm:$0xf]
  %v5619 = vld [vmem:[%s55 + $0x2c] sm:$0xf]
  %v5620 = vld [vmem:[%s55 + $0x30] sm:$0xf]
  %v5621 = vld [vmem:[%s55 + $0x34] sm:$0xf]
  %v5622 = vld [vmem:[%s55 + $0x38] sm:$0xf]
  %v5623 = vld [vmem:[%s55 + $0x3c] sm:$0xf]
  %v5624 = vld [vmem:[%s55 + $0x40] sm:$0xf]
  %v5625 = vld [vmem:[%s55 + $0x44] sm:$0xf]
  %v5626 = vld [vmem:[%s55 + $0x48] sm:$0xf]
  %v5627 = vld [vmem:[%s55 + $0x4c] sm:$0xf]
  %v5628 = vld [vmem:[%s55 + $0x50] sm:$0xf]
  %v5629 = vld [vmem:[%s55 + $0x54] sm:$0xf]
  %v5630 = vld [vmem:[%s55 + $0x58] sm:$0xf]
  %v5631 = vld [vmem:[%s55 + $0x5c] sm:$0xf]
  %v5632 = vld [vmem:[%s55 + $0x60] sm:$0xf]
  %v5633 = vld [vmem:[%s55 + $0x64] sm:$0xf]
  %v5634 = vld [vmem:[%s55 + $0x68] sm:$0xf]
  %v5635 = vld [vmem:[%s55 + $0x6c] sm:$0xf]
  %v5636 = vld [vmem:[%s55 + $0x70] sm:$0xf]
  %v5637 = vld [vmem:[%s55 + $0x74] sm:$0xf]
  %v5638 = vld [vmem:[%s55 + $0x78] sm:$0xf]
  %v5639 = vld [vmem:[%s55 + $0x7c] sm:$0xf]
  %v5640 = vld [vmem:[%s55 + $0x80] sm:$0xf]
  %v5641 = vld [vmem:[%s55 + $0x84] sm:$0xf]
  %v5642 = vld [vmem:[%s55 + $0x88] sm:$0xf]
  %v5643 = vld [vmem:[%s55 + $0x8c] sm:$0xf]
  %v5644 = vld [vmem:[%s55 + $0x90] sm:$0xf]
  %v5645 = vld [vmem:[%s55 + $0x94] sm:$0xf]
  %v5646 = vld [vmem:[%s55 + $0x98] sm:$0xf]
  %v5647 = vld [vmem:[%s55 + $0x9c] sm:$0xf]
  %v5648 = vld [vmem:[%s55 + $0xa0] sm:$0xf]
  %v5649 = vld [vmem:[%s55 + $0xa4] sm:$0xf]
  %v5650 = vld [vmem:[%s55 + $0xa8] sm:$0xf]
  %v5651 = vld [vmem:[%s55 + $0xac] sm:$0xf]
  %v5652 = vld [vmem:[%s55 + $0xb0] sm:$0xf]
  %v5653 = vld [vmem:[%s55 + $0xb4] sm:$0xf]
  %v5654 = vld [vmem:[%s55 + $0xb8] sm:$0xf]
  %v5655 = vld [vmem:[%s55 + $0xbc] sm:$0xf]
  %v5656 = vld [vmem:[%s55 + $0xc0] sm:$0xf]
  %v5657 = vld [vmem:[%s55 + $0xc4] sm:$0xf]
  %v5658 = vld [vmem:[%s55 + $0xc8] sm:$0xf]
  %v5659 = vld [vmem:[%s55 + $0xcc] sm:$0xf]
  %v5660 = vld [vmem:[%s55 + $0xd0] sm:$0xf]
  %v5661 = vld [vmem:[%s55 + $0xd4] sm:$0xf]
  %v5662 = vld [vmem:[%s55 + $0xd8] sm:$0xf]
  %v5663 = vld [vmem:[%s55 + $0xdc] sm:$0xf]
  %v5664 = vld [vmem:[%s55 + $0xe0] sm:$0xf]
  %v5665 = vld [vmem:[%s55 + $0xe4] sm:$0xf]
  %v5666 = vld [vmem:[%s55 + $0xe8] sm:$0xf]
  %v5667 = vld [vmem:[%s55 + $0xec] sm:$0xf]
  %v5668 = vld [vmem:[%s55 + $0xf0] sm:$0xf]
  %v5669 = vld [vmem:[%s55 + $0xf4] sm:$0xf]
  %v5670 = vld [vmem:[%s55 + $0xf8] sm:$0xf]
  %v5671 = vld [vmem:[%s55 + $0xfc] sm:$0xf]
  %v5672 = vld [vmem:[%s55 + $0x100] sm:$0xf]
  %v5673 = vld [vmem:[%s55 + $0x104] sm:$0xf]
  %v5674 = vld [vmem:[%s55 + $0x108] sm:$0xf]
  %v5675 = vld [vmem:[%s55 + $0x10c] sm:$0xf]
  %v5676 = vld [vmem:[%s55 + $0x110] sm:$0xf]
  %v5677 = vld [vmem:[%s55 + $0x114] sm:$0xf]
  %v5678 = vld [vmem:[%s55 + $0x118] sm:$0xf]
  %v5679 = vld [vmem:[%s55 + $0x11c] sm:$0xf]
  %v5680 = vld [vmem:[%s55 + $0x120] sm:$0xf]
  %v5681 = vld [vmem:[%s55 + $0x124] sm:$0xf]
  %v5682 = vld [vmem:[%s55 + $0x128] sm:$0xf]
  %v5683 = vld [vmem:[%s55 + $0x12c] sm:$0xf]
  %v5684 = vld [vmem:[%s55 + $0x130] sm:$0xf]
  %v5685 = vld [vmem:[%s55 + $0x134] sm:$0xf]
  %v5686 = vld [vmem:[%s55 + $0x138] sm:$0xf]
  %v5687 = vld [vmem:[%s55 + $0x13c] sm:$0xf]
  %v5688 = vld [vmem:[%s55 + $0x140] sm:$0xf]
  %v5689 = vld [vmem:[%s55 + $0x144] sm:$0xf]
  %v5690 = vld [vmem:[%s55 + $0x148] sm:$0xf]
  %v5691 = vld [vmem:[%s55 + $0x14c] sm:$0xf]
  %v5692 = vld [vmem:[%s55 + $0x150] sm:$0xf]
  %v5693 = vld [vmem:[%s55 + $0x154] sm:$0xf]
  %v5694 = vld [vmem:[%s55 + $0x158] sm:$0xf]
  %v5695 = vld [vmem:[%s55 + $0x15c] sm:$0xf]
  %v5696 = vld [vmem:[%s55 + $0x160] sm:$0xf]
  %v5697 = vld [vmem:[%s55 + $0x164] sm:$0xf]
  %v5698 = vld [vmem:[%s55 + $0x168] sm:$0xf]
  %v5699 = vld [vmem:[%s55 + $0x16c] sm:$0xf]
  %v5700 = vld [vmem:[%s55 + $0x170] sm:$0xf]
  %v5701 = vld [vmem:[%s55 + $0x174] sm:$0xf]
  %v5702 = vld [vmem:[%s55 + $0x178] sm:$0xf]
  %v5703 = vld [vmem:[%s55 + $0x17c] sm:$0xf]
  %v5704 = vld [vmem:[%s55 + $0x180] sm:$0xf]
  %v5705 = vld [vmem:[%s55 + $0x184] sm:$0xf]
  %v5706 = vld [vmem:[%s55 + $0x188] sm:$0xf]
  %v5707 = vld [vmem:[%s55 + $0x18c] sm:$0xf]
  %v5708 = vld [vmem:[%s55 + $0x190] sm:$0xf]
  %v5709 = vld [vmem:[%s55 + $0x194] sm:$0xf]
  %v5710 = vld [vmem:[%s55 + $0x198] sm:$0xf]
  %v5711 = vld [vmem:[%s55 + $0x19c] sm:$0xf]
  %v5712 = vld [vmem:[%s55 + $0x1a0] sm:$0xf]
  %v5713 = vld [vmem:[%s55 + $0x1a4] sm:$0xf]
  %v5714 = vld [vmem:[%s55 + $0x1a8] sm:$0xf]
  %v5715 = vld [vmem:[%s55 + $0x1ac] sm:$0xf]
  %v5716 = vld [vmem:[%s55 + $0x1b0] sm:$0xf]
  %v5717 = vld [vmem:[%s55 + $0x1b4] sm:$0xf]
  %v5718 = vld [vmem:[%s55 + $0x1b8] sm:$0xf]
  %v5719 = vld [vmem:[%s55 + $0x1bc] sm:$0xf]
  %v5720 = vld [vmem:[%s55 + $0x1c0] sm:$0xf]
  %v5721 = vld [vmem:[%s55 + $0x1c4] sm:$0xf]
  %v5722 = vld [vmem:[%s55 + $0x1c8] sm:$0xf]
  %v5723 = vld [vmem:[%s55 + $0x1cc] sm:$0xf]
  %v5724 = vld [vmem:[%s55 + $0x1d0] sm:$0xf]
  %v5725 = vld [vmem:[%s55 + $0x1d4] sm:$0xf]
  %v5726 = vld [vmem:[%s55 + $0x1d8] sm:$0xf]
  %v5727 = vld [vmem:[%s55 + $0x1dc] sm:$0xf]
  %v5728 = vld [vmem:[%s55 + $0x1e0] sm:$0xf]
  %v5729 = vld [vmem:[%s55 + $0x1e4] sm:$0xf]
  %v5730 = vld [vmem:[%s55 + $0x1e8] sm:$0xf]
  %v5731 = vld [vmem:[%s55 + $0x1ec] sm:$0xf]
  %v5732 = vld [vmem:[%s55 + $0x1f0] sm:$0xf]
  %v5733 = vld [vmem:[%s55 + $0x1f4] sm:$0xf]
  %v5734 = vld [vmem:[%s55 + $0x1f8] sm:$0xf]
  %v5735 = vld [vmem:[%s55 + $0x1fc] sm:$0xf]
  %v5736 = vld [vmem:[%s55 + $0x200] sm:$0xf]
  %v5737 = vld [vmem:[%s55 + $0x204] sm:$0xf]
  %v5738 = vld [vmem:[%s55 + $0x208] sm:$0xf]
  %v5739 = vld [vmem:[%s55 + $0x20c] sm:$0xf]
  %v5740 = vld [vmem:[%s55 + $0x210] sm:$0xf]
  %v5741 = vld [vmem:[%s55 + $0x214] sm:$0xf]
  %v5742 = vld [vmem:[%s55 + $0x218] sm:$0xf]
  %v5743 = vld [vmem:[%s55 + $0x21c] sm:$0xf]
  %v5744 = vld [vmem:[%s55 + $0x220] sm:$0xf]
  %v5745 = vld [vmem:[%s55 + $0x224] sm:$0xf]
  %v5746 = vld [vmem:[%s55 + $0x228] sm:$0xf]
  %v5747 = vld [vmem:[%s55 + $0x22c] sm:$0xf]
  %v5748 = vld [vmem:[%s55 + $0x230] sm:$0xf]
  %v5749 = vld [vmem:[%s55 + $0x234] sm:$0xf]
  %v5750 = vld [vmem:[%s55 + $0x238] sm:$0xf]
  %v5751 = vld [vmem:[%s55 + $0x23c] sm:$0xf]
  %v5752 = vld [vmem:[%s55 + $0x240] sm:$0xf]
  %v5753 = vld [vmem:[%s55 + $0x244] sm:$0xf]
  %v5754 = vld [vmem:[%s55 + $0x248] sm:$0xf]
  %v5755 = vld [vmem:[%s55 + $0x24c] sm:$0xf]
  %v5756 = vld [vmem:[%s55 + $0x250] sm:$0xf]
  %v5757 = vld [vmem:[%s55 + $0x254] sm:$0xf]
  %v5758 = vld [vmem:[%s55 + $0x258] sm:$0xf]
  %v5759 = vld [vmem:[%s55 + $0x25c] sm:$0xf]
  %v5760 = vld [vmem:[%s55 + $0x260] sm:$0xf]
  %v5761 = vld [vmem:[%s55 + $0x264] sm:$0xf]
  %v5762 = vld [vmem:[%s55 + $0x268] sm:$0xf]
  %v5763 = vld [vmem:[%s55 + $0x26c] sm:$0xf]
  %v5764 = vld [vmem:[%s55 + $0x270] sm:$0xf]
  %v5765 = vld [vmem:[%s55 + $0x274] sm:$0xf]
  %v5766 = vld [vmem:[%s55 + $0x278] sm:$0xf]
  %v5767 = vld [vmem:[%s55 + $0x27c] sm:$0xf]
  %v5768 = vld [vmem:[%s55 + $0x280] sm:$0xf]
  %v5769 = vld [vmem:[%s55 + $0x284] sm:$0xf]
  %v5770 = vld [vmem:[%s55 + $0x288] sm:$0xf]
  %v5771 = vld [vmem:[%s55 + $0x28c] sm:$0xf]
  %v5772 = vld [vmem:[%s55 + $0x290] sm:$0xf]
  %v5773 = vld [vmem:[%s55 + $0x294] sm:$0xf]
  %v5774 = vld [vmem:[%s55 + $0x298] sm:$0xf]
  %v5775 = vld [vmem:[%s55 + $0x29c] sm:$0xf]
  %v5776 = vld [vmem:[%s55 + $0x2a0] sm:$0xf]
  %v5777 = vld [vmem:[%s55 + $0x2a4] sm:$0xf]
  %v5778 = vld [vmem:[%s55 + $0x2a8] sm:$0xf]
  %v5779 = vld [vmem:[%s55 + $0x2ac] sm:$0xf]
  %v5780 = vld [vmem:[%s55 + $0x2b0] sm:$0xf]
  %v5781 = vld [vmem:[%s55 + $0x2b4] sm:$0xf]
  %v5782 = vld [vmem:[%s55 + $0x2b8] sm:$0xf]
  %v5783 = vld [vmem:[%s55 + $0x2bc] sm:$0xf]
  %v5784 = vld [vmem:[%s55 + $0x2c0] sm:$0xf]
  %v5785 = vld [vmem:[%s55 + $0x2c4] sm:$0xf]
  %v5786 = vld [vmem:[%s55 + $0x2c8] sm:$0xf]
  %v5787 = vld [vmem:[%s55 + $0x2cc] sm:$0xf]
  %v5788 = vld [vmem:[%s55 + $0x2d0] sm:$0xf]
  %v5789 = vld [vmem:[%s55 + $0x2d4] sm:$0xf]
  %v5790 = vld [vmem:[%s55 + $0x2d8] sm:$0xf]
  %v5791 = vld [vmem:[%s55 + $0x2dc] sm:$0xf]
  %v5792 = vld [vmem:[%s55 + $0x2e0] sm:$0xf]
  %v5793 = vld [vmem:[%s55 + $0x2e4] sm:$0xf]
  %v5794 = vld [vmem:[%s55 + $0x2e8] sm:$0xf]
  %v5795 = vld [vmem:[%s55 + $0x2ec] sm:$0xf]
  %v5796 = vld [vmem:[%s55 + $0x2f0] sm:$0xf]
  %v5797 = vld [vmem:[%s55 + $0x2f4] sm:$0xf]
  %v5798 = vld [vmem:[%s55 + $0x2f8] sm:$0xf]
  %v5799 = vld [vmem:[%s55 + $0x2fc] sm:$0xf]
  %v5800 = vld [vmem:[%s55 + $0x300] sm:$0xf]
  %v5801 = vld [vmem:[%s55 + $0x304] sm:$0xf]
  %v5802 = vld [vmem:[%s55 + $0x308] sm:$0xf]
  %v5803 = vld [vmem:[%s55 + $0x30c] sm:$0xf]
  %v5804 = vld [vmem:[%s55 + $0x310] sm:$0xf]
  %v5805 = vld [vmem:[%s55 + $0x314] sm:$0xf]
  %v5806 = vld [vmem:[%s55 + $0x318] sm:$0xf]
  %v5807 = vld [vmem:[%s55 + $0x31c] sm:$0xf]
  %v5808 = vld [vmem:[%s55 + $0x320] sm:$0xf]
  %v5809 = vld [vmem:[%s55 + $0x324] sm:$0xf]
  %v5810 = vld [vmem:[%s55 + $0x328] sm:$0xf]
  %v5811 = vld [vmem:[%s55 + $0x32c] sm:$0xf]
  %v5812 = vld [vmem:[%s55 + $0x330] sm:$0xf]
  %v5813 = vld [vmem:[%s55 + $0x334] sm:$0xf]
  %v5814 = vld [vmem:[%s55 + $0x338] sm:$0xf]
  %v5815 = vld [vmem:[%s55 + $0x33c] sm:$0xf]
  %v5816 = vld [vmem:[%s55 + $0x340] sm:$0xf]
  %v5817 = vld [vmem:[%s55 + $0x344] sm:$0xf]
  %v5818 = vld [vmem:[%s55 + $0x348] sm:$0xf]
  %v5819 = vld [vmem:[%s55 + $0x34c] sm:$0xf]
  %v5820 = vld [vmem:[%s55 + $0x350] sm:$0xf]
  %v5821 = vld [vmem:[%s55 + $0x354] sm:$0xf]
  %v5822 = vld [vmem:[%s55 + $0x358] sm:$0xf]
  %v5823 = vld [vmem:[%s55 + $0x35c] sm:$0xf]
  %v5824 = vld [vmem:[%s55 + $0x360] sm:$0xf]
  %v5825 = vld [vmem:[%s55 + $0x364] sm:$0xf]
  %v5826 = vld [vmem:[%s55 + $0x368] sm:$0xf]
  %v5827 = vld [vmem:[%s55 + $0x36c] sm:$0xf]
  %v5828 = vld [vmem:[%s55 + $0x370] sm:$0xf]
  %v5829 = vld [vmem:[%s55 + $0x374] sm:$0xf]
  %v5830 = vld [vmem:[%s55 + $0x378] sm:$0xf]
  %v5831 = vld [vmem:[%s55 + $0x37c] sm:$0xf]
  %v5832 = vld [vmem:[%s55 + $0x380] sm:$0xf]
  %v5833 = vld [vmem:[%s55 + $0x384] sm:$0xf]
  %v5834 = vld [vmem:[%s55 + $0x388] sm:$0xf]
  %v5835 = vld [vmem:[%s55 + $0x38c] sm:$0xf]
  %v5836 = vld [vmem:[%s55 + $0x390] sm:$0xf]
  %v5837 = vld [vmem:[%s55 + $0x394] sm:$0xf]
  %v5838 = vld [vmem:[%s55 + $0x398] sm:$0xf]
  %v5839 = vld [vmem:[%s55 + $0x39c] sm:$0xf]
  %v5840 = vld [vmem:[%s55 + $0x3a0] sm:$0xf]
  %v5841 = vld [vmem:[%s55 + $0x3a4] sm:$0xf]
  %v5842 = vld [vmem:[%s55 + $0x3a8] sm:$0xf]
  %v5843 = vld [vmem:[%s55 + $0x3ac] sm:$0xf]
  %v5844 = vld [vmem:[%s55 + $0x3b0] sm:$0xf]
  %v5845 = vld [vmem:[%s55 + $0x3b4] sm:$0xf]
  %v5846 = vld [vmem:[%s55 + $0x3b8] sm:$0xf]
  %v5847 = vld [vmem:[%s55 + $0x3bc] sm:$0xf]
  %v5848 = vld [vmem:[%s55 + $0x3c0] sm:$0xf]
  %v5849 = vld [vmem:[%s55 + $0x3c4] sm:$0xf]
  %v5850 = vld [vmem:[%s55 + $0x3c8] sm:$0xf]
  %v5851 = vld [vmem:[%s55 + $0x3cc] sm:$0xf]
  %v5852 = vld [vmem:[%s55 + $0x3d0] sm:$0xf]
  %v5853 = vld [vmem:[%s55 + $0x3d4] sm:$0xf]
  %v5854 = vld [vmem:[%s55 + $0x3d8] sm:$0xf]
  %v5855 = vld [vmem:[%s55 + $0x3dc] sm:$0xf]
  %v5856 = vld [vmem:[%s55 + $0x3e0] sm:$0xf]
  %v5857 = vld [vmem:[%s55 + $0x3e4] sm:$0xf]
  %v5858 = vld [vmem:[%s55 + $0x3e8] sm:$0xf]
  %v5859 = vld [vmem:[%s55 + $0x3ec] sm:$0xf]
  %v5860 = vld [vmem:[%s55 + $0x3f0] sm:$0xf]
  %v5861 = vld [vmem:[%s55 + $0x3f4] sm:$0xf]
  %v5862 = vld [vmem:[%s55 + $0x3f8] sm:$0xf]
  %v5863 = vld [vmem:[%s55 + $0x3fc] sm:$0xf]
  %v5864 = vld [vmem:[%s57] sm:$0x1]
  %v5866 = vlaneseq
  %v5867 = vshrl.u32 %v5866, 7
  %v5868 = vsub.s32 0, %v5867
  %v5869 = vrot.slane %v5864, %v5868
  %v6127 = vunpack.c.l.b16 %v5608
  %v6128 = vunpack.c.l.b16 %v5609
  %v6129 = vunpack.c.l.b16 %v5610
  %v6130 = vunpack.c.l.b16 %v5611
  %v6131 = vunpack.c.l.b16 %v5612
  %v6132 = vunpack.c.l.b16 %v5613
  %v6133 = vunpack.c.l.b16 %v5614
  %v6134 = vunpack.c.l.b16 %v5615
  %v6135 = vunpack.c.l.b16 %v5616
  %v6136 = vunpack.c.l.b16 %v5617
  %v6137 = vunpack.c.l.b16 %v5618
  %v6138 = vunpack.c.l.b16 %v5619
  %v6139 = vunpack.c.l.b16 %v5620
  %v6140 = vunpack.c.l.b16 %v5621
  %v6141 = vunpack.c.l.b16 %v5622
  %v6142 = vunpack.c.l.b16 %v5623
  %v6143 = vunpack.c.l.b16 %v5624
  %v6144 = vunpack.c.l.b16 %v5625
  %v6145 = vunpack.c.l.b16 %v5626
  %v6146 = vunpack.c.l.b16 %v5627
  %v6147 = vunpack.c.l.b16 %v5628
  %v6148 = vunpack.c.l.b16 %v5629
  %v6149 = vunpack.c.l.b16 %v5630
  %v6150 = vunpack.c.l.b16 %v5631
  %v6151 = vunpack.c.l.b16 %v5632
  %v6152 = vunpack.c.l.b16 %v5633
  %v6153 = vunpack.c.l.b16 %v5634
  %v6154 = vunpack.c.l.b16 %v5635
  %v6155 = vunpack.c.l.b16 %v5636
  %v6156 = vunpack.c.l.b16 %v5637
  %v6157 = vunpack.c.l.b16 %v5638
  %v6158 = vunpack.c.l.b16 %v5639
  %v6159 = vunpack.c.l.b16 %v5640
  %v6160 = vunpack.c.l.b16 %v5641
  %v6161 = vunpack.c.l.b16 %v5642
  %v6162 = vunpack.c.l.b16 %v5643
  %v6163 = vunpack.c.l.b16 %v5644
  %v6164 = vunpack.c.l.b16 %v5645
  %v6165 = vunpack.c.l.b16 %v5646
  %v6166 = vunpack.c.l.b16 %v5647
  %v6167 = vunpack.c.l.b16 %v5648
  %v6168 = vunpack.c.l.b16 %v5649
  %v6169 = vunpack.c.l.b16 %v5650
  %v6170 = vunpack.c.l.b16 %v5651
  %v6171 = vunpack.c.l.b16 %v5652
  %v6172 = vunpack.c.l.b16 %v5653
  %v6173 = vunpack.c.l.b16 %v5654
  %v6174 = vunpack.c.l.b16 %v5655
  %v6175 = vunpack.c.l.b16 %v5656
  %v6176 = vunpack.c.l.b16 %v5657
  %v6177 = vunpack.c.l.b16 %v5658
  %v6178 = vunpack.c.l.b16 %v5659
  %v6179 = vunpack.c.l.b16 %v5660
  %v6180 = vunpack.c.l.b16 %v5661
  %v6181 = vunpack.c.l.b16 %v5662
  %v6182 = vunpack.c.l.b16 %v5663
  %v6183 = vunpack.c.l.b16 %v5664
  %v6184 = vunpack.c.l.b16 %v5665
  %v6185 = vunpack.c.l.b16 %v5666
  %v6186 = vunpack.c.l.b16 %v5667
  %v6187 = vunpack.c.l.b16 %v5668
  %v6188 = vunpack.c.l.b16 %v5669
  %v6189 = vunpack.c.l.b16 %v5670
  %v6190 = vunpack.c.l.b16 %v5671
  %v6191 = vunpack.c.l.b16 %v5672
  %v6192 = vunpack.c.l.b16 %v5673
  %v6193 = vunpack.c.l.b16 %v5674
  %v6194 = vunpack.c.l.b16 %v5675
  %v6195 = vunpack.c.l.b16 %v5676
  %v6196 = vunpack.c.l.b16 %v5677
  %v6197 = vunpack.c.l.b16 %v5678
  %v6198 = vunpack.c.l.b16 %v5679
  %v6199 = vunpack.c.l.b16 %v5680
  %v6200 = vunpack.c.l.b16 %v5681
  %v6201 = vunpack.c.l.b16 %v5682
  %v6202 = vunpack.c.l.b16 %v5683
  %v6203 = vunpack.c.l.b16 %v5684
  %v6204 = vunpack.c.l.b16 %v5685
  %v6205 = vunpack.c.l.b16 %v5686
  %v6206 = vunpack.c.l.b16 %v5687
  %v6207 = vunpack.c.l.b16 %v5688
  %v6208 = vunpack.c.l.b16 %v5689
  %v6209 = vunpack.c.l.b16 %v5690
  %v6210 = vunpack.c.l.b16 %v5691
  %v6211 = vunpack.c.l.b16 %v5692
  %v6212 = vunpack.c.l.b16 %v5693
  %v6213 = vunpack.c.l.b16 %v5694
  %v6214 = vunpack.c.l.b16 %v5695
  %v6215 = vunpack.c.l.b16 %v5696
  %v6216 = vunpack.c.l.b16 %v5697
  %v6217 = vunpack.c.l.b16 %v5698
  %v6218 = vunpack.c.l.b16 %v5699
  %v6219 = vunpack.c.l.b16 %v5700
  %v6220 = vunpack.c.l.b16 %v5701
  %v6221 = vunpack.c.l.b16 %v5702
  %v6222 = vunpack.c.l.b16 %v5703
  %v6223 = vunpack.c.l.b16 %v5704
  %v6224 = vunpack.c.l.b16 %v5705
  %v6225 = vunpack.c.l.b16 %v5706
  %v6226 = vunpack.c.l.b16 %v5707
  %v6227 = vunpack.c.l.b16 %v5708
  %v6228 = vunpack.c.l.b16 %v5709
  %v6229 = vunpack.c.l.b16 %v5710
  %v6230 = vunpack.c.l.b16 %v5711
  %v6231 = vunpack.c.l.b16 %v5712
  %v6232 = vunpack.c.l.b16 %v5713
  %v6233 = vunpack.c.l.b16 %v5714
  %v6234 = vunpack.c.l.b16 %v5715
  %v6235 = vunpack.c.l.b16 %v5716
  %v6236 = vunpack.c.l.b16 %v5717
  %v6237 = vunpack.c.l.b16 %v5718
  %v6238 = vunpack.c.l.b16 %v5719
  %v6239 = vunpack.c.l.b16 %v5720
  %v6240 = vunpack.c.l.b16 %v5721
  %v6241 = vunpack.c.l.b16 %v5722
  %v6242 = vunpack.c.l.b16 %v5723
  %v6243 = vunpack.c.l.b16 %v5724
  %v6244 = vunpack.c.l.b16 %v5725
  %v6245 = vunpack.c.l.b16 %v5726
  %v6246 = vunpack.c.l.b16 %v5727
  %v6247 = vunpack.c.l.b16 %v5728
  %v6248 = vunpack.c.l.b16 %v5729
  %v6249 = vunpack.c.l.b16 %v5730
  %v6250 = vunpack.c.l.b16 %v5731
  %v6251 = vunpack.c.l.b16 %v5732
  %v6252 = vunpack.c.l.b16 %v5733
  %v6253 = vunpack.c.l.b16 %v5734
  %v6254 = vunpack.c.l.b16 %v5735
  %v6255 = vunpack.c.l.b16 %v5736
  %v6256 = vunpack.c.l.b16 %v5737
  %v6257 = vunpack.c.l.b16 %v5738
  %v6258 = vunpack.c.l.b16 %v5739
  %v6259 = vunpack.c.l.b16 %v5740
  %v6260 = vunpack.c.l.b16 %v5741
  %v6261 = vunpack.c.l.b16 %v5742
  %v6262 = vunpack.c.l.b16 %v5743
  %v6263 = vunpack.c.l.b16 %v5744
  %v6264 = vunpack.c.l.b16 %v5745
  %v6265 = vunpack.c.l.b16 %v5746
  %v6266 = vunpack.c.l.b16 %v5747
  %v6267 = vunpack.c.l.b16 %v5748
  %v6268 = vunpack.c.l.b16 %v5749
  %v6269 = vunpack.c.l.b16 %v5750
  %v6270 = vunpack.c.l.b16 %v5751
  %v6271 = vunpack.c.l.b16 %v5752
  %v6272 = vunpack.c.l.b16 %v5753
  %v6273 = vunpack.c.l.b16 %v5754
  %v6274 = vunpack.c.l.b16 %v5755
  %v6275 = vunpack.c.l.b16 %v5756
  %v6276 = vunpack.c.l.b16 %v5757
  %v6277 = vunpack.c.l.b16 %v5758
  %v6278 = vunpack.c.l.b16 %v5759
  %v6279 = vunpack.c.l.b16 %v5760
  %v6280 = vunpack.c.l.b16 %v5761
  %v6281 = vunpack.c.l.b16 %v5762
  %v6282 = vunpack.c.l.b16 %v5763
  %v6283 = vunpack.c.l.b16 %v5764
  %v6284 = vunpack.c.l.b16 %v5765
  %v6285 = vunpack.c.l.b16 %v5766
  %v6286 = vunpack.c.l.b16 %v5767
  %v6287 = vunpack.c.l.b16 %v5768
  %v6288 = vunpack.c.l.b16 %v5769
  %v6289 = vunpack.c.l.b16 %v5770
  %v6290 = vunpack.c.l.b16 %v5771
  %v6291 = vunpack.c.l.b16 %v5772
  %v6292 = vunpack.c.l.b16 %v5773
  %v6293 = vunpack.c.l.b16 %v5774
  %v6294 = vunpack.c.l.b16 %v5775
  %v6295 = vunpack.c.l.b16 %v5776
  %v6296 = vunpack.c.l.b16 %v5777
  %v6297 = vunpack.c.l.b16 %v5778
  %v6298 = vunpack.c.l.b16 %v5779
  %v6299 = vunpack.c.l.b16 %v5780
  %v6300 = vunpack.c.l.b16 %v5781
  %v6301 = vunpack.c.l.b16 %v5782
  %v6302 = vunpack.c.l.b16 %v5783
  %v6303 = vunpack.c.l.b16 %v5784
  %v6304 = vunpack.c.l.b16 %v5785
  %v6305 = vunpack.c.l.b16 %v5786
  %v6306 = vunpack.c.l.b16 %v5787
  %v6307 = vunpack.c.l.b16 %v5788
  %v6308 = vunpack.c.l.b16 %v5789
  %v6309 = vunpack.c.l.b16 %v5790
  %v6310 = vunpack.c.l.b16 %v5791
  %v6311 = vunpack.c.l.b16 %v5792
  %v6312 = vunpack.c.l.b16 %v5793
  %v6313 = vunpack.c.l.b16 %v5794
  %v6314 = vunpack.c.l.b16 %v5795
  %v6315 = vunpack.c.l.b16 %v5796
  %v6316 = vunpack.c.l.b16 %v5797
  %v6317 = vunpack.c.l.b16 %v5798
  %v6318 = vunpack.c.l.b16 %v5799
  %v6319 = vunpack.c.l.b16 %v5800
  %v6320 = vunpack.c.l.b16 %v5801
  %v6321 = vunpack.c.l.b16 %v5802
  %v6322 = vunpack.c.l.b16 %v5803
  %v6323 = vunpack.c.l.b16 %v5804
  %v6324 = vunpack.c.l.b16 %v5805
  %v6325 = vunpack.c.l.b16 %v5806
  %v6326 = vunpack.c.l.b16 %v5807
  %v6327 = vunpack.c.l.b16 %v5808
  %v6328 = vunpack.c.l.b16 %v5809
  %v6329 = vunpack.c.l.b16 %v5810
  %v6330 = vunpack.c.l.b16 %v5811
  %v6331 = vunpack.c.l.b16 %v5812
  %v6332 = vunpack.c.l.b16 %v5813
  %v6333 = vunpack.c.l.b16 %v5814
  %v6334 = vunpack.c.l.b16 %v5815
  %v6335 = vunpack.c.l.b16 %v5816
  %v6336 = vunpack.c.l.b16 %v5817
  %v6337 = vunpack.c.l.b16 %v5818
  %v6338 = vunpack.c.l.b16 %v5819
  %v6339 = vunpack.c.l.b16 %v5820
  %v6340 = vunpack.c.l.b16 %v5821
  %v6341 = vunpack.c.l.b16 %v5822
  %v6342 = vunpack.c.l.b16 %v5823
  %v6343 = vunpack.c.l.b16 %v5824
  %v6344 = vunpack.c.l.b16 %v5825
  %v6345 = vunpack.c.l.b16 %v5826
  %v6346 = vunpack.c.l.b16 %v5827
  %v6347 = vunpack.c.l.b16 %v5828
  %v6348 = vunpack.c.l.b16 %v5829
  %v6349 = vunpack.c.l.b16 %v5830
  %v6350 = vunpack.c.l.b16 %v5831
  %v6351 = vunpack.c.l.b16 %v5832
  %v6352 = vunpack.c.l.b16 %v5833
  %v6353 = vunpack.c.l.b16 %v5834
  %v6354 = vunpack.c.l.b16 %v5835
  %v6355 = vunpack.c.l.b16 %v5836
  %v6356 = vunpack.c.l.b16 %v5837
  %v6357 = vunpack.c.l.b16 %v5838
  %v6358 = vunpack.c.l.b16 %v5839
  %v6359 = vunpack.c.l.b16 %v5840
  %v6360 = vunpack.c.l.b16 %v5841
  %v6361 = vunpack.c.l.b16 %v5842
  %v6362 = vunpack.c.l.b16 %v5843
  %v6363 = vunpack.c.l.b16 %v5844
  %v6364 = vunpack.c.l.b16 %v5845
  %v6365 = vunpack.c.l.b16 %v5846
  %v6366 = vunpack.c.l.b16 %v5847
  %v6367 = vunpack.c.l.b16 %v5848
  %v6368 = vunpack.c.l.b16 %v5849
  %v6369 = vunpack.c.l.b16 %v5850
  %v6370 = vunpack.c.l.b16 %v5851
  %v6371 = vunpack.c.l.b16 %v5852
  %v6372 = vunpack.c.l.b16 %v5853
  %v6373 = vunpack.c.l.b16 %v5854
  %v6374 = vunpack.c.l.b16 %v5855
  %v6375 = vunpack.c.l.b16 %v5856
  %v6376 = vunpack.c.l.b16 %v5857
  %v6377 = vunpack.c.l.b16 %v5858
  %v6378 = vunpack.c.l.b16 %v5859
  %v6379 = vunpack.c.l.b16 %v5860
  %v6380 = vunpack.c.l.b16 %v5861
  %v6381 = vunpack.c.l.b16 %v5862
  %v6382 = vunpack.c.l.b16 %v5863
  %v6383 = vpack.c.b16 %v6128, %v6127
  %v6384 = vpack.c.b16 %v6130, %v6129
  %v6385 = vpack.c.b16 %v6132, %v6131
  %v6386 = vpack.c.b16 %v6134, %v6133
  %v6387 = vpack.c.b16 %v6136, %v6135
  %v6388 = vpack.c.b16 %v6138, %v6137
  %v6389 = vpack.c.b16 %v6140, %v6139
  %v6390 = vpack.c.b16 %v6142, %v6141
  %v6391 = vpack.c.b16 %v6144, %v6143
  %v6392 = vpack.c.b16 %v6146, %v6145
  %v6393 = vpack.c.b16 %v6148, %v6147
  %v6394 = vpack.c.b16 %v6150, %v6149
  %v6395 = vpack.c.b16 %v6152, %v6151
  %v6396 = vpack.c.b16 %v6154, %v6153
  %v6397 = vpack.c.b16 %v6156, %v6155
  %v6398 = vpack.c.b16 %v6158, %v6157
  %v6399 = vpack.c.b16 %v6160, %v6159
  %v6400 = vpack.c.b16 %v6162, %v6161
  %v6401 = vpack.c.b16 %v6164, %v6163
  %v6402 = vpack.c.b16 %v6166, %v6165
  %v6403 = vpack.c.b16 %v6168, %v6167
  %v6404 = vpack.c.b16 %v6170, %v6169
  %v6405 = vpack.c.b16 %v6172, %v6171
  %v6406 = vpack.c.b16 %v6174, %v6173
  %v6407 = vpack.c.b16 %v6176, %v6175
  %v6408 = vpack.c.b16 %v6178, %v6177
  %v6409 = vpack.c.b16 %v6180, %v6179
  %v6410 = vpack.c.b16 %v6182, %v6181
  %v6411 = vpack.c.b16 %v6184, %v6183
  %v6412 = vpack.c.b16 %v6186, %v6185
  %v6413 = vpack.c.b16 %v6188, %v6187
  %v6414 = vpack.c.b16 %v6190, %v6189
  %v6415 = vpack.c.b16 %v6192, %v6191
  %v6416 = vpack.c.b16 %v6194, %v6193
  %v6417 = vpack.c.b16 %v6196, %v6195
  %v6418 = vpack.c.b16 %v6198, %v6197
  %v6419 = vpack.c.b16 %v6200, %v6199
  %v6420 = vpack.c.b16 %v6202, %v6201
  %v6421 = vpack.c.b16 %v6204, %v6203
  %v6422 = vpack.c.b16 %v6206, %v6205
  %v6423 = vpack.c.b16 %v6208, %v6207
  %v6424 = vpack.c.b16 %v6210, %v6209
  %v6425 = vpack.c.b16 %v6212, %v6211
  %v6426 = vpack.c.b16 %v6214, %v6213
  %v6427 = vpack.c.b16 %v6216, %v6215
  %v6428 = vpack.c.b16 %v6218, %v6217
  %v6429 = vpack.c.b16 %v6220, %v6219
  %v6430 = vpack.c.b16 %v6222, %v6221
  %v6431 = vpack.c.b16 %v6224, %v6223
  %v6432 = vpack.c.b16 %v6226, %v6225
  %v6433 = vpack.c.b16 %v6228, %v6227
  %v6434 = vpack.c.b16 %v6230, %v6229
  %v6435 = vpack.c.b16 %v6232, %v6231
  %v6436 = vpack.c.b16 %v6234, %v6233
  %v6437 = vpack.c.b16 %v6236, %v6235
  %v6438 = vpack.c.b16 %v6238, %v6237
  %v6439 = vpack.c.b16 %v6240, %v6239
  %v6440 = vpack.c.b16 %v6242, %v6241
  %v6441 = vpack.c.b16 %v6244, %v6243
  %v6442 = vpack.c.b16 %v6246, %v6245
  %v6443 = vpack.c.b16 %v6248, %v6247
  %v6444 = vpack.c.b16 %v6250, %v6249
  %v6445 = vpack.c.b16 %v6252, %v6251
  %v6446 = vpack.c.b16 %v6254, %v6253
  %v6447 = vpack.c.b16 %v6256, %v6255
  %v6448 = vpack.c.b16 %v6258, %v6257
  %v6449 = vpack.c.b16 %v6260, %v6259
  %v6450 = vpack.c.b16 %v6262, %v6261
  %v6451 = vpack.c.b16 %v6264, %v6263
  %v6452 = vpack.c.b16 %v6266, %v6265
  %v6453 = vpack.c.b16 %v6268, %v6267
  %v6454 = vpack.c.b16 %v6270, %v6269
  %v6455 = vpack.c.b16 %v6272, %v6271
  %v6456 = vpack.c.b16 %v6274, %v6273
  %v6457 = vpack.c.b16 %v6276, %v6275
  %v6458 = vpack.c.b16 %v6278, %v6277
  %v6459 = vpack.c.b16 %v6280, %v6279
  %v6460 = vpack.c.b16 %v6282, %v6281
  %v6461 = vpack.c.b16 %v6284, %v6283
  %v6462 = vpack.c.b16 %v6286, %v6285
  %v6463 = vpack.c.b16 %v6288, %v6287
  %v6464 = vpack.c.b16 %v6290, %v6289
  %v6465 = vpack.c.b16 %v6292, %v6291
  %v6466 = vpack.c.b16 %v6294, %v6293
  %v6467 = vpack.c.b16 %v6296, %v6295
  %v6468 = vpack.c.b16 %v6298, %v6297
  %v6469 = vpack.c.b16 %v6300, %v6299
  %v6470 = vpack.c.b16 %v6302, %v6301
  %v6471 = vpack.c.b16 %v6304, %v6303
  %v6472 = vpack.c.b16 %v6306, %v6305
  %v6473 = vpack.c.b16 %v6308, %v6307
  %v6474 = vpack.c.b16 %v6310, %v6309
  %v6475 = vpack.c.b16 %v6312, %v6311
  %v6476 = vpack.c.b16 %v6314, %v6313
  %v6477 = vpack.c.b16 %v6316, %v6315
  %v6478 = vpack.c.b16 %v6318, %v6317
  %v6479 = vpack.c.b16 %v6320, %v6319
  %v6480 = vpack.c.b16 %v6322, %v6321
  %v6481 = vpack.c.b16 %v6324, %v6323
  %v6482 = vpack.c.b16 %v6326, %v6325
  %v6483 = vpack.c.b16 %v6328, %v6327
  %v6484 = vpack.c.b16 %v6330, %v6329
  %v6485 = vpack.c.b16 %v6332, %v6331
  %v6486 = vpack.c.b16 %v6334, %v6333
  %v6487 = vpack.c.b16 %v6336, %v6335
  %v6488 = vpack.c.b16 %v6338, %v6337
  %v6489 = vpack.c.b16 %v6340, %v6339
  %v6490 = vpack.c.b16 %v6342, %v6341
  %v6491 = vpack.c.b16 %v6344, %v6343
  %v6492 = vpack.c.b16 %v6346, %v6345
  %v6493 = vpack.c.b16 %v6348, %v6347
  %v6494 = vpack.c.b16 %v6350, %v6349
  %v6495 = vpack.c.b16 %v6352, %v6351
  %v6496 = vpack.c.b16 %v6354, %v6353
  %v6497 = vpack.c.b16 %v6356, %v6355
  %v6498 = vpack.c.b16 %v6358, %v6357
  %v6499 = vpack.c.b16 %v6360, %v6359
  %v6500 = vpack.c.b16 %v6362, %v6361
  %v6501 = vpack.c.b16 %v6364, %v6363
  %v6502 = vpack.c.b16 %v6366, %v6365
  %v6503 = vpack.c.b16 %v6368, %v6367
  %v6504 = vpack.c.b16 %v6370, %v6369
  %v6505 = vpack.c.b16 %v6372, %v6371
  %v6506 = vpack.c.b16 %v6374, %v6373
  %v6507 = vpack.c.b16 %v6376, %v6375
  %v6508 = vpack.c.b16 %v6378, %v6377
  %v6509 = vpack.c.b16 %v6380, %v6379
  %v6510 = vpack.c.b16 %v6382, %v6381
  %6639 = vmatprep.subr.bf16.mxu0 0
  %6640 = vmatpush1.bf16.msra.mxu0 %v6390
  %6641 = vmatprep.subr.bf16.mxu0 0
  %6642 = vmatpush1.bf16.msra.mxu0 %v6389
  %6643 = vmatprep.subr.bf16.mxu0 0
  %6644 = vmatpush1.bf16.msra.mxu0 %v6388
  %6645 = vmatprep.subr.bf16.mxu0 0
  %6646 = vmatpush1.bf16.msra.mxu0 %v6387
  %6647 = vmatprep.subr.bf16.mxu0 0
  %6648 = vmatpush1.bf16.msra.mxu0 %v6386
  %6649 = vmatprep.subr.bf16.mxu0 0
  %6650 = vmatpush1.bf16.msra.mxu0 %v6385
  %6651 = vmatprep.subr.bf16.mxu0 0
  %6652 = vmatpush1.bf16.msra.mxu0 %v6384
  %6653 = vmatprep.subr.bf16.mxu0 0
  %6654 = vmatpush1.bf16.msra.mxu0 %v6383
  %6655 = vmatprep.subr.bf16.mxu0 0
  %6656 = vmatpush2.bf16.msra.mxu0 %v6398
  %6657 = vmatprep.subr.bf16.mxu0 0
  %6658 = vmatpush2.bf16.msra.mxu0 %v6397
  %6659 = vmatprep.subr.bf16.mxu0 0
  %6660 = vmatpush2.bf16.msra.mxu0 %v6396
  %6661 = vmatprep.subr.bf16.mxu0 0
  %6662 = vmatpush2.bf16.msra.mxu0 %v6395
  %6663 = vmatprep.subr.bf16.mxu0 0
  %6664 = vmatpush2.bf16.msra.mxu0 %v6394
  %6665 = vmatprep.subr.bf16.mxu0 0
  %6666 = vmatpush2.bf16.msra.mxu0 %v6393
  %6667 = vmatprep.subr.bf16.mxu0 0
  %6668 = vmatpush2.bf16.msra.mxu0 %v6392
  %6669 = vmatprep.subr.bf16.mxu0 0
  %6670 = vmatpush2.bf16.msra.mxu0 %v6391
  %6671 = vmatprep.mubr.bf16.mxu0 %v5593
  %6672 = vmatmul.mubr.bf16.gmra.mxu0 %v5592
  %v6673 = vpop.f32.mrf.mxu0
  %v6674 = vadd.f32 %v5869, %v6673
  %v6675 = vpop.f32.mrf.mxu0
  %v6676 = vpop.f32.mrf.mxu0
  %v6677 = vadd.f32 %v5869, %v6676
  %v6678 = vpop.f32.mrf.mxu0
  %6679 = vdwg.mxu0
  %6680 = vmatprep.subr.bf16.mxu0 0
  %6681 = vmatpush1.bf16.msra.mxu0 %v6406
  %6682 = vmatprep.subr.bf16.mxu0 0
  %6683 = vmatpush1.bf16.msra.mxu0 %v6405
  %6684 = vmatprep.subr.bf16.mxu0 0
  %6685 = vmatpush1.bf16.msra.mxu0 %v6404
  %6686 = vmatprep.subr.bf16.mxu0 0
  %6687 = vmatpush1.bf16.msra.mxu0 %v6403
  %6688 = vmatprep.subr.bf16.mxu0 0
  %6689 = vmatpush1.bf16.msra.mxu0 %v6402
  %6690 = vmatprep.subr.bf16.mxu0 0
  %6691 = vmatpush1.bf16.msra.mxu0 %v6401
  %6692 = vmatprep.subr.bf16.mxu0 0
  %6693 = vmatpush1.bf16.msra.mxu0 %v6400
  %6694 = vmatprep.subr.bf16.mxu0 0
  %6695 = vmatpush1.bf16.msra.mxu0 %v6399
  %6696 = vmatprep.subr.bf16.mxu0 0
  %6697 = vmatpush2.bf16.msra.mxu0 %v6414
  %6698 = vmatprep.subr.bf16.mxu0 0
  %6699 = vmatpush2.bf16.msra.mxu0 %v6413
  %6700 = vmatprep.subr.bf16.mxu0 0
  %6701 = vmatpush2.bf16.msra.mxu0 %v6412
  %6702 = vmatprep.subr.bf16.mxu0 0
  %6703 = vmatpush2.bf16.msra.mxu0 %v6411
  %6704 = vmatprep.subr.bf16.mxu0 0
  %6705 = vmatpush2.bf16.msra.mxu0 %v6410
  %6706 = vmatprep.subr.bf16.mxu0 0
  %6707 = vmatpush2.bf16.msra.mxu0 %v6409
  %6708 = vmatprep.subr.bf16.mxu0 0
  %6709 = vmatpush2.bf16.msra.mxu0 %v6408
  %6710 = vmatprep.subr.bf16.mxu0 0
  %6711 = vmatpush2.bf16.msra.mxu0 %v6407
  %6712 = vmatprep.mubr.bf16.mxu0 %v5595
  %6713 = vmatmul.mubr.bf16.gmra.mxu0 %v5594
  %v6714 = vpop.f32.mrf.mxu0
  %v6715 = vadd.f32 %v6674, %v6714
  %v6716 = vpop.f32.mrf.mxu0
  %v6717 = vpop.f32.mrf.mxu0
  %v6718 = vadd.f32 %v6677, %v6717
  %v6719 = vpop.f32.mrf.mxu0
  %6720 = vdwg.mxu0
  %6721 = vmatprep.subr.bf16.mxu0 0
  %6722 = vmatpush1.bf16.msra.mxu0 %v6422
  %6723 = vmatprep.subr.bf16.mxu0 0
  %6724 = vmatpush1.bf16.msra.mxu0 %v6421
  %6725 = vmatprep.subr.bf16.mxu0 0
  %6726 = vmatpush1.bf16.msra.mxu0 %v6420
  %6727 = vmatprep.subr.bf16.mxu0 0
  %6728 = vmatpush1.bf16.msra.mxu0 %v6419
  %6729 = vmatprep.subr.bf16.mxu0 0
  %6730 = vmatpush1.bf16.msra.mxu0 %v6418
  %6731 = vmatprep.subr.bf16.mxu0 0
  %6732 = vmatpush1.bf16.msra.mxu0 %v6417
  %6733 = vmatprep.subr.bf16.mxu0 0
  %6734 = vmatpush1.bf16.msra.mxu0 %v6416
  %6735 = vmatprep.subr.bf16.mxu0 0
  %6736 = vmatpush1.bf16.msra.mxu0 %v6415
  %6737 = vmatprep.subr.bf16.mxu0 0
  %6738 = vmatpush2.bf16.msra.mxu0 %v6430
  %6739 = vmatprep.subr.bf16.mxu0 0
  %6740 = vmatpush2.bf16.msra.mxu0 %v6429
  %6741 = vmatprep.subr.bf16.mxu0 0
  %6742 = vmatpush2.bf16.msra.mxu0 %v6428
  %6743 = vmatprep.subr.bf16.mxu0 0
  %6744 = vmatpush2.bf16.msra.mxu0 %v6427
  %6745 = vmatprep.subr.bf16.mxu0 0
  %6746 = vmatpush2.bf16.msra.mxu0 %v6426
  %6747 = vmatprep.subr.bf16.mxu0 0
  %6748 = vmatpush2.bf16.msra.mxu0 %v6425
  %6749 = vmatprep.subr.bf16.mxu0 0
  %6750 = vmatpush2.bf16.msra.mxu0 %v6424
  %6751 = vmatprep.subr.bf16.mxu0 0
  %6752 = vmatpush2.bf16.msra.mxu0 %v6423
  %6753 = vmatprep.mubr.bf16.mxu0 %v5597
  %6754 = vmatmul.mubr.bf16.gmra.mxu0 %v5596
  %v6755 = vpop.f32.mrf.mxu0
  %v6756 = vadd.f32 %v6715, %v6755
  %v6757 = vpop.f32.mrf.mxu0
  %v6758 = vpop.f32.mrf.mxu0
  %v6759 = vadd.f32 %v6718, %v6758
  %v6760 = vpop.f32.mrf.mxu0
  %6761 = vdwg.mxu0
  %6762 = vmatprep.subr.bf16.mxu0 0
  %6763 = vmatpush1.bf16.msra.mxu0 %v6438
  %6764 = vmatprep.subr.bf16.mxu0 0
  %6765 = vmatpush1.bf16.msra.mxu0 %v6437
  %6766 = vmatprep.subr.bf16.mxu0 0
  %6767 = vmatpush1.bf16.msra.mxu0 %v6436
  %6768 = vmatprep.subr.bf16.mxu0 0
  %6769 = vmatpush1.bf16.msra.mxu0 %v6435
  %6770 = vmatprep.subr.bf16.mxu0 0
  %6771 = vmatpush1.bf16.msra.mxu0 %v6434
  %6772 = vmatprep.subr.bf16.mxu0 0
  %6773 = vmatpush1.bf16.msra.mxu0 %v6433
  %6774 = vmatprep.subr.bf16.mxu0 0
  %6775 = vmatpush1.bf16.msra.mxu0 %v6432
  %6776 = vmatprep.subr.bf16.mxu0 0
  %6777 = vmatpush1.bf16.msra.mxu0 %v6431
  %6778 = vmatprep.subr.bf16.mxu0 0
  %6779 = vmatpush2.bf16.msra.mxu0 %v6446
  %6780 = vmatprep.subr.bf16.mxu0 0
  %6781 = vmatpush2.bf16.msra.mxu0 %v6445
  %6782 = vmatprep.subr.bf16.mxu0 0
  %6783 = vmatpush2.bf16.msra.mxu0 %v6444
  %6784 = vmatprep.subr.bf16.mxu0 0
  %6785 = vmatpush2.bf16.msra.mxu0 %v6443
  %6786 = vmatprep.subr.bf16.mxu0 0
  %6787 = vmatpush2.bf16.msra.mxu0 %v6442
  %6788 = vmatprep.subr.bf16.mxu0 0
  %6789 = vmatpush2.bf16.msra.mxu0 %v6441
  %6790 = vmatprep.subr.bf16.mxu0 0
  %6791 = vmatpush2.bf16.msra.mxu0 %v6440
  %6792 = vmatprep.subr.bf16.mxu0 0
  %6793 = vmatpush2.bf16.msra.mxu0 %v6439
  %6794 = vmatprep.mubr.bf16.mxu0 %v5599
  %6795 = vmatmul.mubr.bf16.gmra.mxu0 %v5598
  %v6796 = vpop.f32.mrf.mxu0
  %v6797 = vadd.f32 %v6756, %v6796
  %v6798 = vpop.f32.mrf.mxu0
  %v6799 = vpop.f32.mrf.mxu0
  %v6800 = vadd.f32 %v6759, %v6799
  %v6801 = vpop.f32.mrf.mxu0
  %6802 = vdwg.mxu0
  %6803 = vmatprep.subr.bf16.mxu0 0
  %6804 = vmatpush1.bf16.msra.mxu0 %v6454
  %6805 = vmatprep.subr.bf16.mxu0 0
  %6806 = vmatpush1.bf16.msra.mxu0 %v6453
  %6807 = vmatprep.subr.bf16.mxu0 0
  %6808 = vmatpush1.bf16.msra.mxu0 %v6452
  %6809 = vmatprep.subr.bf16.mxu0 0
  %6810 = vmatpush1.bf16.msra.mxu0 %v6451
  %6811 = vmatprep.subr.bf16.mxu0 0
  %6812 = vmatpush1.bf16.msra.mxu0 %v6450
  %6813 = vmatprep.subr.bf16.mxu0 0
  %6814 = vmatpush1.bf16.msra.mxu0 %v6449
  %6815 = vmatprep.subr.bf16.mxu0 0
  %6816 = vmatpush1.bf16.msra.mxu0 %v6448
  %6817 = vmatprep.subr.bf16.mxu0 0
  %6818 = vmatpush1.bf16.msra.mxu0 %v6447
  %6819 = vmatprep.subr.bf16.mxu0 0
  %6820 = vmatpush2.bf16.msra.mxu0 %v6462
  %6821 = vmatprep.subr.bf16.mxu0 0
  %6822 = vmatpush2.bf16.msra.mxu0 %v6461
  %6823 = vmatprep.subr.bf16.mxu0 0
  %6824 = vmatpush2.bf16.msra.mxu0 %v6460
  %6825 = vmatprep.subr.bf16.mxu0 0
  %6826 = vmatpush2.bf16.msra.mxu0 %v6459
  %6827 = vmatprep.subr.bf16.mxu0 0
  %6828 = vmatpush2.bf16.msra.mxu0 %v6458
  %6829 = vmatprep.subr.bf16.mxu0 0
  %6830 = vmatpush2.bf16.msra.mxu0 %v6457
  %6831 = vmatprep.subr.bf16.mxu0 0
  %6832 = vmatpush2.bf16.msra.mxu0 %v6456
  %6833 = vmatprep.subr.bf16.mxu0 0
  %6834 = vmatpush2.bf16.msra.mxu0 %v6455
  %6835 = vmatprep.mubr.bf16.mxu0 %v5601
  %6836 = vmatmul.mubr.bf16.gmra.mxu0 %v5600
  %v6837 = vpop.f32.mrf.mxu0
  %v6838 = vadd.f32 %v6797, %v6837
  %v6839 = vpop.f32.mrf.mxu0
  %v6840 = vpop.f32.mrf.mxu0
  %v6841 = vadd.f32 %v6800, %v6840
  %v6842 = vpop.f32.mrf.mxu0
  %6843 = vdwg.mxu0
  %6844 = vmatprep.subr.bf16.mxu0 0
  %6845 = vmatpush1.bf16.msra.mxu0 %v6470
  %6846 = vmatprep.subr.bf16.mxu0 0
  %6847 = vmatpush1.bf16.msra.mxu0 %v6469
  %6848 = vmatprep.subr.bf16.mxu0 0
  %6849 = vmatpush1.bf16.msra.mxu0 %v6468
  %6850 = vmatprep.subr.bf16.mxu0 0
  %6851 = vmatpush1.bf16.msra.mxu0 %v6467
  %6852 = vmatprep.subr.bf16.mxu0 0
  %6853 = vmatpush1.bf16.msra.mxu0 %v6466
  %6854 = vmatprep.subr.bf16.mxu0 0
  %6855 = vmatpush1.bf16.msra.mxu0 %v6465
  %6856 = vmatprep.subr.bf16.mxu0 0
  %6857 = vmatpush1.bf16.msra.mxu0 %v6464
  %6858 = vmatprep.subr.bf16.mxu0 0
  %6859 = vmatpush1.bf16.msra.mxu0 %v6463
  %6860 = vmatprep.subr.bf16.mxu0 0
  %6861 = vmatpush2.bf16.msra.mxu0 %v6478
  %6862 = vmatprep.subr.bf16.mxu0 0
  %6863 = vmatpush2.bf16.msra.mxu0 %v6477
  %6864 = vmatprep.subr.bf16.mxu0 0
  %6865 = vmatpush2.bf16.msra.mxu0 %v6476
  %6866 = vmatprep.subr.bf16.mxu0 0
  %6867 = vmatpush2.bf16.msra.mxu0 %v6475
  %6868 = vmatprep.subr.bf16.mxu0 0
  %6869 = vmatpush2.bf16.msra.mxu0 %v6474
  %6870 = vmatprep.subr.bf16.mxu0 0
  %6871 = vmatpush2.bf16.msra.mxu0 %v6473
  %6872 = vmatprep.subr.bf16.mxu0 0
  %6873 = vmatpush2.bf16.msra.mxu0 %v6472
  %6874 = vmatprep.subr.bf16.mxu0 0
  %6875 = vmatpush2.bf16.msra.mxu0 %v6471
  %6876 = vmatprep.mubr.bf16.mxu0 %v5603
  %6877 = vmatmul.mubr.bf16.gmra.mxu0 %v5602
  %v6878 = vpop.f32.mrf.mxu0
  %v6879 = vadd.f32 %v6838, %v6878
  %v6880 = vpop.f32.mrf.mxu0
  %v6881 = vpop.f32.mrf.mxu0
  %v6882 = vadd.f32 %v6841, %v6881
  %v6883 = vpop.f32.mrf.mxu0
  %6884 = vdwg.mxu0
  %6885 = vmatprep.subr.bf16.mxu0 0
  %6886 = vmatpush1.bf16.msra.mxu0 %v6486
  %6887 = vmatprep.subr.bf16.mxu0 0
  %6888 = vmatpush1.bf16.msra.mxu0 %v6485
  %6889 = vmatprep.subr.bf16.mxu0 0
  %6890 = vmatpush1.bf16.msra.mxu0 %v6484
  %6891 = vmatprep.subr.bf16.mxu0 0
  %6892 = vmatpush1.bf16.msra.mxu0 %v6483
  %6893 = vmatprep.subr.bf16.mxu0 0
  %6894 = vmatpush1.bf16.msra.mxu0 %v6482
  %6895 = vmatprep.subr.bf16.mxu0 0
  %6896 = vmatpush1.bf16.msra.mxu0 %v6481
  %6897 = vmatprep.subr.bf16.mxu0 0
  %6898 = vmatpush1.bf16.msra.mxu0 %v6480
  %6899 = vmatprep.subr.bf16.mxu0 0
  %6900 = vmatpush1.bf16.msra.mxu0 %v6479
  %6901 = vmatprep.subr.bf16.mxu0 0
  %6902 = vmatpush2.bf16.msra.mxu0 %v6494
  %6903 = vmatprep.subr.bf16.mxu0 0
  %6904 = vmatpush2.bf16.msra.mxu0 %v6493
  %6905 = vmatprep.subr.bf16.mxu0 0
  %6906 = vmatpush2.bf16.msra.mxu0 %v6492
  %6907 = vmatprep.subr.bf16.mxu0 0
  %6908 = vmatpush2.bf16.msra.mxu0 %v6491
  %6909 = vmatprep.subr.bf16.mxu0 0
  %6910 = vmatpush2.bf16.msra.mxu0 %v6490
  %6911 = vmatprep.subr.bf16.mxu0 0
  %6912 = vmatpush2.bf16.msra.mxu0 %v6489
  %6913 = vmatprep.subr.bf16.mxu0 0
  %6914 = vmatpush2.bf16.msra.mxu0 %v6488
  %6915 = vmatprep.subr.bf16.mxu0 0
  %6916 = vmatpush2.bf16.msra.mxu0 %v6487
  %6917 = vmatprep.mubr.bf16.mxu0 %v5605
  %6918 = vmatmul.mubr.bf16.gmra.mxu0 %v5604
  %v6919 = vpop.f32.mrf.mxu0
  %v6920 = vadd.f32 %v6879, %v6919
  %v6921 = vpop.f32.mrf.mxu0
  %v6922 = vpop.f32.mrf.mxu0
  %v6923 = vadd.f32 %v6882, %v6922
  %v6924 = vpop.f32.mrf.mxu0
  %6925 = vdwg.mxu0
  %6926 = vmatprep.subr.bf16.mxu0 0
  %6927 = vmatpush1.bf16.msra.mxu0 %v6502
  %6928 = vmatprep.subr.bf16.mxu0 0
  %6929 = vmatpush1.bf16.msra.mxu0 %v6501
  %6930 = vmatprep.subr.bf16.mxu0 0
  %6931 = vmatpush1.bf16.msra.mxu0 %v6500
  %6932 = vmatprep.subr.bf16.mxu0 0
  %6933 = vmatpush1.bf16.msra.mxu0 %v6499
  %6934 = vmatprep.subr.bf16.mxu0 0
  %6935 = vmatpush1.bf16.msra.mxu0 %v6498
  %6936 = vmatprep.subr.bf16.mxu0 0
  %6937 = vmatpush1.bf16.msra.mxu0 %v6497
  %6938 = vmatprep.subr.bf16.mxu0 0
  %6939 = vmatpush1.bf16.msra.mxu0 %v6496
  %6940 = vmatprep.subr.bf16.mxu0 0
  %6941 = vmatpush1.bf16.msra.mxu0 %v6495
  %6942 = vmatprep.subr.bf16.mxu0 0
  %6943 = vmatpush2.bf16.msra.mxu0 %v6510
  %6944 = vmatprep.subr.bf16.mxu0 0
  %6945 = vmatpush2.bf16.msra.mxu0 %v6509
  %6946 = vmatprep.subr.bf16.mxu0 0
  %6947 = vmatpush2.bf16.msra.mxu0 %v6508
  %6948 = vmatprep.subr.bf16.mxu0 0
  %6949 = vmatpush2.bf16.msra.mxu0 %v6507
  %6950 = vmatprep.subr.bf16.mxu0 0
  %6951 = vmatpush2.bf16.msra.mxu0 %v6506
  %6952 = vmatprep.subr.bf16.mxu0 0
  %6953 = vmatpush2.bf16.msra.mxu0 %v6505
  %6954 = vmatprep.subr.bf16.mxu0 0
  %6955 = vmatpush2.bf16.msra.mxu0 %v6504
  %6956 = vmatprep.subr.bf16.mxu0 0
  %6957 = vmatpush2.bf16.msra.mxu0 %v6503
  %6958 = vmatprep.mubr.bf16.mxu0 %v5607
  %6959 = vmatmul.mubr.bf16.gmra.mxu0 %v5606
  %v6960 = vpop.f32.mrf.mxu0
  %v6961 = vadd.f32 %v6920, %v6960
  %v6962 = vpop.f32.mrf.mxu0
  %v6963 = vpop.f32.mrf.mxu0
  %v6964 = vadd.f32 %v6923, %v6963
  %v6965 = vpop.f32.mrf.mxu0
  %6966 = vdwg.mxu0
  %v6967 = vadd.f32 %v4934, %v6961
  %v6968 = vadd.f32 %v4935, %v6964
  %v6969 = vld [vmem:[%s63] sm:$0x1]
  %v6970 = vld [vmem:[%s65] sm:$0x1]
  %v6971 = vsel %vm179, %v6967, 0.0
  %6972 = vadd.xlane.f32.xlu0 %v6971
  %v6973 = vpop.xlane.xlu0 %6972
  %v6974 = vsel %vm179, %v6968, 0.0
  %6975 = vadd.xlane.f32.xlu0 %v6974
  %v6976 = vpop.xlane.xlu0 %6975
  %v6977 = vmul.f32 %v6973, %v1472
  %v6978 = vmul.f32 %v6976, %v1472
  %v6979 = vsub.f32 %v6967, %v6977
  %v6980 = vsub.f32 %v6968, %v6978
  %v6981 = vmul.f32 %v6979, %v6979
  %v6982 = vmul.f32 %v6980, %v6980
  %v6983 = vsel %vm179, %v6981, 0.0
  %6984 = vadd.xlane.f32.xlu0 %v6983
  %v6985 = vpop.xlane.xlu0 %6984
  %v6986 = vsel %vm179, %v6982, 0.0
  %6987 = vadd.xlane.f32.xlu0 %v6986
  %v6988 = vpop.xlane.xlu0 %6987
  %v6989 = vmul.f32 %v6985, %v1472
  %v6990 = vmul.f32 %v6988, %v1472
  %v6991 = vadd.f32 %v6989, 1e-05
  %v6992 = vadd.f32 %v6990, 1e-05
  %v6993 = vrsqrt.pop %v6991
  %v6994 = vrsqrt.pop %v6992
  %v6995 = vmul.f32 %v6979, %v6993
  %v6996 = vmul.f32 %v6980, %v6994
  %v6998 = vlaneseq
  %v6999 = vshrl.u32 %v6998, 7
  %v7000 = vsub.s32 0, %v6999
  %v7001 = vrot.slane %v6969, %v7000
  %v7003 = vmul.f32 %v6995, %v7001
  %v7004 = vmul.f32 %v6996, %v7001
  %v7006 = vlaneseq
  %v7007 = vshrl.u32 %v7006, 7
  %v7008 = vsub.s32 0, %v7007
  %v7009 = vrot.slane %v6970, %v7008
  %v7011 = vadd.f32 %v7003, %v7009
  %v7012 = vadd.f32 %v7004, %v7009
  %v7013 = vpack.c.bf16 %v7012, %v7011
  %v7014 = vld [vmem:[%s67] sm:$0xf]
  %v7015 = vld [vmem:[%s67 + $0x4] sm:$0xf]
  %v7016 = vld [vmem:[%s67 + $0x8] sm:$0xf]
  %v7017 = vld [vmem:[%s67 + $0xc] sm:$0xf]
  %v7018 = vld [vmem:[%s69] sm:$0x1]
  %v7020 = vlaneseq
  %v7021 = vshrl.u32 %v7020, 7
  %v7022 = vsub.s32 0, %v7021
  %v7023 = vrot.slane %v7018, %v7022
  %v7029 = vunpack.c.l.b16 %v7014
  %v7030 = vunpack.c.l.b16 %v7015
  %v7031 = vunpack.c.l.b16 %v7016
  %v7032 = vunpack.c.l.b16 %v7017
  %v7033 = vpack.c.b16 %v7030, %v7029
  %v7034 = vpack.c.b16 %v7032, %v7031
  %v7038 = vsel %vm179, %v7013, 0
  %7040 = vmatprep.subr.bf16.mxu0 0
  %7041 = vmatpush1.bf16.msra.mxu0 0
  %7042 = vmatprep.subr.bf16.mxu0 0
  %7043 = vmatpush1.bf16.msra.mxu0 0
  %7044 = vmatprep.subr.bf16.mxu0 0
  %7045 = vmatpush1.bf16.msra.mxu0 0
  %7046 = vmatprep.subr.bf16.mxu0 0
  %7047 = vmatpush1.bf16.msra.mxu0 0
  %7048 = vmatprep.subr.bf16.mxu0 0
  %7049 = vmatpush1.bf16.msra.mxu0 0
  %7050 = vmatprep.subr.bf16.mxu0 0
  %7051 = vmatpush1.bf16.msra.mxu0 0
  %7052 = vmatprep.subr.bf16.mxu0 0
  %7053 = vmatpush1.bf16.msra.mxu0 %v7034
  %7054 = vmatprep.subr.bf16.mxu0 0
  %7055 = vmatpush1.bf16.msra.mxu0 %v7033
  %7056 = vmatprep.subr.bf16.mxu0 0
  %7057 = vmatpush2.bf16.msra.mxu0 0
  %7058 = vmatprep.subr.bf16.mxu0 0
  %7059 = vmatpush2.bf16.msra.mxu0 0
  %7060 = vmatprep.subr.bf16.mxu0 0
  %7061 = vmatpush2.bf16.msra.mxu0 0
  %7062 = vmatprep.subr.bf16.mxu0 0
  %7063 = vmatpush2.bf16.msra.mxu0 0
  %7064 = vmatprep.subr.bf16.mxu0 0
  %7065 = vmatpush2.bf16.msra.mxu0 0
  %7066 = vmatprep.subr.bf16.mxu0 0
  %7067 = vmatpush2.bf16.msra.mxu0 0
  %7068 = vmatprep.subr.bf16.mxu0 0
  %7069 = vmatpush2.bf16.msra.mxu0 0
  %7070 = vmatprep.subr.bf16.mxu0 0
  %7071 = vmatpush2.bf16.msra.mxu0 0
  %7072 = vmatprep.mubr.bf16.mxu0 0
  %7073 = vmatmul.mubr.bf16.gmra.mxu0 %v7038
  %v7074 = vpop.f32.mrf.mxu0
  %v7075 = vadd.f32 %v7023, %v7074
  %v7076 = vpop.f32.mrf.mxu0
  %v7077 = vpop.f32.mrf.mxu0
  %v7078 = vadd.f32 %v7023, %v7077
  %v7079 = vpop.f32.mrf.mxu0
  %7080 = vdwg.mxu0
  %7081 = vst [vmem:[%s71] sm:$0xff] %v7075
  %7082 = vst [vmem:[%s71 + $0x8] sm:$0xff] %v7078
  // Predicated region
  $region142: #{transformer_net_forward.1} parent=0 // pred_check
    _
  $region143: #{transformer_net_forward.1} parent=0 // pred_check_branch
    %7084 = sbr.rel (0) target = $region145
  $region144: #{transformer_net_forward.1} parent=0 // pred_region
    _
  $region145: #{transformer_net_forward.1} parent=0 // pred_fallthru
    _
  // Predicated region
  $region146: #{transformer_net_forward.1} parent=0 // pred_check
    _
  $region147: #{transformer_net_forward.1} parent=0 // pred_check_branch
    %7086 = sbr.rel (0) target = $region149
  $region148: #{transformer_net_forward.1} parent=0 // pred_region
    _
  $region149: #{transformer_net_forward.1} parent=0 // pred_fallthru
    _

</llo_original>
